<compile_context>
chip_gen: v5e
topology: v5e:2x2
jax: 0.10.0
libtpu: 0.0.40
codegen_flags: <defaults>
</compile_context>

<pallas_src>
import jax
import jax.numpy as jnp
from jax.experimental import pallas as pl
from jax.experimental.pallas import tpu as pltpu

# Hyper-parameters fixed by Classifier(768, 101) / ClassifierGuided(num_mod)
NUM_MOD = 2
IN_DIM = 768
OUT_DIM = 101
OUT_PAD = 128               # lane-dense padded classifier width (sliced to 101)
NUM_EXPERT = 16
HIDDEN = IN_DIM // 4        # 192
TOP_K = 12
EPS = 8                     # experts per grid step (safe default on v5e/v6e/v7x)
assert NUM_EXPERT % EPS == 0
NUM_BLK = NUM_EXPERT // EPS
STACK = EPS * HIDDEN        # stacked hidden width per step (1536)


def _classifier_kernel(x_ref, wg_ref, w1_ref, b1_ref, w2_ref, b2_ref,
                       wout_ref, bout_ref, out_ref, gates_sc, acc_sc):
    """Grid: (modality [parallel], expert-block [arbitrary, reduction])."""
    e_blk = pl.program_id(1)
    n_blk = pl.num_programs(1)

    B, D = x_ref.shape
    E = wg_ref.shape[1]
    S = w1_ref.shape[1]                 # EPS * HIDDEN

    x = x_ref[...]

    # ---- first expert block of each modality: top-k softmax gate + acc init ----
    @pl.when(e_blk == 0)
    def _init():
        logits = jnp.dot(x, wg_ref[...], preferred_element_type=jnp.float32)   # (B, E)
        # Tie-safe top-k: keep column j iff (# strictly greater logits) < TOP_K.
        # TODO(synk): exact torch Gate body unavailable; noiseless top-k softmax
        # assumed and the `load` output (not returned by ClassifierGuided) omitted.
        ecol = jax.lax.broadcasted_iota(jnp.int32, (B, E), 1)
        cnt = jnp.zeros((B, E), jnp.float32)
        for e in range(NUM_EXPERT):                             # static, tiny
            v_e = jnp.sum(jnp.where(ecol == e, logits, 0.0), axis=-1, keepdims=True)
            cnt = cnt + jnp.where(v_e > logits, 1.0, 0.0)
        masked = jnp.where(cnt < TOP_K, logits, -1e30)
        m = jnp.max(masked, axis=-1, keepdims=True)
        ex = jnp.exp(masked - m)
        gates = ex / jnp.sum(ex, axis=-1, keepdims=True)        # sparse softmax gates
        gates_sc[...] = gates
        # Fold  sum_e gate_e * b2_e  into the accumulator init: removes the per-step
        # (EB,1,D) bias DMAs; b2 stays resident per modality as a tiny (E, D) block.
        acc_sc[...] = jnp.dot(gates, b2_ref[...], preferred_element_type=jnp.float32)

    # ---- EPS experts this step, fused into two lane-dense stacked matmuls ----
    xb = x.astype(jnp.bfloat16)
    h = jnp.dot(xb, w1_ref[...], preferred_element_type=jnp.float32) + b1_ref[...]
    h = jnp.maximum(h, 0.0)                                     # (B, EPS*H)

    # Spread each expert's gate over its H-wide slice of the stacked hidden.
    gates = gates_sc[...]                                       # (B, E)
    ecol = jax.lax.broadcasted_iota(jnp.int32, (B, E), 1)
    hcol = jax.lax.broadcasted_iota(jnp.int32, (B, S), 1)
    base = e_blk * EPS
    g_spread = jnp.zeros((B, S), jnp.float32)
    for j in range(EPS):                                        # static, cheap selects
        g_j = jnp.sum(jnp.where(ecol == base + j, gates, 0.0),
                      axis=-1, keepdims=True)                   # (B, 1)
        in_grp = (hcol >= j * HIDDEN) & (hcol < (j + 1) * HIDDEN)
        g_spread = jnp.where(in_grp, g_j, g_spread)

    acc_sc[...] += jnp.dot((h * g_spread).astype(jnp.bfloat16), w2_ref[...],
                           preferred_element_type=jnp.float32)

    # ---- last expert block: relu(moe) + residual, then output Linear ----
    @pl.when(e_blk == n_blk - 1)
    def _finish():
        z = jnp.maximum(acc_sc[...], 0.0) + x
        out = jnp.dot(z.astype(jnp.bfloat16), wout_ref[...],
                      preferred_element_type=jnp.float32) + bout_ref[...]
        out_ref[...] = out.astype(out_ref.dtype)                # lane-dense 128-wide store


def classifier_guided_forward(xs, pk):
    """ClassifierGuided.forward: all modalities in one fused pallas_call."""
    x = jnp.stack(xs, axis=0)                                   # (M, B, D)
    M, B, D = x.shape
    E, S, P = NUM_EXPERT, STACK, OUT_PAD
    out = pl.pallas_call(
        _classifier_kernel,
        out_shape=jax.ShapeDtypeStruct((M, B, P), jnp.float32),
        grid_spec=pltpu.PrefetchScalarGridSpec(
            num_scalar_prefetch=0,
            grid=(M, NUM_BLK),
            in_specs=[
                pl.BlockSpec((None, B, D), lambda m, e: (m, 0, 0)),          # x (resident/mod)
                # gate weight kept (D, E): ~0.4 MiB lane padding, accepted knowingly
                pl.BlockSpec((None, D, E), lambda m, e: (m, 0, 0)),
                pl.BlockSpec((None, None, D, S), lambda m, e: (m, e, 0, 0)), # W1 stack block
                pl.BlockSpec((None, None, 1, S), lambda m, e: (m, e, 0, 0)), # b1 stack block
                pl.BlockSpec((None, None, S, D), lambda m, e: (m, e, 0, 0)), # W2 stack block
                pl.BlockSpec((None, E, D), lambda m, e: (m, 0, 0)),          # b2 (resident)
                pl.BlockSpec((None, D, P), lambda m, e: (m, 0, 0)),          # out-layer W (padded)
                pl.BlockSpec((None, 1, P), lambda m, e: (m, 0, 0)),          # out-layer b (padded)
            ],
            out_specs=pl.BlockSpec((None, B, P), lambda m, e: (m, 0, 0)),
            scratch_shapes=[
                pltpu.VMEM((B, E), jnp.float32),   # gates
                pltpu.VMEM((B, D), jnp.float32),   # MoE accumulator (incl. gate-weighted b2)
            ],
        ),
        compiler_params=pltpu.CompilerParams(
            dimension_semantics=("parallel", "arbitrary"),
            # ~10.5 MiB used at EPS=8 (double-buffered 2x4.7 MiB stacked weights +
            # residents); explicit limit leaves headroom on all generations.
            vmem_limit_bytes=32 * 1024 * 1024),
    )(x, pk["w_gate"], pk["w1s"], pk["b1s"], pk["w2s"], pk["b2"],
      pk["w_out"], pk["b_out"])
    return [out[i, :, :OUT_DIM] for i in range(M)]


def init_classifier_guided_params(key):
    """Logical per-expert params (stacked over modality); big weights bf16."""
    ks = jax.random.split(key, 7)
    s = 0.02
    M, E, D, H, C = NUM_MOD, NUM_EXPERT, IN_DIM, HIDDEN, OUT_DIM
    return {
        "w_gate": jax.random.normal(ks[0], (M, D, E), jnp.float32) * s,
        "w1": (jax.random.normal(ks[1], (M, E, D, H), jnp.float32) * s).astype(jnp.bfloat16),
        "b1": jax.random.normal(ks[2], (M, E, H), jnp.float32) * s,
        "w2": (jax.random.normal(ks[3], (M, E, H, D), jnp.float32) * s).astype(jnp.bfloat16),
        "b2": jax.random.normal(ks[4], (M, E, D), jnp.float32) * s,
        "w_out": (jax.random.normal(ks[5], (M, D, C), jnp.float32) * s).astype(jnp.bfloat16),
        "b_out": jax.random.normal(ks[6], (M, 1, C), jnp.float32) * s,
    }


def pack_params(p):
    """One-time host-side packing into the kernel layout (stacked expert blocks)."""
    M, E, D, H, C = NUM_MOD, NUM_EXPERT, IN_DIM, HIDDEN, OUT_DIM
    NB, S = NUM_BLK, STACK
    w1s = (p["w1"].reshape(M, NB, EPS, D, H)
                   .transpose(0, 1, 3, 2, 4)
                   .reshape(M, NB, D, S))                       # (M, NB, D, EPS*H) bf16
    b1s = p["b1"].reshape(M, NB, 1, S)                          # (M, NB, 1, EPS*H) f32
    w2s = p["w2"].reshape(M, NB, S, D)                          # (M, NB, EPS*H, D) bf16
    w_out = jnp.zeros((M, D, OUT_PAD), jnp.bfloat16).at[:, :, :C].set(p["w_out"])
    b_out = jnp.zeros((M, 1, OUT_PAD), jnp.float32).at[:, :, :C].set(p["b_out"])
    return {"w_gate": p["w_gate"], "w1s": w1s, "b1s": b1s, "w2s": w2s,
            "b2": p["b2"], "w_out": w_out, "b_out": b_out}


def classifier_ref(x, p, m):
    """Pure-JAX f32 reference for modality m (weights upcast from stored bf16)."""
    logits = x @ p["w_gate"][m]
    top_vals, _ = jax.lax.top_k(logits, TOP_K)
    thresh = top_vals[:, -1:]
    gates = jax.nn.softmax(jnp.where(logits >= thresh, logits, -jnp.inf), axis=-1)
    moe = jnp.zeros_like(x)
    for e in range(NUM_EXPERT):
        w1 = p["w1"][m, e].astype(jnp.float32)
        w2 = p["w2"][m, e].astype(jnp.float32)
        h = jax.nn.relu(x @ w1 + p["b1"][m, e])
        moe = moe + gates[:, e:e + 1] * (h @ w2 + p["b2"][m, e])
    z = jax.nn.relu(moe) + x
    return z @ p["w_out"][m].astype(jnp.float32) + p["b_out"][m]


if __name__ == "__main__":
    key = jax.random.PRNGKey(0)
    k_x, k_p = jax.random.split(key)
    B = 2
    xs = [jax.random.normal(jax.random.fold_in(k_x, i), (B, IN_DIM), jnp.float32)
          for i in range(NUM_MOD)]
    params = init_classifier_guided_params(k_p)
    packed = pack_params(params)

    outs = classifier_guided_forward(xs, packed)
    outs = jax.block_until_ready(outs)

    for i in range(NUM_MOD):
        ref = classifier_ref(xs[i], params, i)
        assert outs[i].shape == (B, OUT_DIM)
        if not jnp.allclose(outs[i], ref, atol=2e-2, rtol=2e-2):
            err = jnp.max(jnp.abs(outs[i] - ref))
            raise AssertionError(f"modality {i}: kernel output mismatch vs reference "
                                 f"(max abs err {err})")

    print("KERNEL_OK")
</pallas_src>

<mosaic_0001>
module attributes {stable_mosaic.version = 11 : i64} {
  func.func @_classifier_kernel(%arg0: i32, %arg1: i32, %arg2: memref<1x2x768xf32, #tpu.memory_space<vmem>>, %arg3: memref<1x768x16xf32, #tpu.memory_space<vmem>>, %arg4: memref<1x1x768x1536xbf16, #tpu.memory_space<vmem>>, %arg5: memref<1x1x1x1536xf32, #tpu.memory_space<vmem>>, %arg6: memref<1x1x1536x768xbf16, #tpu.memory_space<vmem>>, %arg7: memref<1x16x768xf32, #tpu.memory_space<vmem>>, %arg8: memref<1x768x128xbf16, #tpu.memory_space<vmem>>, %arg9: memref<1x1x128xf32, #tpu.memory_space<vmem>>, %arg10: memref<1x2x128xf32, #tpu.memory_space<vmem>>, %arg11: memref<2x16xf32, #tpu.memory_space<vmem>>, %arg12: memref<2x768xf32, #tpu.memory_space<vmem>>) attributes {dimension_semantics = [#tpu.dimension_semantics<parallel>, #tpu.dimension_semantics<arbitrary>], iteration_bounds = array<i64: 2, 2>, scalar_prefetch = 0 : i64, scratch_operands = 2 : i64, tpu.core_type = #tpu.core_type<tc>, window_params = [{transform_indices = @transform_0, window_bounds = array<i64: 1, 2, 768>}, {transform_indices = @transform_1, window_bounds = array<i64: 1, 768, 16>}, {transform_indices = @transform_2, window_bounds = array<i64: 1, 1, 768, 1536>}, {transform_indices = @transform_3, window_bounds = array<i64: 1, 1, 1, 1536>}, {transform_indices = @transform_4, window_bounds = array<i64: 1, 1, 1536, 768>}, {transform_indices = @transform_5, window_bounds = array<i64: 1, 16, 768>}, {transform_indices = @transform_6, window_bounds = array<i64: 1, 768, 128>}, {transform_indices = @transform_7, window_bounds = array<i64: 1, 1, 128>}, {transform_indices = @transform_8, window_bounds = array<i64: 1, 2, 128>}]} {
    %c0 = arith.constant 0 : index
    %c0_0 = arith.constant 0 : index
    %c0_1 = arith.constant 0 : index
    %0 = vector.load %arg2[%c0, %c0_0, %c0_1] : memref<1x2x768xf32, #tpu.memory_space<vmem>>, vector<1x2x768xf32>
    %1 = vector.shape_cast %0 : vector<1x2x768xf32> to vector<2x768xf32>
    %c0_i32 = arith.constant 0 : i32
    %2 = arith.cmpi eq, %arg1, %c0_i32 : i32
    %3 = arith.extui %2 : i1 to i32
    %c0_i32_2 = arith.constant 0 : i32
    %4 = arith.cmpi ne, %3, %c0_i32_2 : i32
    scf.if %4 {
      %c0_51 = arith.constant 0 : index
      %c0_52 = arith.constant 0 : index
      %c0_53 = arith.constant 0 : index
      %151 = vector.load %arg3[%c0_51, %c0_52, %c0_53] : memref<1x768x16xf32, #tpu.memory_space<vmem>>, vector<1x768x16xf32>
      %152 = vector.shape_cast %151 : vector<1x768x16xf32> to vector<768x16xf32>
      %cst_54 = arith.constant dense<0.000000e+00> : vector<2x16xf32>
      %153 = tpu.matmul %1, %152, %cst_54 {dimension_numbers = #tpu.dot_dimension_numbers<[1], [0], [0], [1], [0, 0, 1, 1], [], []>} : vector<2x768xf32>, vector<768x16xf32>, vector<2x16xf32> -> vector<2x16xf32>
      %154 = tpu.iota {dimensions = array<i32: 1>} : vector<2x16xi32>
      %cst_55 = arith.constant 0.000000e+00 : f32
      %155 = vector.broadcast %cst_55 : f32 to vector<2x16xf32>
      %c0_i32_56 = arith.constant 0 : i32
      %156 = vector.broadcast %c0_i32_56 : i32 to vector<2x16xi32>
      %157 = arith.cmpi eq, %154, %156 : vector<2x16xi32>
      %cst_57 = arith.constant 0.000000e+00 : f32
      %158 = vector.broadcast %cst_57 : f32 to vector<2x16xf32>
      %159 = arith.select %157, %153, %158 : vector<2x16xi1>, vector<2x16xf32>
      %cst_58 = arith.constant dense<0.000000e+00> : vector<2xf32>
      %160 = vector.multi_reduction <add>, %159, %cst_58 [1] : vector<2x16xf32> to vector<2xf32>
      %161 = vector.shape_cast %160 : vector<2xf32> to vector<2x1xf32>
      %162 = vector.broadcast %161 : vector<2x1xf32> to vector<2x16xf32>
      %163 = arith.cmpf ogt, %162, %153 : vector<2x16xf32>
      %cst_59 = arith.constant 1.000000e+00 : f32
      %cst_60 = arith.constant 0.000000e+00 : f32
      %164 = vector.broadcast %cst_59 : f32 to vector<2x16xf32>
      %165 = vector.broadcast %cst_60 : f32 to vector<2x16xf32>
      %166 = arith.select %163, %164, %165 : vector<2x16xi1>, vector<2x16xf32>
      %167 = arith.addf %155, %166 : vector<2x16xf32>
      %c1_i32_61 = arith.constant 1 : i32
      %168 = vector.broadcast %c1_i32_61 : i32 to vector<2x16xi32>
      %169 = arith.cmpi eq, %154, %168 : vector<2x16xi32>
      %cst_62 = arith.constant 0.000000e+00 : f32
      %170 = vector.broadcast %cst_62 : f32 to vector<2x16xf32>
      %171 = arith.select %169, %153, %170 : vector<2x16xi1>, vector<2x16xf32>
      %cst_63 = arith.constant dense<0.000000e+00> : vector<2xf32>
      %172 = vector.multi_reduction <add>, %171, %cst_63 [1] : vector<2x16xf32> to vector<2xf32>
      %173 = vector.shape_cast %172 : vector<2xf32> to vector<2x1xf32>
      %174 = vector.broadcast %173 : vector<2x1xf32> to vector<2x16xf32>
      %175 = arith.cmpf ogt, %174, %153 : vector<2x16xf32>
      %cst_64 = arith.constant 1.000000e+00 : f32
      %cst_65 = arith.constant 0.000000e+00 : f32
      %176 = vector.broadcast %cst_64 : f32 to vector<2x16xf32>
      %177 = vector.broadcast %cst_65 : f32 to vector<2x16xf32>
      %178 = arith.select %175, %176, %177 : vector<2x16xi1>, vector<2x16xf32>
      %179 = arith.addf %167, %178 : vector<2x16xf32>
      %c2_i32_66 = arith.constant 2 : i32
      %180 = vector.broadcast %c2_i32_66 : i32 to vector<2x16xi32>
      %181 = arith.cmpi eq, %154, %180 : vector<2x16xi32>
      %cst_67 = arith.constant 0.000000e+00 : f32
      %182 = vector.broadcast %cst_67 : f32 to vector<2x16xf32>
      %183 = arith.select %181, %153, %182 : vector<2x16xi1>, vector<2x16xf32>
      %cst_68 = arith.constant dense<0.000000e+00> : vector<2xf32>
      %184 = vector.multi_reduction <add>, %183, %cst_68 [1] : vector<2x16xf32> to vector<2xf32>
      %185 = vector.shape_cast %184 : vector<2xf32> to vector<2x1xf32>
      %186 = vector.broadcast %185 : vector<2x1xf32> to vector<2x16xf32>
      %187 = arith.cmpf ogt, %186, %153 : vector<2x16xf32>
      %cst_69 = arith.constant 1.000000e+00 : f32
      %cst_70 = arith.constant 0.000000e+00 : f32
      %188 = vector.broadcast %cst_69 : f32 to vector<2x16xf32>
      %189 = vector.broadcast %cst_70 : f32 to vector<2x16xf32>
      %190 = arith.select %187, %188, %189 : vector<2x16xi1>, vector<2x16xf32>
      %191 = arith.addf %179, %190 : vector<2x16xf32>
      %c3_i32_71 = arith.constant 3 : i32
      %192 = vector.broadcast %c3_i32_71 : i32 to vector<2x16xi32>
      %193 = arith.cmpi eq, %154, %192 : vector<2x16xi32>
      %cst_72 = arith.constant 0.000000e+00 : f32
      %194 = vector.broadcast %cst_72 : f32 to vector<2x16xf32>
      %195 = arith.select %193, %153, %194 : vector<2x16xi1>, vector<2x16xf32>
      %cst_73 = arith.constant dense<0.000000e+00> : vector<2xf32>
      %196 = vector.multi_reduction <add>, %195, %cst_73 [1] : vector<2x16xf32> to vector<2xf32>
      %197 = vector.shape_cast %196 : vector<2xf32> to vector<2x1xf32>
      %198 = vector.broadcast %197 : vector<2x1xf32> to vector<2x16xf32>
      %199 = arith.cmpf ogt, %198, %153 : vector<2x16xf32>
      %cst_74 = arith.constant 1.000000e+00 : f32
      %cst_75 = arith.constant 0.000000e+00 : f32
      %200 = vector.broadcast %cst_74 : f32 to vector<2x16xf32>
      %201 = vector.broadcast %cst_75 : f32 to vector<2x16xf32>
      %202 = arith.select %199, %200, %201 : vector<2x16xi1>, vector<2x16xf32>
      %203 = arith.addf %191, %202 : vector<2x16xf32>
      %c4_i32_76 = arith.constant 4 : i32
      %204 = vector.broadcast %c4_i32_76 : i32 to vector<2x16xi32>
      %205 = arith.cmpi eq, %154, %204 : vector<2x16xi32>
      %cst_77 = arith.constant 0.000000e+00 : f32
      %206 = vector.broadcast %cst_77 : f32 to vector<2x16xf32>
      %207 = arith.select %205, %153, %206 : vector<2x16xi1>, vector<2x16xf32>
      %cst_78 = arith.constant dense<0.000000e+00> : vector<2xf32>
      %208 = vector.multi_reduction <add>, %207, %cst_78 [1] : vector<2x16xf32> to vector<2xf32>
      %209 = vector.shape_cast %208 : vector<2xf32> to vector<2x1xf32>
      %210 = vector.broadcast %209 : vector<2x1xf32> to vector<2x16xf32>
      %211 = arith.cmpf ogt, %210, %153 : vector<2x16xf32>
      %cst_79 = arith.constant 1.000000e+00 : f32
      %cst_80 = arith.constant 0.000000e+00 : f32
      %212 = vector.broadcast %cst_79 : f32 to vector<2x16xf32>
      %213 = vector.broadcast %cst_80 : f32 to vector<2x16xf32>
      %214 = arith.select %211, %212, %213 : vector<2x16xi1>, vector<2x16xf32>
      %215 = arith.addf %203, %214 : vector<2x16xf32>
      %c5_i32_81 = arith.constant 5 : i32
      %216 = vector.broadcast %c5_i32_81 : i32 to vector<2x16xi32>
      %217 = arith.cmpi eq, %154, %216 : vector<2x16xi32>
      %cst_82 = arith.constant 0.000000e+00 : f32
      %218 = vector.broadcast %cst_82 : f32 to vector<2x16xf32>
      %219 = arith.select %217, %153, %218 : vector<2x16xi1>, vector<2x16xf32>
      %cst_83 = arith.constant dense<0.000000e+00> : vector<2xf32>
      %220 = vector.multi_reduction <add>, %219, %cst_83 [1] : vector<2x16xf32> to vector<2xf32>
      %221 = vector.shape_cast %220 : vector<2xf32> to vector<2x1xf32>
      %222 = vector.broadcast %221 : vector<2x1xf32> to vector<2x16xf32>
      %223 = arith.cmpf ogt, %222, %153 : vector<2x16xf32>
      %cst_84 = arith.constant 1.000000e+00 : f32
      %cst_85 = arith.constant 0.000000e+00 : f32
      %224 = vector.broadcast %cst_84 : f32 to vector<2x16xf32>
      %225 = vector.broadcast %cst_85 : f32 to vector<2x16xf32>
      %226 = arith.select %223, %224, %225 : vector<2x16xi1>, vector<2x16xf32>
      %227 = arith.addf %215, %226 : vector<2x16xf32>
      %c6_i32_86 = arith.constant 6 : i32
      %228 = vector.broadcast %c6_i32_86 : i32 to vector<2x16xi32>
      %229 = arith.cmpi eq, %154, %228 : vector<2x16xi32>
      %cst_87 = arith.constant 0.000000e+00 : f32
      %230 = vector.broadcast %cst_87 : f32 to vector<2x16xf32>
      %231 = arith.select %229, %153, %230 : vector<2x16xi1>, vector<2x16xf32>
      %cst_88 = arith.constant dense<0.000000e+00> : vector<2xf32>
      %232 = vector.multi_reduction <add>, %231, %cst_88 [1] : vector<2x16xf32> to vector<2xf32>
      %233 = vector.shape_cast %232 : vector<2xf32> to vector<2x1xf32>
      %234 = vector.broadcast %233 : vector<2x1xf32> to vector<2x16xf32>
      %235 = arith.cmpf ogt, %234, %153 : vector<2x16xf32>
      %cst_89 = arith.constant 1.000000e+00 : f32
      %cst_90 = arith.constant 0.000000e+00 : f32
      %236 = vector.broadcast %cst_89 : f32 to vector<2x16xf32>
      %237 = vector.broadcast %cst_90 : f32 to vector<2x16xf32>
      %238 = arith.select %235, %236, %237 : vector<2x16xi1>, vector<2x16xf32>
      %239 = arith.addf %227, %238 : vector<2x16xf32>
      %c7_i32_91 = arith.constant 7 : i32
      %240 = vector.broadcast %c7_i32_91 : i32 to vector<2x16xi32>
      %241 = arith.cmpi eq, %154, %240 : vector<2x16xi32>
      %cst_92 = arith.constant 0.000000e+00 : f32
      %242 = vector.broadcast %cst_92 : f32 to vector<2x16xf32>
      %243 = arith.select %241, %153, %242 : vector<2x16xi1>, vector<2x16xf32>
      %cst_93 = arith.constant dense<0.000000e+00> : vector<2xf32>
      %244 = vector.multi_reduction <add>, %243, %cst_93 [1] : vector<2x16xf32> to vector<2xf32>
      %245 = vector.shape_cast %244 : vector<2xf32> to vector<2x1xf32>
      %246 = vector.broadcast %245 : vector<2x1xf32> to vector<2x16xf32>
      %247 = arith.cmpf ogt, %246, %153 : vector<2x16xf32>
      %cst_94 = arith.constant 1.000000e+00 : f32
      %cst_95 = arith.constant 0.000000e+00 : f32
      %248 = vector.broadcast %cst_94 : f32 to vector<2x16xf32>
      %249 = vector.broadcast %cst_95 : f32 to vector<2x16xf32>
      %250 = arith.select %247, %248, %249 : vector<2x16xi1>, vector<2x16xf32>
      %251 = arith.addf %239, %250 : vector<2x16xf32>
      %c8_i32_96 = arith.constant 8 : i32
      %252 = vector.broadcast %c8_i32_96 : i32 to vector<2x16xi32>
      %253 = arith.cmpi eq, %154, %252 : vector<2x16xi32>
      %cst_97 = arith.constant 0.000000e+00 : f32
      %254 = vector.broadcast %cst_97 : f32 to vector<2x16xf32>
      %255 = arith.select %253, %153, %254 : vector<2x16xi1>, vector<2x16xf32>
      %cst_98 = arith.constant dense<0.000000e+00> : vector<2xf32>
      %256 = vector.multi_reduction <add>, %255, %cst_98 [1] : vector<2x16xf32> to vector<2xf32>
      %257 = vector.shape_cast %256 : vector<2xf32> to vector<2x1xf32>
      %258 = vector.broadcast %257 : vector<2x1xf32> to vector<2x16xf32>
      %259 = arith.cmpf ogt, %258, %153 : vector<2x16xf32>
      %cst_99 = arith.constant 1.000000e+00 : f32
      %cst_100 = arith.constant 0.000000e+00 : f32
      %260 = vector.broadcast %cst_99 : f32 to vector<2x16xf32>
      %261 = vector.broadcast %cst_100 : f32 to vector<2x16xf32>
      %262 = arith.select %259, %260, %261 : vector<2x16xi1>, vector<2x16xf32>
      %263 = arith.addf %251, %262 : vector<2x16xf32>
      %c9_i32 = arith.constant 9 : i32
      %264 = vector.broadcast %c9_i32 : i32 to vector<2x16xi32>
      %265 = arith.cmpi eq, %154, %264 : vector<2x16xi32>
      %cst_101 = arith.constant 0.000000e+00 : f32
      %266 = vector.broadcast %cst_101 : f32 to vector<2x16xf32>
      %267 = arith.select %265, %153, %266 : vector<2x16xi1>, vector<2x16xf32>
      %cst_102 = arith.constant dense<0.000000e+00> : vector<2xf32>
      %268 = vector.multi_reduction <add>, %267, %cst_102 [1] : vector<2x16xf32> to vector<2xf32>
      %269 = vector.shape_cast %268 : vector<2xf32> to vector<2x1xf32>
      %270 = vector.broadcast %269 : vector<2x1xf32> to vector<2x16xf32>
      %271 = arith.cmpf ogt, %270, %153 : vector<2x16xf32>
      %cst_103 = arith.constant 1.000000e+00 : f32
      %cst_104 = arith.constant 0.000000e+00 : f32
      %272 = vector.broadcast %cst_103 : f32 to vector<2x16xf32>
      %273 = vector.broadcast %cst_104 : f32 to vector<2x16xf32>
      %274 = arith.select %271, %272, %273 : vector<2x16xi1>, vector<2x16xf32>
      %275 = arith.addf %263, %274 : vector<2x16xf32>
      %c10_i32 = arith.constant 10 : i32
      %276 = vector.broadcast %c10_i32 : i32 to vector<2x16xi32>
      %277 = arith.cmpi eq, %154, %276 : vector<2x16xi32>
      %cst_105 = arith.constant 0.000000e+00 : f32
      %278 = vector.broadcast %cst_105 : f32 to vector<2x16xf32>
      %279 = arith.select %277, %153, %278 : vector<2x16xi1>, vector<2x16xf32>
      %cst_106 = arith.constant dense<0.000000e+00> : vector<2xf32>
      %280 = vector.multi_reduction <add>, %279, %cst_106 [1] : vector<2x16xf32> to vector<2xf32>
      %281 = vector.shape_cast %280 : vector<2xf32> to vector<2x1xf32>
      %282 = vector.broadcast %281 : vector<2x1xf32> to vector<2x16xf32>
      %283 = arith.cmpf ogt, %282, %153 : vector<2x16xf32>
      %cst_107 = arith.constant 1.000000e+00 : f32
      %cst_108 = arith.constant 0.000000e+00 : f32
      %284 = vector.broadcast %cst_107 : f32 to vector<2x16xf32>
      %285 = vector.broadcast %cst_108 : f32 to vector<2x16xf32>
      %286 = arith.select %283, %284, %285 : vector<2x16xi1>, vector<2x16xf32>
      %287 = arith.addf %275, %286 : vector<2x16xf32>
      %c11_i32 = arith.constant 11 : i32
      %288 = vector.broadcast %c11_i32 : i32 to vector<2x16xi32>
      %289 = arith.cmpi eq, %154, %288 : vector<2x16xi32>
      %cst_109 = arith.constant 0.000000e+00 : f32
      %290 = vector.broadcast %cst_109 : f32 to vector<2x16xf32>
      %291 = arith.select %289, %153, %290 : vector<2x16xi1>, vector<2x16xf32>
      %cst_110 = arith.constant dense<0.000000e+00> : vector<2xf32>
      %292 = vector.multi_reduction <add>, %291, %cst_110 [1] : vector<2x16xf32> to vector<2xf32>
      %293 = vector.shape_cast %292 : vector<2xf32> to vector<2x1xf32>
      %294 = vector.broadcast %293 : vector<2x1xf32> to vector<2x16xf32>
      %295 = arith.cmpf ogt, %294, %153 : vector<2x16xf32>
      %cst_111 = arith.constant 1.000000e+00 : f32
      %cst_112 = arith.constant 0.000000e+00 : f32
      %296 = vector.broadcast %cst_111 : f32 to vector<2x16xf32>
      %297 = vector.broadcast %cst_112 : f32 to vector<2x16xf32>
      %298 = arith.select %295, %296, %297 : vector<2x16xi1>, vector<2x16xf32>
      %299 = arith.addf %287, %298 : vector<2x16xf32>
      %c12_i32 = arith.constant 12 : i32
      %300 = vector.broadcast %c12_i32 : i32 to vector<2x16xi32>
      %301 = arith.cmpi eq, %154, %300 : vector<2x16xi32>
      %cst_113 = arith.constant 0.000000e+00 : f32
      %302 = vector.broadcast %cst_113 : f32 to vector<2x16xf32>
      %303 = arith.select %301, %153, %302 : vector<2x16xi1>, vector<2x16xf32>
      %cst_114 = arith.constant dense<0.000000e+00> : vector<2xf32>
      %304 = vector.multi_reduction <add>, %303, %cst_114 [1] : vector<2x16xf32> to vector<2xf32>
      %305 = vector.shape_cast %304 : vector<2xf32> to vector<2x1xf32>
      %306 = vector.broadcast %305 : vector<2x1xf32> to vector<2x16xf32>
      %307 = arith.cmpf ogt, %306, %153 : vector<2x16xf32>
      %cst_115 = arith.constant 1.000000e+00 : f32
      %cst_116 = arith.constant 0.000000e+00 : f32
      %308 = vector.broadcast %cst_115 : f32 to vector<2x16xf32>
      %309 = vector.broadcast %cst_116 : f32 to vector<2x16xf32>
      %310 = arith.select %307, %308, %309 : vector<2x16xi1>, vector<2x16xf32>
      %311 = arith.addf %299, %310 : vector<2x16xf32>
      %c13_i32 = arith.constant 13 : i32
      %312 = vector.broadcast %c13_i32 : i32 to vector<2x16xi32>
      %313 = arith.cmpi eq, %154, %312 : vector<2x16xi32>
      %cst_117 = arith.constant 0.000000e+00 : f32
      %314 = vector.broadcast %cst_117 : f32 to vector<2x16xf32>
      %315 = arith.select %313, %153, %314 : vector<2x16xi1>, vector<2x16xf32>
      %cst_118 = arith.constant dense<0.000000e+00> : vector<2xf32>
      %316 = vector.multi_reduction <add>, %315, %cst_118 [1] : vector<2x16xf32> to vector<2xf32>
      %317 = vector.shape_cast %316 : vector<2xf32> to vector<2x1xf32>
      %318 = vector.broadcast %317 : vector<2x1xf32> to vector<2x16xf32>
      %319 = arith.cmpf ogt, %318, %153 : vector<2x16xf32>
      %cst_119 = arith.constant 1.000000e+00 : f32
      %cst_120 = arith.constant 0.000000e+00 : f32
      %320 = vector.broadcast %cst_119 : f32 to vector<2x16xf32>
      %321 = vector.broadcast %cst_120 : f32 to vector<2x16xf32>
      %322 = arith.select %319, %320, %321 : vector<2x16xi1>, vector<2x16xf32>
      %323 = arith.addf %311, %322 : vector<2x16xf32>
      %c14_i32 = arith.constant 14 : i32
      %324 = vector.broadcast %c14_i32 : i32 to vector<2x16xi32>
      %325 = arith.cmpi eq, %154, %324 : vector<2x16xi32>
      %cst_121 = arith.constant 0.000000e+00 : f32
      %326 = vector.broadcast %cst_121 : f32 to vector<2x16xf32>
      %327 = arith.select %325, %153, %326 : vector<2x16xi1>, vector<2x16xf32>
      %cst_122 = arith.constant dense<0.000000e+00> : vector<2xf32>
      %328 = vector.multi_reduction <add>, %327, %cst_122 [1] : vector<2x16xf32> to vector<2xf32>
      %329 = vector.shape_cast %328 : vector<2xf32> to vector<2x1xf32>
      %330 = vector.broadcast %329 : vector<2x1xf32> to vector<2x16xf32>
      %331 = arith.cmpf ogt, %330, %153 : vector<2x16xf32>
      %cst_123 = arith.constant 1.000000e+00 : f32
      %cst_124 = arith.constant 0.000000e+00 : f32
      %332 = vector.broadcast %cst_123 : f32 to vector<2x16xf32>
      %333 = vector.broadcast %cst_124 : f32 to vector<2x16xf32>
      %334 = arith.select %331, %332, %333 : vector<2x16xi1>, vector<2x16xf32>
      %335 = arith.addf %323, %334 : vector<2x16xf32>
      %c15_i32 = arith.constant 15 : i32
      %336 = vector.broadcast %c15_i32 : i32 to vector<2x16xi32>
      %337 = arith.cmpi eq, %154, %336 : vector<2x16xi32>
      %cst_125 = arith.constant 0.000000e+00 : f32
      %338 = vector.broadcast %cst_125 : f32 to vector<2x16xf32>
      %339 = arith.select %337, %153, %338 : vector<2x16xi1>, vector<2x16xf32>
      %cst_126 = arith.constant dense<0.000000e+00> : vector<2xf32>
      %340 = vector.multi_reduction <add>, %339, %cst_126 [1] : vector<2x16xf32> to vector<2xf32>
      %341 = vector.shape_cast %340 : vector<2xf32> to vector<2x1xf32>
      %342 = vector.broadcast %341 : vector<2x1xf32> to vector<2x16xf32>
      %343 = arith.cmpf ogt, %342, %153 : vector<2x16xf32>
      %cst_127 = arith.constant 1.000000e+00 : f32
      %cst_128 = arith.constant 0.000000e+00 : f32
      %344 = vector.broadcast %cst_127 : f32 to vector<2x16xf32>
      %345 = vector.broadcast %cst_128 : f32 to vector<2x16xf32>
      %346 = arith.select %343, %344, %345 : vector<2x16xi1>, vector<2x16xf32>
      %347 = arith.addf %335, %346 : vector<2x16xf32>
      %cst_129 = arith.constant 1.200000e+01 : f32
      %348 = vector.broadcast %cst_129 : f32 to vector<2x16xf32>
      %349 = arith.cmpf olt, %347, %348 : vector<2x16xf32>
      %cst_130 = arith.constant -1.000000e+30 : f32
      %350 = vector.broadcast %cst_130 : f32 to vector<2x16xf32>
      %351 = arith.select %349, %153, %350 : vector<2x16xi1>, vector<2x16xf32>
      %cst_131 = arith.constant dense<0xFF800000> : vector<2xf32>
      %352 = vector.multi_reduction <maximumf>, %351, %cst_131 [1] : vector<2x16xf32> to vector<2xf32>
      %353 = vector.shape_cast %352 : vector<2xf32> to vector<2x1xf32>
      %354 = vector.broadcast %353 : vector<2x1xf32> to vector<2x16xf32>
      %355 = arith.subf %351, %354 : vector<2x16xf32>
      %356 = math.exp %355 : vector<2x16xf32>
      %cst_132 = arith.constant dense<0.000000e+00> : vector<2xf32>
      %357 = vector.multi_reduction <add>, %356, %cst_132 [1] : vector<2x16xf32> to vector<2xf32>
      %358 = vector.shape_cast %357 : vector<2xf32> to vector<2x1xf32>
      %359 = vector.broadcast %358 : vector<2x1xf32> to vector<2x16xf32>
      %360 = arith.divf %356, %359 : vector<2x16xf32>
      %c0_133 = arith.constant 0 : index
      %c0_134 = arith.constant 0 : index
      %361 = vector.load %arg11[%c0_133, %c0_134] : memref<2x16xf32, #tpu.memory_space<vmem>>, vector<2x16xf32>
      tpu.vector_store %arg11[%c0_133, %c0_134], %360 {strides = array<i32>} : memref<2x16xf32, #tpu.memory_space<vmem>>, vector<2x16xf32>,
      %c0_135 = arith.constant 0 : index
      %c0_136 = arith.constant 0 : index
      %c0_137 = arith.constant 0 : index
      %362 = vector.load %arg7[%c0_135, %c0_136, %c0_137] : memref<1x16x768xf32, #tpu.memory_space<vmem>>, vector<1x16x768xf32>
      %363 = vector.shape_cast %362 : vector<1x16x768xf32> to vector<16x768xf32>
      %cst_138 = arith.constant dense<0.000000e+00> : vector<2x768xf32>
      %364 = tpu.matmul %360, %363, %cst_138 {dimension_numbers = #tpu.dot_dimension_numbers<[1], [0], [0], [1], [0, 0, 1, 1], [], []>} : vector<2x16xf32>, vector<16x768xf32>, vector<2x768xf32> -> vector<2x768xf32>
      %c0_139 = arith.constant 0 : index
      %c0_140 = arith.constant 0 : index
      %365 = vector.load %arg12[%c0_139, %c0_140] : memref<2x768xf32, #tpu.memory_space<vmem>>, vector<2x768xf32>
      tpu.vector_store %arg12[%c0_139, %c0_140], %364 {strides = array<i32>} : memref<2x768xf32, #tpu.memory_space<vmem>>, vector<2x768xf32>,
    } else {
    }
    %5 = arith.truncf %1 : vector<2x768xf32> to vector<2x768xbf16>
    %c0_3 = arith.constant 0 : index
    %c0_4 = arith.constant 0 : index
    %c0_5 = arith.constant 0 : index
    %c0_6 = arith.constant 0 : index
    %6 = vector.load %arg4[%c0_3, %c0_4, %c0_5, %c0_6] : memref<1x1x768x1536xbf16, #tpu.memory_space<vmem>>, vector<1x1x768x1536xbf16>
    %7 = vector.shape_cast %6 : vector<1x1x768x1536xbf16> to vector<768x1536xbf16>
    %cst = arith.constant dense<0.000000e+00> : vector<2x1536xf32>
    %8 = tpu.matmul %5, %7, %cst {dimension_numbers = #tpu.dot_dimension_numbers<[1], [0], [0], [1], [0, 0, 1, 1], [], []>} : vector<2x768xbf16>, vector<768x1536xbf16>, vector<2x1536xf32> -> vector<2x1536xf32>
    %c0_7 = arith.constant 0 : index
    %c0_8 = arith.constant 0 : index
    %c0_9 = arith.constant 0 : index
    %c0_10 = arith.constant 0 : index
    %9 = vector.load %arg5[%c0_7, %c0_8, %c0_9, %c0_10] : memref<1x1x1x1536xf32, #tpu.memory_space<vmem>>, vector<1x1x1x1536xf32>
    %10 = vector.shape_cast %9 : vector<1x1x1x1536xf32> to vector<1x1536xf32>
    %11 = vector.broadcast %10 : vector<1x1536xf32> to vector<2x1536xf32>
    %12 = arith.addf %8, %11 : vector<2x1536xf32>
    %cst_11 = arith.constant 0.000000e+00 : f32
    %13 = vector.broadcast %cst_11 : f32 to vector<2x1536xf32>
    %14 = arith.maximumf %12, %13 : vector<2x1536xf32>
    %c0_12 = arith.constant 0 : index
    %c0_13 = arith.constant 0 : index
    %15 = vector.load %arg11[%c0_12, %c0_13] : memref<2x16xf32, #tpu.memory_space<vmem>>, vector<2x16xf32>
    %16 = tpu.iota {dimensions = array<i32: 1>} : vector<2x16xi32>
    %17 = tpu.iota {dimensions = array<i32: 1>} : vector<2x1536xi32>
    %c8_i32 = arith.constant 8 : i32
    %18 = arith.muli %arg1, %c8_i32 : i32
    %cst_14 = arith.constant 0.000000e+00 : f32
    %19 = vector.broadcast %cst_14 : f32 to vector<2x1536xf32>
    %c0_i32_15 = arith.constant 0 : i32
    %20 = arith.addi %18, %c0_i32_15 : i32
    %21 = vector.broadcast %20 : i32 to vector<2x16xi32>
    %22 = arith.cmpi eq, %16, %21 : vector<2x16xi32>
    %cst_16 = arith.constant 0.000000e+00 : f32
    %23 = vector.broadcast %cst_16 : f32 to vector<2x16xf32>
    %24 = arith.select %22, %15, %23 : vector<2x16xi1>, vector<2x16xf32>
    %cst_17 = arith.constant dense<0.000000e+00> : vector<2xf32>
    %25 = vector.multi_reduction <add>, %24, %cst_17 [1] : vector<2x16xf32> to vector<2xf32>
    %26 = vector.shape_cast %25 : vector<2xf32> to vector<2x1xf32>
    %c0_i32_18 = arith.constant 0 : i32
    %27 = vector.broadcast %c0_i32_18 : i32 to vector<2x1536xi32>
    %28 = arith.cmpi sge, %17, %27 : vector<2x1536xi32>
    %c192_i32 = arith.constant 192 : i32
    %29 = vector.broadcast %c192_i32 : i32 to vector<2x1536xi32>
    %30 = arith.cmpi slt, %17, %29 : vector<2x1536xi32>
    %31 = arith.andi %28, %30 : vector<2x1536xi1>
    %32 = vector.shape_cast %26 : vector<2x1xf32> to vector<2x1xf32>
    %33 = vector.broadcast %32 : vector<2x1xf32> to vector<2x1536xf32>
    %34 = arith.select %31, %33, %19 : vector<2x1536xi1>, vector<2x1536xf32>
    %c1_i32 = arith.constant 1 : i32
    %35 = arith.addi %18, %c1_i32 : i32
    %36 = vector.broadcast %35 : i32 to vector<2x16xi32>
    %37 = arith.cmpi eq, %16, %36 : vector<2x16xi32>
    %cst_19 = arith.constant 0.000000e+00 : f32
    %38 = vector.broadcast %cst_19 : f32 to vector<2x16xf32>
    %39 = arith.select %37, %15, %38 : vector<2x16xi1>, vector<2x16xf32>
    %cst_20 = arith.constant dense<0.000000e+00> : vector<2xf32>
    %40 = vector.multi_reduction <add>, %39, %cst_20 [1] : vector<2x16xf32> to vector<2xf32>
    %41 = vector.shape_cast %40 : vector<2xf32> to vector<2x1xf32>
    %c192_i32_21 = arith.constant 192 : i32
    %42 = vector.broadcast %c192_i32_21 : i32 to vector<2x1536xi32>
    %43 = arith.cmpi sge, %17, %42 : vector<2x1536xi32>
    %c384_i32 = arith.constant 384 : i32
    %44 = vector.broadcast %c384_i32 : i32 to vector<2x1536xi32>
    %45 = arith.cmpi slt, %17, %44 : vector<2x1536xi32>
    %46 = arith.andi %43, %45 : vector<2x1536xi1>
    %47 = vector.shape_cast %41 : vector<2x1xf32> to vector<2x1xf32>
    %48 = vector.broadcast %47 : vector<2x1xf32> to vector<2x1536xf32>
    %49 = arith.select %46, %48, %34 : vector<2x1536xi1>, vector<2x1536xf32>
    %c2_i32 = arith.constant 2 : i32
    %50 = arith.addi %18, %c2_i32 : i32
    %51 = vector.broadcast %50 : i32 to vector<2x16xi32>
    %52 = arith.cmpi eq, %16, %51 : vector<2x16xi32>
    %cst_22 = arith.constant 0.000000e+00 : f32
    %53 = vector.broadcast %cst_22 : f32 to vector<2x16xf32>
    %54 = arith.select %52, %15, %53 : vector<2x16xi1>, vector<2x16xf32>
    %cst_23 = arith.constant dense<0.000000e+00> : vector<2xf32>
    %55 = vector.multi_reduction <add>, %54, %cst_23 [1] : vector<2x16xf32> to vector<2xf32>
    %56 = vector.shape_cast %55 : vector<2xf32> to vector<2x1xf32>
    %c384_i32_24 = arith.constant 384 : i32
    %57 = vector.broadcast %c384_i32_24 : i32 to vector<2x1536xi32>
    %58 = arith.cmpi sge, %17, %57 : vector<2x1536xi32>
    %c576_i32 = arith.constant 576 : i32
    %59 = vector.broadcast %c576_i32 : i32 to vector<2x1536xi32>
    %60 = arith.cmpi slt, %17, %59 : vector<2x1536xi32>
    %61 = arith.andi %58, %60 : vector<2x1536xi1>
    %62 = vector.shape_cast %56 : vector<2x1xf32> to vector<2x1xf32>
    %63 = vector.broadcast %62 : vector<2x1xf32> to vector<2x1536xf32>
    %64 = arith.select %61, %63, %49 : vector<2x1536xi1>, vector<2x1536xf32>
    %c3_i32 = arith.constant 3 : i32
    %65 = arith.addi %18, %c3_i32 : i32
    %66 = vector.broadcast %65 : i32 to vector<2x16xi32>
    %67 = arith.cmpi eq, %16, %66 : vector<2x16xi32>
    %cst_25 = arith.constant 0.000000e+00 : f32
    %68 = vector.broadcast %cst_25 : f32 to vector<2x16xf32>
    %69 = arith.select %67, %15, %68 : vector<2x16xi1>, vector<2x16xf32>
    %cst_26 = arith.constant dense<0.000000e+00> : vector<2xf32>
    %70 = vector.multi_reduction <add>, %69, %cst_26 [1] : vector<2x16xf32> to vector<2xf32>
    %71 = vector.shape_cast %70 : vector<2xf32> to vector<2x1xf32>
    %c576_i32_27 = arith.constant 576 : i32
    %72 = vector.broadcast %c576_i32_27 : i32 to vector<2x1536xi32>
    %73 = arith.cmpi sge, %17, %72 : vector<2x1536xi32>
    %c768_i32 = arith.constant 768 : i32
    %74 = vector.broadcast %c768_i32 : i32 to vector<2x1536xi32>
    %75 = arith.cmpi slt, %17, %74 : vector<2x1536xi32>
    %76 = arith.andi %73, %75 : vector<2x1536xi1>
    %77 = vector.shape_cast %71 : vector<2x1xf32> to vector<2x1xf32>
    %78 = vector.broadcast %77 : vector<2x1xf32> to vector<2x1536xf32>
    %79 = arith.select %76, %78, %64 : vector<2x1536xi1>, vector<2x1536xf32>
    %c4_i32 = arith.constant 4 : i32
    %80 = arith.addi %18, %c4_i32 : i32
    %81 = vector.broadcast %80 : i32 to vector<2x16xi32>
    %82 = arith.cmpi eq, %16, %81 : vector<2x16xi32>
    %cst_28 = arith.constant 0.000000e+00 : f32
    %83 = vector.broadcast %cst_28 : f32 to vector<2x16xf32>
    %84 = arith.select %82, %15, %83 : vector<2x16xi1>, vector<2x16xf32>
    %cst_29 = arith.constant dense<0.000000e+00> : vector<2xf32>
    %85 = vector.multi_reduction <add>, %84, %cst_29 [1] : vector<2x16xf32> to vector<2xf32>
    %86 = vector.shape_cast %85 : vector<2xf32> to vector<2x1xf32>
    %c768_i32_30 = arith.constant 768 : i32
    %87 = vector.broadcast %c768_i32_30 : i32 to vector<2x1536xi32>
    %88 = arith.cmpi sge, %17, %87 : vector<2x1536xi32>
    %c960_i32 = arith.constant 960 : i32
    %89 = vector.broadcast %c960_i32 : i32 to vector<2x1536xi32>
    %90 = arith.cmpi slt, %17, %89 : vector<2x1536xi32>
    %91 = arith.andi %88, %90 : vector<2x1536xi1>
    %92 = vector.shape_cast %86 : vector<2x1xf32> to vector<2x1xf32>
    %93 = vector.broadcast %92 : vector<2x1xf32> to vector<2x1536xf32>
    %94 = arith.select %91, %93, %79 : vector<2x1536xi1>, vector<2x1536xf32>
    %c5_i32 = arith.constant 5 : i32
    %95 = arith.addi %18, %c5_i32 : i32
    %96 = vector.broadcast %95 : i32 to vector<2x16xi32>
    %97 = arith.cmpi eq, %16, %96 : vector<2x16xi32>
    %cst_31 = arith.constant 0.000000e+00 : f32
    %98 = vector.broadcast %cst_31 : f32 to vector<2x16xf32>
    %99 = arith.select %97, %15, %98 : vector<2x16xi1>, vector<2x16xf32>
    %cst_32 = arith.constant dense<0.000000e+00> : vector<2xf32>
    %100 = vector.multi_reduction <add>, %99, %cst_32 [1] : vector<2x16xf32> to vector<2xf32>
    %101 = vector.shape_cast %100 : vector<2xf32> to vector<2x1xf32>
    %c960_i32_33 = arith.constant 960 : i32
    %102 = vector.broadcast %c960_i32_33 : i32 to vector<2x1536xi32>
    %103 = arith.cmpi sge, %17, %102 : vector<2x1536xi32>
    %c1152_i32 = arith.constant 1152 : i32
    %104 = vector.broadcast %c1152_i32 : i32 to vector<2x1536xi32>
    %105 = arith.cmpi slt, %17, %104 : vector<2x1536xi32>
    %106 = arith.andi %103, %105 : vector<2x1536xi1>
    %107 = vector.shape_cast %101 : vector<2x1xf32> to vector<2x1xf32>
    %108 = vector.broadcast %107 : vector<2x1xf32> to vector<2x1536xf32>
    %109 = arith.select %106, %108, %94 : vector<2x1536xi1>, vector<2x1536xf32>
    %c6_i32 = arith.constant 6 : i32
    %110 = arith.addi %18, %c6_i32 : i32
    %111 = vector.broadcast %110 : i32 to vector<2x16xi32>
    %112 = arith.cmpi eq, %16, %111 : vector<2x16xi32>
    %cst_34 = arith.constant 0.000000e+00 : f32
    %113 = vector.broadcast %cst_34 : f32 to vector<2x16xf32>
    %114 = arith.select %112, %15, %113 : vector<2x16xi1>, vector<2x16xf32>
    %cst_35 = arith.constant dense<0.000000e+00> : vector<2xf32>
    %115 = vector.multi_reduction <add>, %114, %cst_35 [1] : vector<2x16xf32> to vector<2xf32>
    %116 = vector.shape_cast %115 : vector<2xf32> to vector<2x1xf32>
    %c1152_i32_36 = arith.constant 1152 : i32
    %117 = vector.broadcast %c1152_i32_36 : i32 to vector<2x1536xi32>
    %118 = arith.cmpi sge, %17, %117 : vector<2x1536xi32>
    %c1344_i32 = arith.constant 1344 : i32
    %119 = vector.broadcast %c1344_i32 : i32 to vector<2x1536xi32>
    %120 = arith.cmpi slt, %17, %119 : vector<2x1536xi32>
    %121 = arith.andi %118, %120 : vector<2x1536xi1>
    %122 = vector.shape_cast %116 : vector<2x1xf32> to vector<2x1xf32>
    %123 = vector.broadcast %122 : vector<2x1xf32> to vector<2x1536xf32>
    %124 = arith.select %121, %123, %109 : vector<2x1536xi1>, vector<2x1536xf32>
    %c7_i32 = arith.constant 7 : i32
    %125 = arith.addi %18, %c7_i32 : i32
    %126 = vector.broadcast %125 : i32 to vector<2x16xi32>
    %127 = arith.cmpi eq, %16, %126 : vector<2x16xi32>
    %cst_37 = arith.constant 0.000000e+00 : f32
    %128 = vector.broadcast %cst_37 : f32 to vector<2x16xf32>
    %129 = arith.select %127, %15, %128 : vector<2x16xi1>, vector<2x16xf32>
    %cst_38 = arith.constant dense<0.000000e+00> : vector<2xf32>
    %130 = vector.multi_reduction <add>, %129, %cst_38 [1] : vector<2x16xf32> to vector<2xf32>
    %131 = vector.shape_cast %130 : vector<2xf32> to vector<2x1xf32>
    %c1344_i32_39 = arith.constant 1344 : i32
    %132 = vector.broadcast %c1344_i32_39 : i32 to vector<2x1536xi32>
    %133 = arith.cmpi sge, %17, %132 : vector<2x1536xi32>
    %c1536_i32 = arith.constant 1536 : i32
    %134 = vector.broadcast %c1536_i32 : i32 to vector<2x1536xi32>
    %135 = arith.cmpi slt, %17, %134 : vector<2x1536xi32>
    %136 = arith.andi %133, %135 : vector<2x1536xi1>
    %137 = vector.shape_cast %131 : vector<2x1xf32> to vector<2x1xf32>
    %138 = vector.broadcast %137 : vector<2x1xf32> to vector<2x1536xf32>
    %139 = arith.select %136, %138, %124 : vector<2x1536xi1>, vector<2x1536xf32>
    %c0_40 = arith.constant 0 : index
    %c0_41 = arith.constant 0 : index
    %140 = vector.load %arg12[%c0_40, %c0_41] : memref<2x768xf32, #tpu.memory_space<vmem>>, vector<2x768xf32>
    %141 = arith.mulf %14, %139 : vector<2x1536xf32>
    %142 = arith.truncf %141 : vector<2x1536xf32> to vector<2x1536xbf16>
    %c0_42 = arith.constant 0 : index
    %c0_43 = arith.constant 0 : index
    %c0_44 = arith.constant 0 : index
    %c0_45 = arith.constant 0 : index
    %143 = vector.load %arg6[%c0_42, %c0_43, %c0_44, %c0_45] : memref<1x1x1536x768xbf16, #tpu.memory_space<vmem>>, vector<1x1x1536x768xbf16>
    %144 = vector.shape_cast %143 : vector<1x1x1536x768xbf16> to vector<1536x768xbf16>
    %cst_46 = arith.constant dense<0.000000e+00> : vector<2x768xf32>
    %145 = tpu.matmul %142, %144, %cst_46 {dimension_numbers = #tpu.dot_dimension_numbers<[1], [0], [0], [1], [0, 0, 1, 1], [], []>} : vector<2x1536xbf16>, vector<1536x768xbf16>, vector<2x768xf32> -> vector<2x768xf32>
    %146 = arith.addf %140, %145 : vector<2x768xf32>
    %c0_47 = arith.constant 0 : index
    %c0_48 = arith.constant 0 : index
    %147 = vector.load %arg12[%c0_47, %c0_48] : memref<2x768xf32, #tpu.memory_space<vmem>>, vector<2x768xf32>
    tpu.vector_store %arg12[%c0_47, %c0_48], %146 {strides = array<i32>} : memref<2x768xf32, #tpu.memory_space<vmem>>, vector<2x768xf32>,
    %c1_i32_49 = arith.constant 1 : i32
    %148 = arith.cmpi eq, %arg1, %c1_i32_49 : i32
    %149 = arith.extui %148 : i1 to i32
    %c0_i32_50 = arith.constant 0 : i32
    %150 = arith.cmpi ne, %149, %c0_i32_50 : i32
    scf.if %150 {
      %c0_51 = arith.constant 0 : index
      %c0_52 = arith.constant 0 : index
      %151 = vector.load %arg12[%c0_51, %c0_52] : memref<2x768xf32, #tpu.memory_space<vmem>>, vector<2x768xf32>
      %cst_53 = arith.constant 0.000000e+00 : f32
      %152 = vector.broadcast %cst_53 : f32 to vector<2x768xf32>
      %153 = arith.maximumf %151, %152 : vector<2x768xf32>
      %154 = arith.addf %153, %1 : vector<2x768xf32>
      %155 = arith.truncf %154 : vector<2x768xf32> to vector<2x768xbf16>
      %c0_54 = arith.constant 0 : index
      %c0_55 = arith.constant 0 : index
      %c0_56 = arith.constant 0 : index
      %156 = vector.load %arg8[%c0_54, %c0_55, %c0_56] : memref<1x768x128xbf16, #tpu.memory_space<vmem>>, vector<1x768x128xbf16>
      %157 = vector.shape_cast %156 : vector<1x768x128xbf16> to vector<768x128xbf16>
      %cst_57 = arith.constant dense<0.000000e+00> : vector<2x128xf32>
      %158 = tpu.matmul %155, %157, %cst_57 {dimension_numbers = #tpu.dot_dimension_numbers<[1], [0], [0], [1], [0, 0, 1, 1], [], []>} : vector<2x768xbf16>, vector<768x128xbf16>, vector<2x128xf32> -> vector<2x128xf32>
      %c0_58 = arith.constant 0 : index
      %c0_59 = arith.constant 0 : index
      %c0_60 = arith.constant 0 : index
      %159 = vector.load %arg9[%c0_58, %c0_59, %c0_60] : memref<1x1x128xf32, #tpu.memory_space<vmem>>, vector<1x1x128xf32>
      %160 = vector.shape_cast %159 : vector<1x1x128xf32> to vector<1x128xf32>
      %161 = vector.broadcast %160 : vector<1x128xf32> to vector<2x128xf32>
      %162 = arith.addf %158, %161 : vector<2x128xf32>
      %c0_61 = arith.constant 0 : index
      %c0_62 = arith.constant 0 : index
      %c0_63 = arith.constant 0 : index
      %163 = vector.load %arg10[%c0_61, %c0_62, %c0_63] : memref<1x2x128xf32, #tpu.memory_space<vmem>>, vector<1x2x128xf32>
      %164 = vector.shape_cast %163 : vector<1x2x128xf32> to vector<2x128xf32>
      %165 = vector.shape_cast %162 : vector<2x128xf32> to vector<1x2x128xf32>
      tpu.vector_store %arg10[%c0_61, %c0_62, %c0_63], %165 {strides = array<i32>} : memref<1x2x128xf32, #tpu.memory_space<vmem>>, vector<1x2x128xf32>,
    } else {
    }
    return
  }
  func.func @transform_0(%arg0: i32, %arg1: i32) -> (i32, i32, i32) {
    %c0_i32 = arith.constant 0 : i32
    %c0_i32_0 = arith.constant 0 : i32
    %c0_i32_1 = arith.constant 0 : i32
    return %arg0, %c0_i32, %c0_i32_0 : i32, i32, i32
  }
  func.func @transform_1(%arg0: i32, %arg1: i32) -> (i32, i32, i32) {
    %c0_i32 = arith.constant 0 : i32
    %c0_i32_0 = arith.constant 0 : i32
    %c0_i32_1 = arith.constant 0 : i32
    return %arg0, %c0_i32, %c0_i32_0 : i32, i32, i32
  }
  func.func @transform_2(%arg0: i32, %arg1: i32) -> (i32, i32, i32, i32) {
    %c0_i32 = arith.constant 0 : i32
    %c0_i32_0 = arith.constant 0 : i32
    %c0_i32_1 = arith.constant 0 : i32
    return %arg0, %arg1, %c0_i32, %c0_i32_0 : i32, i32, i32, i32
  }
  func.func @transform_3(%arg0: i32, %arg1: i32) -> (i32, i32, i32, i32) {
    %c0_i32 = arith.constant 0 : i32
    %c0_i32_0 = arith.constant 0 : i32
    %c0_i32_1 = arith.constant 0 : i32
    return %arg0, %arg1, %c0_i32, %c0_i32_0 : i32, i32, i32, i32
  }
  func.func @transform_4(%arg0: i32, %arg1: i32) -> (i32, i32, i32, i32) {
    %c0_i32 = arith.constant 0 : i32
    %c0_i32_0 = arith.constant 0 : i32
    %c0_i32_1 = arith.constant 0 : i32
    return %arg0, %arg1, %c0_i32, %c0_i32_0 : i32, i32, i32, i32
  }
  func.func @transform_5(%arg0: i32, %arg1: i32) -> (i32, i32, i32) {
    %c0_i32 = arith.constant 0 : i32
    %c0_i32_0 = arith.constant 0 : i32
    %c0_i32_1 = arith.constant 0 : i32
    return %arg0, %c0_i32, %c0_i32_0 : i32, i32, i32
  }
  func.func @transform_6(%arg0: i32, %arg1: i32) -> (i32, i32, i32) {
    %c0_i32 = arith.constant 0 : i32
    %c0_i32_0 = arith.constant 0 : i32
    %c0_i32_1 = arith.constant 0 : i32
    return %arg0, %c0_i32, %c0_i32_0 : i32, i32, i32
  }
  func.func @transform_7(%arg0: i32, %arg1: i32) -> (i32, i32, i32) {
    %c0_i32 = arith.constant 0 : i32
    %c0_i32_0 = arith.constant 0 : i32
    %c0_i32_1 = arith.constant 0 : i32
    return %arg0, %c0_i32, %c0_i32_0 : i32, i32, i32
  }
  func.func @transform_8(%arg0: i32, %arg1: i32) -> (i32, i32, i32) {
    %c0_i32 = arith.constant 0 : i32
    %c0_i32_0 = arith.constant 0 : i32
    %c0_i32_1 = arith.constant 0 : i32
    return %arg0, %c0_i32, %c0_i32_0 : i32, i32, i32
  }
}

</mosaic_0001>

<llo_original>
// kernel: tpu_custom_call.1
$region0: #{tpu_custom_call.1}
  #allocation0 [shape = 'u32[]', space=smem, size = 0x4, offset = 0x4, fixed_abs, tag = 'smem constant byte address 0x4 - core index']
  #allocation1 [shape = 'u32[72,128]{1,0:T(1,128)}', space=vmem, size = 0x9000, scoped, tag = 'internal scratch']
  #allocation2 [shape = 'f32[2,16]{1,0:T(2,128)}', space=vmem, size = 0x400, scoped, tag = 'scratch operand']
  #allocation3 [shape = 'f32[2,768]{1,0:T(2,128)}', space=vmem, size = 0x1800, scoped, tag = 'scratch operand']
  %s0 = inlined_call_operand.hbm [shape: f32[2,2,768], index: 0, kind: input, shape index: {}]
  %s1 = inlined_call_operand.vmem [shape: f32[2,768,16], index: 1, kind: input, shape index: {}]
  %s2 = inlined_call_operand.hbm [shape: bf16[2,2,768,1536], index: 2, kind: input, shape index: {}]
  %s3 = inlined_call_operand.hbm [shape: f32[2,2,1,1536], index: 3, kind: input, shape index: {}]
  %s4 = inlined_call_operand.hbm [shape: bf16[2,2,1536,768], index: 4, kind: input, shape index: {}]
  %s5 = inlined_call_operand.hbm [shape: f32[2,16,768], index: 5, kind: input, shape index: {}]
  %s6 = inlined_call_operand.hbm [shape: bf16[2,768,128], index: 6, kind: input, shape index: {}]
  %s7 = inlined_call_operand.hbm [shape: f32[2,1,128], index: 7, kind: input, shape index: {}]
  %s8 = inlined_call_operand.hbm [shape: f32[2,2,128], index: 8, kind: output, shape index: {}]
  %s9 = sld [smem:[#allocation0]]
  $region101: #{tpu_custom_call.1} parent=0
    _
  %s11 = ssub.s32 1, %s9
  %s12 = scalar_select 0, %s11, %s9
  $region1: #{tpu_custom_call.1} parent=0
    #allocation4 [shape = 'u8[12288]{0}', space=vmem, size = 0x3000, scoped, tag = 'input window, operand 0']
    #allocation5 [shape = 's32[2]{0}', space=sflag, size = 0x8, scoped, tag = 'scoped memory for tpu_custom_call.1']
    #allocation6 [shape = 's32[2]{0}', space=sflag, size = 0x8, scoped, tag = 'scoped memory for tpu_custom_call.1']
    #allocation7 [shape = 'u8[4718592]{0}', space=vmem, size = 0x480000, scoped, tag = 'input window, operand 2']
    #allocation8 [shape = 's32[2]{0}', space=sflag, size = 0x8, scoped, tag = 'scoped memory for tpu_custom_call.1']
    #allocation9 [shape = 'u8[12288]{0}', space=vmem, size = 0x3000, scoped, tag = 'input window, operand 3']
    #allocation10 [shape = 'u8[4718592]{0}', space=vmem, size = 0x480000, scoped, tag = 'input window, operand 4']
    #allocation11 [shape = 's32[2]{0}', space=sflag, size = 0x8, scoped, tag = 'scoped memory for tpu_custom_call.1']
    #allocation12 [shape = 'u8[98304]{0}', space=vmem, size = 0x18000, scoped, tag = 'input window, operand 5']
    #allocation13 [shape = 'u8[393216]{0}', space=vmem, size = 0x60000, scoped, tag = 'input window, operand 6']
    #allocation14 [shape = 's32[2]{0}', space=sflag, size = 0x8, scoped, tag = 'scoped memory for tpu_custom_call.1']
    #allocation15 [shape = 'u8[1024]{0}', space=vmem, size = 0x400, scoped, tag = 'input window, operand 7']
    #allocation16 [shape = 'u8[2048]{0}', space=vmem, size = 0x800, scoped, tag = 'output window, operand 0']
    %13 = vsyncpa [#allocation5], 0
    %s14 = scalar_lea.sflag [#allocation5], 1
    %15 = vsyncpa %s14, 0
    %16 = vsyncpa [#allocation8], 0
    %s17 = scalar_lea.sflag [#allocation8], 1
    %18 = vsyncpa %s17, 0
    %19 = vsyncpa [#allocation11], 0
    %s20 = scalar_lea.sflag [#allocation11], 1
    %21 = vsyncpa %s20, 0
    %22 = vsyncpa [#allocation14], 0
    %s23 = scalar_lea.sflag [#allocation14], 1
    %24 = vsyncpa %s23, 0
    %25 = vsyncpa [#allocation6], 0
    %s26 = scalar_lea.sflag [#allocation6], 1
    %27 = vsyncpa %s26, 0
    loop: start=0, step=1, limit=6
    $region2: #{tpu_custom_call.1} parent=1 // loop_pre_header
      _
    $region3: #{tpu_custom_call.1} parent=1 // loop_header
      %s29 = sphi 0, %s33
      %p30 = scmp.ge.s32.totalorder %s29, 6
      %s36 = sphi 0, %s48
      %s37 = sphi 0, %s44
      %s38 = sphi 0, %s36
      %s39 = sphi 0, %s37
      %s40 = sphi 0, %s38
      %s41 = sphi 0, %s39
      %s51 = sphi 0, %s53
      %s54 = sphi 0, %s51
      %s55 = sphi 0, %s54
      %s71 = sphi 0, %s55
      %s77 = sphi 0, %s79
      %s80 = sphi 0, %s77
      %s81 = sphi 0, %s80
      %s97 = sphi 0, %s81
      %s105 = sphi 0, %s107
      %s108 = sphi 0, %s105
      %s109 = sphi 0, %s108
      %s125 = sphi 0, %s109
      %s133 = sphi 0, %s135
      %s136 = sphi 0, %s133
      %s137 = sphi 0, %s136
      %s153 = sphi 0, %s137
      %s161 = sphi 0, %s163
      %s164 = sphi 0, %s161
      %s165 = sphi 0, %s164
      %s181 = sphi 0, %s165
      %s187 = sphi 0, %s189
      %s190 = sphi 0, %s187
      %s191 = sphi 0, %s190
      %s207 = sphi 0, %s191
      %s213 = sphi 0, %s215
      %s216 = sphi 0, %s213
      %s217 = sphi 0, %s216
      %s233 = sphi 0, %s217
      %s239 = sphi 0, %s241
      %s242 = sphi 0, %s239
      %s243 = sphi 0, %s242
      %s259 = sphi 0, %s243
      %s265 = sphi 0, %s267
      %s268 = sphi 0, %s265
      %s269 = sphi 0, %s268
      %s285 = sphi 0, %s269
    $region4: #{tpu_custom_call.1} parent=1 // loop_header_branch
      %32 = sbr.rel (%p30) target = $region8
    $region5: #{tpu_custom_call.1} parent=1 // loop_body
      %s34 = ssub.s32 %s29, 1
      %s35 = ssub.s32 %s29, 2
      %s42 = sadd.s32 1, %s37
      %p43 = scmp.ge.s32.totalorder %s42, 2
      %s44 = scalar_select %p43, 0, %s42
      %s45 = sadd.s32 1, %s36
      %s46 = scalar_select %p43, %s45, %s36
      %p47 = scmp.ge.s32.totalorder %s46, 2
      %s48 = scalar_select %p47, 0, %s46
      %s49 = ssub.s32 %s36, %s48
      %p50 = scmp.eq.s32.totalorder %s49, 0
      %s52 = sadd.s32 %s51, 1
      %s53 = scalar_select %p50, %s51, %s52
      %p56 = pneg %p50
      %p57 = scmp.eq.s32.totalorder %s29, 3
      %p58 = por %p56, %p57
      %p59 = scmp.ne.s32.totalorder %s51, %s54
      %p60 = scmp.eq.s32.totalorder %s29, 0
      %p61 = por %p59, %p60
      %p62 = scmp.ne.s32.totalorder %s51, %s54
      %p63 = scmp.eq.s32.totalorder %s34, 3
      %p64 = por %p62, %p63
      %p65 = scmp.ne.s32.totalorder %s54, %s55
      %p66 = scmp.eq.s32.totalorder %s34, 0
      %p67 = por %p65, %p66
      %p68 = scmp.ne.s32.totalorder %s54, %s55
      %p69 = scmp.eq.s32.totalorder %s35, 3
      %p70 = por %p68, %p69
      %p72 = scmp.ne.s32.totalorder %s55, %s71
      %p73 = scmp.eq.s32.totalorder %s35, 0
      %p74 = por %p72, %p73
      %s75 = ssub.s32 %s36, %s48
      %p76 = scmp.eq.s32.totalorder %s75, 0
      %s78 = sadd.s32 %s77, 1
      %s79 = scalar_select %p76, %s77, %s78
      %p82 = pneg %p76
      %p83 = scmp.eq.s32.totalorder %s29, 3
      %p84 = por %p82, %p83
      %p85 = scmp.ne.s32.totalorder %s77, %s80
      %p86 = scmp.eq.s32.totalorder %s29, 0
      %p87 = por %p85, %p86
      %p88 = scmp.ne.s32.totalorder %s77, %s80
      %p89 = scmp.eq.s32.totalorder %s34, 3
      %p90 = por %p88, %p89
      %p91 = scmp.ne.s32.totalorder %s80, %s81
      %p92 = scmp.eq.s32.totalorder %s34, 0
      %p93 = por %p91, %p92
      %p94 = scmp.ne.s32.totalorder %s80, %s81
      %p95 = scmp.eq.s32.totalorder %s35, 3
      %p96 = por %p94, %p95
      %p98 = scmp.ne.s32.totalorder %s81, %s97
      %p99 = scmp.eq.s32.totalorder %s35, 0
      %p100 = por %p98, %p99
      %s101 = ssub.s32 %s36, %s48
      %s102 = ssub.s32 %s37, %s44
      %s103 = sor.u32 %s101, %s102
      %p104 = scmp.eq.s32.totalorder %s103, 0
      %s106 = sadd.s32 %s105, 1
      %s107 = scalar_select %p104, %s105, %s106
      %p110 = pneg %p104
      %p111 = scmp.eq.s32.totalorder %s29, 3
      %p112 = por %p110, %p111
      %p113 = scmp.ne.s32.totalorder %s105, %s108
      %p114 = scmp.eq.s32.totalorder %s29, 0
      %p115 = por %p113, %p114
      %p116 = scmp.ne.s32.totalorder %s105, %s108
      %p117 = scmp.eq.s32.totalorder %s34, 3
      %p118 = por %p116, %p117
      %p119 = scmp.ne.s32.totalorder %s108, %s109
      %p120 = scmp.eq.s32.totalorder %s34, 0
      %p121 = por %p119, %p120
      %p122 = scmp.ne.s32.totalorder %s108, %s109
      %p123 = scmp.eq.s32.totalorder %s35, 3
      %p124 = por %p122, %p123
      %p126 = scmp.ne.s32.totalorder %s109, %s125
      %p127 = scmp.eq.s32.totalorder %s35, 0
      %p128 = por %p126, %p127
      %s129 = ssub.s32 %s36, %s48
      %s130 = ssub.s32 %s37, %s44
      %s131 = sor.u32 %s129, %s130
      %p132 = scmp.eq.s32.totalorder %s131, 0
      %s134 = sadd.s32 %s133, 1
      %s135 = scalar_select %p132, %s133, %s134
      %p138 = pneg %p132
      %p139 = scmp.eq.s32.totalorder %s29, 3
      %p140 = por %p138, %p139
      %p141 = scmp.ne.s32.totalorder %s133, %s136
      %p142 = scmp.eq.s32.totalorder %s29, 0
      %p143 = por %p141, %p142
      %p144 = scmp.ne.s32.totalorder %s133, %s136
      %p145 = scmp.eq.s32.totalorder %s34, 3
      %p146 = por %p144, %p145
      %p147 = scmp.ne.s32.totalorder %s136, %s137
      %p148 = scmp.eq.s32.totalorder %s34, 0
      %p149 = por %p147, %p148
      %p150 = scmp.ne.s32.totalorder %s136, %s137
      %p151 = scmp.eq.s32.totalorder %s35, 3
      %p152 = por %p150, %p151
      %p154 = scmp.ne.s32.totalorder %s137, %s153
      %p155 = scmp.eq.s32.totalorder %s35, 0
      %p156 = por %p154, %p155
      %s157 = ssub.s32 %s36, %s48
      %s158 = ssub.s32 %s37, %s44
      %s159 = sor.u32 %s157, %s158
      %p160 = scmp.eq.s32.totalorder %s159, 0
      %s162 = sadd.s32 %s161, 1
      %s163 = scalar_select %p160, %s161, %s162
      %p166 = pneg %p160
      %p167 = scmp.eq.s32.totalorder %s29, 3
      %p168 = por %p166, %p167
      %p169 = scmp.ne.s32.totalorder %s161, %s164
      %p170 = scmp.eq.s32.totalorder %s29, 0
      %p171 = por %p169, %p170
      %p172 = scmp.ne.s32.totalorder %s161, %s164
      %p173 = scmp.eq.s32.totalorder %s34, 3
      %p174 = por %p172, %p173
      %p175 = scmp.ne.s32.totalorder %s164, %s165
      %p176 = scmp.eq.s32.totalorder %s34, 0
      %p177 = por %p175, %p176
      %p178 = scmp.ne.s32.totalorder %s164, %s165
      %p179 = scmp.eq.s32.totalorder %s35, 3
      %p180 = por %p178, %p179
      %p182 = scmp.ne.s32.totalorder %s165, %s181
      %p183 = scmp.eq.s32.totalorder %s35, 0
      %p184 = por %p182, %p183
      %s185 = ssub.s32 %s36, %s48
      %p186 = scmp.eq.s32.totalorder %s185, 0
      %s188 = sadd.s32 %s187, 1
      %s189 = scalar_select %p186, %s187, %s188
      %p192 = pneg %p186
      %p193 = scmp.eq.s32.totalorder %s29, 3
      %p194 = por %p192, %p193
      %p195 = scmp.ne.s32.totalorder %s187, %s190
      %p196 = scmp.eq.s32.totalorder %s29, 0
      %p197 = por %p195, %p196
      %p198 = scmp.ne.s32.totalorder %s187, %s190
      %p199 = scmp.eq.s32.totalorder %s34, 3
      %p200 = por %p198, %p199
      %p201 = scmp.ne.s32.totalorder %s190, %s191
      %p202 = scmp.eq.s32.totalorder %s34, 0
      %p203 = por %p201, %p202
      %p204 = scmp.ne.s32.totalorder %s190, %s191
      %p205 = scmp.eq.s32.totalorder %s35, 3
      %p206 = por %p204, %p205
      %p208 = scmp.ne.s32.totalorder %s191, %s207
      %p209 = scmp.eq.s32.totalorder %s35, 0
      %p210 = por %p208, %p209
      %s211 = ssub.s32 %s36, %s48
      %p212 = scmp.eq.s32.totalorder %s211, 0
      %s214 = sadd.s32 %s213, 1
      %s215 = scalar_select %p212, %s213, %s214
      %p218 = pneg %p212
      %p219 = scmp.eq.s32.totalorder %s29, 3
      %p220 = por %p218, %p219
      %p221 = scmp.ne.s32.totalorder %s213, %s216
      %p222 = scmp.eq.s32.totalorder %s29, 0
      %p223 = por %p221, %p222
      %p224 = scmp.ne.s32.totalorder %s213, %s216
      %p225 = scmp.eq.s32.totalorder %s34, 3
      %p226 = por %p224, %p225
      %p227 = scmp.ne.s32.totalorder %s216, %s217
      %p228 = scmp.eq.s32.totalorder %s34, 0
      %p229 = por %p227, %p228
      %p230 = scmp.ne.s32.totalorder %s216, %s217
      %p231 = scmp.eq.s32.totalorder %s35, 3
      %p232 = por %p230, %p231
      %p234 = scmp.ne.s32.totalorder %s217, %s233
      %p235 = scmp.eq.s32.totalorder %s35, 0
      %p236 = por %p234, %p235
      %s237 = ssub.s32 %s36, %s48
      %p238 = scmp.eq.s32.totalorder %s237, 0
      %s240 = sadd.s32 %s239, 1
      %s241 = scalar_select %p238, %s239, %s240
      %p244 = pneg %p238
      %p245 = scmp.eq.s32.totalorder %s29, 3
      %p246 = por %p244, %p245
      %p247 = scmp.ne.s32.totalorder %s239, %s242
      %p248 = scmp.eq.s32.totalorder %s29, 0
      %p249 = por %p247, %p248
      %p250 = scmp.ne.s32.totalorder %s239, %s242
      %p251 = scmp.eq.s32.totalorder %s34, 3
      %p252 = por %p250, %p251
      %p253 = scmp.ne.s32.totalorder %s242, %s243
      %p254 = scmp.eq.s32.totalorder %s34, 0
      %p255 = por %p253, %p254
      %p256 = scmp.ne.s32.totalorder %s242, %s243
      %p257 = scmp.eq.s32.totalorder %s35, 3
      %p258 = por %p256, %p257
      %p260 = scmp.ne.s32.totalorder %s243, %s259
      %p261 = scmp.eq.s32.totalorder %s35, 0
      %p262 = por %p260, %p261
      %s263 = ssub.s32 %s36, %s48
      %p264 = scmp.eq.s32.totalorder %s263, 0
      %s266 = sadd.s32 %s265, 1
      %s267 = scalar_select %p264, %s265, %s266
      %p270 = pneg %p264
      %p271 = scmp.eq.s32.totalorder %s29, 3
      %p272 = por %p270, %p271
      %p273 = scmp.ne.s32.totalorder %s265, %s268
      %p274 = scmp.eq.s32.totalorder %s29, 0
      %p275 = por %p273, %p274
      %p276 = scmp.ne.s32.totalorder %s265, %s268
      %p277 = scmp.eq.s32.totalorder %s34, 3
      %p278 = por %p276, %p277
      %p279 = scmp.ne.s32.totalorder %s268, %s269
      %p280 = scmp.eq.s32.totalorder %s34, 0
      %p281 = por %p279, %p280
      %p282 = scmp.ne.s32.totalorder %s268, %s269
      %p283 = scmp.eq.s32.totalorder %s35, 3
      %p284 = por %p282, %p283
      %p286 = scmp.ne.s32.totalorder %s269, %s285
      %p287 = scmp.eq.s32.totalorder %s35, 0
      %p288 = por %p286, %p287
      %p289 = scmp.le.s32.totalorder 1, %s29
      %p290 = scmp.lt.s32.totalorder %s29, 5
      %p291 = pnand %p289, %p290
      %p292 = pneg %p291
      // Predicated region
      $region9: #{tpu_custom_call.1} parent=5 // pred_check
        _
      $region10: #{tpu_custom_call.1} parent=5 // pred_check_branch
        %294 = sbr.rel (%p291) target = $region12
      $region11: #{tpu_custom_call.1} parent=5 // pred_region
        %s295 = ssub.s32 %s29, 1
      $region12: #{tpu_custom_call.1} parent=5 // pred_fallthru
        _
      %p296 = scmp.lt.s32.totalorder %s29, 4
      // Predicated region
      $region13: #{tpu_custom_call.1} parent=5 // pred_check
        %p297 = pneg %p296
      $region14: #{tpu_custom_call.1} parent=5 // pred_check_branch
        %299 = sbr.rel (%p297) target = $region16
      $region15: #{tpu_custom_call.1} parent=5 // pred_region
        // Predicated region
        $region17: #{tpu_custom_call.1} parent=15 // pred_check
          %p300 = pneg %p61
        $region18: #{tpu_custom_call.1} parent=15 // pred_check_branch
          %302 = sbr.rel (%p300) target = $region20
        $region19: #{tpu_custom_call.1} parent=15 // pred_region
          %s303 = sand.u32 %s51, 1
          %s304 = scalar_lea.sflag [#allocation5], %s303
          %s305 = sand.u32 %s51, 1
          %s306 = smul.addr %s305, 12
          %s307 = scalar_lea.vmem [#allocation4], %s306
          %309 = vsyncadd %s304, 0
          %s310 = smul.addr %s36, 6
          %s311 = smul.addr %s310, 2
          %s312 = scalar_lea.hbm %s0, %s311
          %s314 = sshll.u32 %s312, 4
          %s315 = int_to_ptr.hbm [resolvable:$true] %s314
          %s316 = sshll.u32 %s307, 4
          %s317 = int_to_ptr.vmem [resolvable:$true] %s316
          %319 = dma.hbm_to_vmem [thread:$0]  %s315, 192, %s317, %s304
        $region20: #{tpu_custom_call.1} parent=15 // pred_fallthru
          _
        // Predicated region
        $region21: #{tpu_custom_call.1} parent=15 // pred_check
          %p320 = pneg %p87
        $region22: #{tpu_custom_call.1} parent=15 // pred_check_branch
          %322 = sbr.rel (%p320) target = $region24
        $region23: #{tpu_custom_call.1} parent=15 // pred_region
          %p323 = scmp.lt.s32.totalorder %s36, 1
          %s324 = scalar_select %p323, %s36, 1
          %s325 = smul.addr %s324, 96
          %s326 = smul.addr %s325, 8
          %s327 = scalar_lea.vmem %s1, %s326
        $region24: #{tpu_custom_call.1} parent=15 // pred_fallthru
          _
        // Predicated region
        $region25: #{tpu_custom_call.1} parent=15 // pred_check
          %p328 = pneg %p115
        $region26: #{tpu_custom_call.1} parent=15 // pred_check_branch
          %330 = sbr.rel (%p328) target = $region28
        $region27: #{tpu_custom_call.1} parent=15 // pred_region
          %s331 = sand.u32 %s29, 1
          %s332 = scalar_lea.sflag [#allocation8], %s331
          %s333 = sand.u32 %s105, 1
          %s334 = smul.addr %s333, 4608
          %s335 = scalar_lea.vmem [#allocation7], %s334
          %337 = vsyncadd %s332, 0
          %s338 = smul.addr %s37, 1152
          %s339 = smul.addr %s36, 2304
          %s340 = sadd.s32 %s338, %s339
          %s341 = smul.addr %s340, 4
          %s342 = scalar_lea.hbm %s2, %s341
          %s343 = sshll.u32 %s342, 4
          %s344 = int_to_ptr.hbm [resolvable:$true] %s343
          %s345 = sshll.u32 %s335, 4
          %s346 = int_to_ptr.vmem [resolvable:$true] %s345
          %351 = dma.hbm_to_vmem [thread:$0]  %s344, 73728, %s346, %s332, 768, 768, 48
        $region28: #{tpu_custom_call.1} parent=15 // pred_fallthru
          _
        // Predicated region
        $region29: #{tpu_custom_call.1} parent=15 // pred_check
          %p352 = pneg %p143
        $region30: #{tpu_custom_call.1} parent=15 // pred_check_branch
          %354 = sbr.rel (%p352) target = $region32
        $region31: #{tpu_custom_call.1} parent=15 // pred_region
          %s355 = sand.u32 %s29, 1
          %s356 = scalar_lea.sflag [#allocation8], %s355
          %s357 = sand.u32 %s133, 1
          %s358 = smul.addr %s357, 12
          %s359 = scalar_lea.vmem [#allocation9], %s358
          %361 = vsyncadd %s356, 0
          %s362 = smul.addr %s37, 12
          %s363 = smul.addr %s36, 24
          %s364 = sadd.s32 %s362, %s363
          %s365 = scalar_lea.hbm %s3, %s364
          %s367 = sshll.u32 %s365, 4
          %s368 = int_to_ptr.hbm [resolvable:$true] %s367
          %s369 = sshll.u32 %s359, 4
          %s370 = int_to_ptr.vmem [resolvable:$true] %s369
          %372 = dma.hbm_to_vmem [thread:$0]  %s368, 192, %s370, %s356
        $region32: #{tpu_custom_call.1} parent=15 // pred_fallthru
          _
        // Predicated region
        $region33: #{tpu_custom_call.1} parent=15 // pred_check
          %p373 = pneg %p171
        $region34: #{tpu_custom_call.1} parent=15 // pred_check_branch
          %375 = sbr.rel (%p373) target = $region36
        $region35: #{tpu_custom_call.1} parent=15 // pred_region
          %s376 = sand.u32 %s29, 1
          %s377 = scalar_lea.sflag [#allocation11], %s376
          %s378 = sand.u32 %s161, 1
          %s379 = smul.addr %s378, 4608
          %s380 = scalar_lea.vmem [#allocation10], %s379
          %382 = vsyncadd %s377, 0
          %s383 = smul.addr %s37, 1152
          %s384 = smul.addr %s36, 2304
          %s385 = sadd.s32 %s383, %s384
          %s386 = smul.addr %s385, 4
          %s387 = scalar_lea.hbm %s4, %s386
          %s388 = sshll.u32 %s387, 4
          %s389 = int_to_ptr.hbm [resolvable:$true] %s388
          %s390 = sshll.u32 %s380, 4
          %s391 = int_to_ptr.vmem [resolvable:$true] %s390
          %396 = dma.hbm_to_vmem [thread:$0]  %s389, 73728, %s391, %s377, 384, 384, 24
        $region36: #{tpu_custom_call.1} parent=15 // pred_fallthru
          _
        // Predicated region
        $region37: #{tpu_custom_call.1} parent=15 // pred_check
          %p397 = pneg %p197
        $region38: #{tpu_custom_call.1} parent=15 // pred_check_branch
          %399 = sbr.rel (%p397) target = $region40
        $region39: #{tpu_custom_call.1} parent=15 // pred_region
          %s400 = sand.u32 %s29, 1
          %s401 = scalar_lea.sflag [#allocation11], %s400
          %s402 = sand.u32 %s187, 1
          %s403 = smul.addr %s402, 96
          %s404 = scalar_lea.vmem [#allocation12], %s403
          %406 = vsyncadd %s401, 0
          %s407 = smul.addr %s36, 12
          %s408 = smul.addr %s407, 8
          %s409 = scalar_lea.hbm %s5, %s408
          %s410 = sshll.u32 %s409, 4
          %s411 = int_to_ptr.hbm [resolvable:$true] %s410
          %s412 = sshll.u32 %s404, 4
          %s413 = int_to_ptr.vmem [resolvable:$true] %s412
          %418 = dma.hbm_to_vmem [thread:$0]  %s411, 1536, %s413, %s401, 768, 768, 48
        $region40: #{tpu_custom_call.1} parent=15 // pred_fallthru
          _
        // Predicated region
        $region41: #{tpu_custom_call.1} parent=15 // pred_check
          %p419 = pneg %p223
        $region42: #{tpu_custom_call.1} parent=15 // pred_check_branch
          %421 = sbr.rel (%p419) target = $region44
        $region43: #{tpu_custom_call.1} parent=15 // pred_region
          %s422 = sand.u32 %s29, 1
          %s423 = scalar_lea.sflag [#allocation14], %s422
          %s424 = sand.u32 %s213, 1
          %s425 = smul.addr %s424, 384
          %s426 = scalar_lea.vmem [#allocation13], %s425
          %428 = vsyncadd %s423, 0
          %s429 = smul.addr %s36, 96
          %s430 = smul.addr %s429, 4
          %s431 = scalar_lea.hbm %s6, %s430
          %s432 = sshll.u32 %s431, 4
          %s433 = int_to_ptr.hbm [resolvable:$true] %s432
          %s434 = sshll.u32 %s426, 4
          %s435 = int_to_ptr.vmem [resolvable:$true] %s434
          %440 = dma.hbm_to_vmem [thread:$0]  %s433, 6144, %s435, %s423, 64, 64, 4
        $region44: #{tpu_custom_call.1} parent=15 // pred_fallthru
          _
        // Predicated region
        $region45: #{tpu_custom_call.1} parent=15 // pred_check
          %p441 = pneg %p249
        $region46: #{tpu_custom_call.1} parent=15 // pred_check_branch
          %443 = sbr.rel (%p441) target = $region48
        $region47: #{tpu_custom_call.1} parent=15 // pred_region
          %s444 = sand.u32 %s29, 1
          %s445 = scalar_lea.sflag [#allocation14], %s444
          %s446 = sand.u32 %s239, 1
          %s447 = scalar_lea.vmem [#allocation15], %s446
          %449 = vsyncadd %s445, 0
          %s450 = scalar_lea.hbm %s7, %s36
          %s452 = sshll.u32 %s450, 4
          %s453 = int_to_ptr.hbm [resolvable:$true] %s452
          %s454 = sshll.u32 %s447, 4
          %s455 = int_to_ptr.vmem [resolvable:$true] %s454
          %457 = dma.hbm_to_vmem [thread:$0]  %s453, 16, %s455, %s445
        $region48: #{tpu_custom_call.1} parent=15 // pred_fallthru
          _
      $region16: #{tpu_custom_call.1} parent=5 // pred_fallthru
        _
      %p458 = scmp.le.s32.totalorder 1, %s29
      %p459 = scmp.lt.s32.totalorder %s29, 5
      %p460 = pnand %p458, %p459
      %p461 = pneg %p460
      // Predicated region
      $region49: #{tpu_custom_call.1} parent=5 // pred_check
        _
      $region50: #{tpu_custom_call.1} parent=5 // pred_check_branch
        %463 = sbr.rel (%p460) target = $region52
      $region51: #{tpu_custom_call.1} parent=5 // pred_region
        %s464 = ssub.s32 %s29, 1
        %s465 = sand.u32 %s54, 1
        %s466 = scalar_lea.sflag [#allocation5], %s465
        %s467 = sand.u32 %s54, 1
        %s468 = smul.addr %s467, 12
        %s469 = scalar_lea.vmem [#allocation4], %s468
        // Predicated region
        $region53: #{tpu_custom_call.1} parent=51 // pred_check
          %p470 = pneg %p67
        $region54: #{tpu_custom_call.1} parent=51 // pred_check_branch
          %472 = sbr.rel (%p470) target = $region56
        $region55: #{tpu_custom_call.1} parent=51 // pred_region
          %474 = dma.done %s466, 192
        $region56: #{tpu_custom_call.1} parent=51 // pred_fallthru
          _
        %s475 = sand.u32 %s34, 1
        %s476 = scalar_lea.sflag [#allocation8], %s475
        %s477 = sand.u32 %s108, 1
        %s478 = smul.addr %s477, 4608
        %s479 = scalar_lea.vmem [#allocation7], %s478
        // Predicated region
        $region57: #{tpu_custom_call.1} parent=51 // pred_check
          %p480 = pneg %p121
        $region58: #{tpu_custom_call.1} parent=51 // pred_check_branch
          %482 = sbr.rel (%p480) target = $region60
        $region59: #{tpu_custom_call.1} parent=51 // pred_region
          %484 = dma.done %s476, 73728
        $region60: #{tpu_custom_call.1} parent=51 // pred_fallthru
          _
        %s485 = sand.u32 %s34, 1
        %s486 = scalar_lea.sflag [#allocation8], %s485
        %s487 = sand.u32 %s136, 1
        %s488 = smul.addr %s487, 12
        %s489 = scalar_lea.vmem [#allocation9], %s488
        // Predicated region
        $region61: #{tpu_custom_call.1} parent=51 // pred_check
          %p490 = pneg %p149
        $region62: #{tpu_custom_call.1} parent=51 // pred_check_branch
          %492 = sbr.rel (%p490) target = $region64
        $region63: #{tpu_custom_call.1} parent=51 // pred_region
          %494 = dma.done %s486, 192
        $region64: #{tpu_custom_call.1} parent=51 // pred_fallthru
          _
        %s495 = sand.u32 %s34, 1
        %s496 = scalar_lea.sflag [#allocation11], %s495
        %s497 = sand.u32 %s164, 1
        %s498 = smul.addr %s497, 4608
        %s499 = scalar_lea.vmem [#allocation10], %s498
        // Predicated region
        $region65: #{tpu_custom_call.1} parent=51 // pred_check
          %p500 = pneg %p177
        $region66: #{tpu_custom_call.1} parent=51 // pred_check_branch
          %502 = sbr.rel (%p500) target = $region68
        $region67: #{tpu_custom_call.1} parent=51 // pred_region
          %504 = dma.done %s496, 73728
        $region68: #{tpu_custom_call.1} parent=51 // pred_fallthru
          _
        %s505 = sand.u32 %s34, 1
        %s506 = scalar_lea.sflag [#allocation11], %s505
        %s507 = sand.u32 %s190, 1
        %s508 = smul.addr %s507, 96
        %s509 = scalar_lea.vmem [#allocation12], %s508
        // Predicated region
        $region69: #{tpu_custom_call.1} parent=51 // pred_check
          %p510 = pneg %p203
        $region70: #{tpu_custom_call.1} parent=51 // pred_check_branch
          %512 = sbr.rel (%p510) target = $region72
        $region71: #{tpu_custom_call.1} parent=51 // pred_region
          %514 = dma.done %s506, 1536
        $region72: #{tpu_custom_call.1} parent=51 // pred_fallthru
          _
        %s515 = sand.u32 %s34, 1
        %s516 = scalar_lea.sflag [#allocation14], %s515
        %s517 = sand.u32 %s216, 1
        %s518 = smul.addr %s517, 384
        %s519 = scalar_lea.vmem [#allocation13], %s518
        // Predicated region
        $region73: #{tpu_custom_call.1} parent=51 // pred_check
          %p520 = pneg %p229
        $region74: #{tpu_custom_call.1} parent=51 // pred_check_branch
          %522 = sbr.rel (%p520) target = $region76
        $region75: #{tpu_custom_call.1} parent=51 // pred_region
          %524 = dma.done %s516, 6144
        $region76: #{tpu_custom_call.1} parent=51 // pred_fallthru
          _
        %s525 = sand.u32 %s34, 1
        %s526 = scalar_lea.sflag [#allocation14], %s525
        %s527 = sand.u32 %s242, 1
        %s528 = scalar_lea.vmem [#allocation15], %s527
        // Predicated region
        $region77: #{tpu_custom_call.1} parent=51 // pred_check
          %p529 = pneg %p255
        $region78: #{tpu_custom_call.1} parent=51 // pred_check_branch
          %531 = sbr.rel (%p529) target = $region80
        $region79: #{tpu_custom_call.1} parent=51 // pred_region
          %533 = dma.done %s526, 16
        $region80: #{tpu_custom_call.1} parent=51 // pred_fallthru
          _
        %s534 = sand.u32 %s54, 1
        %s535 = scalar_lea.sflag [#allocation5], %s534
        %s536 = sand.u32 %s54, 1
        %s537 = smul.addr %s536, 12
        %s538 = scalar_lea.vmem [#allocation4], %s537
        %p539 = pneg %p67
        %p540 = pneg %p64
        %p541 = scmp.lt.s32.totalorder %s38, 1
        %s542 = scalar_select %p541, %s38, 1
        %s543 = smul.addr %s542, 96
        %s544 = smul.addr %s543, 8
        %s545 = scalar_lea.vmem %s1, %s544
        %p546 = pneg %p93
        %p547 = pneg %p90
        %s548 = sand.u32 %s34, 1
        %s549 = scalar_lea.sflag [#allocation8], %s548
        %s550 = sand.u32 %s108, 1
        %s551 = smul.addr %s550, 4608
        %s552 = scalar_lea.vmem [#allocation7], %s551
        %p553 = pneg %p121
        %p554 = pneg %p118
        %s555 = sand.u32 %s34, 1
        %s556 = scalar_lea.sflag [#allocation8], %s555
        %s557 = sand.u32 %s136, 1
        %s558 = smul.addr %s557, 12
        %s559 = scalar_lea.vmem [#allocation9], %s558
        %p560 = pneg %p149
        %p561 = pneg %p146
        %s562 = sand.u32 %s34, 1
        %s563 = scalar_lea.sflag [#allocation11], %s562
        %s564 = sand.u32 %s164, 1
        %s565 = smul.addr %s564, 4608
        %s566 = scalar_lea.vmem [#allocation10], %s565
        %p567 = pneg %p177
        %p568 = pneg %p174
        %s569 = sand.u32 %s34, 1
        %s570 = scalar_lea.sflag [#allocation11], %s569
        %s571 = sand.u32 %s190, 1
        %s572 = smul.addr %s571, 96
        %s573 = scalar_lea.vmem [#allocation12], %s572
        %p574 = pneg %p203
        %p575 = pneg %p200
        %s576 = sand.u32 %s34, 1
        %s577 = scalar_lea.sflag [#allocation14], %s576
        %s578 = sand.u32 %s216, 1
        %s579 = smul.addr %s578, 384
        %s580 = scalar_lea.vmem [#allocation13], %s579
        %p581 = pneg %p229
        %p582 = pneg %p226
        %s583 = sand.u32 %s34, 1
        %s584 = scalar_lea.sflag [#allocation14], %s583
        %s585 = sand.u32 %s242, 1
        %s586 = scalar_lea.vmem [#allocation15], %s585
        %p587 = pneg %p255
        %p588 = pneg %p252
        %p589 = pneg %p281
        %p590 = pneg %p278
        %s591 = sand.u32 %s268, 1
        %s592 = scalar_lea.sflag [#allocation6], %s591
        %s593 = sand.u32 %s268, 1
        %s594 = smul.addr %s593, 2
        %s595 = scalar_lea.vmem [#allocation16], %s594
        %p596 = scmp.lt.s32.totalorder %s38, 1
        %s597 = scalar_select %p596, %s38, 1
        %s598 = smul.addr %s597, 96
        %s599 = smul.addr %s598, 8
        %s600 = scalar_lea.vmem %s1, %s599
        %v601 = vld [vmem:[%s469] sm:$0xff]
        %v602 = vld [vmem:[%s469 + $0x8] sm:$0xf]
        %p603 = scmp.eq.s32.totalorder %s39, 0
        // Predicated region
        $region81: #{tpu_custom_call.1} parent=51 // pred_check
          %p604 = pneg %p603
        $region82: #{tpu_custom_call.1} parent=51 // pred_check_branch
          %606 = sbr.rel (%p604) target = $region84
        $region83: #{tpu_custom_call.1} parent=51 // pred_region
          %v607 = vld [vmem:[%s600] sm:$0xff]
          %v608 = vld [vmem:[%s600 + $0x8] sm:$0xff]
          %v609 = vld [vmem:[%s600 + $0x10] sm:$0xff]
          %v610 = vld [vmem:[%s600 + $0x18] sm:$0xff]
          %v611 = vld [vmem:[%s600 + $0x20] sm:$0xff]
          %v612 = vld [vmem:[%s600 + $0x28] sm:$0xff]
          %v613 = vld [vmem:[%s600 + $0x30] sm:$0xff]
          %v614 = vld [vmem:[%s600 + $0x38] sm:$0xff]
          %v615 = vld [vmem:[%s600 + $0x40] sm:$0xff]
          %v616 = vld [vmem:[%s600 + $0x48] sm:$0xff]
          %v617 = vld [vmem:[%s600 + $0x50] sm:$0xff]
          %v618 = vld [vmem:[%s600 + $0x58] sm:$0xff]
          %v619 = vld [vmem:[%s600 + $0x60] sm:$0xff]
          %v620 = vld [vmem:[%s600 + $0x68] sm:$0xff]
          %v621 = vld [vmem:[%s600 + $0x70] sm:$0xff]
          %v622 = vld [vmem:[%s600 + $0x78] sm:$0xff]
          %v623 = vld [vmem:[%s600 + $0x80] sm:$0xff]
          %v624 = vld [vmem:[%s600 + $0x88] sm:$0xff]
          %v625 = vld [vmem:[%s600 + $0x90] sm:$0xff]
          %v626 = vld [vmem:[%s600 + $0x98] sm:$0xff]
          %v627 = vld [vmem:[%s600 + $0xa0] sm:$0xff]
          %v628 = vld [vmem:[%s600 + $0xa8] sm:$0xff]
          %v629 = vld [vmem:[%s600 + $0xb0] sm:$0xff]
          %v630 = vld [vmem:[%s600 + $0xb8] sm:$0xff]
          %v631 = vld [vmem:[%s600 + $0xc0] sm:$0xff]
          %v632 = vld [vmem:[%s600 + $0xc8] sm:$0xff]
          %v633 = vld [vmem:[%s600 + $0xd0] sm:$0xff]
          %v634 = vld [vmem:[%s600 + $0xd8] sm:$0xff]
          %v635 = vld [vmem:[%s600 + $0xe0] sm:$0xff]
          %v636 = vld [vmem:[%s600 + $0xe8] sm:$0xff]
          %v637 = vld [vmem:[%s600 + $0xf0] sm:$0xff]
          %v638 = vld [vmem:[%s600 + $0xf8] sm:$0xff]
          %v639 = vld [vmem:[%s600 + $0x100] sm:$0xff]
          %v640 = vld [vmem:[%s600 + $0x108] sm:$0xff]
          %v641 = vld [vmem:[%s600 + $0x110] sm:$0xff]
          %v642 = vld [vmem:[%s600 + $0x118] sm:$0xff]
          %v643 = vld [vmem:[%s600 + $0x120] sm:$0xff]
          %v644 = vld [vmem:[%s600 + $0x128] sm:$0xff]
          %v645 = vld [vmem:[%s600 + $0x130] sm:$0xff]
          %v646 = vld [vmem:[%s600 + $0x138] sm:$0xff]
          %v647 = vld [vmem:[%s600 + $0x140] sm:$0xff]
          %v648 = vld [vmem:[%s600 + $0x148] sm:$0xff]
          %v649 = vld [vmem:[%s600 + $0x150] sm:$0xff]
          %v650 = vld [vmem:[%s600 + $0x158] sm:$0xff]
          %v651 = vld [vmem:[%s600 + $0x160] sm:$0xff]
          %v652 = vld [vmem:[%s600 + $0x168] sm:$0xff]
          %v653 = vld [vmem:[%s600 + $0x170] sm:$0xff]
          %v654 = vld [vmem:[%s600 + $0x178] sm:$0xff]
          %v655 = vld [vmem:[%s600 + $0x180] sm:$0xff]
          %v656 = vld [vmem:[%s600 + $0x188] sm:$0xff]
          %v657 = vld [vmem:[%s600 + $0x190] sm:$0xff]
          %v658 = vld [vmem:[%s600 + $0x198] sm:$0xff]
          %v659 = vld [vmem:[%s600 + $0x1a0] sm:$0xff]
          %v660 = vld [vmem:[%s600 + $0x1a8] sm:$0xff]
          %v661 = vld [vmem:[%s600 + $0x1b0] sm:$0xff]
          %v662 = vld [vmem:[%s600 + $0x1b8] sm:$0xff]
          %v663 = vld [vmem:[%s600 + $0x1c0] sm:$0xff]
          %v664 = vld [vmem:[%s600 + $0x1c8] sm:$0xff]
          %v665 = vld [vmem:[%s600 + $0x1d0] sm:$0xff]
          %v666 = vld [vmem:[%s600 + $0x1d8] sm:$0xff]
          %v667 = vld [vmem:[%s600 + $0x1e0] sm:$0xff]
          %v668 = vld [vmem:[%s600 + $0x1e8] sm:$0xff]
          %v669 = vld [vmem:[%s600 + $0x1f0] sm:$0xff]
          %v670 = vld [vmem:[%s600 + $0x1f8] sm:$0xff]
          %v671 = vld [vmem:[%s600 + $0x200] sm:$0xff]
          %v672 = vld [vmem:[%s600 + $0x208] sm:$0xff]
          %v673 = vld [vmem:[%s600 + $0x210] sm:$0xff]
          %v674 = vld [vmem:[%s600 + $0x218] sm:$0xff]
          %v675 = vld [vmem:[%s600 + $0x220] sm:$0xff]
          %v676 = vld [vmem:[%s600 + $0x228] sm:$0xff]
          %v677 = vld [vmem:[%s600 + $0x230] sm:$0xff]
          %v678 = vld [vmem:[%s600 + $0x238] sm:$0xff]
          %v679 = vld [vmem:[%s600 + $0x240] sm:$0xff]
          %v680 = vld [vmem:[%s600 + $0x248] sm:$0xff]
          %v681 = vld [vmem:[%s600 + $0x250] sm:$0xff]
          %v682 = vld [vmem:[%s600 + $0x258] sm:$0xff]
          %v683 = vld [vmem:[%s600 + $0x260] sm:$0xff]
          %v684 = vld [vmem:[%s600 + $0x268] sm:$0xff]
          %v685 = vld [vmem:[%s600 + $0x270] sm:$0xff]
          %v686 = vld [vmem:[%s600 + $0x278] sm:$0xff]
          %v687 = vld [vmem:[%s600 + $0x280] sm:$0xff]
          %v688 = vld [vmem:[%s600 + $0x288] sm:$0xff]
          %v689 = vld [vmem:[%s600 + $0x290] sm:$0xff]
          %v690 = vld [vmem:[%s600 + $0x298] sm:$0xff]
          %v691 = vld [vmem:[%s600 + $0x2a0] sm:$0xff]
          %v692 = vld [vmem:[%s600 + $0x2a8] sm:$0xff]
          %v693 = vld [vmem:[%s600 + $0x2b0] sm:$0xff]
          %v694 = vld [vmem:[%s600 + $0x2b8] sm:$0xff]
          %v695 = vld [vmem:[%s600 + $0x2c0] sm:$0xff]
          %v696 = vld [vmem:[%s600 + $0x2c8] sm:$0xff]
          %v697 = vld [vmem:[%s600 + $0x2d0] sm:$0xff]
          %v698 = vld [vmem:[%s600 + $0x2d8] sm:$0xff]
          %v699 = vld [vmem:[%s600 + $0x2e0] sm:$0xff]
          %v700 = vld [vmem:[%s600 + $0x2e8] sm:$0xff]
          %v701 = vld [vmem:[%s600 + $0x2f0] sm:$0xff]
          %v702 = vld [vmem:[%s600 + $0x2f8] sm:$0xff]
          %705 = vst [vmem:[#allocation1] ss:$4 sm:$0xff] %v601
          %s706 = scalar_lea.vmem [#allocation1], 32
          %707 = vst [vmem:[%s706] ss:$4 sm:$0xff] %v602
          %v708 = vld.sshfl [vmem:[#allocation1] sm:$0xff pattern:$0x73625140]
          %v709 = vld.sshfl [vmem:[#allocation1 + $0x8] sm:$0xff pattern:$0x73625140]
          %v710 = vld.sshfl [vmem:[#allocation1 + $0x10] sm:$0xff pattern:$0x73625140]
          %v711 = vld.sshfl [vmem:[#allocation1 + $0x18] sm:$0xff pattern:$0x73625140]
          %v712 = vld.sshfl [vmem:[#allocation1 + $0x20] sm:$0xff pattern:$0x73625140]
          %v713 = vld.sshfl [vmem:[#allocation1 + $0x28] sm:$0xff pattern:$0x73625140]
          %720 = vmatpush.msra.mxu0 %v622
          %721 = vmatpush.msra.mxu0 %v621
          %722 = vmatpush.msra.mxu0 %v620
          %723 = vmatpush.msra.mxu0 %v619
          %724 = vmatpush.msra.mxu0 %v618
          %725 = vmatpush.msra.mxu0 %v617
          %726 = vmatpush.msra.mxu0 %v616
          %727 = vmatpush.msra.mxu0 %v615
          %728 = vmatpush.msra.mxu0 %v614
          %729 = vmatpush.msra.mxu0 %v613
          %730 = vmatpush.msra.mxu0 %v612
          %731 = vmatpush.msra.mxu0 %v611
          %732 = vmatpush.msra.mxu0 %v610
          %733 = vmatpush.msra.mxu0 %v609
          %734 = vmatpush.msra.mxu0 %v608
          %735 = vmatpush.msra.mxu0 %v607
          %736 = vmatmul.f32.gmra.mxu0 %v708
          %v737 = vpop.f32.mrf.mxu0
          %v738 = vadd.f32 0.0, %v737
          %739 = vdwg.mxu0
          %740 = vmatpush.msra.mxu0 %v638
          %741 = vmatpush.msra.mxu0 %v637
          %742 = vmatpush.msra.mxu0 %v636
          %743 = vmatpush.msra.mxu0 %v635
          %744 = vmatpush.msra.mxu0 %v634
          %745 = vmatpush.msra.mxu0 %v633
          %746 = vmatpush.msra.mxu0 %v632
          %747 = vmatpush.msra.mxu0 %v631
          %748 = vmatpush.msra.mxu0 %v630
          %749 = vmatpush.msra.mxu0 %v629
          %750 = vmatpush.msra.mxu0 %v628
          %751 = vmatpush.msra.mxu0 %v627
          %752 = vmatpush.msra.mxu0 %v626
          %753 = vmatpush.msra.mxu0 %v625
          %754 = vmatpush.msra.mxu0 %v624
          %755 = vmatpush.msra.mxu0 %v623
          %756 = vmatmul.f32.gmra.mxu0 %v709
          %v757 = vpop.f32.mrf.mxu0
          %v758 = vadd.f32 %v738, %v757
          %759 = vdwg.mxu0
          %760 = vmatpush.msra.mxu0 %v654
          %761 = vmatpush.msra.mxu0 %v653
          %762 = vmatpush.msra.mxu0 %v652
          %763 = vmatpush.msra.mxu0 %v651
          %764 = vmatpush.msra.mxu0 %v650
          %765 = vmatpush.msra.mxu0 %v649
          %766 = vmatpush.msra.mxu0 %v648
          %767 = vmatpush.msra.mxu0 %v647
          %768 = vmatpush.msra.mxu0 %v646
          %769 = vmatpush.msra.mxu0 %v645
          %770 = vmatpush.msra.mxu0 %v644
          %771 = vmatpush.msra.mxu0 %v643
          %772 = vmatpush.msra.mxu0 %v642
          %773 = vmatpush.msra.mxu0 %v641
          %774 = vmatpush.msra.mxu0 %v640
          %775 = vmatpush.msra.mxu0 %v639
          %776 = vmatmul.f32.gmra.mxu0 %v710
          %v777 = vpop.f32.mrf.mxu0
          %v778 = vadd.f32 %v758, %v777
          %779 = vdwg.mxu0
          %780 = vmatpush.msra.mxu0 %v670
          %781 = vmatpush.msra.mxu0 %v669
          %782 = vmatpush.msra.mxu0 %v668
          %783 = vmatpush.msra.mxu0 %v667
          %784 = vmatpush.msra.mxu0 %v666
          %785 = vmatpush.msra.mxu0 %v665
          %786 = vmatpush.msra.mxu0 %v664
          %787 = vmatpush.msra.mxu0 %v663
          %788 = vmatpush.msra.mxu0 %v662
          %789 = vmatpush.msra.mxu0 %v661
          %790 = vmatpush.msra.mxu0 %v660
          %791 = vmatpush.msra.mxu0 %v659
          %792 = vmatpush.msra.mxu0 %v658
          %793 = vmatpush.msra.mxu0 %v657
          %794 = vmatpush.msra.mxu0 %v656
          %795 = vmatpush.msra.mxu0 %v655
          %796 = vmatmul.f32.gmra.mxu0 %v711
          %v797 = vpop.f32.mrf.mxu0
          %v798 = vadd.f32 %v778, %v797
          %799 = vdwg.mxu0
          %800 = vmatpush.msra.mxu0 %v686
          %801 = vmatpush.msra.mxu0 %v685
          %802 = vmatpush.msra.mxu0 %v684
          %803 = vmatpush.msra.mxu0 %v683
          %804 = vmatpush.msra.mxu0 %v682
          %805 = vmatpush.msra.mxu0 %v681
          %806 = vmatpush.msra.mxu0 %v680
          %807 = vmatpush.msra.mxu0 %v679
          %808 = vmatpush.msra.mxu0 %v678
          %809 = vmatpush.msra.mxu0 %v677
          %810 = vmatpush.msra.mxu0 %v676
          %811 = vmatpush.msra.mxu0 %v675
          %812 = vmatpush.msra.mxu0 %v674
          %813 = vmatpush.msra.mxu0 %v673
          %814 = vmatpush.msra.mxu0 %v672
          %815 = vmatpush.msra.mxu0 %v671
          %816 = vmatmul.f32.gmra.mxu0 %v712
          %v817 = vpop.f32.mrf.mxu0
          %v818 = vadd.f32 %v798, %v817
          %819 = vdwg.mxu0
          %820 = vmatpush.msra.mxu0 %v702
          %821 = vmatpush.msra.mxu0 %v701
          %822 = vmatpush.msra.mxu0 %v700
          %823 = vmatpush.msra.mxu0 %v699
          %824 = vmatpush.msra.mxu0 %v698
          %825 = vmatpush.msra.mxu0 %v697
          %826 = vmatpush.msra.mxu0 %v696
          %827 = vmatpush.msra.mxu0 %v695
          %828 = vmatpush.msra.mxu0 %v694
          %829 = vmatpush.msra.mxu0 %v693
          %830 = vmatpush.msra.mxu0 %v692
          %831 = vmatpush.msra.mxu0 %v691
          %832 = vmatpush.msra.mxu0 %v690
          %833 = vmatpush.msra.mxu0 %v689
          %834 = vmatpush.msra.mxu0 %v688
          %835 = vmatpush.msra.mxu0 %v687
          %836 = vmatmul.f32.gmra.mxu0 %v713
          %v837 = vpop.f32.mrf.mxu0
          %v838 = vadd.f32 %v818, %v837
          %839 = vdwg.mxu0
          %v840 = vlaneseq
          %v841 = vand.u32 %v840, 127
          %vm842 = vcmp.eq.s32.totalorder %v841, 0
          %v843 = vsel %vm842, %v838, 0.0
          %vm844 = vcmask 123904
          %v845 = vsel %vm844, %v843, 0.0
          %846 = vadd.xlane.f32.xlu0 %v845
          %v847 = vpop.xlane.xlu0 %846
          %vm848 = vcmp.gt.f32.partialorder %v847, %v838
          %v849 = vsel %vm848, 1.0, 0.0
          %v850 = vadd.f32 %v849, 0.0
          %vm851 = vcmp.eq.s32.totalorder %v841, 1
          %v852 = vsel %vm851, %v838, 0.0
          %v853 = vsel %vm844, %v852, 0.0
          %854 = vadd.xlane.f32.xlu0 %v853
          %v855 = vpop.xlane.xlu0 %854
          %vm856 = vcmp.gt.f32.partialorder %v855, %v838
          %v857 = vsel %vm856, 1.0, 0.0
          %v858 = vadd.f32 %v850, %v857
          %vm859 = vcmp.eq.s32.totalorder %v841, 2
          %v860 = vsel %vm859, %v838, 0.0
          %v861 = vsel %vm844, %v860, 0.0
          %862 = vadd.xlane.f32.xlu0 %v861
          %v863 = vpop.xlane.xlu0 %862
          %vm864 = vcmp.gt.f32.partialorder %v863, %v838
          %v865 = vsel %vm864, 1.0, 0.0
          %v866 = vadd.f32 %v858, %v865
          %vm867 = vcmp.eq.s32.totalorder %v841, 3
          %v868 = vsel %vm867, %v838, 0.0
          %v869 = vsel %vm844, %v868, 0.0
          %870 = vadd.xlane.f32.xlu0 %v869
          %v871 = vpop.xlane.xlu0 %870
          %vm872 = vcmp.gt.f32.partialorder %v871, %v838
          %v873 = vsel %vm872, 1.0, 0.0
          %v874 = vadd.f32 %v866, %v873
          %vm875 = vcmp.eq.s32.totalorder %v841, 4
          %v876 = vsel %vm875, %v838, 0.0
          %v877 = vsel %vm844, %v876, 0.0
          %878 = vadd.xlane.f32.xlu0 %v877
          %v879 = vpop.xlane.xlu0 %878
          %vm880 = vcmp.gt.f32.partialorder %v879, %v838
          %v881 = vsel %vm880, 1.0, 0.0
          %v882 = vadd.f32 %v874, %v881
          %vm883 = vcmp.eq.s32.totalorder %v841, 5
          %v884 = vsel %vm883, %v838, 0.0
          %v885 = vsel %vm844, %v884, 0.0
          %886 = vadd.xlane.f32.xlu0 %v885
          %v887 = vpop.xlane.xlu0 %886
          %vm888 = vcmp.gt.f32.partialorder %v887, %v838
          %v889 = vsel %vm888, 1.0, 0.0
          %v890 = vadd.f32 %v882, %v889
          %vm891 = vcmp.eq.s32.totalorder %v841, 6
          %v892 = vsel %vm891, %v838, 0.0
          %v893 = vsel %vm844, %v892, 0.0
          %894 = vadd.xlane.f32.xlu0 %v893
          %v895 = vpop.xlane.xlu0 %894
          %vm896 = vcmp.gt.f32.partialorder %v895, %v838
          %v897 = vsel %vm896, 1.0, 0.0
          %v898 = vadd.f32 %v890, %v897
          %vm899 = vcmp.eq.s32.totalorder %v841, 7
          %v900 = vsel %vm899, %v838, 0.0
          %v901 = vsel %vm844, %v900, 0.0
          %902 = vadd.xlane.f32.xlu0 %v901
          %v903 = vpop.xlane.xlu0 %902
          %vm904 = vcmp.gt.f32.partialorder %v903, %v838
          %v905 = vsel %vm904, 1.0, 0.0
          %v906 = vadd.f32 %v898, %v905
          %vm907 = vcmp.eq.s32.totalorder %v841, 8
          %v908 = vsel %vm907, %v838, 0.0
          %v909 = vsel %vm844, %v908, 0.0
          %910 = vadd.xlane.f32.xlu0 %v909
          %v911 = vpop.xlane.xlu0 %910
          %vm912 = vcmp.gt.f32.partialorder %v911, %v838
          %v913 = vsel %vm912, 1.0, 0.0
          %v914 = vadd.f32 %v906, %v913
          %vm915 = vcmp.eq.s32.totalorder %v841, 9
          %v916 = vsel %vm915, %v838, 0.0
          %v917 = vsel %vm844, %v916, 0.0
          %918 = vadd.xlane.f32.xlu0 %v917
          %v919 = vpop.xlane.xlu0 %918
          %vm920 = vcmp.gt.f32.partialorder %v919, %v838
          %v921 = vsel %vm920, 1.0, 0.0
          %v922 = vadd.f32 %v914, %v921
          %vm923 = vcmp.eq.s32.totalorder %v841, 10
          %v924 = vsel %vm923, %v838, 0.0
          %v925 = vsel %vm844, %v924, 0.0
          %926 = vadd.xlane.f32.xlu0 %v925
          %v927 = vpop.xlane.xlu0 %926
          %vm928 = vcmp.gt.f32.partialorder %v927, %v838
          %v929 = vsel %vm928, 1.0, 0.0
          %v930 = vadd.f32 %v922, %v929
          %vm931 = vcmp.eq.s32.totalorder %v841, 11
          %v932 = vsel %vm931, %v838, 0.0
          %v933 = vsel %vm844, %v932, 0.0
          %934 = vadd.xlane.f32.xlu0 %v933
          %v935 = vpop.xlane.xlu0 %934
          %vm936 = vcmp.gt.f32.partialorder %v935, %v838
          %v937 = vsel %vm936, 1.0, 0.0
          %v938 = vadd.f32 %v930, %v937
          %vm939 = vcmp.eq.s32.totalorder %v841, 12
          %v940 = vsel %vm939, %v838, 0.0
          %v941 = vsel %vm844, %v940, 0.0
          %942 = vadd.xlane.f32.xlu0 %v941
          %v943 = vpop.xlane.xlu0 %942
          %vm944 = vcmp.gt.f32.partialorder %v943, %v838
          %v945 = vsel %vm944, 1.0, 0.0
          %v946 = vadd.f32 %v938, %v945
          %vm947 = vcmp.eq.s32.totalorder %v841, 13
          %v948 = vsel %vm947, %v838, 0.0
          %v949 = vsel %vm844, %v948, 0.0
          %950 = vadd.xlane.f32.xlu0 %v949
          %v951 = vpop.xlane.xlu0 %950
          %vm952 = vcmp.gt.f32.partialorder %v951, %v838
          %v953 = vsel %vm952, 1.0, 0.0
          %v954 = vadd.f32 %v946, %v953
          %vm955 = vcmp.eq.s32.totalorder %v841, 14
          %v956 = vsel %vm955, %v838, 0.0
          %v957 = vsel %vm844, %v956, 0.0
          %958 = vadd.xlane.f32.xlu0 %v957
          %v959 = vpop.xlane.xlu0 %958
          %vm960 = vcmp.gt.f32.partialorder %v959, %v838
          %v961 = vsel %vm960, 1.0, 0.0
          %v962 = vadd.f32 %v954, %v961
          %vm963 = vcmp.eq.s32.totalorder %v841, 15
          %v964 = vsel %vm963, %v838, 0.0
          %v965 = vsel %vm844, %v964, 0.0
          %966 = vadd.xlane.f32.xlu0 %v965
          %v967 = vpop.xlane.xlu0 %966
          %vm968 = vcmp.gt.f32.partialorder %v967, %v838
          %v969 = vsel %vm968, 1.0, 0.0
          %v970 = vadd.f32 %v962, %v969
          %vm971 = vcmp.lt.f32.partialorder %v970, 12.0
          %v972 = vsel %vm971, %v838, -1e+30
          %v973 = vsel %vm844, %v972, -inf
          %974 = vmax.xlane.f32.xlu0 %v973
          %v975 = vpop.xlane.xlu0 %974
          %v976 = vsub.f32 %v972, %v975
          %v977 = vmul.f32 %v976, 1.442695
          %v978 = vpow.pop %v977
          %v979 = vsel %vm844, %v978, 0.0
          %980 = vadd.xlane.f32.xlu0 %v979
          %v981 = vpop.xlane.xlu0 %980
          %v982 = vrcp.pop %v981
          %v983 = vmul.f32 %v981, %v982
          %v984 = vsub.f32 1.0, %v983
          %v985 = vmul.f32 %v982, %v984
          %v986 = vadd.f32 %v982, %v985
          %vm987 = vweird.f32 %v981
          %vm988 = vweird.f32 %v982
          %vm989 = vmor %vm987, %vm988
          %v990 = vsel %vm989, %v982, %v986
          %v991 = vand.u32 2147483647, %v981
          %vm992 = vcmp.eq.f32.partialorder %v991, 8.507059e+37
          %v993 = vand.u32 %v981, 2147483648
          %v994 = vor.u32 1.1754944e-38, %v993
          %v995 = vsel %vm992, %v994, %v990
          %v996 = vmul.f32 %v978, %v995
          %997 = vst.msk [vmem:[#allocation2] sm:$0x3] %vm844, %v996
          %v998 = vld [vmem:[%s509] sm:$0xff]
          %v999 = vld [vmem:[%s509 + $0x8] sm:$0xff]
          %v1000 = vld [vmem:[%s509 + $0x10] sm:$0xff]
          %v1001 = vld [vmem:[%s509 + $0x18] sm:$0xff]
          %v1002 = vld [vmem:[%s509 + $0x20] sm:$0xff]
          %v1003 = vld [vmem:[%s509 + $0x28] sm:$0xff]
          %v1004 = vld [vmem:[%s509 + $0x30] sm:$0xff]
          %v1005 = vld [vmem:[%s509 + $0x38] sm:$0xff]
          %v1006 = vld [vmem:[%s509 + $0x40] sm:$0xff]
          %v1007 = vld [vmem:[%s509 + $0x48] sm:$0xff]
          %v1008 = vld [vmem:[%s509 + $0x50] sm:$0xff]
          %v1009 = vld [vmem:[%s509 + $0x58] sm:$0xff]
          %vm1010 = vcmask 130048
          %v1012 = vsel %vm1010, %v996, 0
          %1014 = vmatpush.msra.mxu0 0.0
          %1015 = vmatpush.msra.mxu0 0.0
          %1016 = vmatpush.msra.mxu0 0.0
          %1017 = vmatpush.msra.mxu0 0.0
          %1018 = vmatpush.msra.mxu0 0.0
          %1019 = vmatpush.msra.mxu0 0.0
          %1020 = vmatpush.msra.mxu0 0.0
          %1021 = vmatpush.msra.mxu0 0.0
          %1022 = vmatpush.msra.mxu0 0.0
          %1023 = vmatpush.msra.mxu0 0.0
          %1024 = vmatpush.msra.mxu0 0.0
          %1025 = vmatpush.msra.mxu0 0.0
          %1026 = vmatpush.msra.mxu0 0.0
          %1027 = vmatpush.msra.mxu0 0.0
          %1028 = vmatpush.msra.mxu0 %v1004
          %1029 = vmatpush.msra.mxu0 %v998
          %1030 = vmatmul.f32.gmra.mxu0 %v1012
          %v1031 = vpop.f32.mrf.mxu0
          %v1032 = vadd.f32 0.0, %v1031
          %1033 = vdwg.mxu0
          %1034 = vmatpush.msra.mxu0 0.0
          %1035 = vmatpush.msra.mxu0 0.0
          %1036 = vmatpush.msra.mxu0 0.0
          %1037 = vmatpush.msra.mxu0 0.0
          %1038 = vmatpush.msra.mxu0 0.0
          %1039 = vmatpush.msra.mxu0 0.0
          %1040 = vmatpush.msra.mxu0 0.0
          %1041 = vmatpush.msra.mxu0 0.0
          %1042 = vmatpush.msra.mxu0 0.0
          %1043 = vmatpush.msra.mxu0 0.0
          %1044 = vmatpush.msra.mxu0 0.0
          %1045 = vmatpush.msra.mxu0 0.0
          %1046 = vmatpush.msra.mxu0 0.0
          %1047 = vmatpush.msra.mxu0 0.0
          %1048 = vmatpush.msra.mxu0 %v1005
          %1049 = vmatpush.msra.mxu0 %v999
          %1050 = vmatmul.f32.gmra.mxu0 %v1012
          %v1051 = vpop.f32.mrf.mxu0
          %v1052 = vadd.f32 0.0, %v1051
          %1053 = vdwg.mxu0
          %1054 = vmatpush.msra.mxu0 0.0
          %1055 = vmatpush.msra.mxu0 0.0
          %1056 = vmatpush.msra.mxu0 0.0
          %1057 = vmatpush.msra.mxu0 0.0
          %1058 = vmatpush.msra.mxu0 0.0
          %1059 = vmatpush.msra.mxu0 0.0
          %1060 = vmatpush.msra.mxu0 0.0
          %1061 = vmatpush.msra.mxu0 0.0
          %1062 = vmatpush.msra.mxu0 0.0
          %1063 = vmatpush.msra.mxu0 0.0
          %1064 = vmatpush.msra.mxu0 0.0
          %1065 = vmatpush.msra.mxu0 0.0
          %1066 = vmatpush.msra.mxu0 0.0
          %1067 = vmatpush.msra.mxu0 0.0
          %1068 = vmatpush.msra.mxu0 %v1006
          %1069 = vmatpush.msra.mxu0 %v1000
          %1070 = vmatmul.f32.gmra.mxu0 %v1012
          %v1071 = vpop.f32.mrf.mxu0
          %v1072 = vadd.f32 0.0, %v1071
          %1073 = vdwg.mxu0
          %1074 = vmatpush.msra.mxu0 0.0
          %1075 = vmatpush.msra.mxu0 0.0
          %1076 = vmatpush.msra.mxu0 0.0
          %1077 = vmatpush.msra.mxu0 0.0
          %1078 = vmatpush.msra.mxu0 0.0
          %1079 = vmatpush.msra.mxu0 0.0
          %1080 = vmatpush.msra.mxu0 0.0
          %1081 = vmatpush.msra.mxu0 0.0
          %1082 = vmatpush.msra.mxu0 0.0
          %1083 = vmatpush.msra.mxu0 0.0
          %1084 = vmatpush.msra.mxu0 0.0
          %1085 = vmatpush.msra.mxu0 0.0
          %1086 = vmatpush.msra.mxu0 0.0
          %1087 = vmatpush.msra.mxu0 0.0
          %1088 = vmatpush.msra.mxu0 %v1007
          %1089 = vmatpush.msra.mxu0 %v1001
          %1090 = vmatmul.f32.gmra.mxu0 %v1012
          %v1091 = vpop.f32.mrf.mxu0
          %v1092 = vadd.f32 0.0, %v1091
          %1093 = vdwg.mxu0
          %1094 = vmatpush.msra.mxu0 0.0
          %1095 = vmatpush.msra.mxu0 0.0
          %1096 = vmatpush.msra.mxu0 0.0
          %1097 = vmatpush.msra.mxu0 0.0
          %1098 = vmatpush.msra.mxu0 0.0
          %1099 = vmatpush.msra.mxu0 0.0
          %1100 = vmatpush.msra.mxu0 0.0
          %1101 = vmatpush.msra.mxu0 0.0
          %1102 = vmatpush.msra.mxu0 0.0
          %1103 = vmatpush.msra.mxu0 0.0
          %1104 = vmatpush.msra.mxu0 0.0
          %1105 = vmatpush.msra.mxu0 0.0
          %1106 = vmatpush.msra.mxu0 0.0
          %1107 = vmatpush.msra.mxu0 0.0
          %1108 = vmatpush.msra.mxu0 %v1008
          %1109 = vmatpush.msra.mxu0 %v1002
          %1110 = vmatmul.f32.gmra.mxu0 %v1012
          %v1111 = vpop.f32.mrf.mxu0
          %v1112 = vadd.f32 0.0, %v1111
          %1113 = vdwg.mxu0
          %1114 = vmatpush.msra.mxu0 0.0
          %1115 = vmatpush.msra.mxu0 0.0
          %1116 = vmatpush.msra.mxu0 0.0
          %1117 = vmatpush.msra.mxu0 0.0
          %1118 = vmatpush.msra.mxu0 0.0
          %1119 = vmatpush.msra.mxu0 0.0
          %1120 = vmatpush.msra.mxu0 0.0
          %1121 = vmatpush.msra.mxu0 0.0
          %1122 = vmatpush.msra.mxu0 0.0
          %1123 = vmatpush.msra.mxu0 0.0
          %1124 = vmatpush.msra.mxu0 0.0
          %1125 = vmatpush.msra.mxu0 0.0
          %1126 = vmatpush.msra.mxu0 0.0
          %1127 = vmatpush.msra.mxu0 0.0
          %1128 = vmatpush.msra.mxu0 %v1009
          %1129 = vmatpush.msra.mxu0 %v1003
          %1130 = vmatmul.f32.gmra.mxu0 %v1012
          %v1131 = vpop.f32.mrf.mxu0
          %v1132 = vadd.f32 0.0, %v1131
          %1133 = vdwg.mxu0
          %v1140 = vrot.slane %v1052, 6
          %v1141 = vrot.slane %v1072, 4
          %v1142 = vrot.slane %v1092, 2
          %v1143 = vrot.slane %v1132, 6
          %vm1144 = vcmask 1041408
          %v1145 = vsel %vm1144, %v1032, %v1140
          %vm1146 = vcmask 1045508
          %v1147 = vsel %vm1146, %v1141, %v1142
          %vm1148 = vcmask 1043456
          %v1149 = vsel %vm1148, %v1145, %v1147
          %v1150 = vsel %vm1144, %v1112, %v1143
          %1153 = vst [vmem:[#allocation3] sm:$0xff] %v1149
          %1154 = vst [vmem:[#allocation3 + $0x8] sm:$0xf] %v1150
        $region84: #{tpu_custom_call.1} parent=51 // pred_fallthru
          _
        %1157 = vst [vmem:[#allocation1] ss:$4 sm:$0xff] %v601
        %s1158 = scalar_lea.vmem [#allocation1], 32
        %1159 = vst [vmem:[%s1158] ss:$4 sm:$0xff] %v602
        %v1160 = vld.sshfl [vmem:[#allocation1] sm:$0xff pattern:$0x73625140]
        %v1161 = vld.sshfl [vmem:[#allocation1 + $0x8] sm:$0xff pattern:$0x73625140]
        %v1162 = vld.sshfl [vmem:[#allocation1 + $0x10] sm:$0xff pattern:$0x73625140]
        %v1163 = vld.sshfl [vmem:[#allocation1 + $0x18] sm:$0xff pattern:$0x73625140]
        %v1164 = vld.sshfl [vmem:[#allocation1 + $0x20] sm:$0xff pattern:$0x73625140]
        %v1165 = vld.sshfl [vmem:[#allocation1 + $0x28] sm:$0xff pattern:$0x73625140]
        %v1172 = vpack.c.bf16 %v1160, %v1160
        %v1173 = vpack.c.bf16 %v1161, %v1161
        %v1174 = vpack.c.bf16 %v1162, %v1162
        %v1175 = vpack.c.bf16 %v1163, %v1163
        %v1176 = vpack.c.bf16 %v1164, %v1164
        %v1177 = vpack.c.bf16 %v1165, %v1165
        %v1178 = vld [vmem:[%s479] sm:$0xff]
        %v1179 = vld [vmem:[%s479 + $0x8] sm:$0xff]
        %v1180 = vld [vmem:[%s479 + $0x10] sm:$0xff]
        %v1181 = vld [vmem:[%s479 + $0x18] sm:$0xff]
        %v1182 = vld [vmem:[%s479 + $0x20] sm:$0xff]
        %v1183 = vld [vmem:[%s479 + $0x28] sm:$0xff]
        %v1184 = vld [vmem:[%s479 + $0x30] sm:$0xff]
        %v1185 = vld [vmem:[%s479 + $0x38] sm:$0xff]
        %v1186 = vld [vmem:[%s479 + $0x40] sm:$0xff]
        %v1187 = vld [vmem:[%s479 + $0x48] sm:$0xff]
        %v1188 = vld [vmem:[%s479 + $0x50] sm:$0xff]
        %v1189 = vld [vmem:[%s479 + $0x58] sm:$0xff]
        %v1190 = vld [vmem:[%s479 + $0x60] sm:$0xff]
        %v1191 = vld [vmem:[%s479 + $0x68] sm:$0xff]
        %v1192 = vld [vmem:[%s479 + $0x70] sm:$0xff]
        %v1193 = vld [vmem:[%s479 + $0x78] sm:$0xff]
        %v1194 = vld [vmem:[%s479 + $0x80] sm:$0xff]
        %v1195 = vld [vmem:[%s479 + $0x88] sm:$0xff]
        %v1196 = vld [vmem:[%s479 + $0x90] sm:$0xff]
        %v1197 = vld [vmem:[%s479 + $0x98] sm:$0xff]
        %v1198 = vld [vmem:[%s479 + $0xa0] sm:$0xff]
        %v1199 = vld [vmem:[%s479 + $0xa8] sm:$0xff]
        %v1200 = vld [vmem:[%s479 + $0xb0] sm:$0xff]
        %v1201 = vld [vmem:[%s479 + $0xb8] sm:$0xff]
        %v1202 = vld [vmem:[%s479 + $0xc0] sm:$0xff]
        %v1203 = vld [vmem:[%s479 + $0xc8] sm:$0xff]
        %v1204 = vld [vmem:[%s479 + $0xd0] sm:$0xff]
        %v1205 = vld [vmem:[%s479 + $0xd8] sm:$0xff]
        %v1206 = vld [vmem:[%s479 + $0xe0] sm:$0xff]
        %v1207 = vld [vmem:[%s479 + $0xe8] sm:$0xff]
        %v1208 = vld [vmem:[%s479 + $0xf0] sm:$0xff]
        %v1209 = vld [vmem:[%s479 + $0xf8] sm:$0xff]
        %v1210 = vld [vmem:[%s479 + $0x100] sm:$0xff]
        %v1211 = vld [vmem:[%s479 + $0x108] sm:$0xff]
        %v1212 = vld [vmem:[%s479 + $0x110] sm:$0xff]
        %v1213 = vld [vmem:[%s479 + $0x118] sm:$0xff]
        %v1214 = vld [vmem:[%s479 + $0x120] sm:$0xff]
        %v1215 = vld [vmem:[%s479 + $0x128] sm:$0xff]
        %v1216 = vld [vmem:[%s479 + $0x130] sm:$0xff]
        %v1217 = vld [vmem:[%s479 + $0x138] sm:$0xff]
        %v1218 = vld [vmem:[%s479 + $0x140] sm:$0xff]
        %v1219 = vld [vmem:[%s479 + $0x148] sm:$0xff]
        %v1220 = vld [vmem:[%s479 + $0x150] sm:$0xff]
        %v1221 = vld [vmem:[%s479 + $0x158] sm:$0xff]
        %v1222 = vld [vmem:[%s479 + $0x160] sm:$0xff]
        %v1223 = vld [vmem:[%s479 + $0x168] sm:$0xff]
        %v1224 = vld [vmem:[%s479 + $0x170] sm:$0xff]
        %v1225 = vld [vmem:[%s479 + $0x178] sm:$0xff]
        %v1226 = vld [vmem:[%s479 + $0x180] sm:$0xff]
        %v1227 = vld [vmem:[%s479 + $0x188] sm:$0xff]
        %v1228 = vld [vmem:[%s479 + $0x190] sm:$0xff]
        %v1229 = vld [vmem:[%s479 + $0x198] sm:$0xff]
        %v1230 = vld [vmem:[%s479 + $0x1a0] sm:$0xff]
        %v1231 = vld [vmem:[%s479 + $0x1a8] sm:$0xff]
        %v1232 = vld [vmem:[%s479 + $0x1b0] sm:$0xff]
        %v1233 = vld [vmem:[%s479 + $0x1b8] sm:$0xff]
        %v1234 = vld [vmem:[%s479 + $0x1c0] sm:$0xff]
        %v1235 = vld [vmem:[%s479 + $0x1c8] sm:$0xff]
        %v1236 = vld [vmem:[%s479 + $0x1d0] sm:$0xff]
        %v1237 = vld [vmem:[%s479 + $0x1d8] sm:$0xff]
        %v1238 = vld [vmem:[%s479 + $0x1e0] sm:$0xff]
        %v1239 = vld [vmem:[%s479 + $0x1e8] sm:$0xff]
        %v1240 = vld [vmem:[%s479 + $0x1f0] sm:$0xff]
        %v1241 = vld [vmem:[%s479 + $0x1f8] sm:$0xff]
        %v1242 = vld [vmem:[%s479 + $0x200] sm:$0xff]
        %v1243 = vld [vmem:[%s479 + $0x208] sm:$0xff]
        %v1244 = vld [vmem:[%s479 + $0x210] sm:$0xff]
        %v1245 = vld [vmem:[%s479 + $0x218] sm:$0xff]
        %v1246 = vld [vmem:[%s479 + $0x220] sm:$0xff]
        %v1247 = vld [vmem:[%s479 + $0x228] sm:$0xff]
        %v1248 = vld [vmem:[%s479 + $0x230] sm:$0xff]
        %v1249 = vld [vmem:[%s479 + $0x238] sm:$0xff]
        %v1250 = vld [vmem:[%s479 + $0x240] sm:$0xff]
        %v1251 = vld [vmem:[%s479 + $0x248] sm:$0xff]
        %v1252 = vld [vmem:[%s479 + $0x250] sm:$0xff]
        %v1253 = vld [vmem:[%s479 + $0x258] sm:$0xff]
        %v1254 = vld [vmem:[%s479 + $0x260] sm:$0xff]
        %v1255 = vld [vmem:[%s479 + $0x268] sm:$0xff]
        %v1256 = vld [vmem:[%s479 + $0x270] sm:$0xff]
        %v1257 = vld [vmem:[%s479 + $0x278] sm:$0xff]
        %v1258 = vld [vmem:[%s479 + $0x280] sm:$0xff]
        %v1259 = vld [vmem:[%s479 + $0x288] sm:$0xff]
        %v1260 = vld [vmem:[%s479 + $0x290] sm:$0xff]
        %v1261 = vld [vmem:[%s479 + $0x298] sm:$0xff]
        %v1262 = vld [vmem:[%s479 + $0x2a0] sm:$0xff]
        %v1263 = vld [vmem:[%s479 + $0x2a8] sm:$0xff]
        %v1264 = vld [vmem:[%s479 + $0x2b0] sm:$0xff]
        %v1265 = vld [vmem:[%s479 + $0x2b8] sm:$0xff]
        %v1266 = vld [vmem:[%s479 + $0x2c0] sm:$0xff]
        %v1267 = vld [vmem:[%s479 + $0x2c8] sm:$0xff]
        %v1268 = vld [vmem:[%s479 + $0x2d0] sm:$0xff]
        %v1269 = vld [vmem:[%s479 + $0x2d8] sm:$0xff]
        %v1270 = vld [vmem:[%s479 + $0x2e0] sm:$0xff]
        %v1271 = vld [vmem:[%s479 + $0x2e8] sm:$0xff]
        %v1272 = vld [vmem:[%s479 + $0x2f0] sm:$0xff]
        %v1273 = vld [vmem:[%s479 + $0x2f8] sm:$0xff]
        %v1274 = vld [vmem:[%s479 + $0x300] sm:$0xff]
        %v1275 = vld [vmem:[%s479 + $0x308] sm:$0xff]
        %v1276 = vld [vmem:[%s479 + $0x310] sm:$0xff]
        %v1277 = vld [vmem:[%s479 + $0x318] sm:$0xff]
        %v1278 = vld [vmem:[%s479 + $0x320] sm:$0xff]
        %v1279 = vld [vmem:[%s479 + $0x328] sm:$0xff]
        %v1280 = vld [vmem:[%s479 + $0x330] sm:$0xff]
        %v1281 = vld [vmem:[%s479 + $0x338] sm:$0xff]
        %v1282 = vld [vmem:[%s479 + $0x340] sm:$0xff]
        %v1283 = vld [vmem:[%s479 + $0x348] sm:$0xff]
        %v1284 = vld [vmem:[%s479 + $0x350] sm:$0xff]
        %v1285 = vld [vmem:[%s479 + $0x358] sm:$0xff]
        %v1286 = vld [vmem:[%s479 + $0x360] sm:$0xff]
        %v1287 = vld [vmem:[%s479 + $0x368] sm:$0xff]
        %v1288 = vld [vmem:[%s479 + $0x370] sm:$0xff]
        %v1289 = vld [vmem:[%s479 + $0x378] sm:$0xff]
        %v1290 = vld [vmem:[%s479 + $0x380] sm:$0xff]
        %v1291 = vld [vmem:[%s479 + $0x388] sm:$0xff]
        %v1292 = vld [vmem:[%s479 + $0x390] sm:$0xff]
        %v1293 = vld [vmem:[%s479 + $0x398] sm:$0xff]
        %v1294 = vld [vmem:[%s479 + $0x3a0] sm:$0xff]
        %v1295 = vld [vmem:[%s479 + $0x3a8] sm:$0xff]
        %v1296 = vld [vmem:[%s479 + $0x3b0] sm:$0xff]
        %v1297 = vld [vmem:[%s479 + $0x3b8] sm:$0xff]
        %v1298 = vld [vmem:[%s479 + $0x3c0] sm:$0xff]
        %v1299 = vld [vmem:[%s479 + $0x3c8] sm:$0xff]
        %v1300 = vld [vmem:[%s479 + $0x3d0] sm:$0xff]
        %v1301 = vld [vmem:[%s479 + $0x3d8] sm:$0xff]
        %v1302 = vld [vmem:[%s479 + $0x3e0] sm:$0xff]
        %v1303 = vld [vmem:[%s479 + $0x3e8] sm:$0xff]
        %v1304 = vld [vmem:[%s479 + $0x3f0] sm:$0xff]
        %v1305 = vld [vmem:[%s479 + $0x3f8] sm:$0xff]
        %v1306 = vld [vmem:[%s479 + $0x400] sm:$0xff]
        %v1307 = vld [vmem:[%s479 + $0x408] sm:$0xff]
        %v1308 = vld [vmem:[%s479 + $0x410] sm:$0xff]
        %v1309 = vld [vmem:[%s479 + $0x418] sm:$0xff]
        %v1310 = vld [vmem:[%s479 + $0x420] sm:$0xff]
        %v1311 = vld [vmem:[%s479 + $0x428] sm:$0xff]
        %v1312 = vld [vmem:[%s479 + $0x430] sm:$0xff]
        %v1313 = vld [vmem:[%s479 + $0x438] sm:$0xff]
        %v1314 = vld [vmem:[%s479 + $0x440] sm:$0xff]
        %v1315 = vld [vmem:[%s479 + $0x448] sm:$0xff]
        %v1316 = vld [vmem:[%s479 + $0x450] sm:$0xff]
        %v1317 = vld [vmem:[%s479 + $0x458] sm:$0xff]
        %v1318 = vld [vmem:[%s479 + $0x460] sm:$0xff]
        %v1319 = vld [vmem:[%s479 + $0x468] sm:$0xff]
        %v1320 = vld [vmem:[%s479 + $0x470] sm:$0xff]
        %v1321 = vld [vmem:[%s479 + $0x478] sm:$0xff]
        %v1322 = vld [vmem:[%s479 + $0x480] sm:$0xff]
        %v1323 = vld [vmem:[%s479 + $0x488] sm:$0xff]
        %v1324 = vld [vmem:[%s479 + $0x490] sm:$0xff]
        %v1325 = vld [vmem:[%s479 + $0x498] sm:$0xff]
        %v1326 = vld [vmem:[%s479 + $0x4a0] sm:$0xff]
        %v1327 = vld [vmem:[%s479 + $0x4a8] sm:$0xff]
        %v1328 = vld [vmem:[%s479 + $0x4b0] sm:$0xff]
        %v1329 = vld [vmem:[%s479 + $0x4b8] sm:$0xff]
        %v1330 = vld [vmem:[%s479 + $0x4c0] sm:$0xff]
        %v1331 = vld [vmem:[%s479 + $0x4c8] sm:$0xff]
        %v1332 = vld [vmem:[%s479 + $0x4d0] sm:$0xff]
        %v1333 = vld [vmem:[%s479 + $0x4d8] sm:$0xff]
        %v1334 = vld [vmem:[%s479 + $0x4e0] sm:$0xff]
        %v1335 = vld [vmem:[%s479 + $0x4e8] sm:$0xff]
        %v1336 = vld [vmem:[%s479 + $0x4f0] sm:$0xff]
        %v1337 = vld [vmem:[%s479 + $0x4f8] sm:$0xff]
        %v1338 = vld [vmem:[%s479 + $0x500] sm:$0xff]
        %v1339 = vld [vmem:[%s479 + $0x508] sm:$0xff]
        %v1340 = vld [vmem:[%s479 + $0x510] sm:$0xff]
        %v1341 = vld [vmem:[%s479 + $0x518] sm:$0xff]
        %v1342 = vld [vmem:[%s479 + $0x520] sm:$0xff]
        %v1343 = vld [vmem:[%s479 + $0x528] sm:$0xff]
        %v1344 = vld [vmem:[%s479 + $0x530] sm:$0xff]
        %v1345 = vld [vmem:[%s479 + $0x538] sm:$0xff]
        %v1346 = vld [vmem:[%s479 + $0x540] sm:$0xff]
        %v1347 = vld [vmem:[%s479 + $0x548] sm:$0xff]
        %v1348 = vld [vmem:[%s479 + $0x550] sm:$0xff]
        %v1349 = vld [vmem:[%s479 + $0x558] sm:$0xff]
        %v1350 = vld [vmem:[%s479 + $0x560] sm:$0xff]
        %v1351 = vld [vmem:[%s479 + $0x568] sm:$0xff]
        %v1352 = vld [vmem:[%s479 + $0x570] sm:$0xff]
        %v1353 = vld [vmem:[%s479 + $0x578] sm:$0xff]
        %v1354 = vld [vmem:[%s479 + $0x580] sm:$0xff]
        %v1355 = vld [vmem:[%s479 + $0x588] sm:$0xff]
        %v1356 = vld [vmem:[%s479 + $0x590] sm:$0xff]
        %v1357 = vld [vmem:[%s479 + $0x598] sm:$0xff]
        %v1358 = vld [vmem:[%s479 + $0x5a0] sm:$0xff]
        %v1359 = vld [vmem:[%s479 + $0x5a8] sm:$0xff]
        %v1360 = vld [vmem:[%s479 + $0x5b0] sm:$0xff]
        %v1361 = vld [vmem:[%s479 + $0x5b8] sm:$0xff]
        %v1362 = vld [vmem:[%s479 + $0x5c0] sm:$0xff]
        %v1363 = vld [vmem:[%s479 + $0x5c8] sm:$0xff]
        %v1364 = vld [vmem:[%s479 + $0x5d0] sm:$0xff]
        %v1365 = vld [vmem:[%s479 + $0x5d8] sm:$0xff]
        %v1366 = vld [vmem:[%s479 + $0x5e0] sm:$0xff]
        %v1367 = vld [vmem:[%s479 + $0x5e8] sm:$0xff]
        %v1368 = vld [vmem:[%s479 + $0x5f0] sm:$0xff]
        %v1369 = vld [vmem:[%s479 + $0x5f8] sm:$0xff]
        %v1370 = vld [vmem:[%s479 + $0x600] sm:$0xff]
        %v1371 = vld [vmem:[%s479 + $0x608] sm:$0xff]
        %v1372 = vld [vmem:[%s479 + $0x610] sm:$0xff]
        %v1373 = vld [vmem:[%s479 + $0x618] sm:$0xff]
        %v1374 = vld [vmem:[%s479 + $0x620] sm:$0xff]
        %v1375 = vld [vmem:[%s479 + $0x628] sm:$0xff]
        %v1376 = vld [vmem:[%s479 + $0x630] sm:$0xff]
        %v1377 = vld [vmem:[%s479 + $0x638] sm:$0xff]
        %v1378 = vld [vmem:[%s479 + $0x640] sm:$0xff]
        %v1379 = vld [vmem:[%s479 + $0x648] sm:$0xff]
        %v1380 = vld [vmem:[%s479 + $0x650] sm:$0xff]
        %v1381 = vld [vmem:[%s479 + $0x658] sm:$0xff]
        %v1382 = vld [vmem:[%s479 + $0x660] sm:$0xff]
        %v1383 = vld [vmem:[%s479 + $0x668] sm:$0xff]
        %v1384 = vld [vmem:[%s479 + $0x670] sm:$0xff]
        %v1385 = vld [vmem:[%s479 + $0x678] sm:$0xff]
        %v1386 = vld [vmem:[%s479 + $0x680] sm:$0xff]
        %v1387 = vld [vmem:[%s479 + $0x688] sm:$0xff]
        %v1388 = vld [vmem:[%s479 + $0x690] sm:$0xff]
        %v1389 = vld [vmem:[%s479 + $0x698] sm:$0xff]
        %v1390 = vld [vmem:[%s479 + $0x6a0] sm:$0xff]
        %v1391 = vld [vmem:[%s479 + $0x6a8] sm:$0xff]
        %v1392 = vld [vmem:[%s479 + $0x6b0] sm:$0xff]
        %v1393 = vld [vmem:[%s479 + $0x6b8] sm:$0xff]
        %v1394 = vld [vmem:[%s479 + $0x6c0] sm:$0xff]
        %v1395 = vld [vmem:[%s479 + $0x6c8] sm:$0xff]
        %v1396 = vld [vmem:[%s479 + $0x6d0] sm:$0xff]
        %v1397 = vld [vmem:[%s479 + $0x6d8] sm:$0xff]
        %v1398 = vld [vmem:[%s479 + $0x6e0] sm:$0xff]
        %v1399 = vld [vmem:[%s479 + $0x6e8] sm:$0xff]
        %v1400 = vld [vmem:[%s479 + $0x6f0] sm:$0xff]
        %v1401 = vld [vmem:[%s479 + $0x6f8] sm:$0xff]
        %v1402 = vld [vmem:[%s479 + $0x700] sm:$0xff]
        %v1403 = vld [vmem:[%s479 + $0x708] sm:$0xff]
        %v1404 = vld [vmem:[%s479 + $0x710] sm:$0xff]
        %v1405 = vld [vmem:[%s479 + $0x718] sm:$0xff]
        %v1406 = vld [vmem:[%s479 + $0x720] sm:$0xff]
        %v1407 = vld [vmem:[%s479 + $0x728] sm:$0xff]
        %v1408 = vld [vmem:[%s479 + $0x730] sm:$0xff]
        %v1409 = vld [vmem:[%s479 + $0x738] sm:$0xff]
        %v1410 = vld [vmem:[%s479 + $0x740] sm:$0xff]
        %v1411 = vld [vmem:[%s479 + $0x748] sm:$0xff]
        %v1412 = vld [vmem:[%s479 + $0x750] sm:$0xff]
        %v1413 = vld [vmem:[%s479 + $0x758] sm:$0xff]
        %v1414 = vld [vmem:[%s479 + $0x760] sm:$0xff]
        %v1415 = vld [vmem:[%s479 + $0x768] sm:$0xff]
        %v1416 = vld [vmem:[%s479 + $0x770] sm:$0xff]
        %v1417 = vld [vmem:[%s479 + $0x778] sm:$0xff]
        %v1418 = vld [vmem:[%s479 + $0x780] sm:$0xff]
        %v1419 = vld [vmem:[%s479 + $0x788] sm:$0xff]
        %v1420 = vld [vmem:[%s479 + $0x790] sm:$0xff]
        %v1421 = vld [vmem:[%s479 + $0x798] sm:$0xff]
        %v1422 = vld [vmem:[%s479 + $0x7a0] sm:$0xff]
        %v1423 = vld [vmem:[%s479 + $0x7a8] sm:$0xff]
        %v1424 = vld [vmem:[%s479 + $0x7b0] sm:$0xff]
        %v1425 = vld [vmem:[%s479 + $0x7b8] sm:$0xff]
        %v1426 = vld [vmem:[%s479 + $0x7c0] sm:$0xff]
        %v1427 = vld [vmem:[%s479 + $0x7c8] sm:$0xff]
        %v1428 = vld [vmem:[%s479 + $0x7d0] sm:$0xff]
        %v1429 = vld [vmem:[%s479 + $0x7d8] sm:$0xff]
        %v1430 = vld [vmem:[%s479 + $0x7e0] sm:$0xff]
        %v1431 = vld [vmem:[%s479 + $0x7e8] sm:$0xff]
        %v1432 = vld [vmem:[%s479 + $0x7f0] sm:$0xff]
        %v1433 = vld [vmem:[%s479 + $0x7f8] sm:$0xff]
        %v1434 = vld [vmem:[%s479 + $0x800] sm:$0xff]
        %v1435 = vld [vmem:[%s479 + $0x808] sm:$0xff]
        %v1436 = vld [vmem:[%s479 + $0x810] sm:$0xff]
        %v1437 = vld [vmem:[%s479 + $0x818] sm:$0xff]
        %v1438 = vld [vmem:[%s479 + $0x820] sm:$0xff]
        %v1439 = vld [vmem:[%s479 + $0x828] sm:$0xff]
        %v1440 = vld [vmem:[%s479 + $0x830] sm:$0xff]
        %v1441 = vld [vmem:[%s479 + $0x838] sm:$0xff]
        %v1442 = vld [vmem:[%s479 + $0x840] sm:$0xff]
        %v1443 = vld [vmem:[%s479 + $0x848] sm:$0xff]
        %v1444 = vld [vmem:[%s479 + $0x850] sm:$0xff]
        %v1445 = vld [vmem:[%s479 + $0x858] sm:$0xff]
        %v1446 = vld [vmem:[%s479 + $0x860] sm:$0xff]
        %v1447 = vld [vmem:[%s479 + $0x868] sm:$0xff]
        %v1448 = vld [vmem:[%s479 + $0x870] sm:$0xff]
        %v1449 = vld [vmem:[%s479 + $0x878] sm:$0xff]
        %v1450 = vld [vmem:[%s479 + $0x880] sm:$0xff]
        %v1451 = vld [vmem:[%s479 + $0x888] sm:$0xff]
        %v1452 = vld [vmem:[%s479 + $0x890] sm:$0xff]
        %v1453 = vld [vmem:[%s479 + $0x898] sm:$0xff]
        %v1454 = vld [vmem:[%s479 + $0x8a0] sm:$0xff]
        %v1455 = vld [vmem:[%s479 + $0x8a8] sm:$0xff]
        %v1456 = vld [vmem:[%s479 + $0x8b0] sm:$0xff]
        %v1457 = vld [vmem:[%s479 + $0x8b8] sm:$0xff]
        %v1458 = vld [vmem:[%s479 + $0x8c0] sm:$0xff]
        %v1459 = vld [vmem:[%s479 + $0x8c8] sm:$0xff]
        %v1460 = vld [vmem:[%s479 + $0x8d0] sm:$0xff]
        %v1461 = vld [vmem:[%s479 + $0x8d8] sm:$0xff]
        %v1462 = vld [vmem:[%s479 + $0x8e0] sm:$0xff]
        %v1463 = vld [vmem:[%s479 + $0x8e8] sm:$0xff]
        %v1464 = vld [vmem:[%s479 + $0x8f0] sm:$0xff]
        %v1465 = vld [vmem:[%s479 + $0x8f8] sm:$0xff]
        %v1466 = vld [vmem:[%s479 + $0x900] sm:$0xff]
        %v1467 = vld [vmem:[%s479 + $0x908] sm:$0xff]
        %v1468 = vld [vmem:[%s479 + $0x910] sm:$0xff]
        %v1469 = vld [vmem:[%s479 + $0x918] sm:$0xff]
        %v1470 = vld [vmem:[%s479 + $0x920] sm:$0xff]
        %v1471 = vld [vmem:[%s479 + $0x928] sm:$0xff]
        %v1472 = vld [vmem:[%s479 + $0x930] sm:$0xff]
        %v1473 = vld [vmem:[%s479 + $0x938] sm:$0xff]
        %v1474 = vld [vmem:[%s479 + $0x940] sm:$0xff]
        %v1475 = vld [vmem:[%s479 + $0x948] sm:$0xff]
        %v1476 = vld [vmem:[%s479 + $0x950] sm:$0xff]
        %v1477 = vld [vmem:[%s479 + $0x958] sm:$0xff]
        %v1478 = vld [vmem:[%s479 + $0x960] sm:$0xff]
        %v1479 = vld [vmem:[%s479 + $0x968] sm:$0xff]
        %v1480 = vld [vmem:[%s479 + $0x970] sm:$0xff]
        %v1481 = vld [vmem:[%s479 + $0x978] sm:$0xff]
        %v1482 = vld [vmem:[%s479 + $0x980] sm:$0xff]
        %v1483 = vld [vmem:[%s479 + $0x988] sm:$0xff]
        %v1484 = vld [vmem:[%s479 + $0x990] sm:$0xff]
        %v1485 = vld [vmem:[%s479 + $0x998] sm:$0xff]
        %v1486 = vld [vmem:[%s479 + $0x9a0] sm:$0xff]
        %v1487 = vld [vmem:[%s479 + $0x9a8] sm:$0xff]
        %v1488 = vld [vmem:[%s479 + $0x9b0] sm:$0xff]
        %v1489 = vld [vmem:[%s479 + $0x9b8] sm:$0xff]
        %v1490 = vld [vmem:[%s479 + $0x9c0] sm:$0xff]
        %v1491 = vld [vmem:[%s479 + $0x9c8] sm:$0xff]
        %v1492 = vld [vmem:[%s479 + $0x9d0] sm:$0xff]
        %v1493 = vld [vmem:[%s479 + $0x9d8] sm:$0xff]
        %v1494 = vld [vmem:[%s479 + $0x9e0] sm:$0xff]
        %v1495 = vld [vmem:[%s479 + $0x9e8] sm:$0xff]
        %v1496 = vld [vmem:[%s479 + $0x9f0] sm:$0xff]
        %v1497 = vld [vmem:[%s479 + $0x9f8] sm:$0xff]
        %v1498 = vld [vmem:[%s479 + $0xa00] sm:$0xff]
        %v1499 = vld [vmem:[%s479 + $0xa08] sm:$0xff]
        %v1500 = vld [vmem:[%s479 + $0xa10] sm:$0xff]
        %v1501 = vld [vmem:[%s479 + $0xa18] sm:$0xff]
        %v1502 = vld [vmem:[%s479 + $0xa20] sm:$0xff]
        %v1503 = vld [vmem:[%s479 + $0xa28] sm:$0xff]
        %v1504 = vld [vmem:[%s479 + $0xa30] sm:$0xff]
        %v1505 = vld [vmem:[%s479 + $0xa38] sm:$0xff]
        %v1506 = vld [vmem:[%s479 + $0xa40] sm:$0xff]
        %v1507 = vld [vmem:[%s479 + $0xa48] sm:$0xff]
        %v1508 = vld [vmem:[%s479 + $0xa50] sm:$0xff]
        %v1509 = vld [vmem:[%s479 + $0xa58] sm:$0xff]
        %v1510 = vld [vmem:[%s479 + $0xa60] sm:$0xff]
        %v1511 = vld [vmem:[%s479 + $0xa68] sm:$0xff]
        %v1512 = vld [vmem:[%s479 + $0xa70] sm:$0xff]
        %v1513 = vld [vmem:[%s479 + $0xa78] sm:$0xff]
        %v1514 = vld [vmem:[%s479 + $0xa80] sm:$0xff]
        %v1515 = vld [vmem:[%s479 + $0xa88] sm:$0xff]
        %v1516 = vld [vmem:[%s479 + $0xa90] sm:$0xff]
        %v1517 = vld [vmem:[%s479 + $0xa98] sm:$0xff]
        %v1518 = vld [vmem:[%s479 + $0xaa0] sm:$0xff]
        %v1519 = vld [vmem:[%s479 + $0xaa8] sm:$0xff]
        %v1520 = vld [vmem:[%s479 + $0xab0] sm:$0xff]
        %v1521 = vld [vmem:[%s479 + $0xab8] sm:$0xff]
        %v1522 = vld [vmem:[%s479 + $0xac0] sm:$0xff]
        %v1523 = vld [vmem:[%s479 + $0xac8] sm:$0xff]
        %v1524 = vld [vmem:[%s479 + $0xad0] sm:$0xff]
        %v1525 = vld [vmem:[%s479 + $0xad8] sm:$0xff]
        %v1526 = vld [vmem:[%s479 + $0xae0] sm:$0xff]
        %v1527 = vld [vmem:[%s479 + $0xae8] sm:$0xff]
        %v1528 = vld [vmem:[%s479 + $0xaf0] sm:$0xff]
        %v1529 = vld [vmem:[%s479 + $0xaf8] sm:$0xff]
        %v1530 = vld [vmem:[%s479 + $0xb00] sm:$0xff]
        %v1531 = vld [vmem:[%s479 + $0xb08] sm:$0xff]
        %v1532 = vld [vmem:[%s479 + $0xb10] sm:$0xff]
        %v1533 = vld [vmem:[%s479 + $0xb18] sm:$0xff]
        %v1534 = vld [vmem:[%s479 + $0xb20] sm:$0xff]
        %v1535 = vld [vmem:[%s479 + $0xb28] sm:$0xff]
        %v1536 = vld [vmem:[%s479 + $0xb30] sm:$0xff]
        %v1537 = vld [vmem:[%s479 + $0xb38] sm:$0xff]
        %v1538 = vld [vmem:[%s479 + $0xb40] sm:$0xff]
        %v1539 = vld [vmem:[%s479 + $0xb48] sm:$0xff]
        %v1540 = vld [vmem:[%s479 + $0xb50] sm:$0xff]
        %v1541 = vld [vmem:[%s479 + $0xb58] sm:$0xff]
        %v1542 = vld [vmem:[%s479 + $0xb60] sm:$0xff]
        %v1543 = vld [vmem:[%s479 + $0xb68] sm:$0xff]
        %v1544 = vld [vmem:[%s479 + $0xb70] sm:$0xff]
        %v1545 = vld [vmem:[%s479 + $0xb78] sm:$0xff]
        %v1546 = vld [vmem:[%s479 + $0xb80] sm:$0xff]
        %v1547 = vld [vmem:[%s479 + $0xb88] sm:$0xff]
        %v1548 = vld [vmem:[%s479 + $0xb90] sm:$0xff]
        %v1549 = vld [vmem:[%s479 + $0xb98] sm:$0xff]
        %v1550 = vld [vmem:[%s479 + $0xba0] sm:$0xff]
        %v1551 = vld [vmem:[%s479 + $0xba8] sm:$0xff]
        %v1552 = vld [vmem:[%s479 + $0xbb0] sm:$0xff]
        %v1553 = vld [vmem:[%s479 + $0xbb8] sm:$0xff]
        %v1554 = vld [vmem:[%s479 + $0xbc0] sm:$0xff]
        %v1555 = vld [vmem:[%s479 + $0xbc8] sm:$0xff]
        %v1556 = vld [vmem:[%s479 + $0xbd0] sm:$0xff]
        %v1557 = vld [vmem:[%s479 + $0xbd8] sm:$0xff]
        %v1558 = vld [vmem:[%s479 + $0xbe0] sm:$0xff]
        %v1559 = vld [vmem:[%s479 + $0xbe8] sm:$0xff]
        %v1560 = vld [vmem:[%s479 + $0xbf0] sm:$0xff]
        %v1561 = vld [vmem:[%s479 + $0xbf8] sm:$0xff]
        %v1562 = vld [vmem:[%s479 + $0xc00] sm:$0xff]
        %v1563 = vld [vmem:[%s479 + $0xc08] sm:$0xff]
        %v1564 = vld [vmem:[%s479 + $0xc10] sm:$0xff]
        %v1565 = vld [vmem:[%s479 + $0xc18] sm:$0xff]
        %v1566 = vld [vmem:[%s479 + $0xc20] sm:$0xff]
        %v1567 = vld [vmem:[%s479 + $0xc28] sm:$0xff]
        %v1568 = vld [vmem:[%s479 + $0xc30] sm:$0xff]
        %v1569 = vld [vmem:[%s479 + $0xc38] sm:$0xff]
        %v1570 = vld [vmem:[%s479 + $0xc40] sm:$0xff]
        %v1571 = vld [vmem:[%s479 + $0xc48] sm:$0xff]
        %v1572 = vld [vmem:[%s479 + $0xc50] sm:$0xff]
        %v1573 = vld [vmem:[%s479 + $0xc58] sm:$0xff]
        %v1574 = vld [vmem:[%s479 + $0xc60] sm:$0xff]
        %v1575 = vld [vmem:[%s479 + $0xc68] sm:$0xff]
        %v1576 = vld [vmem:[%s479 + $0xc70] sm:$0xff]
        %v1577 = vld [vmem:[%s479 + $0xc78] sm:$0xff]
        %v1578 = vld [vmem:[%s479 + $0xc80] sm:$0xff]
        %v1579 = vld [vmem:[%s479 + $0xc88] sm:$0xff]
        %v1580 = vld [vmem:[%s479 + $0xc90] sm:$0xff]
        %v1581 = vld [vmem:[%s479 + $0xc98] sm:$0xff]
        %v1582 = vld [vmem:[%s479 + $0xca0] sm:$0xff]
        %v1583 = vld [vmem:[%s479 + $0xca8] sm:$0xff]
        %v1584 = vld [vmem:[%s479 + $0xcb0] sm:$0xff]
        %v1585 = vld [vmem:[%s479 + $0xcb8] sm:$0xff]
        %v1586 = vld [vmem:[%s479 + $0xcc0] sm:$0xff]
        %v1587 = vld [vmem:[%s479 + $0xcc8] sm:$0xff]
        %v1588 = vld [vmem:[%s479 + $0xcd0] sm:$0xff]
        %v1589 = vld [vmem:[%s479 + $0xcd8] sm:$0xff]
        %v1590 = vld [vmem:[%s479 + $0xce0] sm:$0xff]
        %v1591 = vld [vmem:[%s479 + $0xce8] sm:$0xff]
        %v1592 = vld [vmem:[%s479 + $0xcf0] sm:$0xff]
        %v1593 = vld [vmem:[%s479 + $0xcf8] sm:$0xff]
        %v1594 = vld [vmem:[%s479 + $0xd00] sm:$0xff]
        %v1595 = vld [vmem:[%s479 + $0xd08] sm:$0xff]
        %v1596 = vld [vmem:[%s479 + $0xd10] sm:$0xff]
        %v1597 = vld [vmem:[%s479 + $0xd18] sm:$0xff]
        %v1598 = vld [vmem:[%s479 + $0xd20] sm:$0xff]
        %v1599 = vld [vmem:[%s479 + $0xd28] sm:$0xff]
        %v1600 = vld [vmem:[%s479 + $0xd30] sm:$0xff]
        %v1601 = vld [vmem:[%s479 + $0xd38] sm:$0xff]
        %v1602 = vld [vmem:[%s479 + $0xd40] sm:$0xff]
        %v1603 = vld [vmem:[%s479 + $0xd48] sm:$0xff]
        %v1604 = vld [vmem:[%s479 + $0xd50] sm:$0xff]
        %v1605 = vld [vmem:[%s479 + $0xd58] sm:$0xff]
        %v1606 = vld [vmem:[%s479 + $0xd60] sm:$0xff]
        %v1607 = vld [vmem:[%s479 + $0xd68] sm:$0xff]
        %v1608 = vld [vmem:[%s479 + $0xd70] sm:$0xff]
        %v1609 = vld [vmem:[%s479 + $0xd78] sm:$0xff]
        %v1610 = vld [vmem:[%s479 + $0xd80] sm:$0xff]
        %v1611 = vld [vmem:[%s479 + $0xd88] sm:$0xff]
        %v1612 = vld [vmem:[%s479 + $0xd90] sm:$0xff]
        %v1613 = vld [vmem:[%s479 + $0xd98] sm:$0xff]
        %v1614 = vld [vmem:[%s479 + $0xda0] sm:$0xff]
        %v1615 = vld [vmem:[%s479 + $0xda8] sm:$0xff]
        %v1616 = vld [vmem:[%s479 + $0xdb0] sm:$0xff]
        %v1617 = vld [vmem:[%s479 + $0xdb8] sm:$0xff]
        %v1618 = vld [vmem:[%s479 + $0xdc0] sm:$0xff]
        %v1619 = vld [vmem:[%s479 + $0xdc8] sm:$0xff]
        %v1620 = vld [vmem:[%s479 + $0xdd0] sm:$0xff]
        %v1621 = vld [vmem:[%s479 + $0xdd8] sm:$0xff]
        %v1622 = vld [vmem:[%s479 + $0xde0] sm:$0xff]
        %v1623 = vld [vmem:[%s479 + $0xde8] sm:$0xff]
        %v1624 = vld [vmem:[%s479 + $0xdf0] sm:$0xff]
        %v1625 = vld [vmem:[%s479 + $0xdf8] sm:$0xff]
        %v1626 = vld [vmem:[%s479 + $0xe00] sm:$0xff]
        %v1627 = vld [vmem:[%s479 + $0xe08] sm:$0xff]
        %v1628 = vld [vmem:[%s479 + $0xe10] sm:$0xff]
        %v1629 = vld [vmem:[%s479 + $0xe18] sm:$0xff]
        %v1630 = vld [vmem:[%s479 + $0xe20] sm:$0xff]
        %v1631 = vld [vmem:[%s479 + $0xe28] sm:$0xff]
        %v1632 = vld [vmem:[%s479 + $0xe30] sm:$0xff]
        %v1633 = vld [vmem:[%s479 + $0xe38] sm:$0xff]
        %v1634 = vld [vmem:[%s479 + $0xe40] sm:$0xff]
        %v1635 = vld [vmem:[%s479 + $0xe48] sm:$0xff]
        %v1636 = vld [vmem:[%s479 + $0xe50] sm:$0xff]
        %v1637 = vld [vmem:[%s479 + $0xe58] sm:$0xff]
        %v1638 = vld [vmem:[%s479 + $0xe60] sm:$0xff]
        %v1639 = vld [vmem:[%s479 + $0xe68] sm:$0xff]
        %v1640 = vld [vmem:[%s479 + $0xe70] sm:$0xff]
        %v1641 = vld [vmem:[%s479 + $0xe78] sm:$0xff]
        %v1642 = vld [vmem:[%s479 + $0xe80] sm:$0xff]
        %v1643 = vld [vmem:[%s479 + $0xe88] sm:$0xff]
        %v1644 = vld [vmem:[%s479 + $0xe90] sm:$0xff]
        %v1645 = vld [vmem:[%s479 + $0xe98] sm:$0xff]
        %v1646 = vld [vmem:[%s479 + $0xea0] sm:$0xff]
        %v1647 = vld [vmem:[%s479 + $0xea8] sm:$0xff]
        %v1648 = vld [vmem:[%s479 + $0xeb0] sm:$0xff]
        %v1649 = vld [vmem:[%s479 + $0xeb8] sm:$0xff]
        %v1650 = vld [vmem:[%s479 + $0xec0] sm:$0xff]
        %v1651 = vld [vmem:[%s479 + $0xec8] sm:$0xff]
        %v1652 = vld [vmem:[%s479 + $0xed0] sm:$0xff]
        %v1653 = vld [vmem:[%s479 + $0xed8] sm:$0xff]
        %v1654 = vld [vmem:[%s479 + $0xee0] sm:$0xff]
        %v1655 = vld [vmem:[%s479 + $0xee8] sm:$0xff]
        %v1656 = vld [vmem:[%s479 + $0xef0] sm:$0xff]
        %v1657 = vld [vmem:[%s479 + $0xef8] sm:$0xff]
        %v1658 = vld [vmem:[%s479 + $0xf00] sm:$0xff]
        %v1659 = vld [vmem:[%s479 + $0xf08] sm:$0xff]
        %v1660 = vld [vmem:[%s479 + $0xf10] sm:$0xff]
        %v1661 = vld [vmem:[%s479 + $0xf18] sm:$0xff]
        %v1662 = vld [vmem:[%s479 + $0xf20] sm:$0xff]
        %v1663 = vld [vmem:[%s479 + $0xf28] sm:$0xff]
        %v1664 = vld [vmem:[%s479 + $0xf30] sm:$0xff]
        %v1665 = vld [vmem:[%s479 + $0xf38] sm:$0xff]
        %v1666 = vld [vmem:[%s479 + $0xf40] sm:$0xff]
        %v1667 = vld [vmem:[%s479 + $0xf48] sm:$0xff]
        %v1668 = vld [vmem:[%s479 + $0xf50] sm:$0xff]
        %v1669 = vld [vmem:[%s479 + $0xf58] sm:$0xff]
        %v1670 = vld [vmem:[%s479 + $0xf60] sm:$0xff]
        %v1671 = vld [vmem:[%s479 + $0xf68] sm:$0xff]
        %v1672 = vld [vmem:[%s479 + $0xf70] sm:$0xff]
        %v1673 = vld [vmem:[%s479 + $0xf78] sm:$0xff]
        %v1674 = vld [vmem:[%s479 + $0xf80] sm:$0xff]
        %v1675 = vld [vmem:[%s479 + $0xf88] sm:$0xff]
        %v1676 = vld [vmem:[%s479 + $0xf90] sm:$0xff]
        %v1677 = vld [vmem:[%s479 + $0xf98] sm:$0xff]
        %v1678 = vld [vmem:[%s479 + $0xfa0] sm:$0xff]
        %v1679 = vld [vmem:[%s479 + $0xfa8] sm:$0xff]
        %v1680 = vld [vmem:[%s479 + $0xfb0] sm:$0xff]
        %v1681 = vld [vmem:[%s479 + $0xfb8] sm:$0xff]
        %v1682 = vld [vmem:[%s479 + $0xfc0] sm:$0xff]
        %v1683 = vld [vmem:[%s479 + $0xfc8] sm:$0xff]
        %v1684 = vld [vmem:[%s479 + $0xfd0] sm:$0xff]
        %v1685 = vld [vmem:[%s479 + $0xfd8] sm:$0xff]
        %v1686 = vld [vmem:[%s479 + $0xfe0] sm:$0xff]
        %v1687 = vld [vmem:[%s479 + $0xfe8] sm:$0xff]
        %v1688 = vld [vmem:[%s479 + $0xff0] sm:$0xff]
        %v1689 = vld [vmem:[%s479 + $0xff8] sm:$0xff]
        %v1690 = vld [vmem:[%s479 + $0x1000] sm:$0xff]
        %v1691 = vld [vmem:[%s479 + $0x1008] sm:$0xff]
        %v1692 = vld [vmem:[%s479 + $0x1010] sm:$0xff]
        %v1693 = vld [vmem:[%s479 + $0x1018] sm:$0xff]
        %v1694 = vld [vmem:[%s479 + $0x1020] sm:$0xff]
        %v1695 = vld [vmem:[%s479 + $0x1028] sm:$0xff]
        %v1696 = vld [vmem:[%s479 + $0x1030] sm:$0xff]
        %v1697 = vld [vmem:[%s479 + $0x1038] sm:$0xff]
        %v1698 = vld [vmem:[%s479 + $0x1040] sm:$0xff]
        %v1699 = vld [vmem:[%s479 + $0x1048] sm:$0xff]
        %v1700 = vld [vmem:[%s479 + $0x1050] sm:$0xff]
        %v1701 = vld [vmem:[%s479 + $0x1058] sm:$0xff]
        %v1702 = vld [vmem:[%s479 + $0x1060] sm:$0xff]
        %v1703 = vld [vmem:[%s479 + $0x1068] sm:$0xff]
        %v1704 = vld [vmem:[%s479 + $0x1070] sm:$0xff]
        %v1705 = vld [vmem:[%s479 + $0x1078] sm:$0xff]
        %v1706 = vld [vmem:[%s479 + $0x1080] sm:$0xff]
        %v1707 = vld [vmem:[%s479 + $0x1088] sm:$0xff]
        %v1708 = vld [vmem:[%s479 + $0x1090] sm:$0xff]
        %v1709 = vld [vmem:[%s479 + $0x1098] sm:$0xff]
        %v1710 = vld [vmem:[%s479 + $0x10a0] sm:$0xff]
        %v1711 = vld [vmem:[%s479 + $0x10a8] sm:$0xff]
        %v1712 = vld [vmem:[%s479 + $0x10b0] sm:$0xff]
        %v1713 = vld [vmem:[%s479 + $0x10b8] sm:$0xff]
        %v1714 = vld [vmem:[%s479 + $0x10c0] sm:$0xff]
        %v1715 = vld [vmem:[%s479 + $0x10c8] sm:$0xff]
        %v1716 = vld [vmem:[%s479 + $0x10d0] sm:$0xff]
        %v1717 = vld [vmem:[%s479 + $0x10d8] sm:$0xff]
        %v1718 = vld [vmem:[%s479 + $0x10e0] sm:$0xff]
        %v1719 = vld [vmem:[%s479 + $0x10e8] sm:$0xff]
        %v1720 = vld [vmem:[%s479 + $0x10f0] sm:$0xff]
        %v1721 = vld [vmem:[%s479 + $0x10f8] sm:$0xff]
        %v1722 = vld [vmem:[%s479 + $0x1100] sm:$0xff]
        %v1723 = vld [vmem:[%s479 + $0x1108] sm:$0xff]
        %v1724 = vld [vmem:[%s479 + $0x1110] sm:$0xff]
        %v1725 = vld [vmem:[%s479 + $0x1118] sm:$0xff]
        %v1726 = vld [vmem:[%s479 + $0x1120] sm:$0xff]
        %v1727 = vld [vmem:[%s479 + $0x1128] sm:$0xff]
        %v1728 = vld [vmem:[%s479 + $0x1130] sm:$0xff]
        %v1729 = vld [vmem:[%s479 + $0x1138] sm:$0xff]
        %v1730 = vld [vmem:[%s479 + $0x1140] sm:$0xff]
        %v1731 = vld [vmem:[%s479 + $0x1148] sm:$0xff]
        %v1732 = vld [vmem:[%s479 + $0x1150] sm:$0xff]
        %v1733 = vld [vmem:[%s479 + $0x1158] sm:$0xff]
        %v1734 = vld [vmem:[%s479 + $0x1160] sm:$0xff]
        %v1735 = vld [vmem:[%s479 + $0x1168] sm:$0xff]
        %v1736 = vld [vmem:[%s479 + $0x1170] sm:$0xff]
        %v1737 = vld [vmem:[%s479 + $0x1178] sm:$0xff]
        %v1738 = vld [vmem:[%s479 + $0x1180] sm:$0xff]
        %v1739 = vld [vmem:[%s479 + $0x1188] sm:$0xff]
        %v1740 = vld [vmem:[%s479 + $0x1190] sm:$0xff]
        %v1741 = vld [vmem:[%s479 + $0x1198] sm:$0xff]
        %v1742 = vld [vmem:[%s479 + $0x11a0] sm:$0xff]
        %v1743 = vld [vmem:[%s479 + $0x11a8] sm:$0xff]
        %v1744 = vld [vmem:[%s479 + $0x11b0] sm:$0xff]
        %v1745 = vld [vmem:[%s479 + $0x11b8] sm:$0xff]
        %v1746 = vld [vmem:[%s479 + $0x11c0] sm:$0xff]
        %v1747 = vld [vmem:[%s479 + $0x11c8] sm:$0xff]
        %v1748 = vld [vmem:[%s479 + $0x11d0] sm:$0xff]
        %v1749 = vld [vmem:[%s479 + $0x11d8] sm:$0xff]
        %v1750 = vld [vmem:[%s479 + $0x11e0] sm:$0xff]
        %v1751 = vld [vmem:[%s479 + $0x11e8] sm:$0xff]
        %v1752 = vld [vmem:[%s479 + $0x11f0] sm:$0xff]
        %v1753 = vld [vmem:[%s479 + $0x11f8] sm:$0xff]
        %v1754 = vld [vmem:[%s489] sm:$0xff]
        %v1755 = vld [vmem:[%s489 + $0x8] sm:$0xf]
        %v1758 = vperm.slane %v1754, 0
        %v1759 = vperm.slane %v1754, 1
        %v1760 = vperm.slane %v1754, 2
        %v1761 = vperm.slane %v1754, 3
        %v1762 = vperm.slane %v1754, 4
        %v1763 = vperm.slane %v1754, 5
        %v1764 = vperm.slane %v1754, 6
        %v1765 = vperm.slane %v1754, 7
        %v1766 = vperm.slane %v1755, 0
        %v1767 = vperm.slane %v1755, 1
        %v1768 = vperm.slane %v1755, 2
        %v1769 = vperm.slane %v1755, 3
        %v2358 = vunpack.c.l.b16 %v1178
        %v2359 = vunpack.c.h.b16 %v1178
        %v2360 = vunpack.c.l.b16 %v1179
        %v2361 = vunpack.c.h.b16 %v1179
        %v2362 = vunpack.c.l.b16 %v1180
        %v2363 = vunpack.c.h.b16 %v1180
        %v2364 = vunpack.c.l.b16 %v1181
        %v2365 = vunpack.c.h.b16 %v1181
        %v2366 = vunpack.c.l.b16 %v1182
        %v2367 = vunpack.c.h.b16 %v1182
        %v2368 = vunpack.c.l.b16 %v1183
        %v2369 = vunpack.c.h.b16 %v1183
        %v2370 = vunpack.c.l.b16 %v1184
        %v2371 = vunpack.c.h.b16 %v1184
        %v2372 = vunpack.c.l.b16 %v1185
        %v2373 = vunpack.c.h.b16 %v1185
        %v2374 = vunpack.c.l.b16 %v1186
        %v2375 = vunpack.c.h.b16 %v1186
        %v2376 = vunpack.c.l.b16 %v1187
        %v2377 = vunpack.c.h.b16 %v1187
        %v2378 = vunpack.c.l.b16 %v1188
        %v2379 = vunpack.c.h.b16 %v1188
        %v2380 = vunpack.c.l.b16 %v1189
        %v2381 = vunpack.c.h.b16 %v1189
        %v2382 = vunpack.c.l.b16 %v1190
        %v2383 = vunpack.c.h.b16 %v1190
        %v2384 = vunpack.c.l.b16 %v1191
        %v2385 = vunpack.c.h.b16 %v1191
        %v2386 = vunpack.c.l.b16 %v1192
        %v2387 = vunpack.c.h.b16 %v1192
        %v2388 = vunpack.c.l.b16 %v1193
        %v2389 = vunpack.c.h.b16 %v1193
        %v2390 = vunpack.c.l.b16 %v1194
        %v2391 = vunpack.c.h.b16 %v1194
        %v2392 = vunpack.c.l.b16 %v1195
        %v2393 = vunpack.c.h.b16 %v1195
        %v2394 = vunpack.c.l.b16 %v1196
        %v2395 = vunpack.c.h.b16 %v1196
        %v2396 = vunpack.c.l.b16 %v1197
        %v2397 = vunpack.c.h.b16 %v1197
        %v2398 = vunpack.c.l.b16 %v1198
        %v2399 = vunpack.c.h.b16 %v1198
        %v2400 = vunpack.c.l.b16 %v1199
        %v2401 = vunpack.c.h.b16 %v1199
        %v2402 = vunpack.c.l.b16 %v1200
        %v2403 = vunpack.c.h.b16 %v1200
        %v2404 = vunpack.c.l.b16 %v1201
        %v2405 = vunpack.c.h.b16 %v1201
        %v2406 = vunpack.c.l.b16 %v1202
        %v2407 = vunpack.c.h.b16 %v1202
        %v2408 = vunpack.c.l.b16 %v1203
        %v2409 = vunpack.c.h.b16 %v1203
        %v2410 = vunpack.c.l.b16 %v1204
        %v2411 = vunpack.c.h.b16 %v1204
        %v2412 = vunpack.c.l.b16 %v1205
        %v2413 = vunpack.c.h.b16 %v1205
        %v2414 = vunpack.c.l.b16 %v1206
        %v2415 = vunpack.c.h.b16 %v1206
        %v2416 = vunpack.c.l.b16 %v1207
        %v2417 = vunpack.c.h.b16 %v1207
        %v2418 = vunpack.c.l.b16 %v1208
        %v2419 = vunpack.c.h.b16 %v1208
        %v2420 = vunpack.c.l.b16 %v1209
        %v2421 = vunpack.c.h.b16 %v1209
        %v2422 = vunpack.c.l.b16 %v1210
        %v2423 = vunpack.c.h.b16 %v1210
        %v2424 = vunpack.c.l.b16 %v1211
        %v2425 = vunpack.c.h.b16 %v1211
        %v2426 = vunpack.c.l.b16 %v1212
        %v2427 = vunpack.c.h.b16 %v1212
        %v2428 = vunpack.c.l.b16 %v1213
        %v2429 = vunpack.c.h.b16 %v1213
        %v2430 = vunpack.c.l.b16 %v1214
        %v2431 = vunpack.c.h.b16 %v1214
        %v2432 = vunpack.c.l.b16 %v1215
        %v2433 = vunpack.c.h.b16 %v1215
        %v2434 = vunpack.c.l.b16 %v1216
        %v2435 = vunpack.c.h.b16 %v1216
        %v2436 = vunpack.c.l.b16 %v1217
        %v2437 = vunpack.c.h.b16 %v1217
        %v2438 = vunpack.c.l.b16 %v1218
        %v2439 = vunpack.c.h.b16 %v1218
        %v2440 = vunpack.c.l.b16 %v1219
        %v2441 = vunpack.c.h.b16 %v1219
        %v2442 = vunpack.c.l.b16 %v1220
        %v2443 = vunpack.c.h.b16 %v1220
        %v2444 = vunpack.c.l.b16 %v1221
        %v2445 = vunpack.c.h.b16 %v1221
        %v2446 = vunpack.c.l.b16 %v1222
        %v2447 = vunpack.c.h.b16 %v1222
        %v2448 = vunpack.c.l.b16 %v1223
        %v2449 = vunpack.c.h.b16 %v1223
        %v2450 = vunpack.c.l.b16 %v1224
        %v2451 = vunpack.c.h.b16 %v1224
        %v2452 = vunpack.c.l.b16 %v1225
        %v2453 = vunpack.c.h.b16 %v1225
        %v2454 = vunpack.c.l.b16 %v1226
        %v2455 = vunpack.c.h.b16 %v1226
        %v2456 = vunpack.c.l.b16 %v1227
        %v2457 = vunpack.c.h.b16 %v1227
        %v2458 = vunpack.c.l.b16 %v1228
        %v2459 = vunpack.c.h.b16 %v1228
        %v2460 = vunpack.c.l.b16 %v1229
        %v2461 = vunpack.c.h.b16 %v1229
        %v2462 = vunpack.c.l.b16 %v1230
        %v2463 = vunpack.c.h.b16 %v1230
        %v2464 = vunpack.c.l.b16 %v1231
        %v2465 = vunpack.c.h.b16 %v1231
        %v2466 = vunpack.c.l.b16 %v1232
        %v2467 = vunpack.c.h.b16 %v1232
        %v2468 = vunpack.c.l.b16 %v1233
        %v2469 = vunpack.c.h.b16 %v1233
        %v2470 = vunpack.c.l.b16 %v1234
        %v2471 = vunpack.c.h.b16 %v1234
        %v2472 = vunpack.c.l.b16 %v1235
        %v2473 = vunpack.c.h.b16 %v1235
        %v2474 = vunpack.c.l.b16 %v1236
        %v2475 = vunpack.c.h.b16 %v1236
        %v2476 = vunpack.c.l.b16 %v1237
        %v2477 = vunpack.c.h.b16 %v1237
        %v2478 = vunpack.c.l.b16 %v1238
        %v2479 = vunpack.c.h.b16 %v1238
        %v2480 = vunpack.c.l.b16 %v1239
        %v2481 = vunpack.c.h.b16 %v1239
        %v2482 = vunpack.c.l.b16 %v1240
        %v2483 = vunpack.c.h.b16 %v1240
        %v2484 = vunpack.c.l.b16 %v1241
        %v2485 = vunpack.c.h.b16 %v1241
        %v2486 = vunpack.c.l.b16 %v1242
        %v2487 = vunpack.c.h.b16 %v1242
        %v2488 = vunpack.c.l.b16 %v1243
        %v2489 = vunpack.c.h.b16 %v1243
        %v2490 = vunpack.c.l.b16 %v1244
        %v2491 = vunpack.c.h.b16 %v1244
        %v2492 = vunpack.c.l.b16 %v1245
        %v2493 = vunpack.c.h.b16 %v1245
        %v2494 = vunpack.c.l.b16 %v1246
        %v2495 = vunpack.c.h.b16 %v1246
        %v2496 = vunpack.c.l.b16 %v1247
        %v2497 = vunpack.c.h.b16 %v1247
        %v2498 = vunpack.c.l.b16 %v1248
        %v2499 = vunpack.c.h.b16 %v1248
        %v2500 = vunpack.c.l.b16 %v1249
        %v2501 = vunpack.c.h.b16 %v1249
        %v2502 = vunpack.c.l.b16 %v1250
        %v2503 = vunpack.c.h.b16 %v1250
        %v2504 = vunpack.c.l.b16 %v1251
        %v2505 = vunpack.c.h.b16 %v1251
        %v2506 = vunpack.c.l.b16 %v1252
        %v2507 = vunpack.c.h.b16 %v1252
        %v2508 = vunpack.c.l.b16 %v1253
        %v2509 = vunpack.c.h.b16 %v1253
        %v2510 = vunpack.c.l.b16 %v1254
        %v2511 = vunpack.c.h.b16 %v1254
        %v2512 = vunpack.c.l.b16 %v1255
        %v2513 = vunpack.c.h.b16 %v1255
        %v2514 = vunpack.c.l.b16 %v1256
        %v2515 = vunpack.c.h.b16 %v1256
        %v2516 = vunpack.c.l.b16 %v1257
        %v2517 = vunpack.c.h.b16 %v1257
        %v2518 = vunpack.c.l.b16 %v1258
        %v2519 = vunpack.c.h.b16 %v1258
        %v2520 = vunpack.c.l.b16 %v1259
        %v2521 = vunpack.c.h.b16 %v1259
        %v2522 = vunpack.c.l.b16 %v1260
        %v2523 = vunpack.c.h.b16 %v1260
        %v2524 = vunpack.c.l.b16 %v1261
        %v2525 = vunpack.c.h.b16 %v1261
        %v2526 = vunpack.c.l.b16 %v1262
        %v2527 = vunpack.c.h.b16 %v1262
        %v2528 = vunpack.c.l.b16 %v1263
        %v2529 = vunpack.c.h.b16 %v1263
        %v2530 = vunpack.c.l.b16 %v1264
        %v2531 = vunpack.c.h.b16 %v1264
        %v2532 = vunpack.c.l.b16 %v1265
        %v2533 = vunpack.c.h.b16 %v1265
        %v2534 = vunpack.c.l.b16 %v1266
        %v2535 = vunpack.c.h.b16 %v1266
        %v2536 = vunpack.c.l.b16 %v1267
        %v2537 = vunpack.c.h.b16 %v1267
        %v2538 = vunpack.c.l.b16 %v1268
        %v2539 = vunpack.c.h.b16 %v1268
        %v2540 = vunpack.c.l.b16 %v1269
        %v2541 = vunpack.c.h.b16 %v1269
        %v2542 = vunpack.c.l.b16 %v1270
        %v2543 = vunpack.c.h.b16 %v1270
        %v2544 = vunpack.c.l.b16 %v1271
        %v2545 = vunpack.c.h.b16 %v1271
        %v2546 = vunpack.c.l.b16 %v1272
        %v2547 = vunpack.c.h.b16 %v1272
        %v2548 = vunpack.c.l.b16 %v1273
        %v2549 = vunpack.c.h.b16 %v1273
        %v2550 = vunpack.c.l.b16 %v1274
        %v2551 = vunpack.c.h.b16 %v1274
        %v2552 = vunpack.c.l.b16 %v1275
        %v2553 = vunpack.c.h.b16 %v1275
        %v2554 = vunpack.c.l.b16 %v1276
        %v2555 = vunpack.c.h.b16 %v1276
        %v2556 = vunpack.c.l.b16 %v1277
        %v2557 = vunpack.c.h.b16 %v1277
        %v2558 = vunpack.c.l.b16 %v1278
        %v2559 = vunpack.c.h.b16 %v1278
        %v2560 = vunpack.c.l.b16 %v1279
        %v2561 = vunpack.c.h.b16 %v1279
        %v2562 = vunpack.c.l.b16 %v1280
        %v2563 = vunpack.c.h.b16 %v1280
        %v2564 = vunpack.c.l.b16 %v1281
        %v2565 = vunpack.c.h.b16 %v1281
        %v2566 = vunpack.c.l.b16 %v1282
        %v2567 = vunpack.c.h.b16 %v1282
        %v2568 = vunpack.c.l.b16 %v1283
        %v2569 = vunpack.c.h.b16 %v1283
        %v2570 = vunpack.c.l.b16 %v1284
        %v2571 = vunpack.c.h.b16 %v1284
        %v2572 = vunpack.c.l.b16 %v1285
        %v2573 = vunpack.c.h.b16 %v1285
        %v2574 = vunpack.c.l.b16 %v1286
        %v2575 = vunpack.c.h.b16 %v1286
        %v2576 = vunpack.c.l.b16 %v1287
        %v2577 = vunpack.c.h.b16 %v1287
        %v2578 = vunpack.c.l.b16 %v1288
        %v2579 = vunpack.c.h.b16 %v1288
        %v2580 = vunpack.c.l.b16 %v1289
        %v2581 = vunpack.c.h.b16 %v1289
        %v2582 = vunpack.c.l.b16 %v1290
        %v2583 = vunpack.c.h.b16 %v1290
        %v2584 = vunpack.c.l.b16 %v1291
        %v2585 = vunpack.c.h.b16 %v1291
        %v2586 = vunpack.c.l.b16 %v1292
        %v2587 = vunpack.c.h.b16 %v1292
        %v2588 = vunpack.c.l.b16 %v1293
        %v2589 = vunpack.c.h.b16 %v1293
        %v2590 = vunpack.c.l.b16 %v1294
        %v2591 = vunpack.c.h.b16 %v1294
        %v2592 = vunpack.c.l.b16 %v1295
        %v2593 = vunpack.c.h.b16 %v1295
        %v2594 = vunpack.c.l.b16 %v1296
        %v2595 = vunpack.c.h.b16 %v1296
        %v2596 = vunpack.c.l.b16 %v1297
        %v2597 = vunpack.c.h.b16 %v1297
        %v2598 = vunpack.c.l.b16 %v1298
        %v2599 = vunpack.c.h.b16 %v1298
        %v2600 = vunpack.c.l.b16 %v1299
        %v2601 = vunpack.c.h.b16 %v1299
        %v2602 = vunpack.c.l.b16 %v1300
        %v2603 = vunpack.c.h.b16 %v1300
        %v2604 = vunpack.c.l.b16 %v1301
        %v2605 = vunpack.c.h.b16 %v1301
        %v2606 = vunpack.c.l.b16 %v1302
        %v2607 = vunpack.c.h.b16 %v1302
        %v2608 = vunpack.c.l.b16 %v1303
        %v2609 = vunpack.c.h.b16 %v1303
        %v2610 = vunpack.c.l.b16 %v1304
        %v2611 = vunpack.c.h.b16 %v1304
        %v2612 = vunpack.c.l.b16 %v1305
        %v2613 = vunpack.c.h.b16 %v1305
        %v2614 = vunpack.c.l.b16 %v1306
        %v2615 = vunpack.c.h.b16 %v1306
        %v2616 = vunpack.c.l.b16 %v1307
        %v2617 = vunpack.c.h.b16 %v1307
        %v2618 = vunpack.c.l.b16 %v1308
        %v2619 = vunpack.c.h.b16 %v1308
        %v2620 = vunpack.c.l.b16 %v1309
        %v2621 = vunpack.c.h.b16 %v1309
        %v2622 = vunpack.c.l.b16 %v1310
        %v2623 = vunpack.c.h.b16 %v1310
        %v2624 = vunpack.c.l.b16 %v1311
        %v2625 = vunpack.c.h.b16 %v1311
        %v2626 = vunpack.c.l.b16 %v1312
        %v2627 = vunpack.c.h.b16 %v1312
        %v2628 = vunpack.c.l.b16 %v1313
        %v2629 = vunpack.c.h.b16 %v1313
        %v2630 = vunpack.c.l.b16 %v1314
        %v2631 = vunpack.c.h.b16 %v1314
        %v2632 = vunpack.c.l.b16 %v1315
        %v2633 = vunpack.c.h.b16 %v1315
        %v2634 = vunpack.c.l.b16 %v1316
        %v2635 = vunpack.c.h.b16 %v1316
        %v2636 = vunpack.c.l.b16 %v1317
        %v2637 = vunpack.c.h.b16 %v1317
        %v2638 = vunpack.c.l.b16 %v1318
        %v2639 = vunpack.c.h.b16 %v1318
        %v2640 = vunpack.c.l.b16 %v1319
        %v2641 = vunpack.c.h.b16 %v1319
        %v2642 = vunpack.c.l.b16 %v1320
        %v2643 = vunpack.c.h.b16 %v1320
        %v2644 = vunpack.c.l.b16 %v1321
        %v2645 = vunpack.c.h.b16 %v1321
        %v2646 = vunpack.c.l.b16 %v1322
        %v2647 = vunpack.c.h.b16 %v1322
        %v2648 = vunpack.c.l.b16 %v1323
        %v2649 = vunpack.c.h.b16 %v1323
        %v2650 = vunpack.c.l.b16 %v1324
        %v2651 = vunpack.c.h.b16 %v1324
        %v2652 = vunpack.c.l.b16 %v1325
        %v2653 = vunpack.c.h.b16 %v1325
        %v2654 = vunpack.c.l.b16 %v1326
        %v2655 = vunpack.c.h.b16 %v1326
        %v2656 = vunpack.c.l.b16 %v1327
        %v2657 = vunpack.c.h.b16 %v1327
        %v2658 = vunpack.c.l.b16 %v1328
        %v2659 = vunpack.c.h.b16 %v1328
        %v2660 = vunpack.c.l.b16 %v1329
        %v2661 = vunpack.c.h.b16 %v1329
        %v2662 = vunpack.c.l.b16 %v1330
        %v2663 = vunpack.c.h.b16 %v1330
        %v2664 = vunpack.c.l.b16 %v1331
        %v2665 = vunpack.c.h.b16 %v1331
        %v2666 = vunpack.c.l.b16 %v1332
        %v2667 = vunpack.c.h.b16 %v1332
        %v2668 = vunpack.c.l.b16 %v1333
        %v2669 = vunpack.c.h.b16 %v1333
        %v2670 = vunpack.c.l.b16 %v1334
        %v2671 = vunpack.c.h.b16 %v1334
        %v2672 = vunpack.c.l.b16 %v1335
        %v2673 = vunpack.c.h.b16 %v1335
        %v2674 = vunpack.c.l.b16 %v1336
        %v2675 = vunpack.c.h.b16 %v1336
        %v2676 = vunpack.c.l.b16 %v1337
        %v2677 = vunpack.c.h.b16 %v1337
        %v2678 = vunpack.c.l.b16 %v1338
        %v2679 = vunpack.c.h.b16 %v1338
        %v2680 = vunpack.c.l.b16 %v1339
        %v2681 = vunpack.c.h.b16 %v1339
        %v2682 = vunpack.c.l.b16 %v1340
        %v2683 = vunpack.c.h.b16 %v1340
        %v2684 = vunpack.c.l.b16 %v1341
        %v2685 = vunpack.c.h.b16 %v1341
        %v2686 = vunpack.c.l.b16 %v1342
        %v2687 = vunpack.c.h.b16 %v1342
        %v2688 = vunpack.c.l.b16 %v1343
        %v2689 = vunpack.c.h.b16 %v1343
        %v2690 = vunpack.c.l.b16 %v1344
        %v2691 = vunpack.c.h.b16 %v1344
        %v2692 = vunpack.c.l.b16 %v1345
        %v2693 = vunpack.c.h.b16 %v1345
        %v2694 = vunpack.c.l.b16 %v1346
        %v2695 = vunpack.c.h.b16 %v1346
        %v2696 = vunpack.c.l.b16 %v1347
        %v2697 = vunpack.c.h.b16 %v1347
        %v2698 = vunpack.c.l.b16 %v1348
        %v2699 = vunpack.c.h.b16 %v1348
        %v2700 = vunpack.c.l.b16 %v1349
        %v2701 = vunpack.c.h.b16 %v1349
        %v2702 = vunpack.c.l.b16 %v1350
        %v2703 = vunpack.c.h.b16 %v1350
        %v2704 = vunpack.c.l.b16 %v1351
        %v2705 = vunpack.c.h.b16 %v1351
        %v2706 = vunpack.c.l.b16 %v1352
        %v2707 = vunpack.c.h.b16 %v1352
        %v2708 = vunpack.c.l.b16 %v1353
        %v2709 = vunpack.c.h.b16 %v1353
        %v2710 = vunpack.c.l.b16 %v1354
        %v2711 = vunpack.c.h.b16 %v1354
        %v2712 = vunpack.c.l.b16 %v1355
        %v2713 = vunpack.c.h.b16 %v1355
        %v2714 = vunpack.c.l.b16 %v1356
        %v2715 = vunpack.c.h.b16 %v1356
        %v2716 = vunpack.c.l.b16 %v1357
        %v2717 = vunpack.c.h.b16 %v1357
        %v2718 = vunpack.c.l.b16 %v1358
        %v2719 = vunpack.c.h.b16 %v1358
        %v2720 = vunpack.c.l.b16 %v1359
        %v2721 = vunpack.c.h.b16 %v1359
        %v2722 = vunpack.c.l.b16 %v1360
        %v2723 = vunpack.c.h.b16 %v1360
        %v2724 = vunpack.c.l.b16 %v1361
        %v2725 = vunpack.c.h.b16 %v1361
        %v2726 = vunpack.c.l.b16 %v1362
        %v2727 = vunpack.c.h.b16 %v1362
        %v2728 = vunpack.c.l.b16 %v1363
        %v2729 = vunpack.c.h.b16 %v1363
        %v2730 = vunpack.c.l.b16 %v1364
        %v2731 = vunpack.c.h.b16 %v1364
        %v2732 = vunpack.c.l.b16 %v1365
        %v2733 = vunpack.c.h.b16 %v1365
        %v2734 = vunpack.c.l.b16 %v1366
        %v2735 = vunpack.c.h.b16 %v1366
        %v2736 = vunpack.c.l.b16 %v1367
        %v2737 = vunpack.c.h.b16 %v1367
        %v2738 = vunpack.c.l.b16 %v1368
        %v2739 = vunpack.c.h.b16 %v1368
        %v2740 = vunpack.c.l.b16 %v1369
        %v2741 = vunpack.c.h.b16 %v1369
        %v2742 = vunpack.c.l.b16 %v1370
        %v2743 = vunpack.c.h.b16 %v1370
        %v2744 = vunpack.c.l.b16 %v1371
        %v2745 = vunpack.c.h.b16 %v1371
        %v2746 = vunpack.c.l.b16 %v1372
        %v2747 = vunpack.c.h.b16 %v1372
        %v2748 = vunpack.c.l.b16 %v1373
        %v2749 = vunpack.c.h.b16 %v1373
        %v2750 = vunpack.c.l.b16 %v1374
        %v2751 = vunpack.c.h.b16 %v1374
        %v2752 = vunpack.c.l.b16 %v1375
        %v2753 = vunpack.c.h.b16 %v1375
        %v2754 = vunpack.c.l.b16 %v1376
        %v2755 = vunpack.c.h.b16 %v1376
        %v2756 = vunpack.c.l.b16 %v1377
        %v2757 = vunpack.c.h.b16 %v1377
        %v2758 = vunpack.c.l.b16 %v1378
        %v2759 = vunpack.c.h.b16 %v1378
        %v2760 = vunpack.c.l.b16 %v1379
        %v2761 = vunpack.c.h.b16 %v1379
        %v2762 = vunpack.c.l.b16 %v1380
        %v2763 = vunpack.c.h.b16 %v1380
        %v2764 = vunpack.c.l.b16 %v1381
        %v2765 = vunpack.c.h.b16 %v1381
        %v2766 = vunpack.c.l.b16 %v1382
        %v2767 = vunpack.c.h.b16 %v1382
        %v2768 = vunpack.c.l.b16 %v1383
        %v2769 = vunpack.c.h.b16 %v1383
        %v2770 = vunpack.c.l.b16 %v1384
        %v2771 = vunpack.c.h.b16 %v1384
        %v2772 = vunpack.c.l.b16 %v1385
        %v2773 = vunpack.c.h.b16 %v1385
        %v2774 = vunpack.c.l.b16 %v1386
        %v2775 = vunpack.c.h.b16 %v1386
        %v2776 = vunpack.c.l.b16 %v1387
        %v2777 = vunpack.c.h.b16 %v1387
        %v2778 = vunpack.c.l.b16 %v1388
        %v2779 = vunpack.c.h.b16 %v1388
        %v2780 = vunpack.c.l.b16 %v1389
        %v2781 = vunpack.c.h.b16 %v1389
        %v2782 = vunpack.c.l.b16 %v1390
        %v2783 = vunpack.c.h.b16 %v1390
        %v2784 = vunpack.c.l.b16 %v1391
        %v2785 = vunpack.c.h.b16 %v1391
        %v2786 = vunpack.c.l.b16 %v1392
        %v2787 = vunpack.c.h.b16 %v1392
        %v2788 = vunpack.c.l.b16 %v1393
        %v2789 = vunpack.c.h.b16 %v1393
        %v2790 = vunpack.c.l.b16 %v1394
        %v2791 = vunpack.c.h.b16 %v1394
        %v2792 = vunpack.c.l.b16 %v1395
        %v2793 = vunpack.c.h.b16 %v1395
        %v2794 = vunpack.c.l.b16 %v1396
        %v2795 = vunpack.c.h.b16 %v1396
        %v2796 = vunpack.c.l.b16 %v1397
        %v2797 = vunpack.c.h.b16 %v1397
        %v2798 = vunpack.c.l.b16 %v1398
        %v2799 = vunpack.c.h.b16 %v1398
        %v2800 = vunpack.c.l.b16 %v1399
        %v2801 = vunpack.c.h.b16 %v1399
        %v2802 = vunpack.c.l.b16 %v1400
        %v2803 = vunpack.c.h.b16 %v1400
        %v2804 = vunpack.c.l.b16 %v1401
        %v2805 = vunpack.c.h.b16 %v1401
        %v2806 = vunpack.c.l.b16 %v1402
        %v2807 = vunpack.c.h.b16 %v1402
        %v2808 = vunpack.c.l.b16 %v1403
        %v2809 = vunpack.c.h.b16 %v1403
        %v2810 = vunpack.c.l.b16 %v1404
        %v2811 = vunpack.c.h.b16 %v1404
        %v2812 = vunpack.c.l.b16 %v1405
        %v2813 = vunpack.c.h.b16 %v1405
        %v2814 = vunpack.c.l.b16 %v1406
        %v2815 = vunpack.c.h.b16 %v1406
        %v2816 = vunpack.c.l.b16 %v1407
        %v2817 = vunpack.c.h.b16 %v1407
        %v2818 = vunpack.c.l.b16 %v1408
        %v2819 = vunpack.c.h.b16 %v1408
        %v2820 = vunpack.c.l.b16 %v1409
        %v2821 = vunpack.c.h.b16 %v1409
        %v2822 = vunpack.c.l.b16 %v1410
        %v2823 = vunpack.c.h.b16 %v1410
        %v2824 = vunpack.c.l.b16 %v1411
        %v2825 = vunpack.c.h.b16 %v1411
        %v2826 = vunpack.c.l.b16 %v1412
        %v2827 = vunpack.c.h.b16 %v1412
        %v2828 = vunpack.c.l.b16 %v1413
        %v2829 = vunpack.c.h.b16 %v1413
        %v2830 = vunpack.c.l.b16 %v1414
        %v2831 = vunpack.c.h.b16 %v1414
        %v2832 = vunpack.c.l.b16 %v1415
        %v2833 = vunpack.c.h.b16 %v1415
        %v2834 = vunpack.c.l.b16 %v1416
        %v2835 = vunpack.c.h.b16 %v1416
        %v2836 = vunpack.c.l.b16 %v1417
        %v2837 = vunpack.c.h.b16 %v1417
        %v2838 = vunpack.c.l.b16 %v1418
        %v2839 = vunpack.c.h.b16 %v1418
        %v2840 = vunpack.c.l.b16 %v1419
        %v2841 = vunpack.c.h.b16 %v1419
        %v2842 = vunpack.c.l.b16 %v1420
        %v2843 = vunpack.c.h.b16 %v1420
        %v2844 = vunpack.c.l.b16 %v1421
        %v2845 = vunpack.c.h.b16 %v1421
        %v2846 = vunpack.c.l.b16 %v1422
        %v2847 = vunpack.c.h.b16 %v1422
        %v2848 = vunpack.c.l.b16 %v1423
        %v2849 = vunpack.c.h.b16 %v1423
        %v2850 = vunpack.c.l.b16 %v1424
        %v2851 = vunpack.c.h.b16 %v1424
        %v2852 = vunpack.c.l.b16 %v1425
        %v2853 = vunpack.c.h.b16 %v1425
        %v2854 = vunpack.c.l.b16 %v1426
        %v2855 = vunpack.c.h.b16 %v1426
        %v2856 = vunpack.c.l.b16 %v1427
        %v2857 = vunpack.c.h.b16 %v1427
        %v2858 = vunpack.c.l.b16 %v1428
        %v2859 = vunpack.c.h.b16 %v1428
        %v2860 = vunpack.c.l.b16 %v1429
        %v2861 = vunpack.c.h.b16 %v1429
        %v2862 = vunpack.c.l.b16 %v1430
        %v2863 = vunpack.c.h.b16 %v1430
        %v2864 = vunpack.c.l.b16 %v1431
        %v2865 = vunpack.c.h.b16 %v1431
        %v2866 = vunpack.c.l.b16 %v1432
        %v2867 = vunpack.c.h.b16 %v1432
        %v2868 = vunpack.c.l.b16 %v1433
        %v2869 = vunpack.c.h.b16 %v1433
        %v2870 = vunpack.c.l.b16 %v1434
        %v2871 = vunpack.c.h.b16 %v1434
        %v2872 = vunpack.c.l.b16 %v1435
        %v2873 = vunpack.c.h.b16 %v1435
        %v2874 = vunpack.c.l.b16 %v1436
        %v2875 = vunpack.c.h.b16 %v1436
        %v2876 = vunpack.c.l.b16 %v1437
        %v2877 = vunpack.c.h.b16 %v1437
        %v2878 = vunpack.c.l.b16 %v1438
        %v2879 = vunpack.c.h.b16 %v1438
        %v2880 = vunpack.c.l.b16 %v1439
        %v2881 = vunpack.c.h.b16 %v1439
        %v2882 = vunpack.c.l.b16 %v1440
        %v2883 = vunpack.c.h.b16 %v1440
        %v2884 = vunpack.c.l.b16 %v1441
        %v2885 = vunpack.c.h.b16 %v1441
        %v2886 = vunpack.c.l.b16 %v1442
        %v2887 = vunpack.c.h.b16 %v1442
        %v2888 = vunpack.c.l.b16 %v1443
        %v2889 = vunpack.c.h.b16 %v1443
        %v2890 = vunpack.c.l.b16 %v1444
        %v2891 = vunpack.c.h.b16 %v1444
        %v2892 = vunpack.c.l.b16 %v1445
        %v2893 = vunpack.c.h.b16 %v1445
        %v2894 = vunpack.c.l.b16 %v1446
        %v2895 = vunpack.c.h.b16 %v1446
        %v2896 = vunpack.c.l.b16 %v1447
        %v2897 = vunpack.c.h.b16 %v1447
        %v2898 = vunpack.c.l.b16 %v1448
        %v2899 = vunpack.c.h.b16 %v1448
        %v2900 = vunpack.c.l.b16 %v1449
        %v2901 = vunpack.c.h.b16 %v1449
        %v2902 = vunpack.c.l.b16 %v1450
        %v2903 = vunpack.c.h.b16 %v1450
        %v2904 = vunpack.c.l.b16 %v1451
        %v2905 = vunpack.c.h.b16 %v1451
        %v2906 = vunpack.c.l.b16 %v1452
        %v2907 = vunpack.c.h.b16 %v1452
        %v2908 = vunpack.c.l.b16 %v1453
        %v2909 = vunpack.c.h.b16 %v1453
        %v2910 = vunpack.c.l.b16 %v1454
        %v2911 = vunpack.c.h.b16 %v1454
        %v2912 = vunpack.c.l.b16 %v1455
        %v2913 = vunpack.c.h.b16 %v1455
        %v2914 = vunpack.c.l.b16 %v1456
        %v2915 = vunpack.c.h.b16 %v1456
        %v2916 = vunpack.c.l.b16 %v1457
        %v2917 = vunpack.c.h.b16 %v1457
        %v2918 = vunpack.c.l.b16 %v1458
        %v2919 = vunpack.c.h.b16 %v1458
        %v2920 = vunpack.c.l.b16 %v1459
        %v2921 = vunpack.c.h.b16 %v1459
        %v2922 = vunpack.c.l.b16 %v1460
        %v2923 = vunpack.c.h.b16 %v1460
        %v2924 = vunpack.c.l.b16 %v1461
        %v2925 = vunpack.c.h.b16 %v1461
        %v2926 = vunpack.c.l.b16 %v1462
        %v2927 = vunpack.c.h.b16 %v1462
        %v2928 = vunpack.c.l.b16 %v1463
        %v2929 = vunpack.c.h.b16 %v1463
        %v2930 = vunpack.c.l.b16 %v1464
        %v2931 = vunpack.c.h.b16 %v1464
        %v2932 = vunpack.c.l.b16 %v1465
        %v2933 = vunpack.c.h.b16 %v1465
        %v2934 = vunpack.c.l.b16 %v1466
        %v2935 = vunpack.c.h.b16 %v1466
        %v2936 = vunpack.c.l.b16 %v1467
        %v2937 = vunpack.c.h.b16 %v1467
        %v2938 = vunpack.c.l.b16 %v1468
        %v2939 = vunpack.c.h.b16 %v1468
        %v2940 = vunpack.c.l.b16 %v1469
        %v2941 = vunpack.c.h.b16 %v1469
        %v2942 = vunpack.c.l.b16 %v1470
        %v2943 = vunpack.c.h.b16 %v1470
        %v2944 = vunpack.c.l.b16 %v1471
        %v2945 = vunpack.c.h.b16 %v1471
        %v2946 = vunpack.c.l.b16 %v1472
        %v2947 = vunpack.c.h.b16 %v1472
        %v2948 = vunpack.c.l.b16 %v1473
        %v2949 = vunpack.c.h.b16 %v1473
        %v2950 = vunpack.c.l.b16 %v1474
        %v2951 = vunpack.c.h.b16 %v1474
        %v2952 = vunpack.c.l.b16 %v1475
        %v2953 = vunpack.c.h.b16 %v1475
        %v2954 = vunpack.c.l.b16 %v1476
        %v2955 = vunpack.c.h.b16 %v1476
        %v2956 = vunpack.c.l.b16 %v1477
        %v2957 = vunpack.c.h.b16 %v1477
        %v2958 = vunpack.c.l.b16 %v1478
        %v2959 = vunpack.c.h.b16 %v1478
        %v2960 = vunpack.c.l.b16 %v1479
        %v2961 = vunpack.c.h.b16 %v1479
        %v2962 = vunpack.c.l.b16 %v1480
        %v2963 = vunpack.c.h.b16 %v1480
        %v2964 = vunpack.c.l.b16 %v1481
        %v2965 = vunpack.c.h.b16 %v1481
        %v2966 = vunpack.c.l.b16 %v1482
        %v2967 = vunpack.c.h.b16 %v1482
        %v2968 = vunpack.c.l.b16 %v1483
        %v2969 = vunpack.c.h.b16 %v1483
        %v2970 = vunpack.c.l.b16 %v1484
        %v2971 = vunpack.c.h.b16 %v1484
        %v2972 = vunpack.c.l.b16 %v1485
        %v2973 = vunpack.c.h.b16 %v1485
        %v2974 = vunpack.c.l.b16 %v1486
        %v2975 = vunpack.c.h.b16 %v1486
        %v2976 = vunpack.c.l.b16 %v1487
        %v2977 = vunpack.c.h.b16 %v1487
        %v2978 = vunpack.c.l.b16 %v1488
        %v2979 = vunpack.c.h.b16 %v1488
        %v2980 = vunpack.c.l.b16 %v1489
        %v2981 = vunpack.c.h.b16 %v1489
        %v2982 = vunpack.c.l.b16 %v1490
        %v2983 = vunpack.c.h.b16 %v1490
        %v2984 = vunpack.c.l.b16 %v1491
        %v2985 = vunpack.c.h.b16 %v1491
        %v2986 = vunpack.c.l.b16 %v1492
        %v2987 = vunpack.c.h.b16 %v1492
        %v2988 = vunpack.c.l.b16 %v1493
        %v2989 = vunpack.c.h.b16 %v1493
        %v2990 = vunpack.c.l.b16 %v1494
        %v2991 = vunpack.c.h.b16 %v1494
        %v2992 = vunpack.c.l.b16 %v1495
        %v2993 = vunpack.c.h.b16 %v1495
        %v2994 = vunpack.c.l.b16 %v1496
        %v2995 = vunpack.c.h.b16 %v1496
        %v2996 = vunpack.c.l.b16 %v1497
        %v2997 = vunpack.c.h.b16 %v1497
        %v2998 = vunpack.c.l.b16 %v1498
        %v2999 = vunpack.c.h.b16 %v1498
        %v3000 = vunpack.c.l.b16 %v1499
        %v3001 = vunpack.c.h.b16 %v1499
        %v3002 = vunpack.c.l.b16 %v1500
        %v3003 = vunpack.c.h.b16 %v1500
        %v3004 = vunpack.c.l.b16 %v1501
        %v3005 = vunpack.c.h.b16 %v1501
        %v3006 = vunpack.c.l.b16 %v1502
        %v3007 = vunpack.c.h.b16 %v1502
        %v3008 = vunpack.c.l.b16 %v1503
        %v3009 = vunpack.c.h.b16 %v1503
        %v3010 = vunpack.c.l.b16 %v1504
        %v3011 = vunpack.c.h.b16 %v1504
        %v3012 = vunpack.c.l.b16 %v1505
        %v3013 = vunpack.c.h.b16 %v1505
        %v3014 = vunpack.c.l.b16 %v1506
        %v3015 = vunpack.c.h.b16 %v1506
        %v3016 = vunpack.c.l.b16 %v1507
        %v3017 = vunpack.c.h.b16 %v1507
        %v3018 = vunpack.c.l.b16 %v1508
        %v3019 = vunpack.c.h.b16 %v1508
        %v3020 = vunpack.c.l.b16 %v1509
        %v3021 = vunpack.c.h.b16 %v1509
        %v3022 = vunpack.c.l.b16 %v1510
        %v3023 = vunpack.c.h.b16 %v1510
        %v3024 = vunpack.c.l.b16 %v1511
        %v3025 = vunpack.c.h.b16 %v1511
        %v3026 = vunpack.c.l.b16 %v1512
        %v3027 = vunpack.c.h.b16 %v1512
        %v3028 = vunpack.c.l.b16 %v1513
        %v3029 = vunpack.c.h.b16 %v1513
        %v3030 = vunpack.c.l.b16 %v1514
        %v3031 = vunpack.c.h.b16 %v1514
        %v3032 = vunpack.c.l.b16 %v1515
        %v3033 = vunpack.c.h.b16 %v1515
        %v3034 = vunpack.c.l.b16 %v1516
        %v3035 = vunpack.c.h.b16 %v1516
        %v3036 = vunpack.c.l.b16 %v1517
        %v3037 = vunpack.c.h.b16 %v1517
        %v3038 = vunpack.c.l.b16 %v1518
        %v3039 = vunpack.c.h.b16 %v1518
        %v3040 = vunpack.c.l.b16 %v1519
        %v3041 = vunpack.c.h.b16 %v1519
        %v3042 = vunpack.c.l.b16 %v1520
        %v3043 = vunpack.c.h.b16 %v1520
        %v3044 = vunpack.c.l.b16 %v1521
        %v3045 = vunpack.c.h.b16 %v1521
        %v3046 = vunpack.c.l.b16 %v1522
        %v3047 = vunpack.c.h.b16 %v1522
        %v3048 = vunpack.c.l.b16 %v1523
        %v3049 = vunpack.c.h.b16 %v1523
        %v3050 = vunpack.c.l.b16 %v1524
        %v3051 = vunpack.c.h.b16 %v1524
        %v3052 = vunpack.c.l.b16 %v1525
        %v3053 = vunpack.c.h.b16 %v1525
        %v3054 = vunpack.c.l.b16 %v1526
        %v3055 = vunpack.c.h.b16 %v1526
        %v3056 = vunpack.c.l.b16 %v1527
        %v3057 = vunpack.c.h.b16 %v1527
        %v3058 = vunpack.c.l.b16 %v1528
        %v3059 = vunpack.c.h.b16 %v1528
        %v3060 = vunpack.c.l.b16 %v1529
        %v3061 = vunpack.c.h.b16 %v1529
        %v3062 = vunpack.c.l.b16 %v1530
        %v3063 = vunpack.c.h.b16 %v1530
        %v3064 = vunpack.c.l.b16 %v1531
        %v3065 = vunpack.c.h.b16 %v1531
        %v3066 = vunpack.c.l.b16 %v1532
        %v3067 = vunpack.c.h.b16 %v1532
        %v3068 = vunpack.c.l.b16 %v1533
        %v3069 = vunpack.c.h.b16 %v1533
        %v3070 = vunpack.c.l.b16 %v1534
        %v3071 = vunpack.c.h.b16 %v1534
        %v3072 = vunpack.c.l.b16 %v1535
        %v3073 = vunpack.c.h.b16 %v1535
        %v3074 = vunpack.c.l.b16 %v1536
        %v3075 = vunpack.c.h.b16 %v1536
        %v3076 = vunpack.c.l.b16 %v1537
        %v3077 = vunpack.c.h.b16 %v1537
        %v3078 = vunpack.c.l.b16 %v1538
        %v3079 = vunpack.c.h.b16 %v1538
        %v3080 = vunpack.c.l.b16 %v1539
        %v3081 = vunpack.c.h.b16 %v1539
        %v3082 = vunpack.c.l.b16 %v1540
        %v3083 = vunpack.c.h.b16 %v1540
        %v3084 = vunpack.c.l.b16 %v1541
        %v3085 = vunpack.c.h.b16 %v1541
        %v3086 = vunpack.c.l.b16 %v1542
        %v3087 = vunpack.c.h.b16 %v1542
        %v3088 = vunpack.c.l.b16 %v1543
        %v3089 = vunpack.c.h.b16 %v1543
        %v3090 = vunpack.c.l.b16 %v1544
        %v3091 = vunpack.c.h.b16 %v1544
        %v3092 = vunpack.c.l.b16 %v1545
        %v3093 = vunpack.c.h.b16 %v1545
        %v3094 = vunpack.c.l.b16 %v1546
        %v3095 = vunpack.c.h.b16 %v1546
        %v3096 = vunpack.c.l.b16 %v1547
        %v3097 = vunpack.c.h.b16 %v1547
        %v3098 = vunpack.c.l.b16 %v1548
        %v3099 = vunpack.c.h.b16 %v1548
        %v3100 = vunpack.c.l.b16 %v1549
        %v3101 = vunpack.c.h.b16 %v1549
        %v3102 = vunpack.c.l.b16 %v1550
        %v3103 = vunpack.c.h.b16 %v1550
        %v3104 = vunpack.c.l.b16 %v1551
        %v3105 = vunpack.c.h.b16 %v1551
        %v3106 = vunpack.c.l.b16 %v1552
        %v3107 = vunpack.c.h.b16 %v1552
        %v3108 = vunpack.c.l.b16 %v1553
        %v3109 = vunpack.c.h.b16 %v1553
        %v3110 = vunpack.c.l.b16 %v1554
        %v3111 = vunpack.c.h.b16 %v1554
        %v3112 = vunpack.c.l.b16 %v1555
        %v3113 = vunpack.c.h.b16 %v1555
        %v3114 = vunpack.c.l.b16 %v1556
        %v3115 = vunpack.c.h.b16 %v1556
        %v3116 = vunpack.c.l.b16 %v1557
        %v3117 = vunpack.c.h.b16 %v1557
        %v3118 = vunpack.c.l.b16 %v1558
        %v3119 = vunpack.c.h.b16 %v1558
        %v3120 = vunpack.c.l.b16 %v1559
        %v3121 = vunpack.c.h.b16 %v1559
        %v3122 = vunpack.c.l.b16 %v1560
        %v3123 = vunpack.c.h.b16 %v1560
        %v3124 = vunpack.c.l.b16 %v1561
        %v3125 = vunpack.c.h.b16 %v1561
        %v3126 = vunpack.c.l.b16 %v1562
        %v3127 = vunpack.c.h.b16 %v1562
        %v3128 = vunpack.c.l.b16 %v1563
        %v3129 = vunpack.c.h.b16 %v1563
        %v3130 = vunpack.c.l.b16 %v1564
        %v3131 = vunpack.c.h.b16 %v1564
        %v3132 = vunpack.c.l.b16 %v1565
        %v3133 = vunpack.c.h.b16 %v1565
        %v3134 = vunpack.c.l.b16 %v1566
        %v3135 = vunpack.c.h.b16 %v1566
        %v3136 = vunpack.c.l.b16 %v1567
        %v3137 = vunpack.c.h.b16 %v1567
        %v3138 = vunpack.c.l.b16 %v1568
        %v3139 = vunpack.c.h.b16 %v1568
        %v3140 = vunpack.c.l.b16 %v1569
        %v3141 = vunpack.c.h.b16 %v1569
        %v3142 = vunpack.c.l.b16 %v1570
        %v3143 = vunpack.c.h.b16 %v1570
        %v3144 = vunpack.c.l.b16 %v1571
        %v3145 = vunpack.c.h.b16 %v1571
        %v3146 = vunpack.c.l.b16 %v1572
        %v3147 = vunpack.c.h.b16 %v1572
        %v3148 = vunpack.c.l.b16 %v1573
        %v3149 = vunpack.c.h.b16 %v1573
        %v3150 = vunpack.c.l.b16 %v1574
        %v3151 = vunpack.c.h.b16 %v1574
        %v3152 = vunpack.c.l.b16 %v1575
        %v3153 = vunpack.c.h.b16 %v1575
        %v3154 = vunpack.c.l.b16 %v1576
        %v3155 = vunpack.c.h.b16 %v1576
        %v3156 = vunpack.c.l.b16 %v1577
        %v3157 = vunpack.c.h.b16 %v1577
        %v3158 = vunpack.c.l.b16 %v1578
        %v3159 = vunpack.c.h.b16 %v1578
        %v3160 = vunpack.c.l.b16 %v1579
        %v3161 = vunpack.c.h.b16 %v1579
        %v3162 = vunpack.c.l.b16 %v1580
        %v3163 = vunpack.c.h.b16 %v1580
        %v3164 = vunpack.c.l.b16 %v1581
        %v3165 = vunpack.c.h.b16 %v1581
        %v3166 = vunpack.c.l.b16 %v1582
        %v3167 = vunpack.c.h.b16 %v1582
        %v3168 = vunpack.c.l.b16 %v1583
        %v3169 = vunpack.c.h.b16 %v1583
        %v3170 = vunpack.c.l.b16 %v1584
        %v3171 = vunpack.c.h.b16 %v1584
        %v3172 = vunpack.c.l.b16 %v1585
        %v3173 = vunpack.c.h.b16 %v1585
        %v3174 = vunpack.c.l.b16 %v1586
        %v3175 = vunpack.c.h.b16 %v1586
        %v3176 = vunpack.c.l.b16 %v1587
        %v3177 = vunpack.c.h.b16 %v1587
        %v3178 = vunpack.c.l.b16 %v1588
        %v3179 = vunpack.c.h.b16 %v1588
        %v3180 = vunpack.c.l.b16 %v1589
        %v3181 = vunpack.c.h.b16 %v1589
        %v3182 = vunpack.c.l.b16 %v1590
        %v3183 = vunpack.c.h.b16 %v1590
        %v3184 = vunpack.c.l.b16 %v1591
        %v3185 = vunpack.c.h.b16 %v1591
        %v3186 = vunpack.c.l.b16 %v1592
        %v3187 = vunpack.c.h.b16 %v1592
        %v3188 = vunpack.c.l.b16 %v1593
        %v3189 = vunpack.c.h.b16 %v1593
        %v3190 = vunpack.c.l.b16 %v1594
        %v3191 = vunpack.c.h.b16 %v1594
        %v3192 = vunpack.c.l.b16 %v1595
        %v3193 = vunpack.c.h.b16 %v1595
        %v3194 = vunpack.c.l.b16 %v1596
        %v3195 = vunpack.c.h.b16 %v1596
        %v3196 = vunpack.c.l.b16 %v1597
        %v3197 = vunpack.c.h.b16 %v1597
        %v3198 = vunpack.c.l.b16 %v1598
        %v3199 = vunpack.c.h.b16 %v1598
        %v3200 = vunpack.c.l.b16 %v1599
        %v3201 = vunpack.c.h.b16 %v1599
        %v3202 = vunpack.c.l.b16 %v1600
        %v3203 = vunpack.c.h.b16 %v1600
        %v3204 = vunpack.c.l.b16 %v1601
        %v3205 = vunpack.c.h.b16 %v1601
        %v3206 = vunpack.c.l.b16 %v1602
        %v3207 = vunpack.c.h.b16 %v1602
        %v3208 = vunpack.c.l.b16 %v1603
        %v3209 = vunpack.c.h.b16 %v1603
        %v3210 = vunpack.c.l.b16 %v1604
        %v3211 = vunpack.c.h.b16 %v1604
        %v3212 = vunpack.c.l.b16 %v1605
        %v3213 = vunpack.c.h.b16 %v1605
        %v3214 = vunpack.c.l.b16 %v1606
        %v3215 = vunpack.c.h.b16 %v1606
        %v3216 = vunpack.c.l.b16 %v1607
        %v3217 = vunpack.c.h.b16 %v1607
        %v3218 = vunpack.c.l.b16 %v1608
        %v3219 = vunpack.c.h.b16 %v1608
        %v3220 = vunpack.c.l.b16 %v1609
        %v3221 = vunpack.c.h.b16 %v1609
        %v3222 = vunpack.c.l.b16 %v1610
        %v3223 = vunpack.c.h.b16 %v1610
        %v3224 = vunpack.c.l.b16 %v1611
        %v3225 = vunpack.c.h.b16 %v1611
        %v3226 = vunpack.c.l.b16 %v1612
        %v3227 = vunpack.c.h.b16 %v1612
        %v3228 = vunpack.c.l.b16 %v1613
        %v3229 = vunpack.c.h.b16 %v1613
        %v3230 = vunpack.c.l.b16 %v1614
        %v3231 = vunpack.c.h.b16 %v1614
        %v3232 = vunpack.c.l.b16 %v1615
        %v3233 = vunpack.c.h.b16 %v1615
        %v3234 = vunpack.c.l.b16 %v1616
        %v3235 = vunpack.c.h.b16 %v1616
        %v3236 = vunpack.c.l.b16 %v1617
        %v3237 = vunpack.c.h.b16 %v1617
        %v3238 = vunpack.c.l.b16 %v1618
        %v3239 = vunpack.c.h.b16 %v1618
        %v3240 = vunpack.c.l.b16 %v1619
        %v3241 = vunpack.c.h.b16 %v1619
        %v3242 = vunpack.c.l.b16 %v1620
        %v3243 = vunpack.c.h.b16 %v1620
        %v3244 = vunpack.c.l.b16 %v1621
        %v3245 = vunpack.c.h.b16 %v1621
        %v3246 = vunpack.c.l.b16 %v1622
        %v3247 = vunpack.c.h.b16 %v1622
        %v3248 = vunpack.c.l.b16 %v1623
        %v3249 = vunpack.c.h.b16 %v1623
        %v3250 = vunpack.c.l.b16 %v1624
        %v3251 = vunpack.c.h.b16 %v1624
        %v3252 = vunpack.c.l.b16 %v1625
        %v3253 = vunpack.c.h.b16 %v1625
        %v3254 = vunpack.c.l.b16 %v1626
        %v3255 = vunpack.c.h.b16 %v1626
        %v3256 = vunpack.c.l.b16 %v1627
        %v3257 = vunpack.c.h.b16 %v1627
        %v3258 = vunpack.c.l.b16 %v1628
        %v3259 = vunpack.c.h.b16 %v1628
        %v3260 = vunpack.c.l.b16 %v1629
        %v3261 = vunpack.c.h.b16 %v1629
        %v3262 = vunpack.c.l.b16 %v1630
        %v3263 = vunpack.c.h.b16 %v1630
        %v3264 = vunpack.c.l.b16 %v1631
        %v3265 = vunpack.c.h.b16 %v1631
        %v3266 = vunpack.c.l.b16 %v1632
        %v3267 = vunpack.c.h.b16 %v1632
        %v3268 = vunpack.c.l.b16 %v1633
        %v3269 = vunpack.c.h.b16 %v1633
        %v3270 = vunpack.c.l.b16 %v1634
        %v3271 = vunpack.c.h.b16 %v1634
        %v3272 = vunpack.c.l.b16 %v1635
        %v3273 = vunpack.c.h.b16 %v1635
        %v3274 = vunpack.c.l.b16 %v1636
        %v3275 = vunpack.c.h.b16 %v1636
        %v3276 = vunpack.c.l.b16 %v1637
        %v3277 = vunpack.c.h.b16 %v1637
        %v3278 = vunpack.c.l.b16 %v1638
        %v3279 = vunpack.c.h.b16 %v1638
        %v3280 = vunpack.c.l.b16 %v1639
        %v3281 = vunpack.c.h.b16 %v1639
        %v3282 = vunpack.c.l.b16 %v1640
        %v3283 = vunpack.c.h.b16 %v1640
        %v3284 = vunpack.c.l.b16 %v1641
        %v3285 = vunpack.c.h.b16 %v1641
        %v3286 = vunpack.c.l.b16 %v1642
        %v3287 = vunpack.c.h.b16 %v1642
        %v3288 = vunpack.c.l.b16 %v1643
        %v3289 = vunpack.c.h.b16 %v1643
        %v3290 = vunpack.c.l.b16 %v1644
        %v3291 = vunpack.c.h.b16 %v1644
        %v3292 = vunpack.c.l.b16 %v1645
        %v3293 = vunpack.c.h.b16 %v1645
        %v3294 = vunpack.c.l.b16 %v1646
        %v3295 = vunpack.c.h.b16 %v1646
        %v3296 = vunpack.c.l.b16 %v1647
        %v3297 = vunpack.c.h.b16 %v1647
        %v3298 = vunpack.c.l.b16 %v1648
        %v3299 = vunpack.c.h.b16 %v1648
        %v3300 = vunpack.c.l.b16 %v1649
        %v3301 = vunpack.c.h.b16 %v1649
        %v3302 = vunpack.c.l.b16 %v1650
        %v3303 = vunpack.c.h.b16 %v1650
        %v3304 = vunpack.c.l.b16 %v1651
        %v3305 = vunpack.c.h.b16 %v1651
        %v3306 = vunpack.c.l.b16 %v1652
        %v3307 = vunpack.c.h.b16 %v1652
        %v3308 = vunpack.c.l.b16 %v1653
        %v3309 = vunpack.c.h.b16 %v1653
        %v3310 = vunpack.c.l.b16 %v1654
        %v3311 = vunpack.c.h.b16 %v1654
        %v3312 = vunpack.c.l.b16 %v1655
        %v3313 = vunpack.c.h.b16 %v1655
        %v3314 = vunpack.c.l.b16 %v1656
        %v3315 = vunpack.c.h.b16 %v1656
        %v3316 = vunpack.c.l.b16 %v1657
        %v3317 = vunpack.c.h.b16 %v1657
        %v3318 = vunpack.c.l.b16 %v1658
        %v3319 = vunpack.c.h.b16 %v1658
        %v3320 = vunpack.c.l.b16 %v1659
        %v3321 = vunpack.c.h.b16 %v1659
        %v3322 = vunpack.c.l.b16 %v1660
        %v3323 = vunpack.c.h.b16 %v1660
        %v3324 = vunpack.c.l.b16 %v1661
        %v3325 = vunpack.c.h.b16 %v1661
        %v3326 = vunpack.c.l.b16 %v1662
        %v3327 = vunpack.c.h.b16 %v1662
        %v3328 = vunpack.c.l.b16 %v1663
        %v3329 = vunpack.c.h.b16 %v1663
        %v3330 = vunpack.c.l.b16 %v1664
        %v3331 = vunpack.c.h.b16 %v1664
        %v3332 = vunpack.c.l.b16 %v1665
        %v3333 = vunpack.c.h.b16 %v1665
        %v3334 = vunpack.c.l.b16 %v1666
        %v3335 = vunpack.c.h.b16 %v1666
        %v3336 = vunpack.c.l.b16 %v1667
        %v3337 = vunpack.c.h.b16 %v1667
        %v3338 = vunpack.c.l.b16 %v1668
        %v3339 = vunpack.c.h.b16 %v1668
        %v3340 = vunpack.c.l.b16 %v1669
        %v3341 = vunpack.c.h.b16 %v1669
        %v3342 = vunpack.c.l.b16 %v1670
        %v3343 = vunpack.c.h.b16 %v1670
        %v3344 = vunpack.c.l.b16 %v1671
        %v3345 = vunpack.c.h.b16 %v1671
        %v3346 = vunpack.c.l.b16 %v1672
        %v3347 = vunpack.c.h.b16 %v1672
        %v3348 = vunpack.c.l.b16 %v1673
        %v3349 = vunpack.c.h.b16 %v1673
        %v3350 = vunpack.c.l.b16 %v1674
        %v3351 = vunpack.c.h.b16 %v1674
        %v3352 = vunpack.c.l.b16 %v1675
        %v3353 = vunpack.c.h.b16 %v1675
        %v3354 = vunpack.c.l.b16 %v1676
        %v3355 = vunpack.c.h.b16 %v1676
        %v3356 = vunpack.c.l.b16 %v1677
        %v3357 = vunpack.c.h.b16 %v1677
        %v3358 = vunpack.c.l.b16 %v1678
        %v3359 = vunpack.c.h.b16 %v1678
        %v3360 = vunpack.c.l.b16 %v1679
        %v3361 = vunpack.c.h.b16 %v1679
        %v3362 = vunpack.c.l.b16 %v1680
        %v3363 = vunpack.c.h.b16 %v1680
        %v3364 = vunpack.c.l.b16 %v1681
        %v3365 = vunpack.c.h.b16 %v1681
        %v3366 = vunpack.c.l.b16 %v1682
        %v3367 = vunpack.c.h.b16 %v1682
        %v3368 = vunpack.c.l.b16 %v1683
        %v3369 = vunpack.c.h.b16 %v1683
        %v3370 = vunpack.c.l.b16 %v1684
        %v3371 = vunpack.c.h.b16 %v1684
        %v3372 = vunpack.c.l.b16 %v1685
        %v3373 = vunpack.c.h.b16 %v1685
        %v3374 = vunpack.c.l.b16 %v1686
        %v3375 = vunpack.c.h.b16 %v1686
        %v3376 = vunpack.c.l.b16 %v1687
        %v3377 = vunpack.c.h.b16 %v1687
        %v3378 = vunpack.c.l.b16 %v1688
        %v3379 = vunpack.c.h.b16 %v1688
        %v3380 = vunpack.c.l.b16 %v1689
        %v3381 = vunpack.c.h.b16 %v1689
        %v3382 = vunpack.c.l.b16 %v1690
        %v3383 = vunpack.c.h.b16 %v1690
        %v3384 = vunpack.c.l.b16 %v1691
        %v3385 = vunpack.c.h.b16 %v1691
        %v3386 = vunpack.c.l.b16 %v1692
        %v3387 = vunpack.c.h.b16 %v1692
        %v3388 = vunpack.c.l.b16 %v1693
        %v3389 = vunpack.c.h.b16 %v1693
        %v3390 = vunpack.c.l.b16 %v1694
        %v3391 = vunpack.c.h.b16 %v1694
        %v3392 = vunpack.c.l.b16 %v1695
        %v3393 = vunpack.c.h.b16 %v1695
        %v3394 = vunpack.c.l.b16 %v1696
        %v3395 = vunpack.c.h.b16 %v1696
        %v3396 = vunpack.c.l.b16 %v1697
        %v3397 = vunpack.c.h.b16 %v1697
        %v3398 = vunpack.c.l.b16 %v1698
        %v3399 = vunpack.c.h.b16 %v1698
        %v3400 = vunpack.c.l.b16 %v1699
        %v3401 = vunpack.c.h.b16 %v1699
        %v3402 = vunpack.c.l.b16 %v1700
        %v3403 = vunpack.c.h.b16 %v1700
        %v3404 = vunpack.c.l.b16 %v1701
        %v3405 = vunpack.c.h.b16 %v1701
        %v3406 = vunpack.c.l.b16 %v1702
        %v3407 = vunpack.c.h.b16 %v1702
        %v3408 = vunpack.c.l.b16 %v1703
        %v3409 = vunpack.c.h.b16 %v1703
        %v3410 = vunpack.c.l.b16 %v1704
        %v3411 = vunpack.c.h.b16 %v1704
        %v3412 = vunpack.c.l.b16 %v1705
        %v3413 = vunpack.c.h.b16 %v1705
        %v3414 = vunpack.c.l.b16 %v1706
        %v3415 = vunpack.c.h.b16 %v1706
        %v3416 = vunpack.c.l.b16 %v1707
        %v3417 = vunpack.c.h.b16 %v1707
        %v3418 = vunpack.c.l.b16 %v1708
        %v3419 = vunpack.c.h.b16 %v1708
        %v3420 = vunpack.c.l.b16 %v1709
        %v3421 = vunpack.c.h.b16 %v1709
        %v3422 = vunpack.c.l.b16 %v1710
        %v3423 = vunpack.c.h.b16 %v1710
        %v3424 = vunpack.c.l.b16 %v1711
        %v3425 = vunpack.c.h.b16 %v1711
        %v3426 = vunpack.c.l.b16 %v1712
        %v3427 = vunpack.c.h.b16 %v1712
        %v3428 = vunpack.c.l.b16 %v1713
        %v3429 = vunpack.c.h.b16 %v1713
        %v3430 = vunpack.c.l.b16 %v1714
        %v3431 = vunpack.c.h.b16 %v1714
        %v3432 = vunpack.c.l.b16 %v1715
        %v3433 = vunpack.c.h.b16 %v1715
        %v3434 = vunpack.c.l.b16 %v1716
        %v3435 = vunpack.c.h.b16 %v1716
        %v3436 = vunpack.c.l.b16 %v1717
        %v3437 = vunpack.c.h.b16 %v1717
        %v3438 = vunpack.c.l.b16 %v1718
        %v3439 = vunpack.c.h.b16 %v1718
        %v3440 = vunpack.c.l.b16 %v1719
        %v3441 = vunpack.c.h.b16 %v1719
        %v3442 = vunpack.c.l.b16 %v1720
        %v3443 = vunpack.c.h.b16 %v1720
        %v3444 = vunpack.c.l.b16 %v1721
        %v3445 = vunpack.c.h.b16 %v1721
        %v3446 = vunpack.c.l.b16 %v1722
        %v3447 = vunpack.c.h.b16 %v1722
        %v3448 = vunpack.c.l.b16 %v1723
        %v3449 = vunpack.c.h.b16 %v1723
        %v3450 = vunpack.c.l.b16 %v1724
        %v3451 = vunpack.c.h.b16 %v1724
        %v3452 = vunpack.c.l.b16 %v1725
        %v3453 = vunpack.c.h.b16 %v1725
        %v3454 = vunpack.c.l.b16 %v1726
        %v3455 = vunpack.c.h.b16 %v1726
        %v3456 = vunpack.c.l.b16 %v1727
        %v3457 = vunpack.c.h.b16 %v1727
        %v3458 = vunpack.c.l.b16 %v1728
        %v3459 = vunpack.c.h.b16 %v1728
        %v3460 = vunpack.c.l.b16 %v1729
        %v3461 = vunpack.c.h.b16 %v1729
        %v3462 = vunpack.c.l.b16 %v1730
        %v3463 = vunpack.c.h.b16 %v1730
        %v3464 = vunpack.c.l.b16 %v1731
        %v3465 = vunpack.c.h.b16 %v1731
        %v3466 = vunpack.c.l.b16 %v1732
        %v3467 = vunpack.c.h.b16 %v1732
        %v3468 = vunpack.c.l.b16 %v1733
        %v3469 = vunpack.c.h.b16 %v1733
        %v3470 = vunpack.c.l.b16 %v1734
        %v3471 = vunpack.c.h.b16 %v1734
        %v3472 = vunpack.c.l.b16 %v1735
        %v3473 = vunpack.c.h.b16 %v1735
        %v3474 = vunpack.c.l.b16 %v1736
        %v3475 = vunpack.c.h.b16 %v1736
        %v3476 = vunpack.c.l.b16 %v1737
        %v3477 = vunpack.c.h.b16 %v1737
        %v3478 = vunpack.c.l.b16 %v1738
        %v3479 = vunpack.c.h.b16 %v1738
        %v3480 = vunpack.c.l.b16 %v1739
        %v3481 = vunpack.c.h.b16 %v1739
        %v3482 = vunpack.c.l.b16 %v1740
        %v3483 = vunpack.c.h.b16 %v1740
        %v3484 = vunpack.c.l.b16 %v1741
        %v3485 = vunpack.c.h.b16 %v1741
        %v3486 = vunpack.c.l.b16 %v1742
        %v3487 = vunpack.c.h.b16 %v1742
        %v3488 = vunpack.c.l.b16 %v1743
        %v3489 = vunpack.c.h.b16 %v1743
        %v3490 = vunpack.c.l.b16 %v1744
        %v3491 = vunpack.c.h.b16 %v1744
        %v3492 = vunpack.c.l.b16 %v1745
        %v3493 = vunpack.c.h.b16 %v1745
        %v3494 = vunpack.c.l.b16 %v1746
        %v3495 = vunpack.c.h.b16 %v1746
        %v3496 = vunpack.c.l.b16 %v1747
        %v3497 = vunpack.c.h.b16 %v1747
        %v3498 = vunpack.c.l.b16 %v1748
        %v3499 = vunpack.c.h.b16 %v1748
        %v3500 = vunpack.c.l.b16 %v1749
        %v3501 = vunpack.c.h.b16 %v1749
        %v3502 = vunpack.c.l.b16 %v1750
        %v3503 = vunpack.c.h.b16 %v1750
        %v3504 = vunpack.c.l.b16 %v1751
        %v3505 = vunpack.c.h.b16 %v1751
        %v3506 = vunpack.c.l.b16 %v1752
        %v3507 = vunpack.c.h.b16 %v1752
        %v3508 = vunpack.c.l.b16 %v1753
        %v3509 = vunpack.c.h.b16 %v1753
        %v3510 = vpack.c.b16 %v2370, %v2358
        %v3511 = vpack.c.b16 %v2371, %v2359
        %v3512 = vpack.c.b16 %v2372, %v2360
        %v3513 = vpack.c.b16 %v2373, %v2361
        %v3514 = vpack.c.b16 %v2374, %v2362
        %v3515 = vpack.c.b16 %v2375, %v2363
        %v3516 = vpack.c.b16 %v2376, %v2364
        %v3517 = vpack.c.b16 %v2377, %v2365
        %v3518 = vpack.c.b16 %v2378, %v2366
        %v3519 = vpack.c.b16 %v2379, %v2367
        %v3520 = vpack.c.b16 %v2380, %v2368
        %v3521 = vpack.c.b16 %v2381, %v2369
        %v3522 = vpack.c.b16 %v2394, %v2382
        %v3523 = vpack.c.b16 %v2395, %v2383
        %v3524 = vpack.c.b16 %v2396, %v2384
        %v3525 = vpack.c.b16 %v2397, %v2385
        %v3526 = vpack.c.b16 %v2398, %v2386
        %v3527 = vpack.c.b16 %v2399, %v2387
        %v3528 = vpack.c.b16 %v2400, %v2388
        %v3529 = vpack.c.b16 %v2401, %v2389
        %v3530 = vpack.c.b16 %v2402, %v2390
        %v3531 = vpack.c.b16 %v2403, %v2391
        %v3532 = vpack.c.b16 %v2404, %v2392
        %v3533 = vpack.c.b16 %v2405, %v2393
        %v3534 = vpack.c.b16 %v2418, %v2406
        %v3535 = vpack.c.b16 %v2419, %v2407
        %v3536 = vpack.c.b16 %v2420, %v2408
        %v3537 = vpack.c.b16 %v2421, %v2409
        %v3538 = vpack.c.b16 %v2422, %v2410
        %v3539 = vpack.c.b16 %v2423, %v2411
        %v3540 = vpack.c.b16 %v2424, %v2412
        %v3541 = vpack.c.b16 %v2425, %v2413
        %v3542 = vpack.c.b16 %v2426, %v2414
        %v3543 = vpack.c.b16 %v2427, %v2415
        %v3544 = vpack.c.b16 %v2428, %v2416
        %v3545 = vpack.c.b16 %v2429, %v2417
        %v3546 = vpack.c.b16 %v2442, %v2430
        %v3547 = vpack.c.b16 %v2443, %v2431
        %v3548 = vpack.c.b16 %v2444, %v2432
        %v3549 = vpack.c.b16 %v2445, %v2433
        %v3550 = vpack.c.b16 %v2446, %v2434
        %v3551 = vpack.c.b16 %v2447, %v2435
        %v3552 = vpack.c.b16 %v2448, %v2436
        %v3553 = vpack.c.b16 %v2449, %v2437
        %v3554 = vpack.c.b16 %v2450, %v2438
        %v3555 = vpack.c.b16 %v2451, %v2439
        %v3556 = vpack.c.b16 %v2452, %v2440
        %v3557 = vpack.c.b16 %v2453, %v2441
        %v3558 = vpack.c.b16 %v2466, %v2454
        %v3559 = vpack.c.b16 %v2467, %v2455
        %v3560 = vpack.c.b16 %v2468, %v2456
        %v3561 = vpack.c.b16 %v2469, %v2457
        %v3562 = vpack.c.b16 %v2470, %v2458
        %v3563 = vpack.c.b16 %v2471, %v2459
        %v3564 = vpack.c.b16 %v2472, %v2460
        %v3565 = vpack.c.b16 %v2473, %v2461
        %v3566 = vpack.c.b16 %v2474, %v2462
        %v3567 = vpack.c.b16 %v2475, %v2463
        %v3568 = vpack.c.b16 %v2476, %v2464
        %v3569 = vpack.c.b16 %v2477, %v2465
        %v3570 = vpack.c.b16 %v2490, %v2478
        %v3571 = vpack.c.b16 %v2491, %v2479
        %v3572 = vpack.c.b16 %v2492, %v2480
        %v3573 = vpack.c.b16 %v2493, %v2481
        %v3574 = vpack.c.b16 %v2494, %v2482
        %v3575 = vpack.c.b16 %v2495, %v2483
        %v3576 = vpack.c.b16 %v2496, %v2484
        %v3577 = vpack.c.b16 %v2497, %v2485
        %v3578 = vpack.c.b16 %v2498, %v2486
        %v3579 = vpack.c.b16 %v2499, %v2487
        %v3580 = vpack.c.b16 %v2500, %v2488
        %v3581 = vpack.c.b16 %v2501, %v2489
        %v3582 = vpack.c.b16 %v2514, %v2502
        %v3583 = vpack.c.b16 %v2515, %v2503
        %v3584 = vpack.c.b16 %v2516, %v2504
        %v3585 = vpack.c.b16 %v2517, %v2505
        %v3586 = vpack.c.b16 %v2518, %v2506
        %v3587 = vpack.c.b16 %v2519, %v2507
        %v3588 = vpack.c.b16 %v2520, %v2508
        %v3589 = vpack.c.b16 %v2521, %v2509
        %v3590 = vpack.c.b16 %v2522, %v2510
        %v3591 = vpack.c.b16 %v2523, %v2511
        %v3592 = vpack.c.b16 %v2524, %v2512
        %v3593 = vpack.c.b16 %v2525, %v2513
        %v3594 = vpack.c.b16 %v2538, %v2526
        %v3595 = vpack.c.b16 %v2539, %v2527
        %v3596 = vpack.c.b16 %v2540, %v2528
        %v3597 = vpack.c.b16 %v2541, %v2529
        %v3598 = vpack.c.b16 %v2542, %v2530
        %v3599 = vpack.c.b16 %v2543, %v2531
        %v3600 = vpack.c.b16 %v2544, %v2532
        %v3601 = vpack.c.b16 %v2545, %v2533
        %v3602 = vpack.c.b16 %v2546, %v2534
        %v3603 = vpack.c.b16 %v2547, %v2535
        %v3604 = vpack.c.b16 %v2548, %v2536
        %v3605 = vpack.c.b16 %v2549, %v2537
        %v3606 = vpack.c.b16 %v2562, %v2550
        %v3607 = vpack.c.b16 %v2563, %v2551
        %v3608 = vpack.c.b16 %v2564, %v2552
        %v3609 = vpack.c.b16 %v2565, %v2553
        %v3610 = vpack.c.b16 %v2566, %v2554
        %v3611 = vpack.c.b16 %v2567, %v2555
        %v3612 = vpack.c.b16 %v2568, %v2556
        %v3613 = vpack.c.b16 %v2569, %v2557
        %v3614 = vpack.c.b16 %v2570, %v2558
        %v3615 = vpack.c.b16 %v2571, %v2559
        %v3616 = vpack.c.b16 %v2572, %v2560
        %v3617 = vpack.c.b16 %v2573, %v2561
        %v3618 = vpack.c.b16 %v2586, %v2574
        %v3619 = vpack.c.b16 %v2587, %v2575
        %v3620 = vpack.c.b16 %v2588, %v2576
        %v3621 = vpack.c.b16 %v2589, %v2577
        %v3622 = vpack.c.b16 %v2590, %v2578
        %v3623 = vpack.c.b16 %v2591, %v2579
        %v3624 = vpack.c.b16 %v2592, %v2580
        %v3625 = vpack.c.b16 %v2593, %v2581
        %v3626 = vpack.c.b16 %v2594, %v2582
        %v3627 = vpack.c.b16 %v2595, %v2583
        %v3628 = vpack.c.b16 %v2596, %v2584
        %v3629 = vpack.c.b16 %v2597, %v2585
        %v3630 = vpack.c.b16 %v2610, %v2598
        %v3631 = vpack.c.b16 %v2611, %v2599
        %v3632 = vpack.c.b16 %v2612, %v2600
        %v3633 = vpack.c.b16 %v2613, %v2601
        %v3634 = vpack.c.b16 %v2614, %v2602
        %v3635 = vpack.c.b16 %v2615, %v2603
        %v3636 = vpack.c.b16 %v2616, %v2604
        %v3637 = vpack.c.b16 %v2617, %v2605
        %v3638 = vpack.c.b16 %v2618, %v2606
        %v3639 = vpack.c.b16 %v2619, %v2607
        %v3640 = vpack.c.b16 %v2620, %v2608
        %v3641 = vpack.c.b16 %v2621, %v2609
        %v3642 = vpack.c.b16 %v2634, %v2622
        %v3643 = vpack.c.b16 %v2635, %v2623
        %v3644 = vpack.c.b16 %v2636, %v2624
        %v3645 = vpack.c.b16 %v2637, %v2625
        %v3646 = vpack.c.b16 %v2638, %v2626
        %v3647 = vpack.c.b16 %v2639, %v2627
        %v3648 = vpack.c.b16 %v2640, %v2628
        %v3649 = vpack.c.b16 %v2641, %v2629
        %v3650 = vpack.c.b16 %v2642, %v2630
        %v3651 = vpack.c.b16 %v2643, %v2631
        %v3652 = vpack.c.b16 %v2644, %v2632
        %v3653 = vpack.c.b16 %v2645, %v2633
        %v3654 = vpack.c.b16 %v2658, %v2646
        %v3655 = vpack.c.b16 %v2659, %v2647
        %v3656 = vpack.c.b16 %v2660, %v2648
        %v3657 = vpack.c.b16 %v2661, %v2649
        %v3658 = vpack.c.b16 %v2662, %v2650
        %v3659 = vpack.c.b16 %v2663, %v2651
        %v3660 = vpack.c.b16 %v2664, %v2652
        %v3661 = vpack.c.b16 %v2665, %v2653
        %v3662 = vpack.c.b16 %v2666, %v2654
        %v3663 = vpack.c.b16 %v2667, %v2655
        %v3664 = vpack.c.b16 %v2668, %v2656
        %v3665 = vpack.c.b16 %v2669, %v2657
        %v3666 = vpack.c.b16 %v2682, %v2670
        %v3667 = vpack.c.b16 %v2683, %v2671
        %v3668 = vpack.c.b16 %v2684, %v2672
        %v3669 = vpack.c.b16 %v2685, %v2673
        %v3670 = vpack.c.b16 %v2686, %v2674
        %v3671 = vpack.c.b16 %v2687, %v2675
        %v3672 = vpack.c.b16 %v2688, %v2676
        %v3673 = vpack.c.b16 %v2689, %v2677
        %v3674 = vpack.c.b16 %v2690, %v2678
        %v3675 = vpack.c.b16 %v2691, %v2679
        %v3676 = vpack.c.b16 %v2692, %v2680
        %v3677 = vpack.c.b16 %v2693, %v2681
        %v3678 = vpack.c.b16 %v2706, %v2694
        %v3679 = vpack.c.b16 %v2707, %v2695
        %v3680 = vpack.c.b16 %v2708, %v2696
        %v3681 = vpack.c.b16 %v2709, %v2697
        %v3682 = vpack.c.b16 %v2710, %v2698
        %v3683 = vpack.c.b16 %v2711, %v2699
        %v3684 = vpack.c.b16 %v2712, %v2700
        %v3685 = vpack.c.b16 %v2713, %v2701
        %v3686 = vpack.c.b16 %v2714, %v2702
        %v3687 = vpack.c.b16 %v2715, %v2703
        %v3688 = vpack.c.b16 %v2716, %v2704
        %v3689 = vpack.c.b16 %v2717, %v2705
        %v3690 = vpack.c.b16 %v2730, %v2718
        %v3691 = vpack.c.b16 %v2731, %v2719
        %v3692 = vpack.c.b16 %v2732, %v2720
        %v3693 = vpack.c.b16 %v2733, %v2721
        %v3694 = vpack.c.b16 %v2734, %v2722
        %v3695 = vpack.c.b16 %v2735, %v2723
        %v3696 = vpack.c.b16 %v2736, %v2724
        %v3697 = vpack.c.b16 %v2737, %v2725
        %v3698 = vpack.c.b16 %v2738, %v2726
        %v3699 = vpack.c.b16 %v2739, %v2727
        %v3700 = vpack.c.b16 %v2740, %v2728
        %v3701 = vpack.c.b16 %v2741, %v2729
        %v3702 = vpack.c.b16 %v2754, %v2742
        %v3703 = vpack.c.b16 %v2755, %v2743
        %v3704 = vpack.c.b16 %v2756, %v2744
        %v3705 = vpack.c.b16 %v2757, %v2745
        %v3706 = vpack.c.b16 %v2758, %v2746
        %v3707 = vpack.c.b16 %v2759, %v2747
        %v3708 = vpack.c.b16 %v2760, %v2748
        %v3709 = vpack.c.b16 %v2761, %v2749
        %v3710 = vpack.c.b16 %v2762, %v2750
        %v3711 = vpack.c.b16 %v2763, %v2751
        %v3712 = vpack.c.b16 %v2764, %v2752
        %v3713 = vpack.c.b16 %v2765, %v2753
        %v3714 = vpack.c.b16 %v2778, %v2766
        %v3715 = vpack.c.b16 %v2779, %v2767
        %v3716 = vpack.c.b16 %v2780, %v2768
        %v3717 = vpack.c.b16 %v2781, %v2769
        %v3718 = vpack.c.b16 %v2782, %v2770
        %v3719 = vpack.c.b16 %v2783, %v2771
        %v3720 = vpack.c.b16 %v2784, %v2772
        %v3721 = vpack.c.b16 %v2785, %v2773
        %v3722 = vpack.c.b16 %v2786, %v2774
        %v3723 = vpack.c.b16 %v2787, %v2775
        %v3724 = vpack.c.b16 %v2788, %v2776
        %v3725 = vpack.c.b16 %v2789, %v2777
        %v3726 = vpack.c.b16 %v2802, %v2790
        %v3727 = vpack.c.b16 %v2803, %v2791
        %v3728 = vpack.c.b16 %v2804, %v2792
        %v3729 = vpack.c.b16 %v2805, %v2793
        %v3730 = vpack.c.b16 %v2806, %v2794
        %v3731 = vpack.c.b16 %v2807, %v2795
        %v3732 = vpack.c.b16 %v2808, %v2796
        %v3733 = vpack.c.b16 %v2809, %v2797
        %v3734 = vpack.c.b16 %v2810, %v2798
        %v3735 = vpack.c.b16 %v2811, %v2799
        %v3736 = vpack.c.b16 %v2812, %v2800
        %v3737 = vpack.c.b16 %v2813, %v2801
        %v3738 = vpack.c.b16 %v2826, %v2814
        %v3739 = vpack.c.b16 %v2827, %v2815
        %v3740 = vpack.c.b16 %v2828, %v2816
        %v3741 = vpack.c.b16 %v2829, %v2817
        %v3742 = vpack.c.b16 %v2830, %v2818
        %v3743 = vpack.c.b16 %v2831, %v2819
        %v3744 = vpack.c.b16 %v2832, %v2820
        %v3745 = vpack.c.b16 %v2833, %v2821
        %v3746 = vpack.c.b16 %v2834, %v2822
        %v3747 = vpack.c.b16 %v2835, %v2823
        %v3748 = vpack.c.b16 %v2836, %v2824
        %v3749 = vpack.c.b16 %v2837, %v2825
        %v3750 = vpack.c.b16 %v2850, %v2838
        %v3751 = vpack.c.b16 %v2851, %v2839
        %v3752 = vpack.c.b16 %v2852, %v2840
        %v3753 = vpack.c.b16 %v2853, %v2841
        %v3754 = vpack.c.b16 %v2854, %v2842
        %v3755 = vpack.c.b16 %v2855, %v2843
        %v3756 = vpack.c.b16 %v2856, %v2844
        %v3757 = vpack.c.b16 %v2857, %v2845
        %v3758 = vpack.c.b16 %v2858, %v2846
        %v3759 = vpack.c.b16 %v2859, %v2847
        %v3760 = vpack.c.b16 %v2860, %v2848
        %v3761 = vpack.c.b16 %v2861, %v2849
        %v3762 = vpack.c.b16 %v2874, %v2862
        %v3763 = vpack.c.b16 %v2875, %v2863
        %v3764 = vpack.c.b16 %v2876, %v2864
        %v3765 = vpack.c.b16 %v2877, %v2865
        %v3766 = vpack.c.b16 %v2878, %v2866
        %v3767 = vpack.c.b16 %v2879, %v2867
        %v3768 = vpack.c.b16 %v2880, %v2868
        %v3769 = vpack.c.b16 %v2881, %v2869
        %v3770 = vpack.c.b16 %v2882, %v2870
        %v3771 = vpack.c.b16 %v2883, %v2871
        %v3772 = vpack.c.b16 %v2884, %v2872
        %v3773 = vpack.c.b16 %v2885, %v2873
        %v3774 = vpack.c.b16 %v2898, %v2886
        %v3775 = vpack.c.b16 %v2899, %v2887
        %v3776 = vpack.c.b16 %v2900, %v2888
        %v3777 = vpack.c.b16 %v2901, %v2889
        %v3778 = vpack.c.b16 %v2902, %v2890
        %v3779 = vpack.c.b16 %v2903, %v2891
        %v3780 = vpack.c.b16 %v2904, %v2892
        %v3781 = vpack.c.b16 %v2905, %v2893
        %v3782 = vpack.c.b16 %v2906, %v2894
        %v3783 = vpack.c.b16 %v2907, %v2895
        %v3784 = vpack.c.b16 %v2908, %v2896
        %v3785 = vpack.c.b16 %v2909, %v2897
        %v3786 = vpack.c.b16 %v2922, %v2910
        %v3787 = vpack.c.b16 %v2923, %v2911
        %v3788 = vpack.c.b16 %v2924, %v2912
        %v3789 = vpack.c.b16 %v2925, %v2913
        %v3790 = vpack.c.b16 %v2926, %v2914
        %v3791 = vpack.c.b16 %v2927, %v2915
        %v3792 = vpack.c.b16 %v2928, %v2916
        %v3793 = vpack.c.b16 %v2929, %v2917
        %v3794 = vpack.c.b16 %v2930, %v2918
        %v3795 = vpack.c.b16 %v2931, %v2919
        %v3796 = vpack.c.b16 %v2932, %v2920
        %v3797 = vpack.c.b16 %v2933, %v2921
        %v3798 = vpack.c.b16 %v2946, %v2934
        %v3799 = vpack.c.b16 %v2947, %v2935
        %v3800 = vpack.c.b16 %v2948, %v2936
        %v3801 = vpack.c.b16 %v2949, %v2937
        %v3802 = vpack.c.b16 %v2950, %v2938
        %v3803 = vpack.c.b16 %v2951, %v2939
        %v3804 = vpack.c.b16 %v2952, %v2940
        %v3805 = vpack.c.b16 %v2953, %v2941
        %v3806 = vpack.c.b16 %v2954, %v2942
        %v3807 = vpack.c.b16 %v2955, %v2943
        %v3808 = vpack.c.b16 %v2956, %v2944
        %v3809 = vpack.c.b16 %v2957, %v2945
        %v3810 = vpack.c.b16 %v2970, %v2958
        %v3811 = vpack.c.b16 %v2971, %v2959
        %v3812 = vpack.c.b16 %v2972, %v2960
        %v3813 = vpack.c.b16 %v2973, %v2961
        %v3814 = vpack.c.b16 %v2974, %v2962
        %v3815 = vpack.c.b16 %v2975, %v2963
        %v3816 = vpack.c.b16 %v2976, %v2964
        %v3817 = vpack.c.b16 %v2977, %v2965
        %v3818 = vpack.c.b16 %v2978, %v2966
        %v3819 = vpack.c.b16 %v2979, %v2967
        %v3820 = vpack.c.b16 %v2980, %v2968
        %v3821 = vpack.c.b16 %v2981, %v2969
        %v3822 = vpack.c.b16 %v2994, %v2982
        %v3823 = vpack.c.b16 %v2995, %v2983
        %v3824 = vpack.c.b16 %v2996, %v2984
        %v3825 = vpack.c.b16 %v2997, %v2985
        %v3826 = vpack.c.b16 %v2998, %v2986
        %v3827 = vpack.c.b16 %v2999, %v2987
        %v3828 = vpack.c.b16 %v3000, %v2988
        %v3829 = vpack.c.b16 %v3001, %v2989
        %v3830 = vpack.c.b16 %v3002, %v2990
        %v3831 = vpack.c.b16 %v3003, %v2991
        %v3832 = vpack.c.b16 %v3004, %v2992
        %v3833 = vpack.c.b16 %v3005, %v2993
        %v3834 = vpack.c.b16 %v3018, %v3006
        %v3835 = vpack.c.b16 %v3019, %v3007
        %v3836 = vpack.c.b16 %v3020, %v3008
        %v3837 = vpack.c.b16 %v3021, %v3009
        %v3838 = vpack.c.b16 %v3022, %v3010
        %v3839 = vpack.c.b16 %v3023, %v3011
        %v3840 = vpack.c.b16 %v3024, %v3012
        %v3841 = vpack.c.b16 %v3025, %v3013
        %v3842 = vpack.c.b16 %v3026, %v3014
        %v3843 = vpack.c.b16 %v3027, %v3015
        %v3844 = vpack.c.b16 %v3028, %v3016
        %v3845 = vpack.c.b16 %v3029, %v3017
        %v3846 = vpack.c.b16 %v3042, %v3030
        %v3847 = vpack.c.b16 %v3043, %v3031
        %v3848 = vpack.c.b16 %v3044, %v3032
        %v3849 = vpack.c.b16 %v3045, %v3033
        %v3850 = vpack.c.b16 %v3046, %v3034
        %v3851 = vpack.c.b16 %v3047, %v3035
        %v3852 = vpack.c.b16 %v3048, %v3036
        %v3853 = vpack.c.b16 %v3049, %v3037
        %v3854 = vpack.c.b16 %v3050, %v3038
        %v3855 = vpack.c.b16 %v3051, %v3039
        %v3856 = vpack.c.b16 %v3052, %v3040
        %v3857 = vpack.c.b16 %v3053, %v3041
        %v3858 = vpack.c.b16 %v3066, %v3054
        %v3859 = vpack.c.b16 %v3067, %v3055
        %v3860 = vpack.c.b16 %v3068, %v3056
        %v3861 = vpack.c.b16 %v3069, %v3057
        %v3862 = vpack.c.b16 %v3070, %v3058
        %v3863 = vpack.c.b16 %v3071, %v3059
        %v3864 = vpack.c.b16 %v3072, %v3060
        %v3865 = vpack.c.b16 %v3073, %v3061
        %v3866 = vpack.c.b16 %v3074, %v3062
        %v3867 = vpack.c.b16 %v3075, %v3063
        %v3868 = vpack.c.b16 %v3076, %v3064
        %v3869 = vpack.c.b16 %v3077, %v3065
        %v3870 = vpack.c.b16 %v3090, %v3078
        %v3871 = vpack.c.b16 %v3091, %v3079
        %v3872 = vpack.c.b16 %v3092, %v3080
        %v3873 = vpack.c.b16 %v3093, %v3081
        %v3874 = vpack.c.b16 %v3094, %v3082
        %v3875 = vpack.c.b16 %v3095, %v3083
        %v3876 = vpack.c.b16 %v3096, %v3084
        %v3877 = vpack.c.b16 %v3097, %v3085
        %v3878 = vpack.c.b16 %v3098, %v3086
        %v3879 = vpack.c.b16 %v3099, %v3087
        %v3880 = vpack.c.b16 %v3100, %v3088
        %v3881 = vpack.c.b16 %v3101, %v3089
        %v3882 = vpack.c.b16 %v3114, %v3102
        %v3883 = vpack.c.b16 %v3115, %v3103
        %v3884 = vpack.c.b16 %v3116, %v3104
        %v3885 = vpack.c.b16 %v3117, %v3105
        %v3886 = vpack.c.b16 %v3118, %v3106
        %v3887 = vpack.c.b16 %v3119, %v3107
        %v3888 = vpack.c.b16 %v3120, %v3108
        %v3889 = vpack.c.b16 %v3121, %v3109
        %v3890 = vpack.c.b16 %v3122, %v3110
        %v3891 = vpack.c.b16 %v3123, %v3111
        %v3892 = vpack.c.b16 %v3124, %v3112
        %v3893 = vpack.c.b16 %v3125, %v3113
        %v3894 = vpack.c.b16 %v3138, %v3126
        %v3895 = vpack.c.b16 %v3139, %v3127
        %v3896 = vpack.c.b16 %v3140, %v3128
        %v3897 = vpack.c.b16 %v3141, %v3129
        %v3898 = vpack.c.b16 %v3142, %v3130
        %v3899 = vpack.c.b16 %v3143, %v3131
        %v3900 = vpack.c.b16 %v3144, %v3132
        %v3901 = vpack.c.b16 %v3145, %v3133
        %v3902 = vpack.c.b16 %v3146, %v3134
        %v3903 = vpack.c.b16 %v3147, %v3135
        %v3904 = vpack.c.b16 %v3148, %v3136
        %v3905 = vpack.c.b16 %v3149, %v3137
        %v3906 = vpack.c.b16 %v3162, %v3150
        %v3907 = vpack.c.b16 %v3163, %v3151
        %v3908 = vpack.c.b16 %v3164, %v3152
        %v3909 = vpack.c.b16 %v3165, %v3153
        %v3910 = vpack.c.b16 %v3166, %v3154
        %v3911 = vpack.c.b16 %v3167, %v3155
        %v3912 = vpack.c.b16 %v3168, %v3156
        %v3913 = vpack.c.b16 %v3169, %v3157
        %v3914 = vpack.c.b16 %v3170, %v3158
        %v3915 = vpack.c.b16 %v3171, %v3159
        %v3916 = vpack.c.b16 %v3172, %v3160
        %v3917 = vpack.c.b16 %v3173, %v3161
        %v3918 = vpack.c.b16 %v3186, %v3174
        %v3919 = vpack.c.b16 %v3187, %v3175
        %v3920 = vpack.c.b16 %v3188, %v3176
        %v3921 = vpack.c.b16 %v3189, %v3177
        %v3922 = vpack.c.b16 %v3190, %v3178
        %v3923 = vpack.c.b16 %v3191, %v3179
        %v3924 = vpack.c.b16 %v3192, %v3180
        %v3925 = vpack.c.b16 %v3193, %v3181
        %v3926 = vpack.c.b16 %v3194, %v3182
        %v3927 = vpack.c.b16 %v3195, %v3183
        %v3928 = vpack.c.b16 %v3196, %v3184
        %v3929 = vpack.c.b16 %v3197, %v3185
        %v3930 = vpack.c.b16 %v3210, %v3198
        %v3931 = vpack.c.b16 %v3211, %v3199
        %v3932 = vpack.c.b16 %v3212, %v3200
        %v3933 = vpack.c.b16 %v3213, %v3201
        %v3934 = vpack.c.b16 %v3214, %v3202
        %v3935 = vpack.c.b16 %v3215, %v3203
        %v3936 = vpack.c.b16 %v3216, %v3204
        %v3937 = vpack.c.b16 %v3217, %v3205
        %v3938 = vpack.c.b16 %v3218, %v3206
        %v3939 = vpack.c.b16 %v3219, %v3207
        %v3940 = vpack.c.b16 %v3220, %v3208
        %v3941 = vpack.c.b16 %v3221, %v3209
        %v3942 = vpack.c.b16 %v3234, %v3222
        %v3943 = vpack.c.b16 %v3235, %v3223
        %v3944 = vpack.c.b16 %v3236, %v3224
        %v3945 = vpack.c.b16 %v3237, %v3225
        %v3946 = vpack.c.b16 %v3238, %v3226
        %v3947 = vpack.c.b16 %v3239, %v3227
        %v3948 = vpack.c.b16 %v3240, %v3228
        %v3949 = vpack.c.b16 %v3241, %v3229
        %v3950 = vpack.c.b16 %v3242, %v3230
        %v3951 = vpack.c.b16 %v3243, %v3231
        %v3952 = vpack.c.b16 %v3244, %v3232
        %v3953 = vpack.c.b16 %v3245, %v3233
        %v3954 = vpack.c.b16 %v3258, %v3246
        %v3955 = vpack.c.b16 %v3259, %v3247
        %v3956 = vpack.c.b16 %v3260, %v3248
        %v3957 = vpack.c.b16 %v3261, %v3249
        %v3958 = vpack.c.b16 %v3262, %v3250
        %v3959 = vpack.c.b16 %v3263, %v3251
        %v3960 = vpack.c.b16 %v3264, %v3252
        %v3961 = vpack.c.b16 %v3265, %v3253
        %v3962 = vpack.c.b16 %v3266, %v3254
        %v3963 = vpack.c.b16 %v3267, %v3255
        %v3964 = vpack.c.b16 %v3268, %v3256
        %v3965 = vpack.c.b16 %v3269, %v3257
        %v3966 = vpack.c.b16 %v3282, %v3270
        %v3967 = vpack.c.b16 %v3283, %v3271
        %v3968 = vpack.c.b16 %v3284, %v3272
        %v3969 = vpack.c.b16 %v3285, %v3273
        %v3970 = vpack.c.b16 %v3286, %v3274
        %v3971 = vpack.c.b16 %v3287, %v3275
        %v3972 = vpack.c.b16 %v3288, %v3276
        %v3973 = vpack.c.b16 %v3289, %v3277
        %v3974 = vpack.c.b16 %v3290, %v3278
        %v3975 = vpack.c.b16 %v3291, %v3279
        %v3976 = vpack.c.b16 %v3292, %v3280
        %v3977 = vpack.c.b16 %v3293, %v3281
        %v3978 = vpack.c.b16 %v3306, %v3294
        %v3979 = vpack.c.b16 %v3307, %v3295
        %v3980 = vpack.c.b16 %v3308, %v3296
        %v3981 = vpack.c.b16 %v3309, %v3297
        %v3982 = vpack.c.b16 %v3310, %v3298
        %v3983 = vpack.c.b16 %v3311, %v3299
        %v3984 = vpack.c.b16 %v3312, %v3300
        %v3985 = vpack.c.b16 %v3313, %v3301
        %v3986 = vpack.c.b16 %v3314, %v3302
        %v3987 = vpack.c.b16 %v3315, %v3303
        %v3988 = vpack.c.b16 %v3316, %v3304
        %v3989 = vpack.c.b16 %v3317, %v3305
        %v3990 = vpack.c.b16 %v3330, %v3318
        %v3991 = vpack.c.b16 %v3331, %v3319
        %v3992 = vpack.c.b16 %v3332, %v3320
        %v3993 = vpack.c.b16 %v3333, %v3321
        %v3994 = vpack.c.b16 %v3334, %v3322
        %v3995 = vpack.c.b16 %v3335, %v3323
        %v3996 = vpack.c.b16 %v3336, %v3324
        %v3997 = vpack.c.b16 %v3337, %v3325
        %v3998 = vpack.c.b16 %v3338, %v3326
        %v3999 = vpack.c.b16 %v3339, %v3327
        %v4000 = vpack.c.b16 %v3340, %v3328
        %v4001 = vpack.c.b16 %v3341, %v3329
        %v4002 = vpack.c.b16 %v3354, %v3342
        %v4003 = vpack.c.b16 %v3355, %v3343
        %v4004 = vpack.c.b16 %v3356, %v3344
        %v4005 = vpack.c.b16 %v3357, %v3345
        %v4006 = vpack.c.b16 %v3358, %v3346
        %v4007 = vpack.c.b16 %v3359, %v3347
        %v4008 = vpack.c.b16 %v3360, %v3348
        %v4009 = vpack.c.b16 %v3361, %v3349
        %v4010 = vpack.c.b16 %v3362, %v3350
        %v4011 = vpack.c.b16 %v3363, %v3351
        %v4012 = vpack.c.b16 %v3364, %v3352
        %v4013 = vpack.c.b16 %v3365, %v3353
        %v4014 = vpack.c.b16 %v3378, %v3366
        %v4015 = vpack.c.b16 %v3379, %v3367
        %v4016 = vpack.c.b16 %v3380, %v3368
        %v4017 = vpack.c.b16 %v3381, %v3369
        %v4018 = vpack.c.b16 %v3382, %v3370
        %v4019 = vpack.c.b16 %v3383, %v3371
        %v4020 = vpack.c.b16 %v3384, %v3372
        %v4021 = vpack.c.b16 %v3385, %v3373
        %v4022 = vpack.c.b16 %v3386, %v3374
        %v4023 = vpack.c.b16 %v3387, %v3375
        %v4024 = vpack.c.b16 %v3388, %v3376
        %v4025 = vpack.c.b16 %v3389, %v3377
        %v4026 = vpack.c.b16 %v3402, %v3390
        %v4027 = vpack.c.b16 %v3403, %v3391
        %v4028 = vpack.c.b16 %v3404, %v3392
        %v4029 = vpack.c.b16 %v3405, %v3393
        %v4030 = vpack.c.b16 %v3406, %v3394
        %v4031 = vpack.c.b16 %v3407, %v3395
        %v4032 = vpack.c.b16 %v3408, %v3396
        %v4033 = vpack.c.b16 %v3409, %v3397
        %v4034 = vpack.c.b16 %v3410, %v3398
        %v4035 = vpack.c.b16 %v3411, %v3399
        %v4036 = vpack.c.b16 %v3412, %v3400
        %v4037 = vpack.c.b16 %v3413, %v3401
        %v4038 = vpack.c.b16 %v3426, %v3414
        %v4039 = vpack.c.b16 %v3427, %v3415
        %v4040 = vpack.c.b16 %v3428, %v3416
        %v4041 = vpack.c.b16 %v3429, %v3417
        %v4042 = vpack.c.b16 %v3430, %v3418
        %v4043 = vpack.c.b16 %v3431, %v3419
        %v4044 = vpack.c.b16 %v3432, %v3420
        %v4045 = vpack.c.b16 %v3433, %v3421
        %v4046 = vpack.c.b16 %v3434, %v3422
        %v4047 = vpack.c.b16 %v3435, %v3423
        %v4048 = vpack.c.b16 %v3436, %v3424
        %v4049 = vpack.c.b16 %v3437, %v3425
        %v4050 = vpack.c.b16 %v3450, %v3438
        %v4051 = vpack.c.b16 %v3451, %v3439
        %v4052 = vpack.c.b16 %v3452, %v3440
        %v4053 = vpack.c.b16 %v3453, %v3441
        %v4054 = vpack.c.b16 %v3454, %v3442
        %v4055 = vpack.c.b16 %v3455, %v3443
        %v4056 = vpack.c.b16 %v3456, %v3444
        %v4057 = vpack.c.b16 %v3457, %v3445
        %v4058 = vpack.c.b16 %v3458, %v3446
        %v4059 = vpack.c.b16 %v3459, %v3447
        %v4060 = vpack.c.b16 %v3460, %v3448
        %v4061 = vpack.c.b16 %v3461, %v3449
        %v4062 = vpack.c.b16 %v3474, %v3462
        %v4063 = vpack.c.b16 %v3475, %v3463
        %v4064 = vpack.c.b16 %v3476, %v3464
        %v4065 = vpack.c.b16 %v3477, %v3465
        %v4066 = vpack.c.b16 %v3478, %v3466
        %v4067 = vpack.c.b16 %v3479, %v3467
        %v4068 = vpack.c.b16 %v3480, %v3468
        %v4069 = vpack.c.b16 %v3481, %v3469
        %v4070 = vpack.c.b16 %v3482, %v3470
        %v4071 = vpack.c.b16 %v3483, %v3471
        %v4072 = vpack.c.b16 %v3484, %v3472
        %v4073 = vpack.c.b16 %v3485, %v3473
        %v4074 = vpack.c.b16 %v3498, %v3486
        %v4075 = vpack.c.b16 %v3499, %v3487
        %v4076 = vpack.c.b16 %v3500, %v3488
        %v4077 = vpack.c.b16 %v3501, %v3489
        %v4078 = vpack.c.b16 %v3502, %v3490
        %v4079 = vpack.c.b16 %v3503, %v3491
        %v4080 = vpack.c.b16 %v3504, %v3492
        %v4081 = vpack.c.b16 %v3505, %v3493
        %v4082 = vpack.c.b16 %v3506, %v3494
        %v4083 = vpack.c.b16 %v3507, %v3495
        %v4084 = vpack.c.b16 %v3508, %v3496
        %v4085 = vpack.c.b16 %v3509, %v3497
        %4662 = vmatpush.bf16.msra.mxu0 %v3594
        %4663 = vmatpush.bf16.msra.mxu0 %v3582
        %4664 = vmatpush.bf16.msra.mxu0 %v3570
        %4665 = vmatpush.bf16.msra.mxu0 %v3558
        %4666 = vmatpush.bf16.msra.mxu0 %v3546
        %4667 = vmatpush.bf16.msra.mxu0 %v3534
        %4668 = vmatpush.bf16.msra.mxu0 %v3522
        %4669 = vmatpush.bf16.msra.mxu0 %v3510
        %4670 = vmatmul.bf16.gmra.mxu0 %v1172
        %v4671 = vpop.f32.mrf.mxu0
        %v4672 = vadd.f32 %v1758, %v4671
        %v4673 = vpop.f32.mrf.mxu0
        %4674 = vdwg.mxu0
        %4675 = vmatpush.bf16.msra.mxu0 %v3690
        %4676 = vmatpush.bf16.msra.mxu0 %v3678
        %4677 = vmatpush.bf16.msra.mxu0 %v3666
        %4678 = vmatpush.bf16.msra.mxu0 %v3654
        %4679 = vmatpush.bf16.msra.mxu0 %v3642
        %4680 = vmatpush.bf16.msra.mxu0 %v3630
        %4681 = vmatpush.bf16.msra.mxu0 %v3618
        %4682 = vmatpush.bf16.msra.mxu0 %v3606
        %4683 = vmatmul.bf16.gmra.mxu0 %v1173
        %v4684 = vpop.f32.mrf.mxu0
        %v4685 = vadd.f32 %v4672, %v4684
        %v4686 = vpop.f32.mrf.mxu0
        %4687 = vdwg.mxu0
        %4688 = vmatpush.bf16.msra.mxu0 %v3786
        %4689 = vmatpush.bf16.msra.mxu0 %v3774
        %4690 = vmatpush.bf16.msra.mxu0 %v3762
        %4691 = vmatpush.bf16.msra.mxu0 %v3750
        %4692 = vmatpush.bf16.msra.mxu0 %v3738
        %4693 = vmatpush.bf16.msra.mxu0 %v3726
        %4694 = vmatpush.bf16.msra.mxu0 %v3714
        %4695 = vmatpush.bf16.msra.mxu0 %v3702
        %4696 = vmatmul.bf16.gmra.mxu0 %v1174
        %v4697 = vpop.f32.mrf.mxu0
        %v4698 = vadd.f32 %v4685, %v4697
        %v4699 = vpop.f32.mrf.mxu0
        %4700 = vdwg.mxu0
        %4701 = vmatpush.bf16.msra.mxu0 %v3882
        %4702 = vmatpush.bf16.msra.mxu0 %v3870
        %4703 = vmatpush.bf16.msra.mxu0 %v3858
        %4704 = vmatpush.bf16.msra.mxu0 %v3846
        %4705 = vmatpush.bf16.msra.mxu0 %v3834
        %4706 = vmatpush.bf16.msra.mxu0 %v3822
        %4707 = vmatpush.bf16.msra.mxu0 %v3810
        %4708 = vmatpush.bf16.msra.mxu0 %v3798
        %4709 = vmatmul.bf16.gmra.mxu0 %v1175
        %v4710 = vpop.f32.mrf.mxu0
        %v4711 = vadd.f32 %v4698, %v4710
        %v4712 = vpop.f32.mrf.mxu0
        %4713 = vdwg.mxu0
        %4714 = vmatpush.bf16.msra.mxu0 %v3978
        %4715 = vmatpush.bf16.msra.mxu0 %v3966
        %4716 = vmatpush.bf16.msra.mxu0 %v3954
        %4717 = vmatpush.bf16.msra.mxu0 %v3942
        %4718 = vmatpush.bf16.msra.mxu0 %v3930
        %4719 = vmatpush.bf16.msra.mxu0 %v3918
        %4720 = vmatpush.bf16.msra.mxu0 %v3906
        %4721 = vmatpush.bf16.msra.mxu0 %v3894
        %4722 = vmatmul.bf16.gmra.mxu0 %v1176
        %v4723 = vpop.f32.mrf.mxu0
        %v4724 = vadd.f32 %v4711, %v4723
        %v4725 = vpop.f32.mrf.mxu0
        %4726 = vdwg.mxu0
        %4727 = vmatpush.bf16.msra.mxu0 %v4074
        %4728 = vmatpush.bf16.msra.mxu0 %v4062
        %4729 = vmatpush.bf16.msra.mxu0 %v4050
        %4730 = vmatpush.bf16.msra.mxu0 %v4038
        %4731 = vmatpush.bf16.msra.mxu0 %v4026
        %4732 = vmatpush.bf16.msra.mxu0 %v4014
        %4733 = vmatpush.bf16.msra.mxu0 %v4002
        %4734 = vmatpush.bf16.msra.mxu0 %v3990
        %4735 = vmatmul.bf16.gmra.mxu0 %v1177
        %v4736 = vpop.f32.mrf.mxu0
        %v4737 = vadd.f32 %v4724, %v4736
        %v4738 = vpop.f32.mrf.mxu0
        %4739 = vdwg.mxu0
        %4740 = vmatpush.bf16.msra.mxu0 %v3595
        %4741 = vmatpush.bf16.msra.mxu0 %v3583
        %4742 = vmatpush.bf16.msra.mxu0 %v3571
        %4743 = vmatpush.bf16.msra.mxu0 %v3559
        %4744 = vmatpush.bf16.msra.mxu0 %v3547
        %4745 = vmatpush.bf16.msra.mxu0 %v3535
        %4746 = vmatpush.bf16.msra.mxu0 %v3523
        %4747 = vmatpush.bf16.msra.mxu0 %v3511
        %4748 = vmatmul.bf16.gmra.mxu0 %v1172
        %v4749 = vpop.f32.mrf.mxu0
        %v4750 = vadd.f32 %v1759, %v4749
        %v4751 = vpop.f32.mrf.mxu0
        %4752 = vdwg.mxu0
        %4753 = vmatpush.bf16.msra.mxu0 %v3691
        %4754 = vmatpush.bf16.msra.mxu0 %v3679
        %4755 = vmatpush.bf16.msra.mxu0 %v3667
        %4756 = vmatpush.bf16.msra.mxu0 %v3655
        %4757 = vmatpush.bf16.msra.mxu0 %v3643
        %4758 = vmatpush.bf16.msra.mxu0 %v3631
        %4759 = vmatpush.bf16.msra.mxu0 %v3619
        %4760 = vmatpush.bf16.msra.mxu0 %v3607
        %4761 = vmatmul.bf16.gmra.mxu0 %v1173
        %v4762 = vpop.f32.mrf.mxu0
        %v4763 = vadd.f32 %v4750, %v4762
        %v4764 = vpop.f32.mrf.mxu0
        %4765 = vdwg.mxu0
        %4766 = vmatpush.bf16.msra.mxu0 %v3787
        %4767 = vmatpush.bf16.msra.mxu0 %v3775
        %4768 = vmatpush.bf16.msra.mxu0 %v3763
        %4769 = vmatpush.bf16.msra.mxu0 %v3751
        %4770 = vmatpush.bf16.msra.mxu0 %v3739
        %4771 = vmatpush.bf16.msra.mxu0 %v3727
        %4772 = vmatpush.bf16.msra.mxu0 %v3715
        %4773 = vmatpush.bf16.msra.mxu0 %v3703
        %4774 = vmatmul.bf16.gmra.mxu0 %v1174
        %v4775 = vpop.f32.mrf.mxu0
        %v4776 = vadd.f32 %v4763, %v4775
        %v4777 = vpop.f32.mrf.mxu0
        %4778 = vdwg.mxu0
        %4779 = vmatpush.bf16.msra.mxu0 %v3883
        %4780 = vmatpush.bf16.msra.mxu0 %v3871
        %4781 = vmatpush.bf16.msra.mxu0 %v3859
        %4782 = vmatpush.bf16.msra.mxu0 %v3847
        %4783 = vmatpush.bf16.msra.mxu0 %v3835
        %4784 = vmatpush.bf16.msra.mxu0 %v3823
        %4785 = vmatpush.bf16.msra.mxu0 %v3811
        %4786 = vmatpush.bf16.msra.mxu0 %v3799
        %4787 = vmatmul.bf16.gmra.mxu0 %v1175
        %v4788 = vpop.f32.mrf.mxu0
        %v4789 = vadd.f32 %v4776, %v4788
        %v4790 = vpop.f32.mrf.mxu0
        %4791 = vdwg.mxu0
        %4792 = vmatpush.bf16.msra.mxu0 %v3979
        %4793 = vmatpush.bf16.msra.mxu0 %v3967
        %4794 = vmatpush.bf16.msra.mxu0 %v3955
        %4795 = vmatpush.bf16.msra.mxu0 %v3943
        %4796 = vmatpush.bf16.msra.mxu0 %v3931
        %4797 = vmatpush.bf16.msra.mxu0 %v3919
        %4798 = vmatpush.bf16.msra.mxu0 %v3907
        %4799 = vmatpush.bf16.msra.mxu0 %v3895
        %4800 = vmatmul.bf16.gmra.mxu0 %v1176
        %v4801 = vpop.f32.mrf.mxu0
        %v4802 = vadd.f32 %v4789, %v4801
        %v4803 = vpop.f32.mrf.mxu0
        %4804 = vdwg.mxu0
        %4805 = vmatpush.bf16.msra.mxu0 %v4075
        %4806 = vmatpush.bf16.msra.mxu0 %v4063
        %4807 = vmatpush.bf16.msra.mxu0 %v4051
        %4808 = vmatpush.bf16.msra.mxu0 %v4039
        %4809 = vmatpush.bf16.msra.mxu0 %v4027
        %4810 = vmatpush.bf16.msra.mxu0 %v4015
        %4811 = vmatpush.bf16.msra.mxu0 %v4003
        %4812 = vmatpush.bf16.msra.mxu0 %v3991
        %4813 = vmatmul.bf16.gmra.mxu0 %v1177
        %v4814 = vpop.f32.mrf.mxu0
        %v4815 = vadd.f32 %v4802, %v4814
        %v4816 = vpop.f32.mrf.mxu0
        %4817 = vdwg.mxu0
        %4818 = vmatpush.bf16.msra.mxu0 %v3596
        %4819 = vmatpush.bf16.msra.mxu0 %v3584
        %4820 = vmatpush.bf16.msra.mxu0 %v3572
        %4821 = vmatpush.bf16.msra.mxu0 %v3560
        %4822 = vmatpush.bf16.msra.mxu0 %v3548
        %4823 = vmatpush.bf16.msra.mxu0 %v3536
        %4824 = vmatpush.bf16.msra.mxu0 %v3524
        %4825 = vmatpush.bf16.msra.mxu0 %v3512
        %4826 = vmatmul.bf16.gmra.mxu0 %v1172
        %v4827 = vpop.f32.mrf.mxu0
        %v4828 = vadd.f32 %v1760, %v4827
        %v4829 = vpop.f32.mrf.mxu0
        %4830 = vdwg.mxu0
        %4831 = vmatpush.bf16.msra.mxu0 %v3692
        %4832 = vmatpush.bf16.msra.mxu0 %v3680
        %4833 = vmatpush.bf16.msra.mxu0 %v3668
        %4834 = vmatpush.bf16.msra.mxu0 %v3656
        %4835 = vmatpush.bf16.msra.mxu0 %v3644
        %4836 = vmatpush.bf16.msra.mxu0 %v3632
        %4837 = vmatpush.bf16.msra.mxu0 %v3620
        %4838 = vmatpush.bf16.msra.mxu0 %v3608
        %4839 = vmatmul.bf16.gmra.mxu0 %v1173
        %v4840 = vpop.f32.mrf.mxu0
        %v4841 = vadd.f32 %v4828, %v4840
        %v4842 = vpop.f32.mrf.mxu0
        %4843 = vdwg.mxu0
        %4844 = vmatpush.bf16.msra.mxu0 %v3788
        %4845 = vmatpush.bf16.msra.mxu0 %v3776
        %4846 = vmatpush.bf16.msra.mxu0 %v3764
        %4847 = vmatpush.bf16.msra.mxu0 %v3752
        %4848 = vmatpush.bf16.msra.mxu0 %v3740
        %4849 = vmatpush.bf16.msra.mxu0 %v3728
        %4850 = vmatpush.bf16.msra.mxu0 %v3716
        %4851 = vmatpush.bf16.msra.mxu0 %v3704
        %4852 = vmatmul.bf16.gmra.mxu0 %v1174
        %v4853 = vpop.f32.mrf.mxu0
        %v4854 = vadd.f32 %v4841, %v4853
        %v4855 = vpop.f32.mrf.mxu0
        %4856 = vdwg.mxu0
        %4857 = vmatpush.bf16.msra.mxu0 %v3884
        %4858 = vmatpush.bf16.msra.mxu0 %v3872
        %4859 = vmatpush.bf16.msra.mxu0 %v3860
        %4860 = vmatpush.bf16.msra.mxu0 %v3848
        %4861 = vmatpush.bf16.msra.mxu0 %v3836
        %4862 = vmatpush.bf16.msra.mxu0 %v3824
        %4863 = vmatpush.bf16.msra.mxu0 %v3812
        %4864 = vmatpush.bf16.msra.mxu0 %v3800
        %4865 = vmatmul.bf16.gmra.mxu0 %v1175
        %v4866 = vpop.f32.mrf.mxu0
        %v4867 = vadd.f32 %v4854, %v4866
        %v4868 = vpop.f32.mrf.mxu0
        %4869 = vdwg.mxu0
        %4870 = vmatpush.bf16.msra.mxu0 %v3980
        %4871 = vmatpush.bf16.msra.mxu0 %v3968
        %4872 = vmatpush.bf16.msra.mxu0 %v3956
        %4873 = vmatpush.bf16.msra.mxu0 %v3944
        %4874 = vmatpush.bf16.msra.mxu0 %v3932
        %4875 = vmatpush.bf16.msra.mxu0 %v3920
        %4876 = vmatpush.bf16.msra.mxu0 %v3908
        %4877 = vmatpush.bf16.msra.mxu0 %v3896
        %4878 = vmatmul.bf16.gmra.mxu0 %v1176
        %v4879 = vpop.f32.mrf.mxu0
        %v4880 = vadd.f32 %v4867, %v4879
        %v4881 = vpop.f32.mrf.mxu0
        %4882 = vdwg.mxu0
        %4883 = vmatpush.bf16.msra.mxu0 %v4076
        %4884 = vmatpush.bf16.msra.mxu0 %v4064
        %4885 = vmatpush.bf16.msra.mxu0 %v4052
        %4886 = vmatpush.bf16.msra.mxu0 %v4040
        %4887 = vmatpush.bf16.msra.mxu0 %v4028
        %4888 = vmatpush.bf16.msra.mxu0 %v4016
        %4889 = vmatpush.bf16.msra.mxu0 %v4004
        %4890 = vmatpush.bf16.msra.mxu0 %v3992
        %4891 = vmatmul.bf16.gmra.mxu0 %v1177
        %v4892 = vpop.f32.mrf.mxu0
        %v4893 = vadd.f32 %v4880, %v4892
        %v4894 = vpop.f32.mrf.mxu0
        %4895 = vdwg.mxu0
        %4896 = vmatpush.bf16.msra.mxu0 %v3597
        %4897 = vmatpush.bf16.msra.mxu0 %v3585
        %4898 = vmatpush.bf16.msra.mxu0 %v3573
        %4899 = vmatpush.bf16.msra.mxu0 %v3561
        %4900 = vmatpush.bf16.msra.mxu0 %v3549
        %4901 = vmatpush.bf16.msra.mxu0 %v3537
        %4902 = vmatpush.bf16.msra.mxu0 %v3525
        %4903 = vmatpush.bf16.msra.mxu0 %v3513
        %4904 = vmatmul.bf16.gmra.mxu0 %v1172
        %v4905 = vpop.f32.mrf.mxu0
        %v4906 = vadd.f32 %v1761, %v4905
        %v4907 = vpop.f32.mrf.mxu0
        %4908 = vdwg.mxu0
        %4909 = vmatpush.bf16.msra.mxu0 %v3693
        %4910 = vmatpush.bf16.msra.mxu0 %v3681
        %4911 = vmatpush.bf16.msra.mxu0 %v3669
        %4912 = vmatpush.bf16.msra.mxu0 %v3657
        %4913 = vmatpush.bf16.msra.mxu0 %v3645
        %4914 = vmatpush.bf16.msra.mxu0 %v3633
        %4915 = vmatpush.bf16.msra.mxu0 %v3621
        %4916 = vmatpush.bf16.msra.mxu0 %v3609
        %4917 = vmatmul.bf16.gmra.mxu0 %v1173
        %v4918 = vpop.f32.mrf.mxu0
        %v4919 = vadd.f32 %v4906, %v4918
        %v4920 = vpop.f32.mrf.mxu0
        %4921 = vdwg.mxu0
        %4922 = vmatpush.bf16.msra.mxu0 %v3789
        %4923 = vmatpush.bf16.msra.mxu0 %v3777
        %4924 = vmatpush.bf16.msra.mxu0 %v3765
        %4925 = vmatpush.bf16.msra.mxu0 %v3753
        %4926 = vmatpush.bf16.msra.mxu0 %v3741
        %4927 = vmatpush.bf16.msra.mxu0 %v3729
        %4928 = vmatpush.bf16.msra.mxu0 %v3717
        %4929 = vmatpush.bf16.msra.mxu0 %v3705
        %4930 = vmatmul.bf16.gmra.mxu0 %v1174
        %v4931 = vpop.f32.mrf.mxu0
        %v4932 = vadd.f32 %v4919, %v4931
        %v4933 = vpop.f32.mrf.mxu0
        %4934 = vdwg.mxu0
        %4935 = vmatpush.bf16.msra.mxu0 %v3885
        %4936 = vmatpush.bf16.msra.mxu0 %v3873
        %4937 = vmatpush.bf16.msra.mxu0 %v3861
        %4938 = vmatpush.bf16.msra.mxu0 %v3849
        %4939 = vmatpush.bf16.msra.mxu0 %v3837
        %4940 = vmatpush.bf16.msra.mxu0 %v3825
        %4941 = vmatpush.bf16.msra.mxu0 %v3813
        %4942 = vmatpush.bf16.msra.mxu0 %v3801
        %4943 = vmatmul.bf16.gmra.mxu0 %v1175
        %v4944 = vpop.f32.mrf.mxu0
        %v4945 = vadd.f32 %v4932, %v4944
        %v4946 = vpop.f32.mrf.mxu0
        %4947 = vdwg.mxu0
        %4948 = vmatpush.bf16.msra.mxu0 %v3981
        %4949 = vmatpush.bf16.msra.mxu0 %v3969
        %4950 = vmatpush.bf16.msra.mxu0 %v3957
        %4951 = vmatpush.bf16.msra.mxu0 %v3945
        %4952 = vmatpush.bf16.msra.mxu0 %v3933
        %4953 = vmatpush.bf16.msra.mxu0 %v3921
        %4954 = vmatpush.bf16.msra.mxu0 %v3909
        %4955 = vmatpush.bf16.msra.mxu0 %v3897
        %4956 = vmatmul.bf16.gmra.mxu0 %v1176
        %v4957 = vpop.f32.mrf.mxu0
        %v4958 = vadd.f32 %v4945, %v4957
        %v4959 = vpop.f32.mrf.mxu0
        %4960 = vdwg.mxu0
        %4961 = vmatpush.bf16.msra.mxu0 %v4077
        %4962 = vmatpush.bf16.msra.mxu0 %v4065
        %4963 = vmatpush.bf16.msra.mxu0 %v4053
        %4964 = vmatpush.bf16.msra.mxu0 %v4041
        %4965 = vmatpush.bf16.msra.mxu0 %v4029
        %4966 = vmatpush.bf16.msra.mxu0 %v4017
        %4967 = vmatpush.bf16.msra.mxu0 %v4005
        %4968 = vmatpush.bf16.msra.mxu0 %v3993
        %4969 = vmatmul.bf16.gmra.mxu0 %v1177
        %v4970 = vpop.f32.mrf.mxu0
        %v4971 = vadd.f32 %v4958, %v4970
        %v4972 = vpop.f32.mrf.mxu0
        %4973 = vdwg.mxu0
        %4974 = vmatpush.bf16.msra.mxu0 %v3598
        %4975 = vmatpush.bf16.msra.mxu0 %v3586
        %4976 = vmatpush.bf16.msra.mxu0 %v3574
        %4977 = vmatpush.bf16.msra.mxu0 %v3562
        %4978 = vmatpush.bf16.msra.mxu0 %v3550
        %4979 = vmatpush.bf16.msra.mxu0 %v3538
        %4980 = vmatpush.bf16.msra.mxu0 %v3526
        %4981 = vmatpush.bf16.msra.mxu0 %v3514
        %4982 = vmatmul.bf16.gmra.mxu0 %v1172
        %v4983 = vpop.f32.mrf.mxu0
        %v4984 = vadd.f32 %v1762, %v4983
        %v4985 = vpop.f32.mrf.mxu0
        %4986 = vdwg.mxu0
        %4987 = vmatpush.bf16.msra.mxu0 %v3694
        %4988 = vmatpush.bf16.msra.mxu0 %v3682
        %4989 = vmatpush.bf16.msra.mxu0 %v3670
        %4990 = vmatpush.bf16.msra.mxu0 %v3658
        %4991 = vmatpush.bf16.msra.mxu0 %v3646
        %4992 = vmatpush.bf16.msra.mxu0 %v3634
        %4993 = vmatpush.bf16.msra.mxu0 %v3622
        %4994 = vmatpush.bf16.msra.mxu0 %v3610
        %4995 = vmatmul.bf16.gmra.mxu0 %v1173
        %v4996 = vpop.f32.mrf.mxu0
        %v4997 = vadd.f32 %v4984, %v4996
        %v4998 = vpop.f32.mrf.mxu0
        %4999 = vdwg.mxu0
        %5000 = vmatpush.bf16.msra.mxu0 %v3790
        %5001 = vmatpush.bf16.msra.mxu0 %v3778
        %5002 = vmatpush.bf16.msra.mxu0 %v3766
        %5003 = vmatpush.bf16.msra.mxu0 %v3754
        %5004 = vmatpush.bf16.msra.mxu0 %v3742
        %5005 = vmatpush.bf16.msra.mxu0 %v3730
        %5006 = vmatpush.bf16.msra.mxu0 %v3718
        %5007 = vmatpush.bf16.msra.mxu0 %v3706
        %5008 = vmatmul.bf16.gmra.mxu0 %v1174
        %v5009 = vpop.f32.mrf.mxu0
        %v5010 = vadd.f32 %v4997, %v5009
        %v5011 = vpop.f32.mrf.mxu0
        %5012 = vdwg.mxu0
        %5013 = vmatpush.bf16.msra.mxu0 %v3886
        %5014 = vmatpush.bf16.msra.mxu0 %v3874
        %5015 = vmatpush.bf16.msra.mxu0 %v3862
        %5016 = vmatpush.bf16.msra.mxu0 %v3850
        %5017 = vmatpush.bf16.msra.mxu0 %v3838
        %5018 = vmatpush.bf16.msra.mxu0 %v3826
        %5019 = vmatpush.bf16.msra.mxu0 %v3814
        %5020 = vmatpush.bf16.msra.mxu0 %v3802
        %5021 = vmatmul.bf16.gmra.mxu0 %v1175
        %v5022 = vpop.f32.mrf.mxu0
        %v5023 = vadd.f32 %v5010, %v5022
        %v5024 = vpop.f32.mrf.mxu0
        %5025 = vdwg.mxu0
        %5026 = vmatpush.bf16.msra.mxu0 %v3982
        %5027 = vmatpush.bf16.msra.mxu0 %v3970
        %5028 = vmatpush.bf16.msra.mxu0 %v3958
        %5029 = vmatpush.bf16.msra.mxu0 %v3946
        %5030 = vmatpush.bf16.msra.mxu0 %v3934
        %5031 = vmatpush.bf16.msra.mxu0 %v3922
        %5032 = vmatpush.bf16.msra.mxu0 %v3910
        %5033 = vmatpush.bf16.msra.mxu0 %v3898
        %5034 = vmatmul.bf16.gmra.mxu0 %v1176
        %v5035 = vpop.f32.mrf.mxu0
        %v5036 = vadd.f32 %v5023, %v5035
        %v5037 = vpop.f32.mrf.mxu0
        %5038 = vdwg.mxu0
        %5039 = vmatpush.bf16.msra.mxu0 %v4078
        %5040 = vmatpush.bf16.msra.mxu0 %v4066
        %5041 = vmatpush.bf16.msra.mxu0 %v4054
        %5042 = vmatpush.bf16.msra.mxu0 %v4042
        %5043 = vmatpush.bf16.msra.mxu0 %v4030
        %5044 = vmatpush.bf16.msra.mxu0 %v4018
        %5045 = vmatpush.bf16.msra.mxu0 %v4006
        %5046 = vmatpush.bf16.msra.mxu0 %v3994
        %5047 = vmatmul.bf16.gmra.mxu0 %v1177
        %v5048 = vpop.f32.mrf.mxu0
        %v5049 = vadd.f32 %v5036, %v5048
        %v5050 = vpop.f32.mrf.mxu0
        %5051 = vdwg.mxu0
        %5052 = vmatpush.bf16.msra.mxu0 %v3599
        %5053 = vmatpush.bf16.msra.mxu0 %v3587
        %5054 = vmatpush.bf16.msra.mxu0 %v3575
        %5055 = vmatpush.bf16.msra.mxu0 %v3563
        %5056 = vmatpush.bf16.msra.mxu0 %v3551
        %5057 = vmatpush.bf16.msra.mxu0 %v3539
        %5058 = vmatpush.bf16.msra.mxu0 %v3527
        %5059 = vmatpush.bf16.msra.mxu0 %v3515
        %5060 = vmatmul.bf16.gmra.mxu0 %v1172
        %v5061 = vpop.f32.mrf.mxu0
        %v5062 = vadd.f32 %v1763, %v5061
        %v5063 = vpop.f32.mrf.mxu0
        %5064 = vdwg.mxu0
        %5065 = vmatpush.bf16.msra.mxu0 %v3695
        %5066 = vmatpush.bf16.msra.mxu0 %v3683
        %5067 = vmatpush.bf16.msra.mxu0 %v3671
        %5068 = vmatpush.bf16.msra.mxu0 %v3659
        %5069 = vmatpush.bf16.msra.mxu0 %v3647
        %5070 = vmatpush.bf16.msra.mxu0 %v3635
        %5071 = vmatpush.bf16.msra.mxu0 %v3623
        %5072 = vmatpush.bf16.msra.mxu0 %v3611
        %5073 = vmatmul.bf16.gmra.mxu0 %v1173
        %v5074 = vpop.f32.mrf.mxu0
        %v5075 = vadd.f32 %v5062, %v5074
        %v5076 = vpop.f32.mrf.mxu0
        %5077 = vdwg.mxu0
        %5078 = vmatpush.bf16.msra.mxu0 %v3791
        %5079 = vmatpush.bf16.msra.mxu0 %v3779
        %5080 = vmatpush.bf16.msra.mxu0 %v3767
        %5081 = vmatpush.bf16.msra.mxu0 %v3755
        %5082 = vmatpush.bf16.msra.mxu0 %v3743
        %5083 = vmatpush.bf16.msra.mxu0 %v3731
        %5084 = vmatpush.bf16.msra.mxu0 %v3719
        %5085 = vmatpush.bf16.msra.mxu0 %v3707
        %5086 = vmatmul.bf16.gmra.mxu0 %v1174
        %v5087 = vpop.f32.mrf.mxu0
        %v5088 = vadd.f32 %v5075, %v5087
        %v5089 = vpop.f32.mrf.mxu0
        %5090 = vdwg.mxu0
        %5091 = vmatpush.bf16.msra.mxu0 %v3887
        %5092 = vmatpush.bf16.msra.mxu0 %v3875
        %5093 = vmatpush.bf16.msra.mxu0 %v3863
        %5094 = vmatpush.bf16.msra.mxu0 %v3851
        %5095 = vmatpush.bf16.msra.mxu0 %v3839
        %5096 = vmatpush.bf16.msra.mxu0 %v3827
        %5097 = vmatpush.bf16.msra.mxu0 %v3815
        %5098 = vmatpush.bf16.msra.mxu0 %v3803
        %5099 = vmatmul.bf16.gmra.mxu0 %v1175
        %v5100 = vpop.f32.mrf.mxu0
        %v5101 = vadd.f32 %v5088, %v5100
        %v5102 = vpop.f32.mrf.mxu0
        %5103 = vdwg.mxu0
        %5104 = vmatpush.bf16.msra.mxu0 %v3983
        %5105 = vmatpush.bf16.msra.mxu0 %v3971
        %5106 = vmatpush.bf16.msra.mxu0 %v3959
        %5107 = vmatpush.bf16.msra.mxu0 %v3947
        %5108 = vmatpush.bf16.msra.mxu0 %v3935
        %5109 = vmatpush.bf16.msra.mxu0 %v3923
        %5110 = vmatpush.bf16.msra.mxu0 %v3911
        %5111 = vmatpush.bf16.msra.mxu0 %v3899
        %5112 = vmatmul.bf16.gmra.mxu0 %v1176
        %v5113 = vpop.f32.mrf.mxu0
        %v5114 = vadd.f32 %v5101, %v5113
        %v5115 = vpop.f32.mrf.mxu0
        %5116 = vdwg.mxu0
        %5117 = vmatpush.bf16.msra.mxu0 %v4079
        %5118 = vmatpush.bf16.msra.mxu0 %v4067
        %5119 = vmatpush.bf16.msra.mxu0 %v4055
        %5120 = vmatpush.bf16.msra.mxu0 %v4043
        %5121 = vmatpush.bf16.msra.mxu0 %v4031
        %5122 = vmatpush.bf16.msra.mxu0 %v4019
        %5123 = vmatpush.bf16.msra.mxu0 %v4007
        %5124 = vmatpush.bf16.msra.mxu0 %v3995
        %5125 = vmatmul.bf16.gmra.mxu0 %v1177
        %v5126 = vpop.f32.mrf.mxu0
        %v5127 = vadd.f32 %v5114, %v5126
        %v5128 = vpop.f32.mrf.mxu0
        %5129 = vdwg.mxu0
        %5130 = vmatpush.bf16.msra.mxu0 %v3600
        %5131 = vmatpush.bf16.msra.mxu0 %v3588
        %5132 = vmatpush.bf16.msra.mxu0 %v3576
        %5133 = vmatpush.bf16.msra.mxu0 %v3564
        %5134 = vmatpush.bf16.msra.mxu0 %v3552
        %5135 = vmatpush.bf16.msra.mxu0 %v3540
        %5136 = vmatpush.bf16.msra.mxu0 %v3528
        %5137 = vmatpush.bf16.msra.mxu0 %v3516
        %5138 = vmatmul.bf16.gmra.mxu0 %v1172
        %v5139 = vpop.f32.mrf.mxu0
        %v5140 = vadd.f32 %v1764, %v5139
        %v5141 = vpop.f32.mrf.mxu0
        %5142 = vdwg.mxu0
        %5143 = vmatpush.bf16.msra.mxu0 %v3696
        %5144 = vmatpush.bf16.msra.mxu0 %v3684
        %5145 = vmatpush.bf16.msra.mxu0 %v3672
        %5146 = vmatpush.bf16.msra.mxu0 %v3660
        %5147 = vmatpush.bf16.msra.mxu0 %v3648
        %5148 = vmatpush.bf16.msra.mxu0 %v3636
        %5149 = vmatpush.bf16.msra.mxu0 %v3624
        %5150 = vmatpush.bf16.msra.mxu0 %v3612
        %5151 = vmatmul.bf16.gmra.mxu0 %v1173
        %v5152 = vpop.f32.mrf.mxu0
        %v5153 = vadd.f32 %v5140, %v5152
        %v5154 = vpop.f32.mrf.mxu0
        %5155 = vdwg.mxu0
        %5156 = vmatpush.bf16.msra.mxu0 %v3792
        %5157 = vmatpush.bf16.msra.mxu0 %v3780
        %5158 = vmatpush.bf16.msra.mxu0 %v3768
        %5159 = vmatpush.bf16.msra.mxu0 %v3756
        %5160 = vmatpush.bf16.msra.mxu0 %v3744
        %5161 = vmatpush.bf16.msra.mxu0 %v3732
        %5162 = vmatpush.bf16.msra.mxu0 %v3720
        %5163 = vmatpush.bf16.msra.mxu0 %v3708
        %5164 = vmatmul.bf16.gmra.mxu0 %v1174
        %v5165 = vpop.f32.mrf.mxu0
        %v5166 = vadd.f32 %v5153, %v5165
        %v5167 = vpop.f32.mrf.mxu0
        %5168 = vdwg.mxu0
        %5169 = vmatpush.bf16.msra.mxu0 %v3888
        %5170 = vmatpush.bf16.msra.mxu0 %v3876
        %5171 = vmatpush.bf16.msra.mxu0 %v3864
        %5172 = vmatpush.bf16.msra.mxu0 %v3852
        %5173 = vmatpush.bf16.msra.mxu0 %v3840
        %5174 = vmatpush.bf16.msra.mxu0 %v3828
        %5175 = vmatpush.bf16.msra.mxu0 %v3816
        %5176 = vmatpush.bf16.msra.mxu0 %v3804
        %5177 = vmatmul.bf16.gmra.mxu0 %v1175
        %v5178 = vpop.f32.mrf.mxu0
        %v5179 = vadd.f32 %v5166, %v5178
        %v5180 = vpop.f32.mrf.mxu0
        %5181 = vdwg.mxu0
        %5182 = vmatpush.bf16.msra.mxu0 %v3984
        %5183 = vmatpush.bf16.msra.mxu0 %v3972
        %5184 = vmatpush.bf16.msra.mxu0 %v3960
        %5185 = vmatpush.bf16.msra.mxu0 %v3948
        %5186 = vmatpush.bf16.msra.mxu0 %v3936
        %5187 = vmatpush.bf16.msra.mxu0 %v3924
        %5188 = vmatpush.bf16.msra.mxu0 %v3912
        %5189 = vmatpush.bf16.msra.mxu0 %v3900
        %5190 = vmatmul.bf16.gmra.mxu0 %v1176
        %v5191 = vpop.f32.mrf.mxu0
        %v5192 = vadd.f32 %v5179, %v5191
        %v5193 = vpop.f32.mrf.mxu0
        %5194 = vdwg.mxu0
        %5195 = vmatpush.bf16.msra.mxu0 %v4080
        %5196 = vmatpush.bf16.msra.mxu0 %v4068
        %5197 = vmatpush.bf16.msra.mxu0 %v4056
        %5198 = vmatpush.bf16.msra.mxu0 %v4044
        %5199 = vmatpush.bf16.msra.mxu0 %v4032
        %5200 = vmatpush.bf16.msra.mxu0 %v4020
        %5201 = vmatpush.bf16.msra.mxu0 %v4008
        %5202 = vmatpush.bf16.msra.mxu0 %v3996
        %5203 = vmatmul.bf16.gmra.mxu0 %v1177
        %v5204 = vpop.f32.mrf.mxu0
        %v5205 = vadd.f32 %v5192, %v5204
        %v5206 = vpop.f32.mrf.mxu0
        %5207 = vdwg.mxu0
        %5208 = vmatpush.bf16.msra.mxu0 %v3601
        %5209 = vmatpush.bf16.msra.mxu0 %v3589
        %5210 = vmatpush.bf16.msra.mxu0 %v3577
        %5211 = vmatpush.bf16.msra.mxu0 %v3565
        %5212 = vmatpush.bf16.msra.mxu0 %v3553
        %5213 = vmatpush.bf16.msra.mxu0 %v3541
        %5214 = vmatpush.bf16.msra.mxu0 %v3529
        %5215 = vmatpush.bf16.msra.mxu0 %v3517
        %5216 = vmatmul.bf16.gmra.mxu0 %v1172
        %v5217 = vpop.f32.mrf.mxu0
        %v5218 = vadd.f32 %v1765, %v5217
        %v5219 = vpop.f32.mrf.mxu0
        %5220 = vdwg.mxu0
        %5221 = vmatpush.bf16.msra.mxu0 %v3697
        %5222 = vmatpush.bf16.msra.mxu0 %v3685
        %5223 = vmatpush.bf16.msra.mxu0 %v3673
        %5224 = vmatpush.bf16.msra.mxu0 %v3661
        %5225 = vmatpush.bf16.msra.mxu0 %v3649
        %5226 = vmatpush.bf16.msra.mxu0 %v3637
        %5227 = vmatpush.bf16.msra.mxu0 %v3625
        %5228 = vmatpush.bf16.msra.mxu0 %v3613
        %5229 = vmatmul.bf16.gmra.mxu0 %v1173
        %v5230 = vpop.f32.mrf.mxu0
        %v5231 = vadd.f32 %v5218, %v5230
        %v5232 = vpop.f32.mrf.mxu0
        %5233 = vdwg.mxu0
        %5234 = vmatpush.bf16.msra.mxu0 %v3793
        %5235 = vmatpush.bf16.msra.mxu0 %v3781
        %5236 = vmatpush.bf16.msra.mxu0 %v3769
        %5237 = vmatpush.bf16.msra.mxu0 %v3757
        %5238 = vmatpush.bf16.msra.mxu0 %v3745
        %5239 = vmatpush.bf16.msra.mxu0 %v3733
        %5240 = vmatpush.bf16.msra.mxu0 %v3721
        %5241 = vmatpush.bf16.msra.mxu0 %v3709
        %5242 = vmatmul.bf16.gmra.mxu0 %v1174
        %v5243 = vpop.f32.mrf.mxu0
        %v5244 = vadd.f32 %v5231, %v5243
        %v5245 = vpop.f32.mrf.mxu0
        %5246 = vdwg.mxu0
        %5247 = vmatpush.bf16.msra.mxu0 %v3889
        %5248 = vmatpush.bf16.msra.mxu0 %v3877
        %5249 = vmatpush.bf16.msra.mxu0 %v3865
        %5250 = vmatpush.bf16.msra.mxu0 %v3853
        %5251 = vmatpush.bf16.msra.mxu0 %v3841
        %5252 = vmatpush.bf16.msra.mxu0 %v3829
        %5253 = vmatpush.bf16.msra.mxu0 %v3817
        %5254 = vmatpush.bf16.msra.mxu0 %v3805
        %5255 = vmatmul.bf16.gmra.mxu0 %v1175
        %v5256 = vpop.f32.mrf.mxu0
        %v5257 = vadd.f32 %v5244, %v5256
        %v5258 = vpop.f32.mrf.mxu0
        %5259 = vdwg.mxu0
        %5260 = vmatpush.bf16.msra.mxu0 %v3985
        %5261 = vmatpush.bf16.msra.mxu0 %v3973
        %5262 = vmatpush.bf16.msra.mxu0 %v3961
        %5263 = vmatpush.bf16.msra.mxu0 %v3949
        %5264 = vmatpush.bf16.msra.mxu0 %v3937
        %5265 = vmatpush.bf16.msra.mxu0 %v3925
        %5266 = vmatpush.bf16.msra.mxu0 %v3913
        %5267 = vmatpush.bf16.msra.mxu0 %v3901
        %5268 = vmatmul.bf16.gmra.mxu0 %v1176
        %v5269 = vpop.f32.mrf.mxu0
        %v5270 = vadd.f32 %v5257, %v5269
        %v5271 = vpop.f32.mrf.mxu0
        %5272 = vdwg.mxu0
        %5273 = vmatpush.bf16.msra.mxu0 %v4081
        %5274 = vmatpush.bf16.msra.mxu0 %v4069
        %5275 = vmatpush.bf16.msra.mxu0 %v4057
        %5276 = vmatpush.bf16.msra.mxu0 %v4045
        %5277 = vmatpush.bf16.msra.mxu0 %v4033
        %5278 = vmatpush.bf16.msra.mxu0 %v4021
        %5279 = vmatpush.bf16.msra.mxu0 %v4009
        %5280 = vmatpush.bf16.msra.mxu0 %v3997
        %5281 = vmatmul.bf16.gmra.mxu0 %v1177
        %v5282 = vpop.f32.mrf.mxu0
        %v5283 = vadd.f32 %v5270, %v5282
        %v5284 = vpop.f32.mrf.mxu0
        %5285 = vdwg.mxu0
        %5286 = vmatpush.bf16.msra.mxu0 %v3602
        %5287 = vmatpush.bf16.msra.mxu0 %v3590
        %5288 = vmatpush.bf16.msra.mxu0 %v3578
        %5289 = vmatpush.bf16.msra.mxu0 %v3566
        %5290 = vmatpush.bf16.msra.mxu0 %v3554
        %5291 = vmatpush.bf16.msra.mxu0 %v3542
        %5292 = vmatpush.bf16.msra.mxu0 %v3530
        %5293 = vmatpush.bf16.msra.mxu0 %v3518
        %5294 = vmatmul.bf16.gmra.mxu0 %v1172
        %v5295 = vpop.f32.mrf.mxu0
        %v5296 = vadd.f32 %v1766, %v5295
        %v5297 = vpop.f32.mrf.mxu0
        %5298 = vdwg.mxu0
        %5299 = vmatpush.bf16.msra.mxu0 %v3698
        %5300 = vmatpush.bf16.msra.mxu0 %v3686
        %5301 = vmatpush.bf16.msra.mxu0 %v3674
        %5302 = vmatpush.bf16.msra.mxu0 %v3662
        %5303 = vmatpush.bf16.msra.mxu0 %v3650
        %5304 = vmatpush.bf16.msra.mxu0 %v3638
        %5305 = vmatpush.bf16.msra.mxu0 %v3626
        %5306 = vmatpush.bf16.msra.mxu0 %v3614
        %5307 = vmatmul.bf16.gmra.mxu0 %v1173
        %v5308 = vpop.f32.mrf.mxu0
        %v5309 = vadd.f32 %v5296, %v5308
        %v5310 = vpop.f32.mrf.mxu0
        %5311 = vdwg.mxu0
        %5312 = vmatpush.bf16.msra.mxu0 %v3794
        %5313 = vmatpush.bf16.msra.mxu0 %v3782
        %5314 = vmatpush.bf16.msra.mxu0 %v3770
        %5315 = vmatpush.bf16.msra.mxu0 %v3758
        %5316 = vmatpush.bf16.msra.mxu0 %v3746
        %5317 = vmatpush.bf16.msra.mxu0 %v3734
        %5318 = vmatpush.bf16.msra.mxu0 %v3722
        %5319 = vmatpush.bf16.msra.mxu0 %v3710
        %5320 = vmatmul.bf16.gmra.mxu0 %v1174
        %v5321 = vpop.f32.mrf.mxu0
        %v5322 = vadd.f32 %v5309, %v5321
        %v5323 = vpop.f32.mrf.mxu0
        %5324 = vdwg.mxu0
        %5325 = vmatpush.bf16.msra.mxu0 %v3890
        %5326 = vmatpush.bf16.msra.mxu0 %v3878
        %5327 = vmatpush.bf16.msra.mxu0 %v3866
        %5328 = vmatpush.bf16.msra.mxu0 %v3854
        %5329 = vmatpush.bf16.msra.mxu0 %v3842
        %5330 = vmatpush.bf16.msra.mxu0 %v3830
        %5331 = vmatpush.bf16.msra.mxu0 %v3818
        %5332 = vmatpush.bf16.msra.mxu0 %v3806
        %5333 = vmatmul.bf16.gmra.mxu0 %v1175
        %v5334 = vpop.f32.mrf.mxu0
        %v5335 = vadd.f32 %v5322, %v5334
        %v5336 = vpop.f32.mrf.mxu0
        %5337 = vdwg.mxu0
        %5338 = vmatpush.bf16.msra.mxu0 %v3986
        %5339 = vmatpush.bf16.msra.mxu0 %v3974
        %5340 = vmatpush.bf16.msra.mxu0 %v3962
        %5341 = vmatpush.bf16.msra.mxu0 %v3950
        %5342 = vmatpush.bf16.msra.mxu0 %v3938
        %5343 = vmatpush.bf16.msra.mxu0 %v3926
        %5344 = vmatpush.bf16.msra.mxu0 %v3914
        %5345 = vmatpush.bf16.msra.mxu0 %v3902
        %5346 = vmatmul.bf16.gmra.mxu0 %v1176
        %v5347 = vpop.f32.mrf.mxu0
        %v5348 = vadd.f32 %v5335, %v5347
        %v5349 = vpop.f32.mrf.mxu0
        %5350 = vdwg.mxu0
        %5351 = vmatpush.bf16.msra.mxu0 %v4082
        %5352 = vmatpush.bf16.msra.mxu0 %v4070
        %5353 = vmatpush.bf16.msra.mxu0 %v4058
        %5354 = vmatpush.bf16.msra.mxu0 %v4046
        %5355 = vmatpush.bf16.msra.mxu0 %v4034
        %5356 = vmatpush.bf16.msra.mxu0 %v4022
        %5357 = vmatpush.bf16.msra.mxu0 %v4010
        %5358 = vmatpush.bf16.msra.mxu0 %v3998
        %5359 = vmatmul.bf16.gmra.mxu0 %v1177
        %v5360 = vpop.f32.mrf.mxu0
        %v5361 = vadd.f32 %v5348, %v5360
        %v5362 = vpop.f32.mrf.mxu0
        %5363 = vdwg.mxu0
        %5364 = vmatpush.bf16.msra.mxu0 %v3603
        %5365 = vmatpush.bf16.msra.mxu0 %v3591
        %5366 = vmatpush.bf16.msra.mxu0 %v3579
        %5367 = vmatpush.bf16.msra.mxu0 %v3567
        %5368 = vmatpush.bf16.msra.mxu0 %v3555
        %5369 = vmatpush.bf16.msra.mxu0 %v3543
        %5370 = vmatpush.bf16.msra.mxu0 %v3531
        %5371 = vmatpush.bf16.msra.mxu0 %v3519
        %5372 = vmatmul.bf16.gmra.mxu0 %v1172
        %v5373 = vpop.f32.mrf.mxu0
        %v5374 = vadd.f32 %v1767, %v5373
        %v5375 = vpop.f32.mrf.mxu0
        %5376 = vdwg.mxu0
        %5377 = vmatpush.bf16.msra.mxu0 %v3699
        %5378 = vmatpush.bf16.msra.mxu0 %v3687
        %5379 = vmatpush.bf16.msra.mxu0 %v3675
        %5380 = vmatpush.bf16.msra.mxu0 %v3663
        %5381 = vmatpush.bf16.msra.mxu0 %v3651
        %5382 = vmatpush.bf16.msra.mxu0 %v3639
        %5383 = vmatpush.bf16.msra.mxu0 %v3627
        %5384 = vmatpush.bf16.msra.mxu0 %v3615
        %5385 = vmatmul.bf16.gmra.mxu0 %v1173
        %v5386 = vpop.f32.mrf.mxu0
        %v5387 = vadd.f32 %v5374, %v5386
        %v5388 = vpop.f32.mrf.mxu0
        %5389 = vdwg.mxu0
        %5390 = vmatpush.bf16.msra.mxu0 %v3795
        %5391 = vmatpush.bf16.msra.mxu0 %v3783
        %5392 = vmatpush.bf16.msra.mxu0 %v3771
        %5393 = vmatpush.bf16.msra.mxu0 %v3759
        %5394 = vmatpush.bf16.msra.mxu0 %v3747
        %5395 = vmatpush.bf16.msra.mxu0 %v3735
        %5396 = vmatpush.bf16.msra.mxu0 %v3723
        %5397 = vmatpush.bf16.msra.mxu0 %v3711
        %5398 = vmatmul.bf16.gmra.mxu0 %v1174
        %v5399 = vpop.f32.mrf.mxu0
        %v5400 = vadd.f32 %v5387, %v5399
        %v5401 = vpop.f32.mrf.mxu0
        %5402 = vdwg.mxu0
        %5403 = vmatpush.bf16.msra.mxu0 %v3891
        %5404 = vmatpush.bf16.msra.mxu0 %v3879
        %5405 = vmatpush.bf16.msra.mxu0 %v3867
        %5406 = vmatpush.bf16.msra.mxu0 %v3855
        %5407 = vmatpush.bf16.msra.mxu0 %v3843
        %5408 = vmatpush.bf16.msra.mxu0 %v3831
        %5409 = vmatpush.bf16.msra.mxu0 %v3819
        %5410 = vmatpush.bf16.msra.mxu0 %v3807
        %5411 = vmatmul.bf16.gmra.mxu0 %v1175
        %v5412 = vpop.f32.mrf.mxu0
        %v5413 = vadd.f32 %v5400, %v5412
        %v5414 = vpop.f32.mrf.mxu0
        %5415 = vdwg.mxu0
        %5416 = vmatpush.bf16.msra.mxu0 %v3987
        %5417 = vmatpush.bf16.msra.mxu0 %v3975
        %5418 = vmatpush.bf16.msra.mxu0 %v3963
        %5419 = vmatpush.bf16.msra.mxu0 %v3951
        %5420 = vmatpush.bf16.msra.mxu0 %v3939
        %5421 = vmatpush.bf16.msra.mxu0 %v3927
        %5422 = vmatpush.bf16.msra.mxu0 %v3915
        %5423 = vmatpush.bf16.msra.mxu0 %v3903
        %5424 = vmatmul.bf16.gmra.mxu0 %v1176
        %v5425 = vpop.f32.mrf.mxu0
        %v5426 = vadd.f32 %v5413, %v5425
        %v5427 = vpop.f32.mrf.mxu0
        %5428 = vdwg.mxu0
        %5429 = vmatpush.bf16.msra.mxu0 %v4083
        %5430 = vmatpush.bf16.msra.mxu0 %v4071
        %5431 = vmatpush.bf16.msra.mxu0 %v4059
        %5432 = vmatpush.bf16.msra.mxu0 %v4047
        %5433 = vmatpush.bf16.msra.mxu0 %v4035
        %5434 = vmatpush.bf16.msra.mxu0 %v4023
        %5435 = vmatpush.bf16.msra.mxu0 %v4011
        %5436 = vmatpush.bf16.msra.mxu0 %v3999
        %5437 = vmatmul.bf16.gmra.mxu0 %v1177
        %v5438 = vpop.f32.mrf.mxu0
        %v5439 = vadd.f32 %v5426, %v5438
        %v5440 = vpop.f32.mrf.mxu0
        %5441 = vdwg.mxu0
        %5442 = vmatpush.bf16.msra.mxu0 %v3604
        %5443 = vmatpush.bf16.msra.mxu0 %v3592
        %5444 = vmatpush.bf16.msra.mxu0 %v3580
        %5445 = vmatpush.bf16.msra.mxu0 %v3568
        %5446 = vmatpush.bf16.msra.mxu0 %v3556
        %5447 = vmatpush.bf16.msra.mxu0 %v3544
        %5448 = vmatpush.bf16.msra.mxu0 %v3532
        %5449 = vmatpush.bf16.msra.mxu0 %v3520
        %5450 = vmatmul.bf16.gmra.mxu0 %v1172
        %v5451 = vpop.f32.mrf.mxu0
        %v5452 = vadd.f32 %v1768, %v5451
        %v5453 = vpop.f32.mrf.mxu0
        %5454 = vdwg.mxu0
        %5455 = vmatpush.bf16.msra.mxu0 %v3700
        %5456 = vmatpush.bf16.msra.mxu0 %v3688
        %5457 = vmatpush.bf16.msra.mxu0 %v3676
        %5458 = vmatpush.bf16.msra.mxu0 %v3664
        %5459 = vmatpush.bf16.msra.mxu0 %v3652
        %5460 = vmatpush.bf16.msra.mxu0 %v3640
        %5461 = vmatpush.bf16.msra.mxu0 %v3628
        %5462 = vmatpush.bf16.msra.mxu0 %v3616
        %5463 = vmatmul.bf16.gmra.mxu0 %v1173
        %v5464 = vpop.f32.mrf.mxu0
        %v5465 = vadd.f32 %v5452, %v5464
        %v5466 = vpop.f32.mrf.mxu0
        %5467 = vdwg.mxu0
        %5468 = vmatpush.bf16.msra.mxu0 %v3796
        %5469 = vmatpush.bf16.msra.mxu0 %v3784
        %5470 = vmatpush.bf16.msra.mxu0 %v3772
        %5471 = vmatpush.bf16.msra.mxu0 %v3760
        %5472 = vmatpush.bf16.msra.mxu0 %v3748
        %5473 = vmatpush.bf16.msra.mxu0 %v3736
        %5474 = vmatpush.bf16.msra.mxu0 %v3724
        %5475 = vmatpush.bf16.msra.mxu0 %v3712
        %5476 = vmatmul.bf16.gmra.mxu0 %v1174
        %v5477 = vpop.f32.mrf.mxu0
        %v5478 = vadd.f32 %v5465, %v5477
        %v5479 = vpop.f32.mrf.mxu0
        %5480 = vdwg.mxu0
        %5481 = vmatpush.bf16.msra.mxu0 %v3892
        %5482 = vmatpush.bf16.msra.mxu0 %v3880
        %5483 = vmatpush.bf16.msra.mxu0 %v3868
        %5484 = vmatpush.bf16.msra.mxu0 %v3856
        %5485 = vmatpush.bf16.msra.mxu0 %v3844
        %5486 = vmatpush.bf16.msra.mxu0 %v3832
        %5487 = vmatpush.bf16.msra.mxu0 %v3820
        %5488 = vmatpush.bf16.msra.mxu0 %v3808
        %5489 = vmatmul.bf16.gmra.mxu0 %v1175
        %v5490 = vpop.f32.mrf.mxu0
        %v5491 = vadd.f32 %v5478, %v5490
        %v5492 = vpop.f32.mrf.mxu0
        %5493 = vdwg.mxu0
        %5494 = vmatpush.bf16.msra.mxu0 %v3988
        %5495 = vmatpush.bf16.msra.mxu0 %v3976
        %5496 = vmatpush.bf16.msra.mxu0 %v3964
        %5497 = vmatpush.bf16.msra.mxu0 %v3952
        %5498 = vmatpush.bf16.msra.mxu0 %v3940
        %5499 = vmatpush.bf16.msra.mxu0 %v3928
        %5500 = vmatpush.bf16.msra.mxu0 %v3916
        %5501 = vmatpush.bf16.msra.mxu0 %v3904
        %5502 = vmatmul.bf16.gmra.mxu0 %v1176
        %v5503 = vpop.f32.mrf.mxu0
        %v5504 = vadd.f32 %v5491, %v5503
        %v5505 = vpop.f32.mrf.mxu0
        %5506 = vdwg.mxu0
        %5507 = vmatpush.bf16.msra.mxu0 %v4084
        %5508 = vmatpush.bf16.msra.mxu0 %v4072
        %5509 = vmatpush.bf16.msra.mxu0 %v4060
        %5510 = vmatpush.bf16.msra.mxu0 %v4048
        %5511 = vmatpush.bf16.msra.mxu0 %v4036
        %5512 = vmatpush.bf16.msra.mxu0 %v4024
        %5513 = vmatpush.bf16.msra.mxu0 %v4012
        %5514 = vmatpush.bf16.msra.mxu0 %v4000
        %5515 = vmatmul.bf16.gmra.mxu0 %v1177
        %v5516 = vpop.f32.mrf.mxu0
        %v5517 = vadd.f32 %v5504, %v5516
        %v5518 = vpop.f32.mrf.mxu0
        %5519 = vdwg.mxu0
        %5520 = vmatpush.bf16.msra.mxu0 %v3605
        %5521 = vmatpush.bf16.msra.mxu0 %v3593
        %5522 = vmatpush.bf16.msra.mxu0 %v3581
        %5523 = vmatpush.bf16.msra.mxu0 %v3569
        %5524 = vmatpush.bf16.msra.mxu0 %v3557
        %5525 = vmatpush.bf16.msra.mxu0 %v3545
        %5526 = vmatpush.bf16.msra.mxu0 %v3533
        %5527 = vmatpush.bf16.msra.mxu0 %v3521
        %5528 = vmatmul.bf16.gmra.mxu0 %v1172
        %v5529 = vpop.f32.mrf.mxu0
        %v5530 = vadd.f32 %v1769, %v5529
        %v5531 = vpop.f32.mrf.mxu0
        %5532 = vdwg.mxu0
        %5533 = vmatpush.bf16.msra.mxu0 %v3701
        %5534 = vmatpush.bf16.msra.mxu0 %v3689
        %5535 = vmatpush.bf16.msra.mxu0 %v3677
        %5536 = vmatpush.bf16.msra.mxu0 %v3665
        %5537 = vmatpush.bf16.msra.mxu0 %v3653
        %5538 = vmatpush.bf16.msra.mxu0 %v3641
        %5539 = vmatpush.bf16.msra.mxu0 %v3629
        %5540 = vmatpush.bf16.msra.mxu0 %v3617
        %5541 = vmatmul.bf16.gmra.mxu0 %v1173
        %v5542 = vpop.f32.mrf.mxu0
        %v5543 = vadd.f32 %v5530, %v5542
        %v5544 = vpop.f32.mrf.mxu0
        %5545 = vdwg.mxu0
        %5546 = vmatpush.bf16.msra.mxu0 %v3797
        %5547 = vmatpush.bf16.msra.mxu0 %v3785
        %5548 = vmatpush.bf16.msra.mxu0 %v3773
        %5549 = vmatpush.bf16.msra.mxu0 %v3761
        %5550 = vmatpush.bf16.msra.mxu0 %v3749
        %5551 = vmatpush.bf16.msra.mxu0 %v3737
        %5552 = vmatpush.bf16.msra.mxu0 %v3725
        %5553 = vmatpush.bf16.msra.mxu0 %v3713
        %5554 = vmatmul.bf16.gmra.mxu0 %v1174
        %v5555 = vpop.f32.mrf.mxu0
        %v5556 = vadd.f32 %v5543, %v5555
        %v5557 = vpop.f32.mrf.mxu0
        %5558 = vdwg.mxu0
        %5559 = vmatpush.bf16.msra.mxu0 %v3893
        %5560 = vmatpush.bf16.msra.mxu0 %v3881
        %5561 = vmatpush.bf16.msra.mxu0 %v3869
        %5562 = vmatpush.bf16.msra.mxu0 %v3857
        %5563 = vmatpush.bf16.msra.mxu0 %v3845
        %5564 = vmatpush.bf16.msra.mxu0 %v3833
        %5565 = vmatpush.bf16.msra.mxu0 %v3821
        %5566 = vmatpush.bf16.msra.mxu0 %v3809
        %5567 = vmatmul.bf16.gmra.mxu0 %v1175
        %v5568 = vpop.f32.mrf.mxu0
        %v5569 = vadd.f32 %v5556, %v5568
        %v5570 = vpop.f32.mrf.mxu0
        %5571 = vdwg.mxu0
        %5572 = vmatpush.bf16.msra.mxu0 %v3989
        %5573 = vmatpush.bf16.msra.mxu0 %v3977
        %5574 = vmatpush.bf16.msra.mxu0 %v3965
        %5575 = vmatpush.bf16.msra.mxu0 %v3953
        %5576 = vmatpush.bf16.msra.mxu0 %v3941
        %5577 = vmatpush.bf16.msra.mxu0 %v3929
        %5578 = vmatpush.bf16.msra.mxu0 %v3917
        %5579 = vmatpush.bf16.msra.mxu0 %v3905
        %5580 = vmatmul.bf16.gmra.mxu0 %v1176
        %v5581 = vpop.f32.mrf.mxu0
        %v5582 = vadd.f32 %v5569, %v5581
        %v5583 = vpop.f32.mrf.mxu0
        %5584 = vdwg.mxu0
        %5585 = vmatpush.bf16.msra.mxu0 %v4085
        %5586 = vmatpush.bf16.msra.mxu0 %v4073
        %5587 = vmatpush.bf16.msra.mxu0 %v4061
        %5588 = vmatpush.bf16.msra.mxu0 %v4049
        %5589 = vmatpush.bf16.msra.mxu0 %v4037
        %5590 = vmatpush.bf16.msra.mxu0 %v4025
        %5591 = vmatpush.bf16.msra.mxu0 %v4013
        %5592 = vmatpush.bf16.msra.mxu0 %v4001
        %5593 = vmatmul.bf16.gmra.mxu0 %v1177
        %v5594 = vpop.f32.mrf.mxu0
        %v5595 = vadd.f32 %v5582, %v5594
        %v5596 = vpop.f32.mrf.mxu0
        %5597 = vdwg.mxu0
        %v5598 = vmax.f32 %v4737, 0.0
        %v5599 = vmax.f32 %v4815, 0.0
        %v5600 = vmax.f32 %v4893, 0.0
        %v5601 = vmax.f32 %v4971, 0.0
        %v5602 = vmax.f32 %v5049, 0.0
        %v5603 = vmax.f32 %v5127, 0.0
        %v5604 = vmax.f32 %v5205, 0.0
        %v5605 = vmax.f32 %v5283, 0.0
        %v5606 = vmax.f32 %v5361, 0.0
        %v5607 = vmax.f32 %v5439, 0.0
        %v5608 = vmax.f32 %v5517, 0.0
        %v5609 = vmax.f32 %v5595, 0.0
        %v5610 = vld [vmem:[#allocation2] sm:$0x3]
        %v5611 = vlaneseq
        %v5612 = vand.u32 %v5611, 127
        %v5613 = vadd.s32 %v5612, 128
        %v5614 = vadd.s32 %v5612, 256
        %v5615 = vadd.s32 %v5612, 384
        %v5616 = vadd.s32 %v5612, 512
        %v5617 = vadd.s32 %v5612, 640
        %v5618 = vadd.s32 %v5612, 768
        %v5619 = vadd.s32 %v5612, 896
        %v5620 = vadd.s32 %v5612, 1024
        %v5621 = vadd.s32 %v5612, 1152
        %v5622 = vadd.s32 %v5612, 1280
        %v5623 = vadd.s32 %v5612, 1408
        %s5624 = smul.u32 %s39, 8
        %v5625 = vstv %s5624
        %vm5626 = vcmp.eq.s32.totalorder %v5612, %v5625
        %v5627 = vsel %vm5626, %v5610, 0.0
        %vm5628 = vcmask 123904
        %v5629 = vsel %vm5628, %v5627, 0.0
        %5630 = vadd.xlane.f32.xlu0 %v5629
        %v5631 = vpop.xlane.xlu0 %5630
        %vm5632 = vcmp.ge.s32.totalorder %v5612, 0
        %vm5633 = vcmp.ge.s32.totalorder %v5613, 0
        %vm5634 = vcmp.ge.s32.totalorder %v5614, 0
        %vm5635 = vcmp.ge.s32.totalorder %v5615, 0
        %vm5636 = vcmp.ge.s32.totalorder %v5616, 0
        %vm5637 = vcmp.ge.s32.totalorder %v5617, 0
        %vm5638 = vcmp.ge.s32.totalorder %v5618, 0
        %vm5639 = vcmp.ge.s32.totalorder %v5619, 0
        %vm5640 = vcmp.ge.s32.totalorder %v5620, 0
        %vm5641 = vcmp.ge.s32.totalorder %v5621, 0
        %vm5642 = vcmp.ge.s32.totalorder %v5622, 0
        %vm5643 = vcmp.ge.s32.totalorder %v5623, 0
        %vm5644 = vcmp.lt.s32.totalorder %v5612, 192
        %vm5645 = vcmp.lt.s32.totalorder %v5613, 192
        %vm5646 = vcmp.lt.s32.totalorder %v5614, 192
        %vm5647 = vcmp.lt.s32.totalorder %v5615, 192
        %vm5648 = vcmp.lt.s32.totalorder %v5616, 192
        %vm5649 = vcmp.lt.s32.totalorder %v5617, 192
        %vm5650 = vcmp.lt.s32.totalorder %v5618, 192
        %vm5651 = vcmp.lt.s32.totalorder %v5619, 192
        %vm5652 = vcmp.lt.s32.totalorder %v5620, 192
        %vm5653 = vcmp.lt.s32.totalorder %v5621, 192
        %vm5654 = vcmp.lt.s32.totalorder %v5622, 192
        %vm5655 = vcmp.lt.s32.totalorder %v5623, 192
        %vm5656 = vmand %vm5632, %vm5644
        %vm5657 = vmand %vm5633, %vm5645
        %vm5658 = vmand %vm5634, %vm5646
        %vm5659 = vmand %vm5635, %vm5647
        %vm5660 = vmand %vm5636, %vm5648
        %vm5661 = vmand %vm5637, %vm5649
        %vm5662 = vmand %vm5638, %vm5650
        %vm5663 = vmand %vm5639, %vm5651
        %vm5664 = vmand %vm5640, %vm5652
        %vm5665 = vmand %vm5641, %vm5653
        %vm5666 = vmand %vm5642, %vm5654
        %vm5667 = vmand %vm5643, %vm5655
        %v5668 = vsel %vm5656, %v5631, 0.0
        %v5669 = vsel %vm5657, %v5631, 0.0
        %v5670 = vsel %vm5658, %v5631, 0.0
        %v5671 = vsel %vm5659, %v5631, 0.0
        %v5672 = vsel %vm5660, %v5631, 0.0
        %v5673 = vsel %vm5661, %v5631, 0.0
        %v5674 = vsel %vm5662, %v5631, 0.0
        %v5675 = vsel %vm5663, %v5631, 0.0
        %v5676 = vsel %vm5664, %v5631, 0.0
        %v5677 = vsel %vm5665, %v5631, 0.0
        %v5678 = vsel %vm5666, %v5631, 0.0
        %v5679 = vsel %vm5667, %v5631, 0.0
        %s5680 = sadd.s32 %s5624, 1
        %v5681 = vstv %s5680
        %vm5682 = vcmp.eq.s32.totalorder %v5612, %v5681
        %v5683 = vsel %vm5682, %v5610, 0.0
        %v5684 = vsel %vm5628, %v5683, 0.0
        %5685 = vadd.xlane.f32.xlu0 %v5684
        %v5686 = vpop.xlane.xlu0 %5685
        %vm5687 = vcmp.ge.s32.totalorder %v5612, 192
        %vm5688 = vcmp.ge.s32.totalorder %v5613, 192
        %vm5689 = vcmp.ge.s32.totalorder %v5614, 192
        %vm5690 = vcmp.ge.s32.totalorder %v5615, 192
        %vm5691 = vcmp.ge.s32.totalorder %v5616, 192
        %vm5692 = vcmp.ge.s32.totalorder %v5617, 192
        %vm5693 = vcmp.ge.s32.totalorder %v5618, 192
        %vm5694 = vcmp.ge.s32.totalorder %v5619, 192
        %vm5695 = vcmp.ge.s32.totalorder %v5620, 192
        %vm5696 = vcmp.ge.s32.totalorder %v5621, 192
        %vm5697 = vcmp.ge.s32.totalorder %v5622, 192
        %vm5698 = vcmp.ge.s32.totalorder %v5623, 192
        %vm5699 = vcmp.lt.s32.totalorder %v5612, 384
        %vm5700 = vcmp.lt.s32.totalorder %v5613, 384
        %vm5701 = vcmp.lt.s32.totalorder %v5614, 384
        %vm5702 = vcmp.lt.s32.totalorder %v5615, 384
        %vm5703 = vcmp.lt.s32.totalorder %v5616, 384
        %vm5704 = vcmp.lt.s32.totalorder %v5617, 384
        %vm5705 = vcmp.lt.s32.totalorder %v5618, 384
        %vm5706 = vcmp.lt.s32.totalorder %v5619, 384
        %vm5707 = vcmp.lt.s32.totalorder %v5620, 384
        %vm5708 = vcmp.lt.s32.totalorder %v5621, 384
        %vm5709 = vcmp.lt.s32.totalorder %v5622, 384
        %vm5710 = vcmp.lt.s32.totalorder %v5623, 384
        %vm5711 = vmand %vm5687, %vm5699
        %vm5712 = vmand %vm5688, %vm5700
        %vm5713 = vmand %vm5689, %vm5701
        %vm5714 = vmand %vm5690, %vm5702
        %vm5715 = vmand %vm5691, %vm5703
        %vm5716 = vmand %vm5692, %vm5704
        %vm5717 = vmand %vm5693, %vm5705
        %vm5718 = vmand %vm5694, %vm5706
        %vm5719 = vmand %vm5695, %vm5707
        %vm5720 = vmand %vm5696, %vm5708
        %vm5721 = vmand %vm5697, %vm5709
        %vm5722 = vmand %vm5698, %vm5710
        %v5723 = vsel %vm5711, %v5686, %v5668
        %v5724 = vsel %vm5712, %v5686, %v5669
        %v5725 = vsel %vm5713, %v5686, %v5670
        %v5726 = vsel %vm5714, %v5686, %v5671
        %v5727 = vsel %vm5715, %v5686, %v5672
        %v5728 = vsel %vm5716, %v5686, %v5673
        %v5729 = vsel %vm5717, %v5686, %v5674
        %v5730 = vsel %vm5718, %v5686, %v5675
        %v5731 = vsel %vm5719, %v5686, %v5676
        %v5732 = vsel %vm5720, %v5686, %v5677
        %v5733 = vsel %vm5721, %v5686, %v5678
        %v5734 = vsel %vm5722, %v5686, %v5679
        %s5735 = sadd.s32 %s5624, 2
        %v5736 = vstv %s5735
        %vm5737 = vcmp.eq.s32.totalorder %v5612, %v5736
        %v5738 = vsel %vm5737, %v5610, 0.0
        %v5739 = vsel %vm5628, %v5738, 0.0
        %5740 = vadd.xlane.f32.xlu0 %v5739
        %v5741 = vpop.xlane.xlu0 %5740
        %vm5742 = vcmp.ge.s32.totalorder %v5612, 384
        %vm5743 = vcmp.ge.s32.totalorder %v5613, 384
        %vm5744 = vcmp.ge.s32.totalorder %v5614, 384
        %vm5745 = vcmp.ge.s32.totalorder %v5615, 384
        %vm5746 = vcmp.ge.s32.totalorder %v5616, 384
        %vm5747 = vcmp.ge.s32.totalorder %v5617, 384
        %vm5748 = vcmp.ge.s32.totalorder %v5618, 384
        %vm5749 = vcmp.ge.s32.totalorder %v5619, 384
        %vm5750 = vcmp.ge.s32.totalorder %v5620, 384
        %vm5751 = vcmp.ge.s32.totalorder %v5621, 384
        %vm5752 = vcmp.ge.s32.totalorder %v5622, 384
        %vm5753 = vcmp.ge.s32.totalorder %v5623, 384
        %vm5754 = vcmp.lt.s32.totalorder %v5612, 576
        %vm5755 = vcmp.lt.s32.totalorder %v5613, 576
        %vm5756 = vcmp.lt.s32.totalorder %v5614, 576
        %vm5757 = vcmp.lt.s32.totalorder %v5615, 576
        %vm5758 = vcmp.lt.s32.totalorder %v5616, 576
        %vm5759 = vcmp.lt.s32.totalorder %v5617, 576
        %vm5760 = vcmp.lt.s32.totalorder %v5618, 576
        %vm5761 = vcmp.lt.s32.totalorder %v5619, 576
        %vm5762 = vcmp.lt.s32.totalorder %v5620, 576
        %vm5763 = vcmp.lt.s32.totalorder %v5621, 576
        %vm5764 = vcmp.lt.s32.totalorder %v5622, 576
        %vm5765 = vcmp.lt.s32.totalorder %v5623, 576
        %vm5766 = vmand %vm5742, %vm5754
        %vm5767 = vmand %vm5743, %vm5755
        %vm5768 = vmand %vm5744, %vm5756
        %vm5769 = vmand %vm5745, %vm5757
        %vm5770 = vmand %vm5746, %vm5758
        %vm5771 = vmand %vm5747, %vm5759
        %vm5772 = vmand %vm5748, %vm5760
        %vm5773 = vmand %vm5749, %vm5761
        %vm5774 = vmand %vm5750, %vm5762
        %vm5775 = vmand %vm5751, %vm5763
        %vm5776 = vmand %vm5752, %vm5764
        %vm5777 = vmand %vm5753, %vm5765
        %v5778 = vsel %vm5766, %v5741, %v5723
        %v5779 = vsel %vm5767, %v5741, %v5724
        %v5780 = vsel %vm5768, %v5741, %v5725
        %v5781 = vsel %vm5769, %v5741, %v5726
        %v5782 = vsel %vm5770, %v5741, %v5727
        %v5783 = vsel %vm5771, %v5741, %v5728
        %v5784 = vsel %vm5772, %v5741, %v5729
        %v5785 = vsel %vm5773, %v5741, %v5730
        %v5786 = vsel %vm5774, %v5741, %v5731
        %v5787 = vsel %vm5775, %v5741, %v5732
        %v5788 = vsel %vm5776, %v5741, %v5733
        %v5789 = vsel %vm5777, %v5741, %v5734
        %s5790 = sadd.s32 %s5624, 3
        %v5791 = vstv %s5790
        %vm5792 = vcmp.eq.s32.totalorder %v5612, %v5791
        %v5793 = vsel %vm5792, %v5610, 0.0
        %v5794 = vsel %vm5628, %v5793, 0.0
        %5795 = vadd.xlane.f32.xlu0 %v5794
        %v5796 = vpop.xlane.xlu0 %5795
        %vm5797 = vcmp.ge.s32.totalorder %v5612, 576
        %vm5798 = vcmp.ge.s32.totalorder %v5613, 576
        %vm5799 = vcmp.ge.s32.totalorder %v5614, 576
        %vm5800 = vcmp.ge.s32.totalorder %v5615, 576
        %vm5801 = vcmp.ge.s32.totalorder %v5616, 576
        %vm5802 = vcmp.ge.s32.totalorder %v5617, 576
        %vm5803 = vcmp.ge.s32.totalorder %v5618, 576
        %vm5804 = vcmp.ge.s32.totalorder %v5619, 576
        %vm5805 = vcmp.ge.s32.totalorder %v5620, 576
        %vm5806 = vcmp.ge.s32.totalorder %v5621, 576
        %vm5807 = vcmp.ge.s32.totalorder %v5622, 576
        %vm5808 = vcmp.ge.s32.totalorder %v5623, 576
        %vm5809 = vcmp.lt.s32.totalorder %v5612, 768
        %vm5810 = vcmp.lt.s32.totalorder %v5613, 768
        %vm5811 = vcmp.lt.s32.totalorder %v5614, 768
        %vm5812 = vcmp.lt.s32.totalorder %v5615, 768
        %vm5813 = vcmp.lt.s32.totalorder %v5616, 768
        %vm5814 = vcmp.lt.s32.totalorder %v5617, 768
        %vm5815 = vcmp.lt.s32.totalorder %v5618, 768
        %vm5816 = vcmp.lt.s32.totalorder %v5619, 768
        %vm5817 = vcmp.lt.s32.totalorder %v5620, 768
        %vm5818 = vcmp.lt.s32.totalorder %v5621, 768
        %vm5819 = vcmp.lt.s32.totalorder %v5622, 768
        %vm5820 = vcmp.lt.s32.totalorder %v5623, 768
        %vm5821 = vmand %vm5797, %vm5809
        %vm5822 = vmand %vm5798, %vm5810
        %vm5823 = vmand %vm5799, %vm5811
        %vm5824 = vmand %vm5800, %vm5812
        %vm5825 = vmand %vm5801, %vm5813
        %vm5826 = vmand %vm5802, %vm5814
        %vm5827 = vmand %vm5803, %vm5815
        %vm5828 = vmand %vm5804, %vm5816
        %vm5829 = vmand %vm5805, %vm5817
        %vm5830 = vmand %vm5806, %vm5818
        %vm5831 = vmand %vm5807, %vm5819
        %vm5832 = vmand %vm5808, %vm5820
        %v5833 = vsel %vm5821, %v5796, %v5778
        %v5834 = vsel %vm5822, %v5796, %v5779
        %v5835 = vsel %vm5823, %v5796, %v5780
        %v5836 = vsel %vm5824, %v5796, %v5781
        %v5837 = vsel %vm5825, %v5796, %v5782
        %v5838 = vsel %vm5826, %v5796, %v5783
        %v5839 = vsel %vm5827, %v5796, %v5784
        %v5840 = vsel %vm5828, %v5796, %v5785
        %v5841 = vsel %vm5829, %v5796, %v5786
        %v5842 = vsel %vm5830, %v5796, %v5787
        %v5843 = vsel %vm5831, %v5796, %v5788
        %v5844 = vsel %vm5832, %v5796, %v5789
        %s5845 = sadd.s32 %s5624, 4
        %v5846 = vstv %s5845
        %vm5847 = vcmp.eq.s32.totalorder %v5612, %v5846
        %v5848 = vsel %vm5847, %v5610, 0.0
        %v5849 = vsel %vm5628, %v5848, 0.0
        %5850 = vadd.xlane.f32.xlu0 %v5849
        %v5851 = vpop.xlane.xlu0 %5850
        %vm5852 = vcmp.ge.s32.totalorder %v5612, 768
        %vm5853 = vcmp.ge.s32.totalorder %v5613, 768
        %vm5854 = vcmp.ge.s32.totalorder %v5614, 768
        %vm5855 = vcmp.ge.s32.totalorder %v5615, 768
        %vm5856 = vcmp.ge.s32.totalorder %v5616, 768
        %vm5857 = vcmp.ge.s32.totalorder %v5617, 768
        %vm5858 = vcmp.ge.s32.totalorder %v5618, 768
        %vm5859 = vcmp.ge.s32.totalorder %v5619, 768
        %vm5860 = vcmp.ge.s32.totalorder %v5620, 768
        %vm5861 = vcmp.ge.s32.totalorder %v5621, 768
        %vm5862 = vcmp.ge.s32.totalorder %v5622, 768
        %vm5863 = vcmp.ge.s32.totalorder %v5623, 768
        %vm5864 = vcmp.lt.s32.totalorder %v5612, 960
        %vm5865 = vcmp.lt.s32.totalorder %v5613, 960
        %vm5866 = vcmp.lt.s32.totalorder %v5614, 960
        %vm5867 = vcmp.lt.s32.totalorder %v5615, 960
        %vm5868 = vcmp.lt.s32.totalorder %v5616, 960
        %vm5869 = vcmp.lt.s32.totalorder %v5617, 960
        %vm5870 = vcmp.lt.s32.totalorder %v5618, 960
        %vm5871 = vcmp.lt.s32.totalorder %v5619, 960
        %vm5872 = vcmp.lt.s32.totalorder %v5620, 960
        %vm5873 = vcmp.lt.s32.totalorder %v5621, 960
        %vm5874 = vcmp.lt.s32.totalorder %v5622, 960
        %vm5875 = vcmp.lt.s32.totalorder %v5623, 960
        %vm5876 = vmand %vm5852, %vm5864
        %vm5877 = vmand %vm5853, %vm5865
        %vm5878 = vmand %vm5854, %vm5866
        %vm5879 = vmand %vm5855, %vm5867
        %vm5880 = vmand %vm5856, %vm5868
        %vm5881 = vmand %vm5857, %vm5869
        %vm5882 = vmand %vm5858, %vm5870
        %vm5883 = vmand %vm5859, %vm5871
        %vm5884 = vmand %vm5860, %vm5872
        %vm5885 = vmand %vm5861, %vm5873
        %vm5886 = vmand %vm5862, %vm5874
        %vm5887 = vmand %vm5863, %vm5875
        %v5888 = vsel %vm5876, %v5851, %v5833
        %v5889 = vsel %vm5877, %v5851, %v5834
        %v5890 = vsel %vm5878, %v5851, %v5835
        %v5891 = vsel %vm5879, %v5851, %v5836
        %v5892 = vsel %vm5880, %v5851, %v5837
        %v5893 = vsel %vm5881, %v5851, %v5838
        %v5894 = vsel %vm5882, %v5851, %v5839
        %v5895 = vsel %vm5883, %v5851, %v5840
        %v5896 = vsel %vm5884, %v5851, %v5841
        %v5897 = vsel %vm5885, %v5851, %v5842
        %v5898 = vsel %vm5886, %v5851, %v5843
        %v5899 = vsel %vm5887, %v5851, %v5844
        %s5900 = sadd.s32 %s5624, 5
        %v5901 = vstv %s5900
        %vm5902 = vcmp.eq.s32.totalorder %v5612, %v5901
        %v5903 = vsel %vm5902, %v5610, 0.0
        %v5904 = vsel %vm5628, %v5903, 0.0
        %5905 = vadd.xlane.f32.xlu0 %v5904
        %v5906 = vpop.xlane.xlu0 %5905
        %vm5907 = vcmp.ge.s32.totalorder %v5612, 960
        %vm5908 = vcmp.ge.s32.totalorder %v5613, 960
        %vm5909 = vcmp.ge.s32.totalorder %v5614, 960
        %vm5910 = vcmp.ge.s32.totalorder %v5615, 960
        %vm5911 = vcmp.ge.s32.totalorder %v5616, 960
        %vm5912 = vcmp.ge.s32.totalorder %v5617, 960
        %vm5913 = vcmp.ge.s32.totalorder %v5618, 960
        %vm5914 = vcmp.ge.s32.totalorder %v5619, 960
        %vm5915 = vcmp.ge.s32.totalorder %v5620, 960
        %vm5916 = vcmp.ge.s32.totalorder %v5621, 960
        %vm5917 = vcmp.ge.s32.totalorder %v5622, 960
        %vm5918 = vcmp.ge.s32.totalorder %v5623, 960
        %vm5919 = vcmp.lt.s32.totalorder %v5612, 1152
        %vm5920 = vcmp.lt.s32.totalorder %v5613, 1152
        %vm5921 = vcmp.lt.s32.totalorder %v5614, 1152
        %vm5922 = vcmp.lt.s32.totalorder %v5615, 1152
        %vm5923 = vcmp.lt.s32.totalorder %v5616, 1152
        %vm5924 = vcmp.lt.s32.totalorder %v5617, 1152
        %vm5925 = vcmp.lt.s32.totalorder %v5618, 1152
        %vm5926 = vcmp.lt.s32.totalorder %v5619, 1152
        %vm5927 = vcmp.lt.s32.totalorder %v5620, 1152
        %vm5928 = vcmp.lt.s32.totalorder %v5621, 1152
        %vm5929 = vcmp.lt.s32.totalorder %v5622, 1152
        %vm5930 = vcmp.lt.s32.totalorder %v5623, 1152
        %vm5931 = vmand %vm5907, %vm5919
        %vm5932 = vmand %vm5908, %vm5920
        %vm5933 = vmand %vm5909, %vm5921
        %vm5934 = vmand %vm5910, %vm5922
        %vm5935 = vmand %vm5911, %vm5923
        %vm5936 = vmand %vm5912, %vm5924
        %vm5937 = vmand %vm5913, %vm5925
        %vm5938 = vmand %vm5914, %vm5926
        %vm5939 = vmand %vm5915, %vm5927
        %vm5940 = vmand %vm5916, %vm5928
        %vm5941 = vmand %vm5917, %vm5929
        %vm5942 = vmand %vm5918, %vm5930
        %v5943 = vsel %vm5931, %v5906, %v5888
        %v5944 = vsel %vm5932, %v5906, %v5889
        %v5945 = vsel %vm5933, %v5906, %v5890
        %v5946 = vsel %vm5934, %v5906, %v5891
        %v5947 = vsel %vm5935, %v5906, %v5892
        %v5948 = vsel %vm5936, %v5906, %v5893
        %v5949 = vsel %vm5937, %v5906, %v5894
        %v5950 = vsel %vm5938, %v5906, %v5895
        %v5951 = vsel %vm5939, %v5906, %v5896
        %v5952 = vsel %vm5940, %v5906, %v5897
        %v5953 = vsel %vm5941, %v5906, %v5898
        %v5954 = vsel %vm5942, %v5906, %v5899
        %s5955 = sadd.s32 %s5624, 6
        %v5956 = vstv %s5955
        %vm5957 = vcmp.eq.s32.totalorder %v5612, %v5956
        %v5958 = vsel %vm5957, %v5610, 0.0
        %v5959 = vsel %vm5628, %v5958, 0.0
        %5960 = vadd.xlane.f32.xlu0 %v5959
        %v5961 = vpop.xlane.xlu0 %5960
        %vm5962 = vcmp.ge.s32.totalorder %v5612, 1152
        %vm5963 = vcmp.ge.s32.totalorder %v5613, 1152
        %vm5964 = vcmp.ge.s32.totalorder %v5614, 1152
        %vm5965 = vcmp.ge.s32.totalorder %v5615, 1152
        %vm5966 = vcmp.ge.s32.totalorder %v5616, 1152
        %vm5967 = vcmp.ge.s32.totalorder %v5617, 1152
        %vm5968 = vcmp.ge.s32.totalorder %v5618, 1152
        %vm5969 = vcmp.ge.s32.totalorder %v5619, 1152
        %vm5970 = vcmp.ge.s32.totalorder %v5620, 1152
        %vm5971 = vcmp.ge.s32.totalorder %v5621, 1152
        %vm5972 = vcmp.ge.s32.totalorder %v5622, 1152
        %vm5973 = vcmp.ge.s32.totalorder %v5623, 1152
        %vm5974 = vcmp.lt.s32.totalorder %v5612, 1344
        %vm5975 = vcmp.lt.s32.totalorder %v5613, 1344
        %vm5976 = vcmp.lt.s32.totalorder %v5614, 1344
        %vm5977 = vcmp.lt.s32.totalorder %v5615, 1344
        %vm5978 = vcmp.lt.s32.totalorder %v5616, 1344
        %vm5979 = vcmp.lt.s32.totalorder %v5617, 1344
        %vm5980 = vcmp.lt.s32.totalorder %v5618, 1344
        %vm5981 = vcmp.lt.s32.totalorder %v5619, 1344
        %vm5982 = vcmp.lt.s32.totalorder %v5620, 1344
        %vm5983 = vcmp.lt.s32.totalorder %v5621, 1344
        %vm5984 = vcmp.lt.s32.totalorder %v5622, 1344
        %vm5985 = vcmp.lt.s32.totalorder %v5623, 1344
        %vm5986 = vmand %vm5962, %vm5974
        %vm5987 = vmand %vm5963, %vm5975
        %vm5988 = vmand %vm5964, %vm5976
        %vm5989 = vmand %vm5965, %vm5977
        %vm5990 = vmand %vm5966, %vm5978
        %vm5991 = vmand %vm5967, %vm5979
        %vm5992 = vmand %vm5968, %vm5980
        %vm5993 = vmand %vm5969, %vm5981
        %vm5994 = vmand %vm5970, %vm5982
        %vm5995 = vmand %vm5971, %vm5983
        %vm5996 = vmand %vm5972, %vm5984
        %vm5997 = vmand %vm5973, %vm5985
        %v5998 = vsel %vm5986, %v5961, %v5943
        %v5999 = vsel %vm5987, %v5961, %v5944
        %v6000 = vsel %vm5988, %v5961, %v5945
        %v6001 = vsel %vm5989, %v5961, %v5946
        %v6002 = vsel %vm5990, %v5961, %v5947
        %v6003 = vsel %vm5991, %v5961, %v5948
        %v6004 = vsel %vm5992, %v5961, %v5949
        %v6005 = vsel %vm5993, %v5961, %v5950
        %v6006 = vsel %vm5994, %v5961, %v5951
        %v6007 = vsel %vm5995, %v5961, %v5952
        %v6008 = vsel %vm5996, %v5961, %v5953
        %v6009 = vsel %vm5997, %v5961, %v5954
        %s6010 = sadd.s32 %s5624, 7
        %v6011 = vstv %s6010
        %vm6012 = vcmp.eq.s32.totalorder %v5612, %v6011
        %v6013 = vsel %vm6012, %v5610, 0.0
        %v6014 = vsel %vm5628, %v6013, 0.0
        %6015 = vadd.xlane.f32.xlu0 %v6014
        %v6016 = vpop.xlane.xlu0 %6015
        %vm6017 = vcmp.ge.s32.totalorder %v5612, 1344
        %vm6018 = vcmp.ge.s32.totalorder %v5613, 1344
        %vm6019 = vcmp.ge.s32.totalorder %v5614, 1344
        %vm6020 = vcmp.ge.s32.totalorder %v5615, 1344
        %vm6021 = vcmp.ge.s32.totalorder %v5616, 1344
        %vm6022 = vcmp.ge.s32.totalorder %v5617, 1344
        %vm6023 = vcmp.ge.s32.totalorder %v5618, 1344
        %vm6024 = vcmp.ge.s32.totalorder %v5619, 1344
        %vm6025 = vcmp.ge.s32.totalorder %v5620, 1344
        %vm6026 = vcmp.ge.s32.totalorder %v5621, 1344
        %vm6027 = vcmp.ge.s32.totalorder %v5622, 1344
        %vm6028 = vcmp.ge.s32.totalorder %v5623, 1344
        %vm6029 = vcmp.lt.s32.totalorder %v5612, 1536
        %vm6030 = vcmp.lt.s32.totalorder %v5613, 1536
        %vm6031 = vcmp.lt.s32.totalorder %v5614, 1536
        %vm6032 = vcmp.lt.s32.totalorder %v5615, 1536
        %vm6033 = vcmp.lt.s32.totalorder %v5616, 1536
        %vm6034 = vcmp.lt.s32.totalorder %v5617, 1536
        %vm6035 = vcmp.lt.s32.totalorder %v5618, 1536
        %vm6036 = vcmp.lt.s32.totalorder %v5619, 1536
        %vm6037 = vcmp.lt.s32.totalorder %v5620, 1536
        %vm6038 = vcmp.lt.s32.totalorder %v5621, 1536
        %vm6039 = vcmp.lt.s32.totalorder %v5622, 1536
        %vm6040 = vcmp.lt.s32.totalorder %v5623, 1536
        %vm6041 = vmand %vm6017, %vm6029
        %vm6042 = vmand %vm6018, %vm6030
        %vm6043 = vmand %vm6019, %vm6031
        %vm6044 = vmand %vm6020, %vm6032
        %vm6045 = vmand %vm6021, %vm6033
        %vm6046 = vmand %vm6022, %vm6034
        %vm6047 = vmand %vm6023, %vm6035
        %vm6048 = vmand %vm6024, %vm6036
        %vm6049 = vmand %vm6025, %vm6037
        %vm6050 = vmand %vm6026, %vm6038
        %vm6051 = vmand %vm6027, %vm6039
        %vm6052 = vmand %vm6028, %vm6040
        %v6053 = vsel %vm6041, %v6016, %v5998
        %v6054 = vsel %vm6042, %v6016, %v5999
        %v6055 = vsel %vm6043, %v6016, %v6000
        %v6056 = vsel %vm6044, %v6016, %v6001
        %v6057 = vsel %vm6045, %v6016, %v6002
        %v6058 = vsel %vm6046, %v6016, %v6003
        %v6059 = vsel %vm6047, %v6016, %v6004
        %v6060 = vsel %vm6048, %v6016, %v6005
        %v6061 = vsel %vm6049, %v6016, %v6006
        %v6062 = vsel %vm6050, %v6016, %v6007
        %v6063 = vsel %vm6051, %v6016, %v6008
        %v6064 = vsel %vm6052, %v6016, %v6009
        %v6065 = vld [vmem:[#allocation3] sm:$0xff]
        %v6066 = vld [vmem:[#allocation3 + $0x8] sm:$0xf]
        %v6067 = vmul.f32 %v5598, %v6053
        %v6068 = vmul.f32 %v5599, %v6054
        %v6069 = vmul.f32 %v5600, %v6055
        %v6070 = vmul.f32 %v5601, %v6056
        %v6071 = vmul.f32 %v5602, %v6057
        %v6072 = vmul.f32 %v5603, %v6058
        %v6073 = vmul.f32 %v5604, %v6059
        %v6074 = vmul.f32 %v5605, %v6060
        %v6075 = vmul.f32 %v5606, %v6061
        %v6076 = vmul.f32 %v5607, %v6062
        %v6077 = vmul.f32 %v5608, %v6063
        %v6078 = vmul.f32 %v5609, %v6064
        %v6079 = vpack.c.bf16 %v6067, %v6067
        %v6080 = vpack.c.bf16 %v6068, %v6068
        %v6081 = vpack.c.bf16 %v6069, %v6069
        %v6082 = vpack.c.bf16 %v6070, %v6070
        %v6083 = vpack.c.bf16 %v6071, %v6071
        %v6084 = vpack.c.bf16 %v6072, %v6072
        %v6085 = vpack.c.bf16 %v6073, %v6073
        %v6086 = vpack.c.bf16 %v6074, %v6074
        %v6087 = vpack.c.bf16 %v6075, %v6075
        %v6088 = vpack.c.bf16 %v6076, %v6076
        %v6089 = vpack.c.bf16 %v6077, %v6077
        %v6090 = vpack.c.bf16 %v6078, %v6078
        %v6091 = vld [vmem:[%s499] sm:$0xff]
        %v6092 = vld [vmem:[%s499 + $0x8] sm:$0xff]
        %v6093 = vld [vmem:[%s499 + $0x10] sm:$0xff]
        %v6094 = vld [vmem:[%s499 + $0x18] sm:$0xff]
        %v6095 = vld [vmem:[%s499 + $0x20] sm:$0xff]
        %v6096 = vld [vmem:[%s499 + $0x28] sm:$0xff]
        %v6097 = vld [vmem:[%s499 + $0x30] sm:$0xff]
        %v6098 = vld [vmem:[%s499 + $0x38] sm:$0xff]
        %v6099 = vld [vmem:[%s499 + $0x40] sm:$0xff]
        %v6100 = vld [vmem:[%s499 + $0x48] sm:$0xff]
        %v6101 = vld [vmem:[%s499 + $0x50] sm:$0xff]
        %v6102 = vld [vmem:[%s499 + $0x58] sm:$0xff]
        %v6103 = vld [vmem:[%s499 + $0x60] sm:$0xff]
        %v6104 = vld [vmem:[%s499 + $0x68] sm:$0xff]
        %v6105 = vld [vmem:[%s499 + $0x70] sm:$0xff]
        %v6106 = vld [vmem:[%s499 + $0x78] sm:$0xff]
        %v6107 = vld [vmem:[%s499 + $0x80] sm:$0xff]
        %v6108 = vld [vmem:[%s499 + $0x88] sm:$0xff]
        %v6109 = vld [vmem:[%s499 + $0x90] sm:$0xff]
        %v6110 = vld [vmem:[%s499 + $0x98] sm:$0xff]
        %v6111 = vld [vmem:[%s499 + $0xa0] sm:$0xff]
        %v6112 = vld [vmem:[%s499 + $0xa8] sm:$0xff]
        %v6113 = vld [vmem:[%s499 + $0xb0] sm:$0xff]
        %v6114 = vld [vmem:[%s499 + $0xb8] sm:$0xff]
        %v6115 = vld [vmem:[%s499 + $0xc0] sm:$0xff]
        %v6116 = vld [vmem:[%s499 + $0xc8] sm:$0xff]
        %v6117 = vld [vmem:[%s499 + $0xd0] sm:$0xff]
        %v6118 = vld [vmem:[%s499 + $0xd8] sm:$0xff]
        %v6119 = vld [vmem:[%s499 + $0xe0] sm:$0xff]
        %v6120 = vld [vmem:[%s499 + $0xe8] sm:$0xff]
        %v6121 = vld [vmem:[%s499 + $0xf0] sm:$0xff]
        %v6122 = vld [vmem:[%s499 + $0xf8] sm:$0xff]
        %v6123 = vld [vmem:[%s499 + $0x100] sm:$0xff]
        %v6124 = vld [vmem:[%s499 + $0x108] sm:$0xff]
        %v6125 = vld [vmem:[%s499 + $0x110] sm:$0xff]
        %v6126 = vld [vmem:[%s499 + $0x118] sm:$0xff]
        %v6127 = vld [vmem:[%s499 + $0x120] sm:$0xff]
        %v6128 = vld [vmem:[%s499 + $0x128] sm:$0xff]
        %v6129 = vld [vmem:[%s499 + $0x130] sm:$0xff]
        %v6130 = vld [vmem:[%s499 + $0x138] sm:$0xff]
        %v6131 = vld [vmem:[%s499 + $0x140] sm:$0xff]
        %v6132 = vld [vmem:[%s499 + $0x148] sm:$0xff]
        %v6133 = vld [vmem:[%s499 + $0x150] sm:$0xff]
        %v6134 = vld [vmem:[%s499 + $0x158] sm:$0xff]
        %v6135 = vld [vmem:[%s499 + $0x160] sm:$0xff]
        %v6136 = vld [vmem:[%s499 + $0x168] sm:$0xff]
        %v6137 = vld [vmem:[%s499 + $0x170] sm:$0xff]
        %v6138 = vld [vmem:[%s499 + $0x178] sm:$0xff]
        %v6139 = vld [vmem:[%s499 + $0x180] sm:$0xff]
        %v6140 = vld [vmem:[%s499 + $0x188] sm:$0xff]
        %v6141 = vld [vmem:[%s499 + $0x190] sm:$0xff]
        %v6142 = vld [vmem:[%s499 + $0x198] sm:$0xff]
        %v6143 = vld [vmem:[%s499 + $0x1a0] sm:$0xff]
        %v6144 = vld [vmem:[%s499 + $0x1a8] sm:$0xff]
        %v6145 = vld [vmem:[%s499 + $0x1b0] sm:$0xff]
        %v6146 = vld [vmem:[%s499 + $0x1b8] sm:$0xff]
        %v6147 = vld [vmem:[%s499 + $0x1c0] sm:$0xff]
        %v6148 = vld [vmem:[%s499 + $0x1c8] sm:$0xff]
        %v6149 = vld [vmem:[%s499 + $0x1d0] sm:$0xff]
        %v6150 = vld [vmem:[%s499 + $0x1d8] sm:$0xff]
        %v6151 = vld [vmem:[%s499 + $0x1e0] sm:$0xff]
        %v6152 = vld [vmem:[%s499 + $0x1e8] sm:$0xff]
        %v6153 = vld [vmem:[%s499 + $0x1f0] sm:$0xff]
        %v6154 = vld [vmem:[%s499 + $0x1f8] sm:$0xff]
        %v6155 = vld [vmem:[%s499 + $0x200] sm:$0xff]
        %v6156 = vld [vmem:[%s499 + $0x208] sm:$0xff]
        %v6157 = vld [vmem:[%s499 + $0x210] sm:$0xff]
        %v6158 = vld [vmem:[%s499 + $0x218] sm:$0xff]
        %v6159 = vld [vmem:[%s499 + $0x220] sm:$0xff]
        %v6160 = vld [vmem:[%s499 + $0x228] sm:$0xff]
        %v6161 = vld [vmem:[%s499 + $0x230] sm:$0xff]
        %v6162 = vld [vmem:[%s499 + $0x238] sm:$0xff]
        %v6163 = vld [vmem:[%s499 + $0x240] sm:$0xff]
        %v6164 = vld [vmem:[%s499 + $0x248] sm:$0xff]
        %v6165 = vld [vmem:[%s499 + $0x250] sm:$0xff]
        %v6166 = vld [vmem:[%s499 + $0x258] sm:$0xff]
        %v6167 = vld [vmem:[%s499 + $0x260] sm:$0xff]
        %v6168 = vld [vmem:[%s499 + $0x268] sm:$0xff]
        %v6169 = vld [vmem:[%s499 + $0x270] sm:$0xff]
        %v6170 = vld [vmem:[%s499 + $0x278] sm:$0xff]
        %v6171 = vld [vmem:[%s499 + $0x280] sm:$0xff]
        %v6172 = vld [vmem:[%s499 + $0x288] sm:$0xff]
        %v6173 = vld [vmem:[%s499 + $0x290] sm:$0xff]
        %v6174 = vld [vmem:[%s499 + $0x298] sm:$0xff]
        %v6175 = vld [vmem:[%s499 + $0x2a0] sm:$0xff]
        %v6176 = vld [vmem:[%s499 + $0x2a8] sm:$0xff]
        %v6177 = vld [vmem:[%s499 + $0x2b0] sm:$0xff]
        %v6178 = vld [vmem:[%s499 + $0x2b8] sm:$0xff]
        %v6179 = vld [vmem:[%s499 + $0x2c0] sm:$0xff]
        %v6180 = vld [vmem:[%s499 + $0x2c8] sm:$0xff]
        %v6181 = vld [vmem:[%s499 + $0x2d0] sm:$0xff]
        %v6182 = vld [vmem:[%s499 + $0x2d8] sm:$0xff]
        %v6183 = vld [vmem:[%s499 + $0x2e0] sm:$0xff]
        %v6184 = vld [vmem:[%s499 + $0x2e8] sm:$0xff]
        %v6185 = vld [vmem:[%s499 + $0x2f0] sm:$0xff]
        %v6186 = vld [vmem:[%s499 + $0x2f8] sm:$0xff]
        %v6187 = vld [vmem:[%s499 + $0x300] sm:$0xff]
        %v6188 = vld [vmem:[%s499 + $0x308] sm:$0xff]
        %v6189 = vld [vmem:[%s499 + $0x310] sm:$0xff]
        %v6190 = vld [vmem:[%s499 + $0x318] sm:$0xff]
        %v6191 = vld [vmem:[%s499 + $0x320] sm:$0xff]
        %v6192 = vld [vmem:[%s499 + $0x328] sm:$0xff]
        %v6193 = vld [vmem:[%s499 + $0x330] sm:$0xff]
        %v6194 = vld [vmem:[%s499 + $0x338] sm:$0xff]
        %v6195 = vld [vmem:[%s499 + $0x340] sm:$0xff]
        %v6196 = vld [vmem:[%s499 + $0x348] sm:$0xff]
        %v6197 = vld [vmem:[%s499 + $0x350] sm:$0xff]
        %v6198 = vld [vmem:[%s499 + $0x358] sm:$0xff]
        %v6199 = vld [vmem:[%s499 + $0x360] sm:$0xff]
        %v6200 = vld [vmem:[%s499 + $0x368] sm:$0xff]
        %v6201 = vld [vmem:[%s499 + $0x370] sm:$0xff]
        %v6202 = vld [vmem:[%s499 + $0x378] sm:$0xff]
        %v6203 = vld [vmem:[%s499 + $0x380] sm:$0xff]
        %v6204 = vld [vmem:[%s499 + $0x388] sm:$0xff]
        %v6205 = vld [vmem:[%s499 + $0x390] sm:$0xff]
        %v6206 = vld [vmem:[%s499 + $0x398] sm:$0xff]
        %v6207 = vld [vmem:[%s499 + $0x3a0] sm:$0xff]
        %v6208 = vld [vmem:[%s499 + $0x3a8] sm:$0xff]
        %v6209 = vld [vmem:[%s499 + $0x3b0] sm:$0xff]
        %v6210 = vld [vmem:[%s499 + $0x3b8] sm:$0xff]
        %v6211 = vld [vmem:[%s499 + $0x3c0] sm:$0xff]
        %v6212 = vld [vmem:[%s499 + $0x3c8] sm:$0xff]
        %v6213 = vld [vmem:[%s499 + $0x3d0] sm:$0xff]
        %v6214 = vld [vmem:[%s499 + $0x3d8] sm:$0xff]
        %v6215 = vld [vmem:[%s499 + $0x3e0] sm:$0xff]
        %v6216 = vld [vmem:[%s499 + $0x3e8] sm:$0xff]
        %v6217 = vld [vmem:[%s499 + $0x3f0] sm:$0xff]
        %v6218 = vld [vmem:[%s499 + $0x3f8] sm:$0xff]
        %v6219 = vld [vmem:[%s499 + $0x400] sm:$0xff]
        %v6220 = vld [vmem:[%s499 + $0x408] sm:$0xff]
        %v6221 = vld [vmem:[%s499 + $0x410] sm:$0xff]
        %v6222 = vld [vmem:[%s499 + $0x418] sm:$0xff]
        %v6223 = vld [vmem:[%s499 + $0x420] sm:$0xff]
        %v6224 = vld [vmem:[%s499 + $0x428] sm:$0xff]
        %v6225 = vld [vmem:[%s499 + $0x430] sm:$0xff]
        %v6226 = vld [vmem:[%s499 + $0x438] sm:$0xff]
        %v6227 = vld [vmem:[%s499 + $0x440] sm:$0xff]
        %v6228 = vld [vmem:[%s499 + $0x448] sm:$0xff]
        %v6229 = vld [vmem:[%s499 + $0x450] sm:$0xff]
        %v6230 = vld [vmem:[%s499 + $0x458] sm:$0xff]
        %v6231 = vld [vmem:[%s499 + $0x460] sm:$0xff]
        %v6232 = vld [vmem:[%s499 + $0x468] sm:$0xff]
        %v6233 = vld [vmem:[%s499 + $0x470] sm:$0xff]
        %v6234 = vld [vmem:[%s499 + $0x478] sm:$0xff]
        %v6235 = vld [vmem:[%s499 + $0x480] sm:$0xff]
        %v6236 = vld [vmem:[%s499 + $0x488] sm:$0xff]
        %v6237 = vld [vmem:[%s499 + $0x490] sm:$0xff]
        %v6238 = vld [vmem:[%s499 + $0x498] sm:$0xff]
        %v6239 = vld [vmem:[%s499 + $0x4a0] sm:$0xff]
        %v6240 = vld [vmem:[%s499 + $0x4a8] sm:$0xff]
        %v6241 = vld [vmem:[%s499 + $0x4b0] sm:$0xff]
        %v6242 = vld [vmem:[%s499 + $0x4b8] sm:$0xff]
        %v6243 = vld [vmem:[%s499 + $0x4c0] sm:$0xff]
        %v6244 = vld [vmem:[%s499 + $0x4c8] sm:$0xff]
        %v6245 = vld [vmem:[%s499 + $0x4d0] sm:$0xff]
        %v6246 = vld [vmem:[%s499 + $0x4d8] sm:$0xff]
        %v6247 = vld [vmem:[%s499 + $0x4e0] sm:$0xff]
        %v6248 = vld [vmem:[%s499 + $0x4e8] sm:$0xff]
        %v6249 = vld [vmem:[%s499 + $0x4f0] sm:$0xff]
        %v6250 = vld [vmem:[%s499 + $0x4f8] sm:$0xff]
        %v6251 = vld [vmem:[%s499 + $0x500] sm:$0xff]
        %v6252 = vld [vmem:[%s499 + $0x508] sm:$0xff]
        %v6253 = vld [vmem:[%s499 + $0x510] sm:$0xff]
        %v6254 = vld [vmem:[%s499 + $0x518] sm:$0xff]
        %v6255 = vld [vmem:[%s499 + $0x520] sm:$0xff]
        %v6256 = vld [vmem:[%s499 + $0x528] sm:$0xff]
        %v6257 = vld [vmem:[%s499 + $0x530] sm:$0xff]
        %v6258 = vld [vmem:[%s499 + $0x538] sm:$0xff]
        %v6259 = vld [vmem:[%s499 + $0x540] sm:$0xff]
        %v6260 = vld [vmem:[%s499 + $0x548] sm:$0xff]
        %v6261 = vld [vmem:[%s499 + $0x550] sm:$0xff]
        %v6262 = vld [vmem:[%s499 + $0x558] sm:$0xff]
        %v6263 = vld [vmem:[%s499 + $0x560] sm:$0xff]
        %v6264 = vld [vmem:[%s499 + $0x568] sm:$0xff]
        %v6265 = vld [vmem:[%s499 + $0x570] sm:$0xff]
        %v6266 = vld [vmem:[%s499 + $0x578] sm:$0xff]
        %v6267 = vld [vmem:[%s499 + $0x580] sm:$0xff]
        %v6268 = vld [vmem:[%s499 + $0x588] sm:$0xff]
        %v6269 = vld [vmem:[%s499 + $0x590] sm:$0xff]
        %v6270 = vld [vmem:[%s499 + $0x598] sm:$0xff]
        %v6271 = vld [vmem:[%s499 + $0x5a0] sm:$0xff]
        %v6272 = vld [vmem:[%s499 + $0x5a8] sm:$0xff]
        %v6273 = vld [vmem:[%s499 + $0x5b0] sm:$0xff]
        %v6274 = vld [vmem:[%s499 + $0x5b8] sm:$0xff]
        %v6275 = vld [vmem:[%s499 + $0x5c0] sm:$0xff]
        %v6276 = vld [vmem:[%s499 + $0x5c8] sm:$0xff]
        %v6277 = vld [vmem:[%s499 + $0x5d0] sm:$0xff]
        %v6278 = vld [vmem:[%s499 + $0x5d8] sm:$0xff]
        %v6279 = vld [vmem:[%s499 + $0x5e0] sm:$0xff]
        %v6280 = vld [vmem:[%s499 + $0x5e8] sm:$0xff]
        %v6281 = vld [vmem:[%s499 + $0x5f0] sm:$0xff]
        %v6282 = vld [vmem:[%s499 + $0x5f8] sm:$0xff]
        %v6283 = vld [vmem:[%s499 + $0x600] sm:$0xff]
        %v6284 = vld [vmem:[%s499 + $0x608] sm:$0xff]
        %v6285 = vld [vmem:[%s499 + $0x610] sm:$0xff]
        %v6286 = vld [vmem:[%s499 + $0x618] sm:$0xff]
        %v6287 = vld [vmem:[%s499 + $0x620] sm:$0xff]
        %v6288 = vld [vmem:[%s499 + $0x628] sm:$0xff]
        %v6289 = vld [vmem:[%s499 + $0x630] sm:$0xff]
        %v6290 = vld [vmem:[%s499 + $0x638] sm:$0xff]
        %v6291 = vld [vmem:[%s499 + $0x640] sm:$0xff]
        %v6292 = vld [vmem:[%s499 + $0x648] sm:$0xff]
        %v6293 = vld [vmem:[%s499 + $0x650] sm:$0xff]
        %v6294 = vld [vmem:[%s499 + $0x658] sm:$0xff]
        %v6295 = vld [vmem:[%s499 + $0x660] sm:$0xff]
        %v6296 = vld [vmem:[%s499 + $0x668] sm:$0xff]
        %v6297 = vld [vmem:[%s499 + $0x670] sm:$0xff]
        %v6298 = vld [vmem:[%s499 + $0x678] sm:$0xff]
        %v6299 = vld [vmem:[%s499 + $0x680] sm:$0xff]
        %v6300 = vld [vmem:[%s499 + $0x688] sm:$0xff]
        %v6301 = vld [vmem:[%s499 + $0x690] sm:$0xff]
        %v6302 = vld [vmem:[%s499 + $0x698] sm:$0xff]
        %v6303 = vld [vmem:[%s499 + $0x6a0] sm:$0xff]
        %v6304 = vld [vmem:[%s499 + $0x6a8] sm:$0xff]
        %v6305 = vld [vmem:[%s499 + $0x6b0] sm:$0xff]
        %v6306 = vld [vmem:[%s499 + $0x6b8] sm:$0xff]
        %v6307 = vld [vmem:[%s499 + $0x6c0] sm:$0xff]
        %v6308 = vld [vmem:[%s499 + $0x6c8] sm:$0xff]
        %v6309 = vld [vmem:[%s499 + $0x6d0] sm:$0xff]
        %v6310 = vld [vmem:[%s499 + $0x6d8] sm:$0xff]
        %v6311 = vld [vmem:[%s499 + $0x6e0] sm:$0xff]
        %v6312 = vld [vmem:[%s499 + $0x6e8] sm:$0xff]
        %v6313 = vld [vmem:[%s499 + $0x6f0] sm:$0xff]
        %v6314 = vld [vmem:[%s499 + $0x6f8] sm:$0xff]
        %v6315 = vld [vmem:[%s499 + $0x700] sm:$0xff]
        %v6316 = vld [vmem:[%s499 + $0x708] sm:$0xff]
        %v6317 = vld [vmem:[%s499 + $0x710] sm:$0xff]
        %v6318 = vld [vmem:[%s499 + $0x718] sm:$0xff]
        %v6319 = vld [vmem:[%s499 + $0x720] sm:$0xff]
        %v6320 = vld [vmem:[%s499 + $0x728] sm:$0xff]
        %v6321 = vld [vmem:[%s499 + $0x730] sm:$0xff]
        %v6322 = vld [vmem:[%s499 + $0x738] sm:$0xff]
        %v6323 = vld [vmem:[%s499 + $0x740] sm:$0xff]
        %v6324 = vld [vmem:[%s499 + $0x748] sm:$0xff]
        %v6325 = vld [vmem:[%s499 + $0x750] sm:$0xff]
        %v6326 = vld [vmem:[%s499 + $0x758] sm:$0xff]
        %v6327 = vld [vmem:[%s499 + $0x760] sm:$0xff]
        %v6328 = vld [vmem:[%s499 + $0x768] sm:$0xff]
        %v6329 = vld [vmem:[%s499 + $0x770] sm:$0xff]
        %v6330 = vld [vmem:[%s499 + $0x778] sm:$0xff]
        %v6331 = vld [vmem:[%s499 + $0x780] sm:$0xff]
        %v6332 = vld [vmem:[%s499 + $0x788] sm:$0xff]
        %v6333 = vld [vmem:[%s499 + $0x790] sm:$0xff]
        %v6334 = vld [vmem:[%s499 + $0x798] sm:$0xff]
        %v6335 = vld [vmem:[%s499 + $0x7a0] sm:$0xff]
        %v6336 = vld [vmem:[%s499 + $0x7a8] sm:$0xff]
        %v6337 = vld [vmem:[%s499 + $0x7b0] sm:$0xff]
        %v6338 = vld [vmem:[%s499 + $0x7b8] sm:$0xff]
        %v6339 = vld [vmem:[%s499 + $0x7c0] sm:$0xff]
        %v6340 = vld [vmem:[%s499 + $0x7c8] sm:$0xff]
        %v6341 = vld [vmem:[%s499 + $0x7d0] sm:$0xff]
        %v6342 = vld [vmem:[%s499 + $0x7d8] sm:$0xff]
        %v6343 = vld [vmem:[%s499 + $0x7e0] sm:$0xff]
        %v6344 = vld [vmem:[%s499 + $0x7e8] sm:$0xff]
        %v6345 = vld [vmem:[%s499 + $0x7f0] sm:$0xff]
        %v6346 = vld [vmem:[%s499 + $0x7f8] sm:$0xff]
        %v6347 = vld [vmem:[%s499 + $0x800] sm:$0xff]
        %v6348 = vld [vmem:[%s499 + $0x808] sm:$0xff]
        %v6349 = vld [vmem:[%s499 + $0x810] sm:$0xff]
        %v6350 = vld [vmem:[%s499 + $0x818] sm:$0xff]
        %v6351 = vld [vmem:[%s499 + $0x820] sm:$0xff]
        %v6352 = vld [vmem:[%s499 + $0x828] sm:$0xff]
        %v6353 = vld [vmem:[%s499 + $0x830] sm:$0xff]
        %v6354 = vld [vmem:[%s499 + $0x838] sm:$0xff]
        %v6355 = vld [vmem:[%s499 + $0x840] sm:$0xff]
        %v6356 = vld [vmem:[%s499 + $0x848] sm:$0xff]
        %v6357 = vld [vmem:[%s499 + $0x850] sm:$0xff]
        %v6358 = vld [vmem:[%s499 + $0x858] sm:$0xff]
        %v6359 = vld [vmem:[%s499 + $0x860] sm:$0xff]
        %v6360 = vld [vmem:[%s499 + $0x868] sm:$0xff]
        %v6361 = vld [vmem:[%s499 + $0x870] sm:$0xff]
        %v6362 = vld [vmem:[%s499 + $0x878] sm:$0xff]
        %v6363 = vld [vmem:[%s499 + $0x880] sm:$0xff]
        %v6364 = vld [vmem:[%s499 + $0x888] sm:$0xff]
        %v6365 = vld [vmem:[%s499 + $0x890] sm:$0xff]
        %v6366 = vld [vmem:[%s499 + $0x898] sm:$0xff]
        %v6367 = vld [vmem:[%s499 + $0x8a0] sm:$0xff]
        %v6368 = vld [vmem:[%s499 + $0x8a8] sm:$0xff]
        %v6369 = vld [vmem:[%s499 + $0x8b0] sm:$0xff]
        %v6370 = vld [vmem:[%s499 + $0x8b8] sm:$0xff]
        %v6371 = vld [vmem:[%s499 + $0x8c0] sm:$0xff]
        %v6372 = vld [vmem:[%s499 + $0x8c8] sm:$0xff]
        %v6373 = vld [vmem:[%s499 + $0x8d0] sm:$0xff]
        %v6374 = vld [vmem:[%s499 + $0x8d8] sm:$0xff]
        %v6375 = vld [vmem:[%s499 + $0x8e0] sm:$0xff]
        %v6376 = vld [vmem:[%s499 + $0x8e8] sm:$0xff]
        %v6377 = vld [vmem:[%s499 + $0x8f0] sm:$0xff]
        %v6378 = vld [vmem:[%s499 + $0x8f8] sm:$0xff]
        %v6379 = vld [vmem:[%s499 + $0x900] sm:$0xff]
        %v6380 = vld [vmem:[%s499 + $0x908] sm:$0xff]
        %v6381 = vld [vmem:[%s499 + $0x910] sm:$0xff]
        %v6382 = vld [vmem:[%s499 + $0x918] sm:$0xff]
        %v6383 = vld [vmem:[%s499 + $0x920] sm:$0xff]
        %v6384 = vld [vmem:[%s499 + $0x928] sm:$0xff]
        %v6385 = vld [vmem:[%s499 + $0x930] sm:$0xff]
        %v6386 = vld [vmem:[%s499 + $0x938] sm:$0xff]
        %v6387 = vld [vmem:[%s499 + $0x940] sm:$0xff]
        %v6388 = vld [vmem:[%s499 + $0x948] sm:$0xff]
        %v6389 = vld [vmem:[%s499 + $0x950] sm:$0xff]
        %v6390 = vld [vmem:[%s499 + $0x958] sm:$0xff]
        %v6391 = vld [vmem:[%s499 + $0x960] sm:$0xff]
        %v6392 = vld [vmem:[%s499 + $0x968] sm:$0xff]
        %v6393 = vld [vmem:[%s499 + $0x970] sm:$0xff]
        %v6394 = vld [vmem:[%s499 + $0x978] sm:$0xff]
        %v6395 = vld [vmem:[%s499 + $0x980] sm:$0xff]
        %v6396 = vld [vmem:[%s499 + $0x988] sm:$0xff]
        %v6397 = vld [vmem:[%s499 + $0x990] sm:$0xff]
        %v6398 = vld [vmem:[%s499 + $0x998] sm:$0xff]
        %v6399 = vld [vmem:[%s499 + $0x9a0] sm:$0xff]
        %v6400 = vld [vmem:[%s499 + $0x9a8] sm:$0xff]
        %v6401 = vld [vmem:[%s499 + $0x9b0] sm:$0xff]
        %v6402 = vld [vmem:[%s499 + $0x9b8] sm:$0xff]
        %v6403 = vld [vmem:[%s499 + $0x9c0] sm:$0xff]
        %v6404 = vld [vmem:[%s499 + $0x9c8] sm:$0xff]
        %v6405 = vld [vmem:[%s499 + $0x9d0] sm:$0xff]
        %v6406 = vld [vmem:[%s499 + $0x9d8] sm:$0xff]
        %v6407 = vld [vmem:[%s499 + $0x9e0] sm:$0xff]
        %v6408 = vld [vmem:[%s499 + $0x9e8] sm:$0xff]
        %v6409 = vld [vmem:[%s499 + $0x9f0] sm:$0xff]
        %v6410 = vld [vmem:[%s499 + $0x9f8] sm:$0xff]
        %v6411 = vld [vmem:[%s499 + $0xa00] sm:$0xff]
        %v6412 = vld [vmem:[%s499 + $0xa08] sm:$0xff]
        %v6413 = vld [vmem:[%s499 + $0xa10] sm:$0xff]
        %v6414 = vld [vmem:[%s499 + $0xa18] sm:$0xff]
        %v6415 = vld [vmem:[%s499 + $0xa20] sm:$0xff]
        %v6416 = vld [vmem:[%s499 + $0xa28] sm:$0xff]
        %v6417 = vld [vmem:[%s499 + $0xa30] sm:$0xff]
        %v6418 = vld [vmem:[%s499 + $0xa38] sm:$0xff]
        %v6419 = vld [vmem:[%s499 + $0xa40] sm:$0xff]
        %v6420 = vld [vmem:[%s499 + $0xa48] sm:$0xff]
        %v6421 = vld [vmem:[%s499 + $0xa50] sm:$0xff]
        %v6422 = vld [vmem:[%s499 + $0xa58] sm:$0xff]
        %v6423 = vld [vmem:[%s499 + $0xa60] sm:$0xff]
        %v6424 = vld [vmem:[%s499 + $0xa68] sm:$0xff]
        %v6425 = vld [vmem:[%s499 + $0xa70] sm:$0xff]
        %v6426 = vld [vmem:[%s499 + $0xa78] sm:$0xff]
        %v6427 = vld [vmem:[%s499 + $0xa80] sm:$0xff]
        %v6428 = vld [vmem:[%s499 + $0xa88] sm:$0xff]
        %v6429 = vld [vmem:[%s499 + $0xa90] sm:$0xff]
        %v6430 = vld [vmem:[%s499 + $0xa98] sm:$0xff]
        %v6431 = vld [vmem:[%s499 + $0xaa0] sm:$0xff]
        %v6432 = vld [vmem:[%s499 + $0xaa8] sm:$0xff]
        %v6433 = vld [vmem:[%s499 + $0xab0] sm:$0xff]
        %v6434 = vld [vmem:[%s499 + $0xab8] sm:$0xff]
        %v6435 = vld [vmem:[%s499 + $0xac0] sm:$0xff]
        %v6436 = vld [vmem:[%s499 + $0xac8] sm:$0xff]
        %v6437 = vld [vmem:[%s499 + $0xad0] sm:$0xff]
        %v6438 = vld [vmem:[%s499 + $0xad8] sm:$0xff]
        %v6439 = vld [vmem:[%s499 + $0xae0] sm:$0xff]
        %v6440 = vld [vmem:[%s499 + $0xae8] sm:$0xff]
        %v6441 = vld [vmem:[%s499 + $0xaf0] sm:$0xff]
        %v6442 = vld [vmem:[%s499 + $0xaf8] sm:$0xff]
        %v6443 = vld [vmem:[%s499 + $0xb00] sm:$0xff]
        %v6444 = vld [vmem:[%s499 + $0xb08] sm:$0xff]
        %v6445 = vld [vmem:[%s499 + $0xb10] sm:$0xff]
        %v6446 = vld [vmem:[%s499 + $0xb18] sm:$0xff]
        %v6447 = vld [vmem:[%s499 + $0xb20] sm:$0xff]
        %v6448 = vld [vmem:[%s499 + $0xb28] sm:$0xff]
        %v6449 = vld [vmem:[%s499 + $0xb30] sm:$0xff]
        %v6450 = vld [vmem:[%s499 + $0xb38] sm:$0xff]
        %v6451 = vld [vmem:[%s499 + $0xb40] sm:$0xff]
        %v6452 = vld [vmem:[%s499 + $0xb48] sm:$0xff]
        %v6453 = vld [vmem:[%s499 + $0xb50] sm:$0xff]
        %v6454 = vld [vmem:[%s499 + $0xb58] sm:$0xff]
        %v6455 = vld [vmem:[%s499 + $0xb60] sm:$0xff]
        %v6456 = vld [vmem:[%s499 + $0xb68] sm:$0xff]
        %v6457 = vld [vmem:[%s499 + $0xb70] sm:$0xff]
        %v6458 = vld [vmem:[%s499 + $0xb78] sm:$0xff]
        %v6459 = vld [vmem:[%s499 + $0xb80] sm:$0xff]
        %v6460 = vld [vmem:[%s499 + $0xb88] sm:$0xff]
        %v6461 = vld [vmem:[%s499 + $0xb90] sm:$0xff]
        %v6462 = vld [vmem:[%s499 + $0xb98] sm:$0xff]
        %v6463 = vld [vmem:[%s499 + $0xba0] sm:$0xff]
        %v6464 = vld [vmem:[%s499 + $0xba8] sm:$0xff]
        %v6465 = vld [vmem:[%s499 + $0xbb0] sm:$0xff]
        %v6466 = vld [vmem:[%s499 + $0xbb8] sm:$0xff]
        %v6467 = vld [vmem:[%s499 + $0xbc0] sm:$0xff]
        %v6468 = vld [vmem:[%s499 + $0xbc8] sm:$0xff]
        %v6469 = vld [vmem:[%s499 + $0xbd0] sm:$0xff]
        %v6470 = vld [vmem:[%s499 + $0xbd8] sm:$0xff]
        %v6471 = vld [vmem:[%s499 + $0xbe0] sm:$0xff]
        %v6472 = vld [vmem:[%s499 + $0xbe8] sm:$0xff]
        %v6473 = vld [vmem:[%s499 + $0xbf0] sm:$0xff]
        %v6474 = vld [vmem:[%s499 + $0xbf8] sm:$0xff]
        %v6475 = vld [vmem:[%s499 + $0xc00] sm:$0xff]
        %v6476 = vld [vmem:[%s499 + $0xc08] sm:$0xff]
        %v6477 = vld [vmem:[%s499 + $0xc10] sm:$0xff]
        %v6478 = vld [vmem:[%s499 + $0xc18] sm:$0xff]
        %v6479 = vld [vmem:[%s499 + $0xc20] sm:$0xff]
        %v6480 = vld [vmem:[%s499 + $0xc28] sm:$0xff]
        %v6481 = vld [vmem:[%s499 + $0xc30] sm:$0xff]
        %v6482 = vld [vmem:[%s499 + $0xc38] sm:$0xff]
        %v6483 = vld [vmem:[%s499 + $0xc40] sm:$0xff]
        %v6484 = vld [vmem:[%s499 + $0xc48] sm:$0xff]
        %v6485 = vld [vmem:[%s499 + $0xc50] sm:$0xff]
        %v6486 = vld [vmem:[%s499 + $0xc58] sm:$0xff]
        %v6487 = vld [vmem:[%s499 + $0xc60] sm:$0xff]
        %v6488 = vld [vmem:[%s499 + $0xc68] sm:$0xff]
        %v6489 = vld [vmem:[%s499 + $0xc70] sm:$0xff]
        %v6490 = vld [vmem:[%s499 + $0xc78] sm:$0xff]
        %v6491 = vld [vmem:[%s499 + $0xc80] sm:$0xff]
        %v6492 = vld [vmem:[%s499 + $0xc88] sm:$0xff]
        %v6493 = vld [vmem:[%s499 + $0xc90] sm:$0xff]
        %v6494 = vld [vmem:[%s499 + $0xc98] sm:$0xff]
        %v6495 = vld [vmem:[%s499 + $0xca0] sm:$0xff]
        %v6496 = vld [vmem:[%s499 + $0xca8] sm:$0xff]
        %v6497 = vld [vmem:[%s499 + $0xcb0] sm:$0xff]
        %v6498 = vld [vmem:[%s499 + $0xcb8] sm:$0xff]
        %v6499 = vld [vmem:[%s499 + $0xcc0] sm:$0xff]
        %v6500 = vld [vmem:[%s499 + $0xcc8] sm:$0xff]
        %v6501 = vld [vmem:[%s499 + $0xcd0] sm:$0xff]
        %v6502 = vld [vmem:[%s499 + $0xcd8] sm:$0xff]
        %v6503 = vld [vmem:[%s499 + $0xce0] sm:$0xff]
        %v6504 = vld [vmem:[%s499 + $0xce8] sm:$0xff]
        %v6505 = vld [vmem:[%s499 + $0xcf0] sm:$0xff]
        %v6506 = vld [vmem:[%s499 + $0xcf8] sm:$0xff]
        %v6507 = vld [vmem:[%s499 + $0xd00] sm:$0xff]
        %v6508 = vld [vmem:[%s499 + $0xd08] sm:$0xff]
        %v6509 = vld [vmem:[%s499 + $0xd10] sm:$0xff]
        %v6510 = vld [vmem:[%s499 + $0xd18] sm:$0xff]
        %v6511 = vld [vmem:[%s499 + $0xd20] sm:$0xff]
        %v6512 = vld [vmem:[%s499 + $0xd28] sm:$0xff]
        %v6513 = vld [vmem:[%s499 + $0xd30] sm:$0xff]
        %v6514 = vld [vmem:[%s499 + $0xd38] sm:$0xff]
        %v6515 = vld [vmem:[%s499 + $0xd40] sm:$0xff]
        %v6516 = vld [vmem:[%s499 + $0xd48] sm:$0xff]
        %v6517 = vld [vmem:[%s499 + $0xd50] sm:$0xff]
        %v6518 = vld [vmem:[%s499 + $0xd58] sm:$0xff]
        %v6519 = vld [vmem:[%s499 + $0xd60] sm:$0xff]
        %v6520 = vld [vmem:[%s499 + $0xd68] sm:$0xff]
        %v6521 = vld [vmem:[%s499 + $0xd70] sm:$0xff]
        %v6522 = vld [vmem:[%s499 + $0xd78] sm:$0xff]
        %v6523 = vld [vmem:[%s499 + $0xd80] sm:$0xff]
        %v6524 = vld [vmem:[%s499 + $0xd88] sm:$0xff]
        %v6525 = vld [vmem:[%s499 + $0xd90] sm:$0xff]
        %v6526 = vld [vmem:[%s499 + $0xd98] sm:$0xff]
        %v6527 = vld [vmem:[%s499 + $0xda0] sm:$0xff]
        %v6528 = vld [vmem:[%s499 + $0xda8] sm:$0xff]
        %v6529 = vld [vmem:[%s499 + $0xdb0] sm:$0xff]
        %v6530 = vld [vmem:[%s499 + $0xdb8] sm:$0xff]
        %v6531 = vld [vmem:[%s499 + $0xdc0] sm:$0xff]
        %v6532 = vld [vmem:[%s499 + $0xdc8] sm:$0xff]
        %v6533 = vld [vmem:[%s499 + $0xdd0] sm:$0xff]
        %v6534 = vld [vmem:[%s499 + $0xdd8] sm:$0xff]
        %v6535 = vld [vmem:[%s499 + $0xde0] sm:$0xff]
        %v6536 = vld [vmem:[%s499 + $0xde8] sm:$0xff]
        %v6537 = vld [vmem:[%s499 + $0xdf0] sm:$0xff]
        %v6538 = vld [vmem:[%s499 + $0xdf8] sm:$0xff]
        %v6539 = vld [vmem:[%s499 + $0xe00] sm:$0xff]
        %v6540 = vld [vmem:[%s499 + $0xe08] sm:$0xff]
        %v6541 = vld [vmem:[%s499 + $0xe10] sm:$0xff]
        %v6542 = vld [vmem:[%s499 + $0xe18] sm:$0xff]
        %v6543 = vld [vmem:[%s499 + $0xe20] sm:$0xff]
        %v6544 = vld [vmem:[%s499 + $0xe28] sm:$0xff]
        %v6545 = vld [vmem:[%s499 + $0xe30] sm:$0xff]
        %v6546 = vld [vmem:[%s499 + $0xe38] sm:$0xff]
        %v6547 = vld [vmem:[%s499 + $0xe40] sm:$0xff]
        %v6548 = vld [vmem:[%s499 + $0xe48] sm:$0xff]
        %v6549 = vld [vmem:[%s499 + $0xe50] sm:$0xff]
        %v6550 = vld [vmem:[%s499 + $0xe58] sm:$0xff]
        %v6551 = vld [vmem:[%s499 + $0xe60] sm:$0xff]
        %v6552 = vld [vmem:[%s499 + $0xe68] sm:$0xff]
        %v6553 = vld [vmem:[%s499 + $0xe70] sm:$0xff]
        %v6554 = vld [vmem:[%s499 + $0xe78] sm:$0xff]
        %v6555 = vld [vmem:[%s499 + $0xe80] sm:$0xff]
        %v6556 = vld [vmem:[%s499 + $0xe88] sm:$0xff]
        %v6557 = vld [vmem:[%s499 + $0xe90] sm:$0xff]
        %v6558 = vld [vmem:[%s499 + $0xe98] sm:$0xff]
        %v6559 = vld [vmem:[%s499 + $0xea0] sm:$0xff]
        %v6560 = vld [vmem:[%s499 + $0xea8] sm:$0xff]
        %v6561 = vld [vmem:[%s499 + $0xeb0] sm:$0xff]
        %v6562 = vld [vmem:[%s499 + $0xeb8] sm:$0xff]
        %v6563 = vld [vmem:[%s499 + $0xec0] sm:$0xff]
        %v6564 = vld [vmem:[%s499 + $0xec8] sm:$0xff]
        %v6565 = vld [vmem:[%s499 + $0xed0] sm:$0xff]
        %v6566 = vld [vmem:[%s499 + $0xed8] sm:$0xff]
        %v6567 = vld [vmem:[%s499 + $0xee0] sm:$0xff]
        %v6568 = vld [vmem:[%s499 + $0xee8] sm:$0xff]
        %v6569 = vld [vmem:[%s499 + $0xef0] sm:$0xff]
        %v6570 = vld [vmem:[%s499 + $0xef8] sm:$0xff]
        %v6571 = vld [vmem:[%s499 + $0xf00] sm:$0xff]
        %v6572 = vld [vmem:[%s499 + $0xf08] sm:$0xff]
        %v6573 = vld [vmem:[%s499 + $0xf10] sm:$0xff]
        %v6574 = vld [vmem:[%s499 + $0xf18] sm:$0xff]
        %v6575 = vld [vmem:[%s499 + $0xf20] sm:$0xff]
        %v6576 = vld [vmem:[%s499 + $0xf28] sm:$0xff]
        %v6577 = vld [vmem:[%s499 + $0xf30] sm:$0xff]
        %v6578 = vld [vmem:[%s499 + $0xf38] sm:$0xff]
        %v6579 = vld [vmem:[%s499 + $0xf40] sm:$0xff]
        %v6580 = vld [vmem:[%s499 + $0xf48] sm:$0xff]
        %v6581 = vld [vmem:[%s499 + $0xf50] sm:$0xff]
        %v6582 = vld [vmem:[%s499 + $0xf58] sm:$0xff]
        %v6583 = vld [vmem:[%s499 + $0xf60] sm:$0xff]
        %v6584 = vld [vmem:[%s499 + $0xf68] sm:$0xff]
        %v6585 = vld [vmem:[%s499 + $0xf70] sm:$0xff]
        %v6586 = vld [vmem:[%s499 + $0xf78] sm:$0xff]
        %v6587 = vld [vmem:[%s499 + $0xf80] sm:$0xff]
        %v6588 = vld [vmem:[%s499 + $0xf88] sm:$0xff]
        %v6589 = vld [vmem:[%s499 + $0xf90] sm:$0xff]
        %v6590 = vld [vmem:[%s499 + $0xf98] sm:$0xff]
        %v6591 = vld [vmem:[%s499 + $0xfa0] sm:$0xff]
        %v6592 = vld [vmem:[%s499 + $0xfa8] sm:$0xff]
        %v6593 = vld [vmem:[%s499 + $0xfb0] sm:$0xff]
        %v6594 = vld [vmem:[%s499 + $0xfb8] sm:$0xff]
        %v6595 = vld [vmem:[%s499 + $0xfc0] sm:$0xff]
        %v6596 = vld [vmem:[%s499 + $0xfc8] sm:$0xff]
        %v6597 = vld [vmem:[%s499 + $0xfd0] sm:$0xff]
        %v6598 = vld [vmem:[%s499 + $0xfd8] sm:$0xff]
        %v6599 = vld [vmem:[%s499 + $0xfe0] sm:$0xff]
        %v6600 = vld [vmem:[%s499 + $0xfe8] sm:$0xff]
        %v6601 = vld [vmem:[%s499 + $0xff0] sm:$0xff]
        %v6602 = vld [vmem:[%s499 + $0xff8] sm:$0xff]
        %v6603 = vld [vmem:[%s499 + $0x1000] sm:$0xff]
        %v6604 = vld [vmem:[%s499 + $0x1008] sm:$0xff]
        %v6605 = vld [vmem:[%s499 + $0x1010] sm:$0xff]
        %v6606 = vld [vmem:[%s499 + $0x1018] sm:$0xff]
        %v6607 = vld [vmem:[%s499 + $0x1020] sm:$0xff]
        %v6608 = vld [vmem:[%s499 + $0x1028] sm:$0xff]
        %v6609 = vld [vmem:[%s499 + $0x1030] sm:$0xff]
        %v6610 = vld [vmem:[%s499 + $0x1038] sm:$0xff]
        %v6611 = vld [vmem:[%s499 + $0x1040] sm:$0xff]
        %v6612 = vld [vmem:[%s499 + $0x1048] sm:$0xff]
        %v6613 = vld [vmem:[%s499 + $0x1050] sm:$0xff]
        %v6614 = vld [vmem:[%s499 + $0x1058] sm:$0xff]
        %v6615 = vld [vmem:[%s499 + $0x1060] sm:$0xff]
        %v6616 = vld [vmem:[%s499 + $0x1068] sm:$0xff]
        %v6617 = vld [vmem:[%s499 + $0x1070] sm:$0xff]
        %v6618 = vld [vmem:[%s499 + $0x1078] sm:$0xff]
        %v6619 = vld [vmem:[%s499 + $0x1080] sm:$0xff]
        %v6620 = vld [vmem:[%s499 + $0x1088] sm:$0xff]
        %v6621 = vld [vmem:[%s499 + $0x1090] sm:$0xff]
        %v6622 = vld [vmem:[%s499 + $0x1098] sm:$0xff]
        %v6623 = vld [vmem:[%s499 + $0x10a0] sm:$0xff]
        %v6624 = vld [vmem:[%s499 + $0x10a8] sm:$0xff]
        %v6625 = vld [vmem:[%s499 + $0x10b0] sm:$0xff]
        %v6626 = vld [vmem:[%s499 + $0x10b8] sm:$0xff]
        %v6627 = vld [vmem:[%s499 + $0x10c0] sm:$0xff]
        %v6628 = vld [vmem:[%s499 + $0x10c8] sm:$0xff]
        %v6629 = vld [vmem:[%s499 + $0x10d0] sm:$0xff]
        %v6630 = vld [vmem:[%s499 + $0x10d8] sm:$0xff]
        %v6631 = vld [vmem:[%s499 + $0x10e0] sm:$0xff]
        %v6632 = vld [vmem:[%s499 + $0x10e8] sm:$0xff]
        %v6633 = vld [vmem:[%s499 + $0x10f0] sm:$0xff]
        %v6634 = vld [vmem:[%s499 + $0x10f8] sm:$0xff]
        %v6635 = vld [vmem:[%s499 + $0x1100] sm:$0xff]
        %v6636 = vld [vmem:[%s499 + $0x1108] sm:$0xff]
        %v6637 = vld [vmem:[%s499 + $0x1110] sm:$0xff]
        %v6638 = vld [vmem:[%s499 + $0x1118] sm:$0xff]
        %v6639 = vld [vmem:[%s499 + $0x1120] sm:$0xff]
        %v6640 = vld [vmem:[%s499 + $0x1128] sm:$0xff]
        %v6641 = vld [vmem:[%s499 + $0x1130] sm:$0xff]
        %v6642 = vld [vmem:[%s499 + $0x1138] sm:$0xff]
        %v6643 = vld [vmem:[%s499 + $0x1140] sm:$0xff]
        %v6644 = vld [vmem:[%s499 + $0x1148] sm:$0xff]
        %v6645 = vld [vmem:[%s499 + $0x1150] sm:$0xff]
        %v6646 = vld [vmem:[%s499 + $0x1158] sm:$0xff]
        %v6647 = vld [vmem:[%s499 + $0x1160] sm:$0xff]
        %v6648 = vld [vmem:[%s499 + $0x1168] sm:$0xff]
        %v6649 = vld [vmem:[%s499 + $0x1170] sm:$0xff]
        %v6650 = vld [vmem:[%s499 + $0x1178] sm:$0xff]
        %v6651 = vld [vmem:[%s499 + $0x1180] sm:$0xff]
        %v6652 = vld [vmem:[%s499 + $0x1188] sm:$0xff]
        %v6653 = vld [vmem:[%s499 + $0x1190] sm:$0xff]
        %v6654 = vld [vmem:[%s499 + $0x1198] sm:$0xff]
        %v6655 = vld [vmem:[%s499 + $0x11a0] sm:$0xff]
        %v6656 = vld [vmem:[%s499 + $0x11a8] sm:$0xff]
        %v6657 = vld [vmem:[%s499 + $0x11b0] sm:$0xff]
        %v6658 = vld [vmem:[%s499 + $0x11b8] sm:$0xff]
        %v6659 = vld [vmem:[%s499 + $0x11c0] sm:$0xff]
        %v6660 = vld [vmem:[%s499 + $0x11c8] sm:$0xff]
        %v6661 = vld [vmem:[%s499 + $0x11d0] sm:$0xff]
        %v6662 = vld [vmem:[%s499 + $0x11d8] sm:$0xff]
        %v6663 = vld [vmem:[%s499 + $0x11e0] sm:$0xff]
        %v6664 = vld [vmem:[%s499 + $0x11e8] sm:$0xff]
        %v6665 = vld [vmem:[%s499 + $0x11f0] sm:$0xff]
        %v6666 = vld [vmem:[%s499 + $0x11f8] sm:$0xff]
        %v7243 = vunpack.c.l.b16 %v6091
        %v7244 = vunpack.c.h.b16 %v6091
        %v7245 = vunpack.c.l.b16 %v6092
        %v7246 = vunpack.c.h.b16 %v6092
        %v7247 = vunpack.c.l.b16 %v6093
        %v7248 = vunpack.c.h.b16 %v6093
        %v7249 = vunpack.c.l.b16 %v6094
        %v7250 = vunpack.c.h.b16 %v6094
        %v7251 = vunpack.c.l.b16 %v6095
        %v7252 = vunpack.c.h.b16 %v6095
        %v7253 = vunpack.c.l.b16 %v6096
        %v7254 = vunpack.c.h.b16 %v6096
        %v7255 = vunpack.c.l.b16 %v6097
        %v7256 = vunpack.c.h.b16 %v6097
        %v7257 = vunpack.c.l.b16 %v6098
        %v7258 = vunpack.c.h.b16 %v6098
        %v7259 = vunpack.c.l.b16 %v6099
        %v7260 = vunpack.c.h.b16 %v6099
        %v7261 = vunpack.c.l.b16 %v6100
        %v7262 = vunpack.c.h.b16 %v6100
        %v7263 = vunpack.c.l.b16 %v6101
        %v7264 = vunpack.c.h.b16 %v6101
        %v7265 = vunpack.c.l.b16 %v6102
        %v7266 = vunpack.c.h.b16 %v6102
        %v7267 = vunpack.c.l.b16 %v6103
        %v7268 = vunpack.c.h.b16 %v6103
        %v7269 = vunpack.c.l.b16 %v6104
        %v7270 = vunpack.c.h.b16 %v6104
        %v7271 = vunpack.c.l.b16 %v6105
        %v7272 = vunpack.c.h.b16 %v6105
        %v7273 = vunpack.c.l.b16 %v6106
        %v7274 = vunpack.c.h.b16 %v6106
        %v7275 = vunpack.c.l.b16 %v6107
        %v7276 = vunpack.c.h.b16 %v6107
        %v7277 = vunpack.c.l.b16 %v6108
        %v7278 = vunpack.c.h.b16 %v6108
        %v7279 = vunpack.c.l.b16 %v6109
        %v7280 = vunpack.c.h.b16 %v6109
        %v7281 = vunpack.c.l.b16 %v6110
        %v7282 = vunpack.c.h.b16 %v6110
        %v7283 = vunpack.c.l.b16 %v6111
        %v7284 = vunpack.c.h.b16 %v6111
        %v7285 = vunpack.c.l.b16 %v6112
        %v7286 = vunpack.c.h.b16 %v6112
        %v7287 = vunpack.c.l.b16 %v6113
        %v7288 = vunpack.c.h.b16 %v6113
        %v7289 = vunpack.c.l.b16 %v6114
        %v7290 = vunpack.c.h.b16 %v6114
        %v7291 = vunpack.c.l.b16 %v6115
        %v7292 = vunpack.c.h.b16 %v6115
        %v7293 = vunpack.c.l.b16 %v6116
        %v7294 = vunpack.c.h.b16 %v6116
        %v7295 = vunpack.c.l.b16 %v6117
        %v7296 = vunpack.c.h.b16 %v6117
        %v7297 = vunpack.c.l.b16 %v6118
        %v7298 = vunpack.c.h.b16 %v6118
        %v7299 = vunpack.c.l.b16 %v6119
        %v7300 = vunpack.c.h.b16 %v6119
        %v7301 = vunpack.c.l.b16 %v6120
        %v7302 = vunpack.c.h.b16 %v6120
        %v7303 = vunpack.c.l.b16 %v6121
        %v7304 = vunpack.c.h.b16 %v6121
        %v7305 = vunpack.c.l.b16 %v6122
        %v7306 = vunpack.c.h.b16 %v6122
        %v7307 = vunpack.c.l.b16 %v6123
        %v7308 = vunpack.c.h.b16 %v6123
        %v7309 = vunpack.c.l.b16 %v6124
        %v7310 = vunpack.c.h.b16 %v6124
        %v7311 = vunpack.c.l.b16 %v6125
        %v7312 = vunpack.c.h.b16 %v6125
        %v7313 = vunpack.c.l.b16 %v6126
        %v7314 = vunpack.c.h.b16 %v6126
        %v7315 = vunpack.c.l.b16 %v6127
        %v7316 = vunpack.c.h.b16 %v6127
        %v7317 = vunpack.c.l.b16 %v6128
        %v7318 = vunpack.c.h.b16 %v6128
        %v7319 = vunpack.c.l.b16 %v6129
        %v7320 = vunpack.c.h.b16 %v6129
        %v7321 = vunpack.c.l.b16 %v6130
        %v7322 = vunpack.c.h.b16 %v6130
        %v7323 = vunpack.c.l.b16 %v6131
        %v7324 = vunpack.c.h.b16 %v6131
        %v7325 = vunpack.c.l.b16 %v6132
        %v7326 = vunpack.c.h.b16 %v6132
        %v7327 = vunpack.c.l.b16 %v6133
        %v7328 = vunpack.c.h.b16 %v6133
        %v7329 = vunpack.c.l.b16 %v6134
        %v7330 = vunpack.c.h.b16 %v6134
        %v7331 = vunpack.c.l.b16 %v6135
        %v7332 = vunpack.c.h.b16 %v6135
        %v7333 = vunpack.c.l.b16 %v6136
        %v7334 = vunpack.c.h.b16 %v6136
        %v7335 = vunpack.c.l.b16 %v6137
        %v7336 = vunpack.c.h.b16 %v6137
        %v7337 = vunpack.c.l.b16 %v6138
        %v7338 = vunpack.c.h.b16 %v6138
        %v7339 = vunpack.c.l.b16 %v6139
        %v7340 = vunpack.c.h.b16 %v6139
        %v7341 = vunpack.c.l.b16 %v6140
        %v7342 = vunpack.c.h.b16 %v6140
        %v7343 = vunpack.c.l.b16 %v6141
        %v7344 = vunpack.c.h.b16 %v6141
        %v7345 = vunpack.c.l.b16 %v6142
        %v7346 = vunpack.c.h.b16 %v6142
        %v7347 = vunpack.c.l.b16 %v6143
        %v7348 = vunpack.c.h.b16 %v6143
        %v7349 = vunpack.c.l.b16 %v6144
        %v7350 = vunpack.c.h.b16 %v6144
        %v7351 = vunpack.c.l.b16 %v6145
        %v7352 = vunpack.c.h.b16 %v6145
        %v7353 = vunpack.c.l.b16 %v6146
        %v7354 = vunpack.c.h.b16 %v6146
        %v7355 = vunpack.c.l.b16 %v6147
        %v7356 = vunpack.c.h.b16 %v6147
        %v7357 = vunpack.c.l.b16 %v6148
        %v7358 = vunpack.c.h.b16 %v6148
        %v7359 = vunpack.c.l.b16 %v6149
        %v7360 = vunpack.c.h.b16 %v6149
        %v7361 = vunpack.c.l.b16 %v6150
        %v7362 = vunpack.c.h.b16 %v6150
        %v7363 = vunpack.c.l.b16 %v6151
        %v7364 = vunpack.c.h.b16 %v6151
        %v7365 = vunpack.c.l.b16 %v6152
        %v7366 = vunpack.c.h.b16 %v6152
        %v7367 = vunpack.c.l.b16 %v6153
        %v7368 = vunpack.c.h.b16 %v6153
        %v7369 = vunpack.c.l.b16 %v6154
        %v7370 = vunpack.c.h.b16 %v6154
        %v7371 = vunpack.c.l.b16 %v6155
        %v7372 = vunpack.c.h.b16 %v6155
        %v7373 = vunpack.c.l.b16 %v6156
        %v7374 = vunpack.c.h.b16 %v6156
        %v7375 = vunpack.c.l.b16 %v6157
        %v7376 = vunpack.c.h.b16 %v6157
        %v7377 = vunpack.c.l.b16 %v6158
        %v7378 = vunpack.c.h.b16 %v6158
        %v7379 = vunpack.c.l.b16 %v6159
        %v7380 = vunpack.c.h.b16 %v6159
        %v7381 = vunpack.c.l.b16 %v6160
        %v7382 = vunpack.c.h.b16 %v6160
        %v7383 = vunpack.c.l.b16 %v6161
        %v7384 = vunpack.c.h.b16 %v6161
        %v7385 = vunpack.c.l.b16 %v6162
        %v7386 = vunpack.c.h.b16 %v6162
        %v7387 = vunpack.c.l.b16 %v6163
        %v7388 = vunpack.c.h.b16 %v6163
        %v7389 = vunpack.c.l.b16 %v6164
        %v7390 = vunpack.c.h.b16 %v6164
        %v7391 = vunpack.c.l.b16 %v6165
        %v7392 = vunpack.c.h.b16 %v6165
        %v7393 = vunpack.c.l.b16 %v6166
        %v7394 = vunpack.c.h.b16 %v6166
        %v7395 = vunpack.c.l.b16 %v6167
        %v7396 = vunpack.c.h.b16 %v6167
        %v7397 = vunpack.c.l.b16 %v6168
        %v7398 = vunpack.c.h.b16 %v6168
        %v7399 = vunpack.c.l.b16 %v6169
        %v7400 = vunpack.c.h.b16 %v6169
        %v7401 = vunpack.c.l.b16 %v6170
        %v7402 = vunpack.c.h.b16 %v6170
        %v7403 = vunpack.c.l.b16 %v6171
        %v7404 = vunpack.c.h.b16 %v6171
        %v7405 = vunpack.c.l.b16 %v6172
        %v7406 = vunpack.c.h.b16 %v6172
        %v7407 = vunpack.c.l.b16 %v6173
        %v7408 = vunpack.c.h.b16 %v6173
        %v7409 = vunpack.c.l.b16 %v6174
        %v7410 = vunpack.c.h.b16 %v6174
        %v7411 = vunpack.c.l.b16 %v6175
        %v7412 = vunpack.c.h.b16 %v6175
        %v7413 = vunpack.c.l.b16 %v6176
        %v7414 = vunpack.c.h.b16 %v6176
        %v7415 = vunpack.c.l.b16 %v6177
        %v7416 = vunpack.c.h.b16 %v6177
        %v7417 = vunpack.c.l.b16 %v6178
        %v7418 = vunpack.c.h.b16 %v6178
        %v7419 = vunpack.c.l.b16 %v6179
        %v7420 = vunpack.c.h.b16 %v6179
        %v7421 = vunpack.c.l.b16 %v6180
        %v7422 = vunpack.c.h.b16 %v6180
        %v7423 = vunpack.c.l.b16 %v6181
        %v7424 = vunpack.c.h.b16 %v6181
        %v7425 = vunpack.c.l.b16 %v6182
        %v7426 = vunpack.c.h.b16 %v6182
        %v7427 = vunpack.c.l.b16 %v6183
        %v7428 = vunpack.c.h.b16 %v6183
        %v7429 = vunpack.c.l.b16 %v6184
        %v7430 = vunpack.c.h.b16 %v6184
        %v7431 = vunpack.c.l.b16 %v6185
        %v7432 = vunpack.c.h.b16 %v6185
        %v7433 = vunpack.c.l.b16 %v6186
        %v7434 = vunpack.c.h.b16 %v6186
        %v7435 = vunpack.c.l.b16 %v6187
        %v7436 = vunpack.c.h.b16 %v6187
        %v7437 = vunpack.c.l.b16 %v6188
        %v7438 = vunpack.c.h.b16 %v6188
        %v7439 = vunpack.c.l.b16 %v6189
        %v7440 = vunpack.c.h.b16 %v6189
        %v7441 = vunpack.c.l.b16 %v6190
        %v7442 = vunpack.c.h.b16 %v6190
        %v7443 = vunpack.c.l.b16 %v6191
        %v7444 = vunpack.c.h.b16 %v6191
        %v7445 = vunpack.c.l.b16 %v6192
        %v7446 = vunpack.c.h.b16 %v6192
        %v7447 = vunpack.c.l.b16 %v6193
        %v7448 = vunpack.c.h.b16 %v6193
        %v7449 = vunpack.c.l.b16 %v6194
        %v7450 = vunpack.c.h.b16 %v6194
        %v7451 = vunpack.c.l.b16 %v6195
        %v7452 = vunpack.c.h.b16 %v6195
        %v7453 = vunpack.c.l.b16 %v6196
        %v7454 = vunpack.c.h.b16 %v6196
        %v7455 = vunpack.c.l.b16 %v6197
        %v7456 = vunpack.c.h.b16 %v6197
        %v7457 = vunpack.c.l.b16 %v6198
        %v7458 = vunpack.c.h.b16 %v6198
        %v7459 = vunpack.c.l.b16 %v6199
        %v7460 = vunpack.c.h.b16 %v6199
        %v7461 = vunpack.c.l.b16 %v6200
        %v7462 = vunpack.c.h.b16 %v6200
        %v7463 = vunpack.c.l.b16 %v6201
        %v7464 = vunpack.c.h.b16 %v6201
        %v7465 = vunpack.c.l.b16 %v6202
        %v7466 = vunpack.c.h.b16 %v6202
        %v7467 = vunpack.c.l.b16 %v6203
        %v7468 = vunpack.c.h.b16 %v6203
        %v7469 = vunpack.c.l.b16 %v6204
        %v7470 = vunpack.c.h.b16 %v6204
        %v7471 = vunpack.c.l.b16 %v6205
        %v7472 = vunpack.c.h.b16 %v6205
        %v7473 = vunpack.c.l.b16 %v6206
        %v7474 = vunpack.c.h.b16 %v6206
        %v7475 = vunpack.c.l.b16 %v6207
        %v7476 = vunpack.c.h.b16 %v6207
        %v7477 = vunpack.c.l.b16 %v6208
        %v7478 = vunpack.c.h.b16 %v6208
        %v7479 = vunpack.c.l.b16 %v6209
        %v7480 = vunpack.c.h.b16 %v6209
        %v7481 = vunpack.c.l.b16 %v6210
        %v7482 = vunpack.c.h.b16 %v6210
        %v7483 = vunpack.c.l.b16 %v6211
        %v7484 = vunpack.c.h.b16 %v6211
        %v7485 = vunpack.c.l.b16 %v6212
        %v7486 = vunpack.c.h.b16 %v6212
        %v7487 = vunpack.c.l.b16 %v6213
        %v7488 = vunpack.c.h.b16 %v6213
        %v7489 = vunpack.c.l.b16 %v6214
        %v7490 = vunpack.c.h.b16 %v6214
        %v7491 = vunpack.c.l.b16 %v6215
        %v7492 = vunpack.c.h.b16 %v6215
        %v7493 = vunpack.c.l.b16 %v6216
        %v7494 = vunpack.c.h.b16 %v6216
        %v7495 = vunpack.c.l.b16 %v6217
        %v7496 = vunpack.c.h.b16 %v6217
        %v7497 = vunpack.c.l.b16 %v6218
        %v7498 = vunpack.c.h.b16 %v6218
        %v7499 = vunpack.c.l.b16 %v6219
        %v7500 = vunpack.c.h.b16 %v6219
        %v7501 = vunpack.c.l.b16 %v6220
        %v7502 = vunpack.c.h.b16 %v6220
        %v7503 = vunpack.c.l.b16 %v6221
        %v7504 = vunpack.c.h.b16 %v6221
        %v7505 = vunpack.c.l.b16 %v6222
        %v7506 = vunpack.c.h.b16 %v6222
        %v7507 = vunpack.c.l.b16 %v6223
        %v7508 = vunpack.c.h.b16 %v6223
        %v7509 = vunpack.c.l.b16 %v6224
        %v7510 = vunpack.c.h.b16 %v6224
        %v7511 = vunpack.c.l.b16 %v6225
        %v7512 = vunpack.c.h.b16 %v6225
        %v7513 = vunpack.c.l.b16 %v6226
        %v7514 = vunpack.c.h.b16 %v6226
        %v7515 = vunpack.c.l.b16 %v6227
        %v7516 = vunpack.c.h.b16 %v6227
        %v7517 = vunpack.c.l.b16 %v6228
        %v7518 = vunpack.c.h.b16 %v6228
        %v7519 = vunpack.c.l.b16 %v6229
        %v7520 = vunpack.c.h.b16 %v6229
        %v7521 = vunpack.c.l.b16 %v6230
        %v7522 = vunpack.c.h.b16 %v6230
        %v7523 = vunpack.c.l.b16 %v6231
        %v7524 = vunpack.c.h.b16 %v6231
        %v7525 = vunpack.c.l.b16 %v6232
        %v7526 = vunpack.c.h.b16 %v6232
        %v7527 = vunpack.c.l.b16 %v6233
        %v7528 = vunpack.c.h.b16 %v6233
        %v7529 = vunpack.c.l.b16 %v6234
        %v7530 = vunpack.c.h.b16 %v6234
        %v7531 = vunpack.c.l.b16 %v6235
        %v7532 = vunpack.c.h.b16 %v6235
        %v7533 = vunpack.c.l.b16 %v6236
        %v7534 = vunpack.c.h.b16 %v6236
        %v7535 = vunpack.c.l.b16 %v6237
        %v7536 = vunpack.c.h.b16 %v6237
        %v7537 = vunpack.c.l.b16 %v6238
        %v7538 = vunpack.c.h.b16 %v6238
        %v7539 = vunpack.c.l.b16 %v6239
        %v7540 = vunpack.c.h.b16 %v6239
        %v7541 = vunpack.c.l.b16 %v6240
        %v7542 = vunpack.c.h.b16 %v6240
        %v7543 = vunpack.c.l.b16 %v6241
        %v7544 = vunpack.c.h.b16 %v6241
        %v7545 = vunpack.c.l.b16 %v6242
        %v7546 = vunpack.c.h.b16 %v6242
        %v7547 = vunpack.c.l.b16 %v6243
        %v7548 = vunpack.c.h.b16 %v6243
        %v7549 = vunpack.c.l.b16 %v6244
        %v7550 = vunpack.c.h.b16 %v6244
        %v7551 = vunpack.c.l.b16 %v6245
        %v7552 = vunpack.c.h.b16 %v6245
        %v7553 = vunpack.c.l.b16 %v6246
        %v7554 = vunpack.c.h.b16 %v6246
        %v7555 = vunpack.c.l.b16 %v6247
        %v7556 = vunpack.c.h.b16 %v6247
        %v7557 = vunpack.c.l.b16 %v6248
        %v7558 = vunpack.c.h.b16 %v6248
        %v7559 = vunpack.c.l.b16 %v6249
        %v7560 = vunpack.c.h.b16 %v6249
        %v7561 = vunpack.c.l.b16 %v6250
        %v7562 = vunpack.c.h.b16 %v6250
        %v7563 = vunpack.c.l.b16 %v6251
        %v7564 = vunpack.c.h.b16 %v6251
        %v7565 = vunpack.c.l.b16 %v6252
        %v7566 = vunpack.c.h.b16 %v6252
        %v7567 = vunpack.c.l.b16 %v6253
        %v7568 = vunpack.c.h.b16 %v6253
        %v7569 = vunpack.c.l.b16 %v6254
        %v7570 = vunpack.c.h.b16 %v6254
        %v7571 = vunpack.c.l.b16 %v6255
        %v7572 = vunpack.c.h.b16 %v6255
        %v7573 = vunpack.c.l.b16 %v6256
        %v7574 = vunpack.c.h.b16 %v6256
        %v7575 = vunpack.c.l.b16 %v6257
        %v7576 = vunpack.c.h.b16 %v6257
        %v7577 = vunpack.c.l.b16 %v6258
        %v7578 = vunpack.c.h.b16 %v6258
        %v7579 = vunpack.c.l.b16 %v6259
        %v7580 = vunpack.c.h.b16 %v6259
        %v7581 = vunpack.c.l.b16 %v6260
        %v7582 = vunpack.c.h.b16 %v6260
        %v7583 = vunpack.c.l.b16 %v6261
        %v7584 = vunpack.c.h.b16 %v6261
        %v7585 = vunpack.c.l.b16 %v6262
        %v7586 = vunpack.c.h.b16 %v6262
        %v7587 = vunpack.c.l.b16 %v6263
        %v7588 = vunpack.c.h.b16 %v6263
        %v7589 = vunpack.c.l.b16 %v6264
        %v7590 = vunpack.c.h.b16 %v6264
        %v7591 = vunpack.c.l.b16 %v6265
        %v7592 = vunpack.c.h.b16 %v6265
        %v7593 = vunpack.c.l.b16 %v6266
        %v7594 = vunpack.c.h.b16 %v6266
        %v7595 = vunpack.c.l.b16 %v6267
        %v7596 = vunpack.c.h.b16 %v6267
        %v7597 = vunpack.c.l.b16 %v6268
        %v7598 = vunpack.c.h.b16 %v6268
        %v7599 = vunpack.c.l.b16 %v6269
        %v7600 = vunpack.c.h.b16 %v6269
        %v7601 = vunpack.c.l.b16 %v6270
        %v7602 = vunpack.c.h.b16 %v6270
        %v7603 = vunpack.c.l.b16 %v6271
        %v7604 = vunpack.c.h.b16 %v6271
        %v7605 = vunpack.c.l.b16 %v6272
        %v7606 = vunpack.c.h.b16 %v6272
        %v7607 = vunpack.c.l.b16 %v6273
        %v7608 = vunpack.c.h.b16 %v6273
        %v7609 = vunpack.c.l.b16 %v6274
        %v7610 = vunpack.c.h.b16 %v6274
        %v7611 = vunpack.c.l.b16 %v6275
        %v7612 = vunpack.c.h.b16 %v6275
        %v7613 = vunpack.c.l.b16 %v6276
        %v7614 = vunpack.c.h.b16 %v6276
        %v7615 = vunpack.c.l.b16 %v6277
        %v7616 = vunpack.c.h.b16 %v6277
        %v7617 = vunpack.c.l.b16 %v6278
        %v7618 = vunpack.c.h.b16 %v6278
        %v7619 = vunpack.c.l.b16 %v6279
        %v7620 = vunpack.c.h.b16 %v6279
        %v7621 = vunpack.c.l.b16 %v6280
        %v7622 = vunpack.c.h.b16 %v6280
        %v7623 = vunpack.c.l.b16 %v6281
        %v7624 = vunpack.c.h.b16 %v6281
        %v7625 = vunpack.c.l.b16 %v6282
        %v7626 = vunpack.c.h.b16 %v6282
        %v7627 = vunpack.c.l.b16 %v6283
        %v7628 = vunpack.c.h.b16 %v6283
        %v7629 = vunpack.c.l.b16 %v6284
        %v7630 = vunpack.c.h.b16 %v6284
        %v7631 = vunpack.c.l.b16 %v6285
        %v7632 = vunpack.c.h.b16 %v6285
        %v7633 = vunpack.c.l.b16 %v6286
        %v7634 = vunpack.c.h.b16 %v6286
        %v7635 = vunpack.c.l.b16 %v6287
        %v7636 = vunpack.c.h.b16 %v6287
        %v7637 = vunpack.c.l.b16 %v6288
        %v7638 = vunpack.c.h.b16 %v6288
        %v7639 = vunpack.c.l.b16 %v6289
        %v7640 = vunpack.c.h.b16 %v6289
        %v7641 = vunpack.c.l.b16 %v6290
        %v7642 = vunpack.c.h.b16 %v6290
        %v7643 = vunpack.c.l.b16 %v6291
        %v7644 = vunpack.c.h.b16 %v6291
        %v7645 = vunpack.c.l.b16 %v6292
        %v7646 = vunpack.c.h.b16 %v6292
        %v7647 = vunpack.c.l.b16 %v6293
        %v7648 = vunpack.c.h.b16 %v6293
        %v7649 = vunpack.c.l.b16 %v6294
        %v7650 = vunpack.c.h.b16 %v6294
        %v7651 = vunpack.c.l.b16 %v6295
        %v7652 = vunpack.c.h.b16 %v6295
        %v7653 = vunpack.c.l.b16 %v6296
        %v7654 = vunpack.c.h.b16 %v6296
        %v7655 = vunpack.c.l.b16 %v6297
        %v7656 = vunpack.c.h.b16 %v6297
        %v7657 = vunpack.c.l.b16 %v6298
        %v7658 = vunpack.c.h.b16 %v6298
        %v7659 = vunpack.c.l.b16 %v6299
        %v7660 = vunpack.c.h.b16 %v6299
        %v7661 = vunpack.c.l.b16 %v6300
        %v7662 = vunpack.c.h.b16 %v6300
        %v7663 = vunpack.c.l.b16 %v6301
        %v7664 = vunpack.c.h.b16 %v6301
        %v7665 = vunpack.c.l.b16 %v6302
        %v7666 = vunpack.c.h.b16 %v6302
        %v7667 = vunpack.c.l.b16 %v6303
        %v7668 = vunpack.c.h.b16 %v6303
        %v7669 = vunpack.c.l.b16 %v6304
        %v7670 = vunpack.c.h.b16 %v6304
        %v7671 = vunpack.c.l.b16 %v6305
        %v7672 = vunpack.c.h.b16 %v6305
        %v7673 = vunpack.c.l.b16 %v6306
        %v7674 = vunpack.c.h.b16 %v6306
        %v7675 = vunpack.c.l.b16 %v6307
        %v7676 = vunpack.c.h.b16 %v6307
        %v7677 = vunpack.c.l.b16 %v6308
        %v7678 = vunpack.c.h.b16 %v6308
        %v7679 = vunpack.c.l.b16 %v6309
        %v7680 = vunpack.c.h.b16 %v6309
        %v7681 = vunpack.c.l.b16 %v6310
        %v7682 = vunpack.c.h.b16 %v6310
        %v7683 = vunpack.c.l.b16 %v6311
        %v7684 = vunpack.c.h.b16 %v6311
        %v7685 = vunpack.c.l.b16 %v6312
        %v7686 = vunpack.c.h.b16 %v6312
        %v7687 = vunpack.c.l.b16 %v6313
        %v7688 = vunpack.c.h.b16 %v6313
        %v7689 = vunpack.c.l.b16 %v6314
        %v7690 = vunpack.c.h.b16 %v6314
        %v7691 = vunpack.c.l.b16 %v6315
        %v7692 = vunpack.c.h.b16 %v6315
        %v7693 = vunpack.c.l.b16 %v6316
        %v7694 = vunpack.c.h.b16 %v6316
        %v7695 = vunpack.c.l.b16 %v6317
        %v7696 = vunpack.c.h.b16 %v6317
        %v7697 = vunpack.c.l.b16 %v6318
        %v7698 = vunpack.c.h.b16 %v6318
        %v7699 = vunpack.c.l.b16 %v6319
        %v7700 = vunpack.c.h.b16 %v6319
        %v7701 = vunpack.c.l.b16 %v6320
        %v7702 = vunpack.c.h.b16 %v6320
        %v7703 = vunpack.c.l.b16 %v6321
        %v7704 = vunpack.c.h.b16 %v6321
        %v7705 = vunpack.c.l.b16 %v6322
        %v7706 = vunpack.c.h.b16 %v6322
        %v7707 = vunpack.c.l.b16 %v6323
        %v7708 = vunpack.c.h.b16 %v6323
        %v7709 = vunpack.c.l.b16 %v6324
        %v7710 = vunpack.c.h.b16 %v6324
        %v7711 = vunpack.c.l.b16 %v6325
        %v7712 = vunpack.c.h.b16 %v6325
        %v7713 = vunpack.c.l.b16 %v6326
        %v7714 = vunpack.c.h.b16 %v6326
        %v7715 = vunpack.c.l.b16 %v6327
        %v7716 = vunpack.c.h.b16 %v6327
        %v7717 = vunpack.c.l.b16 %v6328
        %v7718 = vunpack.c.h.b16 %v6328
        %v7719 = vunpack.c.l.b16 %v6329
        %v7720 = vunpack.c.h.b16 %v6329
        %v7721 = vunpack.c.l.b16 %v6330
        %v7722 = vunpack.c.h.b16 %v6330
        %v7723 = vunpack.c.l.b16 %v6331
        %v7724 = vunpack.c.h.b16 %v6331
        %v7725 = vunpack.c.l.b16 %v6332
        %v7726 = vunpack.c.h.b16 %v6332
        %v7727 = vunpack.c.l.b16 %v6333
        %v7728 = vunpack.c.h.b16 %v6333
        %v7729 = vunpack.c.l.b16 %v6334
        %v7730 = vunpack.c.h.b16 %v6334
        %v7731 = vunpack.c.l.b16 %v6335
        %v7732 = vunpack.c.h.b16 %v6335
        %v7733 = vunpack.c.l.b16 %v6336
        %v7734 = vunpack.c.h.b16 %v6336
        %v7735 = vunpack.c.l.b16 %v6337
        %v7736 = vunpack.c.h.b16 %v6337
        %v7737 = vunpack.c.l.b16 %v6338
        %v7738 = vunpack.c.h.b16 %v6338
        %v7739 = vunpack.c.l.b16 %v6339
        %v7740 = vunpack.c.h.b16 %v6339
        %v7741 = vunpack.c.l.b16 %v6340
        %v7742 = vunpack.c.h.b16 %v6340
        %v7743 = vunpack.c.l.b16 %v6341
        %v7744 = vunpack.c.h.b16 %v6341
        %v7745 = vunpack.c.l.b16 %v6342
        %v7746 = vunpack.c.h.b16 %v6342
        %v7747 = vunpack.c.l.b16 %v6343
        %v7748 = vunpack.c.h.b16 %v6343
        %v7749 = vunpack.c.l.b16 %v6344
        %v7750 = vunpack.c.h.b16 %v6344
        %v7751 = vunpack.c.l.b16 %v6345
        %v7752 = vunpack.c.h.b16 %v6345
        %v7753 = vunpack.c.l.b16 %v6346
        %v7754 = vunpack.c.h.b16 %v6346
        %v7755 = vunpack.c.l.b16 %v6347
        %v7756 = vunpack.c.h.b16 %v6347
        %v7757 = vunpack.c.l.b16 %v6348
        %v7758 = vunpack.c.h.b16 %v6348
        %v7759 = vunpack.c.l.b16 %v6349
        %v7760 = vunpack.c.h.b16 %v6349
        %v7761 = vunpack.c.l.b16 %v6350
        %v7762 = vunpack.c.h.b16 %v6350
        %v7763 = vunpack.c.l.b16 %v6351
        %v7764 = vunpack.c.h.b16 %v6351
        %v7765 = vunpack.c.l.b16 %v6352
        %v7766 = vunpack.c.h.b16 %v6352
        %v7767 = vunpack.c.l.b16 %v6353
        %v7768 = vunpack.c.h.b16 %v6353
        %v7769 = vunpack.c.l.b16 %v6354
        %v7770 = vunpack.c.h.b16 %v6354
        %v7771 = vunpack.c.l.b16 %v6355
        %v7772 = vunpack.c.h.b16 %v6355
        %v7773 = vunpack.c.l.b16 %v6356
        %v7774 = vunpack.c.h.b16 %v6356
        %v7775 = vunpack.c.l.b16 %v6357
        %v7776 = vunpack.c.h.b16 %v6357
        %v7777 = vunpack.c.l.b16 %v6358
        %v7778 = vunpack.c.h.b16 %v6358
        %v7779 = vunpack.c.l.b16 %v6359
        %v7780 = vunpack.c.h.b16 %v6359
        %v7781 = vunpack.c.l.b16 %v6360
        %v7782 = vunpack.c.h.b16 %v6360
        %v7783 = vunpack.c.l.b16 %v6361
        %v7784 = vunpack.c.h.b16 %v6361
        %v7785 = vunpack.c.l.b16 %v6362
        %v7786 = vunpack.c.h.b16 %v6362
        %v7787 = vunpack.c.l.b16 %v6363
        %v7788 = vunpack.c.h.b16 %v6363
        %v7789 = vunpack.c.l.b16 %v6364
        %v7790 = vunpack.c.h.b16 %v6364
        %v7791 = vunpack.c.l.b16 %v6365
        %v7792 = vunpack.c.h.b16 %v6365
        %v7793 = vunpack.c.l.b16 %v6366
        %v7794 = vunpack.c.h.b16 %v6366
        %v7795 = vunpack.c.l.b16 %v6367
        %v7796 = vunpack.c.h.b16 %v6367
        %v7797 = vunpack.c.l.b16 %v6368
        %v7798 = vunpack.c.h.b16 %v6368
        %v7799 = vunpack.c.l.b16 %v6369
        %v7800 = vunpack.c.h.b16 %v6369
        %v7801 = vunpack.c.l.b16 %v6370
        %v7802 = vunpack.c.h.b16 %v6370
        %v7803 = vunpack.c.l.b16 %v6371
        %v7804 = vunpack.c.h.b16 %v6371
        %v7805 = vunpack.c.l.b16 %v6372
        %v7806 = vunpack.c.h.b16 %v6372
        %v7807 = vunpack.c.l.b16 %v6373
        %v7808 = vunpack.c.h.b16 %v6373
        %v7809 = vunpack.c.l.b16 %v6374
        %v7810 = vunpack.c.h.b16 %v6374
        %v7811 = vunpack.c.l.b16 %v6375
        %v7812 = vunpack.c.h.b16 %v6375
        %v7813 = vunpack.c.l.b16 %v6376
        %v7814 = vunpack.c.h.b16 %v6376
        %v7815 = vunpack.c.l.b16 %v6377
        %v7816 = vunpack.c.h.b16 %v6377
        %v7817 = vunpack.c.l.b16 %v6378
        %v7818 = vunpack.c.h.b16 %v6378
        %v7819 = vunpack.c.l.b16 %v6379
        %v7820 = vunpack.c.h.b16 %v6379
        %v7821 = vunpack.c.l.b16 %v6380
        %v7822 = vunpack.c.h.b16 %v6380
        %v7823 = vunpack.c.l.b16 %v6381
        %v7824 = vunpack.c.h.b16 %v6381
        %v7825 = vunpack.c.l.b16 %v6382
        %v7826 = vunpack.c.h.b16 %v6382
        %v7827 = vunpack.c.l.b16 %v6383
        %v7828 = vunpack.c.h.b16 %v6383
        %v7829 = vunpack.c.l.b16 %v6384
        %v7830 = vunpack.c.h.b16 %v6384
        %v7831 = vunpack.c.l.b16 %v6385
        %v7832 = vunpack.c.h.b16 %v6385
        %v7833 = vunpack.c.l.b16 %v6386
        %v7834 = vunpack.c.h.b16 %v6386
        %v7835 = vunpack.c.l.b16 %v6387
        %v7836 = vunpack.c.h.b16 %v6387
        %v7837 = vunpack.c.l.b16 %v6388
        %v7838 = vunpack.c.h.b16 %v6388
        %v7839 = vunpack.c.l.b16 %v6389
        %v7840 = vunpack.c.h.b16 %v6389
        %v7841 = vunpack.c.l.b16 %v6390
        %v7842 = vunpack.c.h.b16 %v6390
        %v7843 = vunpack.c.l.b16 %v6391
        %v7844 = vunpack.c.h.b16 %v6391
        %v7845 = vunpack.c.l.b16 %v6392
        %v7846 = vunpack.c.h.b16 %v6392
        %v7847 = vunpack.c.l.b16 %v6393
        %v7848 = vunpack.c.h.b16 %v6393
        %v7849 = vunpack.c.l.b16 %v6394
        %v7850 = vunpack.c.h.b16 %v6394
        %v7851 = vunpack.c.l.b16 %v6395
        %v7852 = vunpack.c.h.b16 %v6395
        %v7853 = vunpack.c.l.b16 %v6396
        %v7854 = vunpack.c.h.b16 %v6396
        %v7855 = vunpack.c.l.b16 %v6397
        %v7856 = vunpack.c.h.b16 %v6397
        %v7857 = vunpack.c.l.b16 %v6398
        %v7858 = vunpack.c.h.b16 %v6398
        %v7859 = vunpack.c.l.b16 %v6399
        %v7860 = vunpack.c.h.b16 %v6399
        %v7861 = vunpack.c.l.b16 %v6400
        %v7862 = vunpack.c.h.b16 %v6400
        %v7863 = vunpack.c.l.b16 %v6401
        %v7864 = vunpack.c.h.b16 %v6401
        %v7865 = vunpack.c.l.b16 %v6402
        %v7866 = vunpack.c.h.b16 %v6402
        %v7867 = vunpack.c.l.b16 %v6403
        %v7868 = vunpack.c.h.b16 %v6403
        %v7869 = vunpack.c.l.b16 %v6404
        %v7870 = vunpack.c.h.b16 %v6404
        %v7871 = vunpack.c.l.b16 %v6405
        %v7872 = vunpack.c.h.b16 %v6405
        %v7873 = vunpack.c.l.b16 %v6406
        %v7874 = vunpack.c.h.b16 %v6406
        %v7875 = vunpack.c.l.b16 %v6407
        %v7876 = vunpack.c.h.b16 %v6407
        %v7877 = vunpack.c.l.b16 %v6408
        %v7878 = vunpack.c.h.b16 %v6408
        %v7879 = vunpack.c.l.b16 %v6409
        %v7880 = vunpack.c.h.b16 %v6409
        %v7881 = vunpack.c.l.b16 %v6410
        %v7882 = vunpack.c.h.b16 %v6410
        %v7883 = vunpack.c.l.b16 %v6411
        %v7884 = vunpack.c.h.b16 %v6411
        %v7885 = vunpack.c.l.b16 %v6412
        %v7886 = vunpack.c.h.b16 %v6412
        %v7887 = vunpack.c.l.b16 %v6413
        %v7888 = vunpack.c.h.b16 %v6413
        %v7889 = vunpack.c.l.b16 %v6414
        %v7890 = vunpack.c.h.b16 %v6414
        %v7891 = vunpack.c.l.b16 %v6415
        %v7892 = vunpack.c.h.b16 %v6415
        %v7893 = vunpack.c.l.b16 %v6416
        %v7894 = vunpack.c.h.b16 %v6416
        %v7895 = vunpack.c.l.b16 %v6417
        %v7896 = vunpack.c.h.b16 %v6417
        %v7897 = vunpack.c.l.b16 %v6418
        %v7898 = vunpack.c.h.b16 %v6418
        %v7899 = vunpack.c.l.b16 %v6419
        %v7900 = vunpack.c.h.b16 %v6419
        %v7901 = vunpack.c.l.b16 %v6420
        %v7902 = vunpack.c.h.b16 %v6420
        %v7903 = vunpack.c.l.b16 %v6421
        %v7904 = vunpack.c.h.b16 %v6421
        %v7905 = vunpack.c.l.b16 %v6422
        %v7906 = vunpack.c.h.b16 %v6422
        %v7907 = vunpack.c.l.b16 %v6423
        %v7908 = vunpack.c.h.b16 %v6423
        %v7909 = vunpack.c.l.b16 %v6424
        %v7910 = vunpack.c.h.b16 %v6424
        %v7911 = vunpack.c.l.b16 %v6425
        %v7912 = vunpack.c.h.b16 %v6425
        %v7913 = vunpack.c.l.b16 %v6426
        %v7914 = vunpack.c.h.b16 %v6426
        %v7915 = vunpack.c.l.b16 %v6427
        %v7916 = vunpack.c.h.b16 %v6427
        %v7917 = vunpack.c.l.b16 %v6428
        %v7918 = vunpack.c.h.b16 %v6428
        %v7919 = vunpack.c.l.b16 %v6429
        %v7920 = vunpack.c.h.b16 %v6429
        %v7921 = vunpack.c.l.b16 %v6430
        %v7922 = vunpack.c.h.b16 %v6430
        %v7923 = vunpack.c.l.b16 %v6431
        %v7924 = vunpack.c.h.b16 %v6431
        %v7925 = vunpack.c.l.b16 %v6432
        %v7926 = vunpack.c.h.b16 %v6432
        %v7927 = vunpack.c.l.b16 %v6433
        %v7928 = vunpack.c.h.b16 %v6433
        %v7929 = vunpack.c.l.b16 %v6434
        %v7930 = vunpack.c.h.b16 %v6434
        %v7931 = vunpack.c.l.b16 %v6435
        %v7932 = vunpack.c.h.b16 %v6435
        %v7933 = vunpack.c.l.b16 %v6436
        %v7934 = vunpack.c.h.b16 %v6436
        %v7935 = vunpack.c.l.b16 %v6437
        %v7936 = vunpack.c.h.b16 %v6437
        %v7937 = vunpack.c.l.b16 %v6438
        %v7938 = vunpack.c.h.b16 %v6438
        %v7939 = vunpack.c.l.b16 %v6439
        %v7940 = vunpack.c.h.b16 %v6439
        %v7941 = vunpack.c.l.b16 %v6440
        %v7942 = vunpack.c.h.b16 %v6440
        %v7943 = vunpack.c.l.b16 %v6441
        %v7944 = vunpack.c.h.b16 %v6441
        %v7945 = vunpack.c.l.b16 %v6442
        %v7946 = vunpack.c.h.b16 %v6442
        %v7947 = vunpack.c.l.b16 %v6443
        %v7948 = vunpack.c.h.b16 %v6443
        %v7949 = vunpack.c.l.b16 %v6444
        %v7950 = vunpack.c.h.b16 %v6444
        %v7951 = vunpack.c.l.b16 %v6445
        %v7952 = vunpack.c.h.b16 %v6445
        %v7953 = vunpack.c.l.b16 %v6446
        %v7954 = vunpack.c.h.b16 %v6446
        %v7955 = vunpack.c.l.b16 %v6447
        %v7956 = vunpack.c.h.b16 %v6447
        %v7957 = vunpack.c.l.b16 %v6448
        %v7958 = vunpack.c.h.b16 %v6448
        %v7959 = vunpack.c.l.b16 %v6449
        %v7960 = vunpack.c.h.b16 %v6449
        %v7961 = vunpack.c.l.b16 %v6450
        %v7962 = vunpack.c.h.b16 %v6450
        %v7963 = vunpack.c.l.b16 %v6451
        %v7964 = vunpack.c.h.b16 %v6451
        %v7965 = vunpack.c.l.b16 %v6452
        %v7966 = vunpack.c.h.b16 %v6452
        %v7967 = vunpack.c.l.b16 %v6453
        %v7968 = vunpack.c.h.b16 %v6453
        %v7969 = vunpack.c.l.b16 %v6454
        %v7970 = vunpack.c.h.b16 %v6454
        %v7971 = vunpack.c.l.b16 %v6455
        %v7972 = vunpack.c.h.b16 %v6455
        %v7973 = vunpack.c.l.b16 %v6456
        %v7974 = vunpack.c.h.b16 %v6456
        %v7975 = vunpack.c.l.b16 %v6457
        %v7976 = vunpack.c.h.b16 %v6457
        %v7977 = vunpack.c.l.b16 %v6458
        %v7978 = vunpack.c.h.b16 %v6458
        %v7979 = vunpack.c.l.b16 %v6459
        %v7980 = vunpack.c.h.b16 %v6459
        %v7981 = vunpack.c.l.b16 %v6460
        %v7982 = vunpack.c.h.b16 %v6460
        %v7983 = vunpack.c.l.b16 %v6461
        %v7984 = vunpack.c.h.b16 %v6461
        %v7985 = vunpack.c.l.b16 %v6462
        %v7986 = vunpack.c.h.b16 %v6462
        %v7987 = vunpack.c.l.b16 %v6463
        %v7988 = vunpack.c.h.b16 %v6463
        %v7989 = vunpack.c.l.b16 %v6464
        %v7990 = vunpack.c.h.b16 %v6464
        %v7991 = vunpack.c.l.b16 %v6465
        %v7992 = vunpack.c.h.b16 %v6465
        %v7993 = vunpack.c.l.b16 %v6466
        %v7994 = vunpack.c.h.b16 %v6466
        %v7995 = vunpack.c.l.b16 %v6467
        %v7996 = vunpack.c.h.b16 %v6467
        %v7997 = vunpack.c.l.b16 %v6468
        %v7998 = vunpack.c.h.b16 %v6468
        %v7999 = vunpack.c.l.b16 %v6469
        %v8000 = vunpack.c.h.b16 %v6469
        %v8001 = vunpack.c.l.b16 %v6470
        %v8002 = vunpack.c.h.b16 %v6470
        %v8003 = vunpack.c.l.b16 %v6471
        %v8004 = vunpack.c.h.b16 %v6471
        %v8005 = vunpack.c.l.b16 %v6472
        %v8006 = vunpack.c.h.b16 %v6472
        %v8007 = vunpack.c.l.b16 %v6473
        %v8008 = vunpack.c.h.b16 %v6473
        %v8009 = vunpack.c.l.b16 %v6474
        %v8010 = vunpack.c.h.b16 %v6474
        %v8011 = vunpack.c.l.b16 %v6475
        %v8012 = vunpack.c.h.b16 %v6475
        %v8013 = vunpack.c.l.b16 %v6476
        %v8014 = vunpack.c.h.b16 %v6476
        %v8015 = vunpack.c.l.b16 %v6477
        %v8016 = vunpack.c.h.b16 %v6477
        %v8017 = vunpack.c.l.b16 %v6478
        %v8018 = vunpack.c.h.b16 %v6478
        %v8019 = vunpack.c.l.b16 %v6479
        %v8020 = vunpack.c.h.b16 %v6479
        %v8021 = vunpack.c.l.b16 %v6480
        %v8022 = vunpack.c.h.b16 %v6480
        %v8023 = vunpack.c.l.b16 %v6481
        %v8024 = vunpack.c.h.b16 %v6481
        %v8025 = vunpack.c.l.b16 %v6482
        %v8026 = vunpack.c.h.b16 %v6482
        %v8027 = vunpack.c.l.b16 %v6483
        %v8028 = vunpack.c.h.b16 %v6483
        %v8029 = vunpack.c.l.b16 %v6484
        %v8030 = vunpack.c.h.b16 %v6484
        %v8031 = vunpack.c.l.b16 %v6485
        %v8032 = vunpack.c.h.b16 %v6485
        %v8033 = vunpack.c.l.b16 %v6486
        %v8034 = vunpack.c.h.b16 %v6486
        %v8035 = vunpack.c.l.b16 %v6487
        %v8036 = vunpack.c.h.b16 %v6487
        %v8037 = vunpack.c.l.b16 %v6488
        %v8038 = vunpack.c.h.b16 %v6488
        %v8039 = vunpack.c.l.b16 %v6489
        %v8040 = vunpack.c.h.b16 %v6489
        %v8041 = vunpack.c.l.b16 %v6490
        %v8042 = vunpack.c.h.b16 %v6490
        %v8043 = vunpack.c.l.b16 %v6491
        %v8044 = vunpack.c.h.b16 %v6491
        %v8045 = vunpack.c.l.b16 %v6492
        %v8046 = vunpack.c.h.b16 %v6492
        %v8047 = vunpack.c.l.b16 %v6493
        %v8048 = vunpack.c.h.b16 %v6493
        %v8049 = vunpack.c.l.b16 %v6494
        %v8050 = vunpack.c.h.b16 %v6494
        %v8051 = vunpack.c.l.b16 %v6495
        %v8052 = vunpack.c.h.b16 %v6495
        %v8053 = vunpack.c.l.b16 %v6496
        %v8054 = vunpack.c.h.b16 %v6496
        %v8055 = vunpack.c.l.b16 %v6497
        %v8056 = vunpack.c.h.b16 %v6497
        %v8057 = vunpack.c.l.b16 %v6498
        %v8058 = vunpack.c.h.b16 %v6498
        %v8059 = vunpack.c.l.b16 %v6499
        %v8060 = vunpack.c.h.b16 %v6499
        %v8061 = vunpack.c.l.b16 %v6500
        %v8062 = vunpack.c.h.b16 %v6500
        %v8063 = vunpack.c.l.b16 %v6501
        %v8064 = vunpack.c.h.b16 %v6501
        %v8065 = vunpack.c.l.b16 %v6502
        %v8066 = vunpack.c.h.b16 %v6502
        %v8067 = vunpack.c.l.b16 %v6503
        %v8068 = vunpack.c.h.b16 %v6503
        %v8069 = vunpack.c.l.b16 %v6504
        %v8070 = vunpack.c.h.b16 %v6504
        %v8071 = vunpack.c.l.b16 %v6505
        %v8072 = vunpack.c.h.b16 %v6505
        %v8073 = vunpack.c.l.b16 %v6506
        %v8074 = vunpack.c.h.b16 %v6506
        %v8075 = vunpack.c.l.b16 %v6507
        %v8076 = vunpack.c.h.b16 %v6507
        %v8077 = vunpack.c.l.b16 %v6508
        %v8078 = vunpack.c.h.b16 %v6508
        %v8079 = vunpack.c.l.b16 %v6509
        %v8080 = vunpack.c.h.b16 %v6509
        %v8081 = vunpack.c.l.b16 %v6510
        %v8082 = vunpack.c.h.b16 %v6510
        %v8083 = vunpack.c.l.b16 %v6511
        %v8084 = vunpack.c.h.b16 %v6511
        %v8085 = vunpack.c.l.b16 %v6512
        %v8086 = vunpack.c.h.b16 %v6512
        %v8087 = vunpack.c.l.b16 %v6513
        %v8088 = vunpack.c.h.b16 %v6513
        %v8089 = vunpack.c.l.b16 %v6514
        %v8090 = vunpack.c.h.b16 %v6514
        %v8091 = vunpack.c.l.b16 %v6515
        %v8092 = vunpack.c.h.b16 %v6515
        %v8093 = vunpack.c.l.b16 %v6516
        %v8094 = vunpack.c.h.b16 %v6516
        %v8095 = vunpack.c.l.b16 %v6517
        %v8096 = vunpack.c.h.b16 %v6517
        %v8097 = vunpack.c.l.b16 %v6518
        %v8098 = vunpack.c.h.b16 %v6518
        %v8099 = vunpack.c.l.b16 %v6519
        %v8100 = vunpack.c.h.b16 %v6519
        %v8101 = vunpack.c.l.b16 %v6520
        %v8102 = vunpack.c.h.b16 %v6520
        %v8103 = vunpack.c.l.b16 %v6521
        %v8104 = vunpack.c.h.b16 %v6521
        %v8105 = vunpack.c.l.b16 %v6522
        %v8106 = vunpack.c.h.b16 %v6522
        %v8107 = vunpack.c.l.b16 %v6523
        %v8108 = vunpack.c.h.b16 %v6523
        %v8109 = vunpack.c.l.b16 %v6524
        %v8110 = vunpack.c.h.b16 %v6524
        %v8111 = vunpack.c.l.b16 %v6525
        %v8112 = vunpack.c.h.b16 %v6525
        %v8113 = vunpack.c.l.b16 %v6526
        %v8114 = vunpack.c.h.b16 %v6526
        %v8115 = vunpack.c.l.b16 %v6527
        %v8116 = vunpack.c.h.b16 %v6527
        %v8117 = vunpack.c.l.b16 %v6528
        %v8118 = vunpack.c.h.b16 %v6528
        %v8119 = vunpack.c.l.b16 %v6529
        %v8120 = vunpack.c.h.b16 %v6529
        %v8121 = vunpack.c.l.b16 %v6530
        %v8122 = vunpack.c.h.b16 %v6530
        %v8123 = vunpack.c.l.b16 %v6531
        %v8124 = vunpack.c.h.b16 %v6531
        %v8125 = vunpack.c.l.b16 %v6532
        %v8126 = vunpack.c.h.b16 %v6532
        %v8127 = vunpack.c.l.b16 %v6533
        %v8128 = vunpack.c.h.b16 %v6533
        %v8129 = vunpack.c.l.b16 %v6534
        %v8130 = vunpack.c.h.b16 %v6534
        %v8131 = vunpack.c.l.b16 %v6535
        %v8132 = vunpack.c.h.b16 %v6535
        %v8133 = vunpack.c.l.b16 %v6536
        %v8134 = vunpack.c.h.b16 %v6536
        %v8135 = vunpack.c.l.b16 %v6537
        %v8136 = vunpack.c.h.b16 %v6537
        %v8137 = vunpack.c.l.b16 %v6538
        %v8138 = vunpack.c.h.b16 %v6538
        %v8139 = vunpack.c.l.b16 %v6539
        %v8140 = vunpack.c.h.b16 %v6539
        %v8141 = vunpack.c.l.b16 %v6540
        %v8142 = vunpack.c.h.b16 %v6540
        %v8143 = vunpack.c.l.b16 %v6541
        %v8144 = vunpack.c.h.b16 %v6541
        %v8145 = vunpack.c.l.b16 %v6542
        %v8146 = vunpack.c.h.b16 %v6542
        %v8147 = vunpack.c.l.b16 %v6543
        %v8148 = vunpack.c.h.b16 %v6543
        %v8149 = vunpack.c.l.b16 %v6544
        %v8150 = vunpack.c.h.b16 %v6544
        %v8151 = vunpack.c.l.b16 %v6545
        %v8152 = vunpack.c.h.b16 %v6545
        %v8153 = vunpack.c.l.b16 %v6546
        %v8154 = vunpack.c.h.b16 %v6546
        %v8155 = vunpack.c.l.b16 %v6547
        %v8156 = vunpack.c.h.b16 %v6547
        %v8157 = vunpack.c.l.b16 %v6548
        %v8158 = vunpack.c.h.b16 %v6548
        %v8159 = vunpack.c.l.b16 %v6549
        %v8160 = vunpack.c.h.b16 %v6549
        %v8161 = vunpack.c.l.b16 %v6550
        %v8162 = vunpack.c.h.b16 %v6550
        %v8163 = vunpack.c.l.b16 %v6551
        %v8164 = vunpack.c.h.b16 %v6551
        %v8165 = vunpack.c.l.b16 %v6552
        %v8166 = vunpack.c.h.b16 %v6552
        %v8167 = vunpack.c.l.b16 %v6553
        %v8168 = vunpack.c.h.b16 %v6553
        %v8169 = vunpack.c.l.b16 %v6554
        %v8170 = vunpack.c.h.b16 %v6554
        %v8171 = vunpack.c.l.b16 %v6555
        %v8172 = vunpack.c.h.b16 %v6555
        %v8173 = vunpack.c.l.b16 %v6556
        %v8174 = vunpack.c.h.b16 %v6556
        %v8175 = vunpack.c.l.b16 %v6557
        %v8176 = vunpack.c.h.b16 %v6557
        %v8177 = vunpack.c.l.b16 %v6558
        %v8178 = vunpack.c.h.b16 %v6558
        %v8179 = vunpack.c.l.b16 %v6559
        %v8180 = vunpack.c.h.b16 %v6559
        %v8181 = vunpack.c.l.b16 %v6560
        %v8182 = vunpack.c.h.b16 %v6560
        %v8183 = vunpack.c.l.b16 %v6561
        %v8184 = vunpack.c.h.b16 %v6561
        %v8185 = vunpack.c.l.b16 %v6562
        %v8186 = vunpack.c.h.b16 %v6562
        %v8187 = vunpack.c.l.b16 %v6563
        %v8188 = vunpack.c.h.b16 %v6563
        %v8189 = vunpack.c.l.b16 %v6564
        %v8190 = vunpack.c.h.b16 %v6564
        %v8191 = vunpack.c.l.b16 %v6565
        %v8192 = vunpack.c.h.b16 %v6565
        %v8193 = vunpack.c.l.b16 %v6566
        %v8194 = vunpack.c.h.b16 %v6566
        %v8195 = vunpack.c.l.b16 %v6567
        %v8196 = vunpack.c.h.b16 %v6567
        %v8197 = vunpack.c.l.b16 %v6568
        %v8198 = vunpack.c.h.b16 %v6568
        %v8199 = vunpack.c.l.b16 %v6569
        %v8200 = vunpack.c.h.b16 %v6569
        %v8201 = vunpack.c.l.b16 %v6570
        %v8202 = vunpack.c.h.b16 %v6570
        %v8203 = vunpack.c.l.b16 %v6571
        %v8204 = vunpack.c.h.b16 %v6571
        %v8205 = vunpack.c.l.b16 %v6572
        %v8206 = vunpack.c.h.b16 %v6572
        %v8207 = vunpack.c.l.b16 %v6573
        %v8208 = vunpack.c.h.b16 %v6573
        %v8209 = vunpack.c.l.b16 %v6574
        %v8210 = vunpack.c.h.b16 %v6574
        %v8211 = vunpack.c.l.b16 %v6575
        %v8212 = vunpack.c.h.b16 %v6575
        %v8213 = vunpack.c.l.b16 %v6576
        %v8214 = vunpack.c.h.b16 %v6576
        %v8215 = vunpack.c.l.b16 %v6577
        %v8216 = vunpack.c.h.b16 %v6577
        %v8217 = vunpack.c.l.b16 %v6578
        %v8218 = vunpack.c.h.b16 %v6578
        %v8219 = vunpack.c.l.b16 %v6579
        %v8220 = vunpack.c.h.b16 %v6579
        %v8221 = vunpack.c.l.b16 %v6580
        %v8222 = vunpack.c.h.b16 %v6580
        %v8223 = vunpack.c.l.b16 %v6581
        %v8224 = vunpack.c.h.b16 %v6581
        %v8225 = vunpack.c.l.b16 %v6582
        %v8226 = vunpack.c.h.b16 %v6582
        %v8227 = vunpack.c.l.b16 %v6583
        %v8228 = vunpack.c.h.b16 %v6583
        %v8229 = vunpack.c.l.b16 %v6584
        %v8230 = vunpack.c.h.b16 %v6584
        %v8231 = vunpack.c.l.b16 %v6585
        %v8232 = vunpack.c.h.b16 %v6585
        %v8233 = vunpack.c.l.b16 %v6586
        %v8234 = vunpack.c.h.b16 %v6586
        %v8235 = vunpack.c.l.b16 %v6587
        %v8236 = vunpack.c.h.b16 %v6587
        %v8237 = vunpack.c.l.b16 %v6588
        %v8238 = vunpack.c.h.b16 %v6588
        %v8239 = vunpack.c.l.b16 %v6589
        %v8240 = vunpack.c.h.b16 %v6589
        %v8241 = vunpack.c.l.b16 %v6590
        %v8242 = vunpack.c.h.b16 %v6590
        %v8243 = vunpack.c.l.b16 %v6591
        %v8244 = vunpack.c.h.b16 %v6591
        %v8245 = vunpack.c.l.b16 %v6592
        %v8246 = vunpack.c.h.b16 %v6592
        %v8247 = vunpack.c.l.b16 %v6593
        %v8248 = vunpack.c.h.b16 %v6593
        %v8249 = vunpack.c.l.b16 %v6594
        %v8250 = vunpack.c.h.b16 %v6594
        %v8251 = vunpack.c.l.b16 %v6595
        %v8252 = vunpack.c.h.b16 %v6595
        %v8253 = vunpack.c.l.b16 %v6596
        %v8254 = vunpack.c.h.b16 %v6596
        %v8255 = vunpack.c.l.b16 %v6597
        %v8256 = vunpack.c.h.b16 %v6597
        %v8257 = vunpack.c.l.b16 %v6598
        %v8258 = vunpack.c.h.b16 %v6598
        %v8259 = vunpack.c.l.b16 %v6599
        %v8260 = vunpack.c.h.b16 %v6599
        %v8261 = vunpack.c.l.b16 %v6600
        %v8262 = vunpack.c.h.b16 %v6600
        %v8263 = vunpack.c.l.b16 %v6601
        %v8264 = vunpack.c.h.b16 %v6601
        %v8265 = vunpack.c.l.b16 %v6602
        %v8266 = vunpack.c.h.b16 %v6602
        %v8267 = vunpack.c.l.b16 %v6603
        %v8268 = vunpack.c.h.b16 %v6603
        %v8269 = vunpack.c.l.b16 %v6604
        %v8270 = vunpack.c.h.b16 %v6604
        %v8271 = vunpack.c.l.b16 %v6605
        %v8272 = vunpack.c.h.b16 %v6605
        %v8273 = vunpack.c.l.b16 %v6606
        %v8274 = vunpack.c.h.b16 %v6606
        %v8275 = vunpack.c.l.b16 %v6607
        %v8276 = vunpack.c.h.b16 %v6607
        %v8277 = vunpack.c.l.b16 %v6608
        %v8278 = vunpack.c.h.b16 %v6608
        %v8279 = vunpack.c.l.b16 %v6609
        %v8280 = vunpack.c.h.b16 %v6609
        %v8281 = vunpack.c.l.b16 %v6610
        %v8282 = vunpack.c.h.b16 %v6610
        %v8283 = vunpack.c.l.b16 %v6611
        %v8284 = vunpack.c.h.b16 %v6611
        %v8285 = vunpack.c.l.b16 %v6612
        %v8286 = vunpack.c.h.b16 %v6612
        %v8287 = vunpack.c.l.b16 %v6613
        %v8288 = vunpack.c.h.b16 %v6613
        %v8289 = vunpack.c.l.b16 %v6614
        %v8290 = vunpack.c.h.b16 %v6614
        %v8291 = vunpack.c.l.b16 %v6615
        %v8292 = vunpack.c.h.b16 %v6615
        %v8293 = vunpack.c.l.b16 %v6616
        %v8294 = vunpack.c.h.b16 %v6616
        %v8295 = vunpack.c.l.b16 %v6617
        %v8296 = vunpack.c.h.b16 %v6617
        %v8297 = vunpack.c.l.b16 %v6618
        %v8298 = vunpack.c.h.b16 %v6618
        %v8299 = vunpack.c.l.b16 %v6619
        %v8300 = vunpack.c.h.b16 %v6619
        %v8301 = vunpack.c.l.b16 %v6620
        %v8302 = vunpack.c.h.b16 %v6620
        %v8303 = vunpack.c.l.b16 %v6621
        %v8304 = vunpack.c.h.b16 %v6621
        %v8305 = vunpack.c.l.b16 %v6622
        %v8306 = vunpack.c.h.b16 %v6622
        %v8307 = vunpack.c.l.b16 %v6623
        %v8308 = vunpack.c.h.b16 %v6623
        %v8309 = vunpack.c.l.b16 %v6624
        %v8310 = vunpack.c.h.b16 %v6624
        %v8311 = vunpack.c.l.b16 %v6625
        %v8312 = vunpack.c.h.b16 %v6625
        %v8313 = vunpack.c.l.b16 %v6626
        %v8314 = vunpack.c.h.b16 %v6626
        %v8315 = vunpack.c.l.b16 %v6627
        %v8316 = vunpack.c.h.b16 %v6627
        %v8317 = vunpack.c.l.b16 %v6628
        %v8318 = vunpack.c.h.b16 %v6628
        %v8319 = vunpack.c.l.b16 %v6629
        %v8320 = vunpack.c.h.b16 %v6629
        %v8321 = vunpack.c.l.b16 %v6630
        %v8322 = vunpack.c.h.b16 %v6630
        %v8323 = vunpack.c.l.b16 %v6631
        %v8324 = vunpack.c.h.b16 %v6631
        %v8325 = vunpack.c.l.b16 %v6632
        %v8326 = vunpack.c.h.b16 %v6632
        %v8327 = vunpack.c.l.b16 %v6633
        %v8328 = vunpack.c.h.b16 %v6633
        %v8329 = vunpack.c.l.b16 %v6634
        %v8330 = vunpack.c.h.b16 %v6634
        %v8331 = vunpack.c.l.b16 %v6635
        %v8332 = vunpack.c.h.b16 %v6635
        %v8333 = vunpack.c.l.b16 %v6636
        %v8334 = vunpack.c.h.b16 %v6636
        %v8335 = vunpack.c.l.b16 %v6637
        %v8336 = vunpack.c.h.b16 %v6637
        %v8337 = vunpack.c.l.b16 %v6638
        %v8338 = vunpack.c.h.b16 %v6638
        %v8339 = vunpack.c.l.b16 %v6639
        %v8340 = vunpack.c.h.b16 %v6639
        %v8341 = vunpack.c.l.b16 %v6640
        %v8342 = vunpack.c.h.b16 %v6640
        %v8343 = vunpack.c.l.b16 %v6641
        %v8344 = vunpack.c.h.b16 %v6641
        %v8345 = vunpack.c.l.b16 %v6642
        %v8346 = vunpack.c.h.b16 %v6642
        %v8347 = vunpack.c.l.b16 %v6643
        %v8348 = vunpack.c.h.b16 %v6643
        %v8349 = vunpack.c.l.b16 %v6644
        %v8350 = vunpack.c.h.b16 %v6644
        %v8351 = vunpack.c.l.b16 %v6645
        %v8352 = vunpack.c.h.b16 %v6645
        %v8353 = vunpack.c.l.b16 %v6646
        %v8354 = vunpack.c.h.b16 %v6646
        %v8355 = vunpack.c.l.b16 %v6647
        %v8356 = vunpack.c.h.b16 %v6647
        %v8357 = vunpack.c.l.b16 %v6648
        %v8358 = vunpack.c.h.b16 %v6648
        %v8359 = vunpack.c.l.b16 %v6649
        %v8360 = vunpack.c.h.b16 %v6649
        %v8361 = vunpack.c.l.b16 %v6650
        %v8362 = vunpack.c.h.b16 %v6650
        %v8363 = vunpack.c.l.b16 %v6651
        %v8364 = vunpack.c.h.b16 %v6651
        %v8365 = vunpack.c.l.b16 %v6652
        %v8366 = vunpack.c.h.b16 %v6652
        %v8367 = vunpack.c.l.b16 %v6653
        %v8368 = vunpack.c.h.b16 %v6653
        %v8369 = vunpack.c.l.b16 %v6654
        %v8370 = vunpack.c.h.b16 %v6654
        %v8371 = vunpack.c.l.b16 %v6655
        %v8372 = vunpack.c.h.b16 %v6655
        %v8373 = vunpack.c.l.b16 %v6656
        %v8374 = vunpack.c.h.b16 %v6656
        %v8375 = vunpack.c.l.b16 %v6657
        %v8376 = vunpack.c.h.b16 %v6657
        %v8377 = vunpack.c.l.b16 %v6658
        %v8378 = vunpack.c.h.b16 %v6658
        %v8379 = vunpack.c.l.b16 %v6659
        %v8380 = vunpack.c.h.b16 %v6659
        %v8381 = vunpack.c.l.b16 %v6660
        %v8382 = vunpack.c.h.b16 %v6660
        %v8383 = vunpack.c.l.b16 %v6661
        %v8384 = vunpack.c.h.b16 %v6661
        %v8385 = vunpack.c.l.b16 %v6662
        %v8386 = vunpack.c.h.b16 %v6662
        %v8387 = vunpack.c.l.b16 %v6663
        %v8388 = vunpack.c.h.b16 %v6663
        %v8389 = vunpack.c.l.b16 %v6664
        %v8390 = vunpack.c.h.b16 %v6664
        %v8391 = vunpack.c.l.b16 %v6665
        %v8392 = vunpack.c.h.b16 %v6665
        %v8393 = vunpack.c.l.b16 %v6666
        %v8394 = vunpack.c.h.b16 %v6666
        %v8395 = vpack.c.b16 %v7249, %v7243
        %v8396 = vpack.c.b16 %v7250, %v7244
        %v8397 = vpack.c.b16 %v7251, %v7245
        %v8398 = vpack.c.b16 %v7252, %v7246
        %v8399 = vpack.c.b16 %v7253, %v7247
        %v8400 = vpack.c.b16 %v7254, %v7248
        %v8401 = vpack.c.b16 %v7261, %v7255
        %v8402 = vpack.c.b16 %v7262, %v7256
        %v8403 = vpack.c.b16 %v7263, %v7257
        %v8404 = vpack.c.b16 %v7264, %v7258
        %v8405 = vpack.c.b16 %v7265, %v7259
        %v8406 = vpack.c.b16 %v7266, %v7260
        %v8407 = vpack.c.b16 %v7273, %v7267
        %v8408 = vpack.c.b16 %v7274, %v7268
        %v8409 = vpack.c.b16 %v7275, %v7269
        %v8410 = vpack.c.b16 %v7276, %v7270
        %v8411 = vpack.c.b16 %v7277, %v7271
        %v8412 = vpack.c.b16 %v7278, %v7272
        %v8413 = vpack.c.b16 %v7285, %v7279
        %v8414 = vpack.c.b16 %v7286, %v7280
        %v8415 = vpack.c.b16 %v7287, %v7281
        %v8416 = vpack.c.b16 %v7288, %v7282
        %v8417 = vpack.c.b16 %v7289, %v7283
        %v8418 = vpack.c.b16 %v7290, %v7284
        %v8419 = vpack.c.b16 %v7297, %v7291
        %v8420 = vpack.c.b16 %v7298, %v7292
        %v8421 = vpack.c.b16 %v7299, %v7293
        %v8422 = vpack.c.b16 %v7300, %v7294
        %v8423 = vpack.c.b16 %v7301, %v7295
        %v8424 = vpack.c.b16 %v7302, %v7296
        %v8425 = vpack.c.b16 %v7309, %v7303
        %v8426 = vpack.c.b16 %v7310, %v7304
        %v8427 = vpack.c.b16 %v7311, %v7305
        %v8428 = vpack.c.b16 %v7312, %v7306
        %v8429 = vpack.c.b16 %v7313, %v7307
        %v8430 = vpack.c.b16 %v7314, %v7308
        %v8431 = vpack.c.b16 %v7321, %v7315
        %v8432 = vpack.c.b16 %v7322, %v7316
        %v8433 = vpack.c.b16 %v7323, %v7317
        %v8434 = vpack.c.b16 %v7324, %v7318
        %v8435 = vpack.c.b16 %v7325, %v7319
        %v8436 = vpack.c.b16 %v7326, %v7320
        %v8437 = vpack.c.b16 %v7333, %v7327
        %v8438 = vpack.c.b16 %v7334, %v7328
        %v8439 = vpack.c.b16 %v7335, %v7329
        %v8440 = vpack.c.b16 %v7336, %v7330
        %v8441 = vpack.c.b16 %v7337, %v7331
        %v8442 = vpack.c.b16 %v7338, %v7332
        %v8443 = vpack.c.b16 %v7345, %v7339
        %v8444 = vpack.c.b16 %v7346, %v7340
        %v8445 = vpack.c.b16 %v7347, %v7341
        %v8446 = vpack.c.b16 %v7348, %v7342
        %v8447 = vpack.c.b16 %v7349, %v7343
        %v8448 = vpack.c.b16 %v7350, %v7344
        %v8449 = vpack.c.b16 %v7357, %v7351
        %v8450 = vpack.c.b16 %v7358, %v7352
        %v8451 = vpack.c.b16 %v7359, %v7353
        %v8452 = vpack.c.b16 %v7360, %v7354
        %v8453 = vpack.c.b16 %v7361, %v7355
        %v8454 = vpack.c.b16 %v7362, %v7356
        %v8455 = vpack.c.b16 %v7369, %v7363
        %v8456 = vpack.c.b16 %v7370, %v7364
        %v8457 = vpack.c.b16 %v7371, %v7365
        %v8458 = vpack.c.b16 %v7372, %v7366
        %v8459 = vpack.c.b16 %v7373, %v7367
        %v8460 = vpack.c.b16 %v7374, %v7368
        %v8461 = vpack.c.b16 %v7381, %v7375
        %v8462 = vpack.c.b16 %v7382, %v7376
        %v8463 = vpack.c.b16 %v7383, %v7377
        %v8464 = vpack.c.b16 %v7384, %v7378
        %v8465 = vpack.c.b16 %v7385, %v7379
        %v8466 = vpack.c.b16 %v7386, %v7380
        %v8467 = vpack.c.b16 %v7393, %v7387
        %v8468 = vpack.c.b16 %v7394, %v7388
        %v8469 = vpack.c.b16 %v7395, %v7389
        %v8470 = vpack.c.b16 %v7396, %v7390
        %v8471 = vpack.c.b16 %v7397, %v7391
        %v8472 = vpack.c.b16 %v7398, %v7392
        %v8473 = vpack.c.b16 %v7405, %v7399
        %v8474 = vpack.c.b16 %v7406, %v7400
        %v8475 = vpack.c.b16 %v7407, %v7401
        %v8476 = vpack.c.b16 %v7408, %v7402
        %v8477 = vpack.c.b16 %v7409, %v7403
        %v8478 = vpack.c.b16 %v7410, %v7404
        %v8479 = vpack.c.b16 %v7417, %v7411
        %v8480 = vpack.c.b16 %v7418, %v7412
        %v8481 = vpack.c.b16 %v7419, %v7413
        %v8482 = vpack.c.b16 %v7420, %v7414
        %v8483 = vpack.c.b16 %v7421, %v7415
        %v8484 = vpack.c.b16 %v7422, %v7416
        %v8485 = vpack.c.b16 %v7429, %v7423
        %v8486 = vpack.c.b16 %v7430, %v7424
        %v8487 = vpack.c.b16 %v7431, %v7425
        %v8488 = vpack.c.b16 %v7432, %v7426
        %v8489 = vpack.c.b16 %v7433, %v7427
        %v8490 = vpack.c.b16 %v7434, %v7428
        %v8491 = vpack.c.b16 %v7441, %v7435
        %v8492 = vpack.c.b16 %v7442, %v7436
        %v8493 = vpack.c.b16 %v7443, %v7437
        %v8494 = vpack.c.b16 %v7444, %v7438
        %v8495 = vpack.c.b16 %v7445, %v7439
        %v8496 = vpack.c.b16 %v7446, %v7440
        %v8497 = vpack.c.b16 %v7453, %v7447
        %v8498 = vpack.c.b16 %v7454, %v7448
        %v8499 = vpack.c.b16 %v7455, %v7449
        %v8500 = vpack.c.b16 %v7456, %v7450
        %v8501 = vpack.c.b16 %v7457, %v7451
        %v8502 = vpack.c.b16 %v7458, %v7452
        %v8503 = vpack.c.b16 %v7465, %v7459
        %v8504 = vpack.c.b16 %v7466, %v7460
        %v8505 = vpack.c.b16 %v7467, %v7461
        %v8506 = vpack.c.b16 %v7468, %v7462
        %v8507 = vpack.c.b16 %v7469, %v7463
        %v8508 = vpack.c.b16 %v7470, %v7464
        %v8509 = vpack.c.b16 %v7477, %v7471
        %v8510 = vpack.c.b16 %v7478, %v7472
        %v8511 = vpack.c.b16 %v7479, %v7473
        %v8512 = vpack.c.b16 %v7480, %v7474
        %v8513 = vpack.c.b16 %v7481, %v7475
        %v8514 = vpack.c.b16 %v7482, %v7476
        %v8515 = vpack.c.b16 %v7489, %v7483
        %v8516 = vpack.c.b16 %v7490, %v7484
        %v8517 = vpack.c.b16 %v7491, %v7485
        %v8518 = vpack.c.b16 %v7492, %v7486
        %v8519 = vpack.c.b16 %v7493, %v7487
        %v8520 = vpack.c.b16 %v7494, %v7488
        %v8521 = vpack.c.b16 %v7501, %v7495
        %v8522 = vpack.c.b16 %v7502, %v7496
        %v8523 = vpack.c.b16 %v7503, %v7497
        %v8524 = vpack.c.b16 %v7504, %v7498
        %v8525 = vpack.c.b16 %v7505, %v7499
        %v8526 = vpack.c.b16 %v7506, %v7500
        %v8527 = vpack.c.b16 %v7513, %v7507
        %v8528 = vpack.c.b16 %v7514, %v7508
        %v8529 = vpack.c.b16 %v7515, %v7509
        %v8530 = vpack.c.b16 %v7516, %v7510
        %v8531 = vpack.c.b16 %v7517, %v7511
        %v8532 = vpack.c.b16 %v7518, %v7512
        %v8533 = vpack.c.b16 %v7525, %v7519
        %v8534 = vpack.c.b16 %v7526, %v7520
        %v8535 = vpack.c.b16 %v7527, %v7521
        %v8536 = vpack.c.b16 %v7528, %v7522
        %v8537 = vpack.c.b16 %v7529, %v7523
        %v8538 = vpack.c.b16 %v7530, %v7524
        %v8539 = vpack.c.b16 %v7537, %v7531
        %v8540 = vpack.c.b16 %v7538, %v7532
        %v8541 = vpack.c.b16 %v7539, %v7533
        %v8542 = vpack.c.b16 %v7540, %v7534
        %v8543 = vpack.c.b16 %v7541, %v7535
        %v8544 = vpack.c.b16 %v7542, %v7536
        %v8545 = vpack.c.b16 %v7549, %v7543
        %v8546 = vpack.c.b16 %v7550, %v7544
        %v8547 = vpack.c.b16 %v7551, %v7545
        %v8548 = vpack.c.b16 %v7552, %v7546
        %v8549 = vpack.c.b16 %v7553, %v7547
        %v8550 = vpack.c.b16 %v7554, %v7548
        %v8551 = vpack.c.b16 %v7561, %v7555
        %v8552 = vpack.c.b16 %v7562, %v7556
        %v8553 = vpack.c.b16 %v7563, %v7557
        %v8554 = vpack.c.b16 %v7564, %v7558
        %v8555 = vpack.c.b16 %v7565, %v7559
        %v8556 = vpack.c.b16 %v7566, %v7560
        %v8557 = vpack.c.b16 %v7573, %v7567
        %v8558 = vpack.c.b16 %v7574, %v7568
        %v8559 = vpack.c.b16 %v7575, %v7569
        %v8560 = vpack.c.b16 %v7576, %v7570
        %v8561 = vpack.c.b16 %v7577, %v7571
        %v8562 = vpack.c.b16 %v7578, %v7572
        %v8563 = vpack.c.b16 %v7585, %v7579
        %v8564 = vpack.c.b16 %v7586, %v7580
        %v8565 = vpack.c.b16 %v7587, %v7581
        %v8566 = vpack.c.b16 %v7588, %v7582
        %v8567 = vpack.c.b16 %v7589, %v7583
        %v8568 = vpack.c.b16 %v7590, %v7584
        %v8569 = vpack.c.b16 %v7597, %v7591
        %v8570 = vpack.c.b16 %v7598, %v7592
        %v8571 = vpack.c.b16 %v7599, %v7593
        %v8572 = vpack.c.b16 %v7600, %v7594
        %v8573 = vpack.c.b16 %v7601, %v7595
        %v8574 = vpack.c.b16 %v7602, %v7596
        %v8575 = vpack.c.b16 %v7609, %v7603
        %v8576 = vpack.c.b16 %v7610, %v7604
        %v8577 = vpack.c.b16 %v7611, %v7605
        %v8578 = vpack.c.b16 %v7612, %v7606
        %v8579 = vpack.c.b16 %v7613, %v7607
        %v8580 = vpack.c.b16 %v7614, %v7608
        %v8581 = vpack.c.b16 %v7621, %v7615
        %v8582 = vpack.c.b16 %v7622, %v7616
        %v8583 = vpack.c.b16 %v7623, %v7617
        %v8584 = vpack.c.b16 %v7624, %v7618
        %v8585 = vpack.c.b16 %v7625, %v7619
        %v8586 = vpack.c.b16 %v7626, %v7620
        %v8587 = vpack.c.b16 %v7633, %v7627
        %v8588 = vpack.c.b16 %v7634, %v7628
        %v8589 = vpack.c.b16 %v7635, %v7629
        %v8590 = vpack.c.b16 %v7636, %v7630
        %v8591 = vpack.c.b16 %v7637, %v7631
        %v8592 = vpack.c.b16 %v7638, %v7632
        %v8593 = vpack.c.b16 %v7645, %v7639
        %v8594 = vpack.c.b16 %v7646, %v7640
        %v8595 = vpack.c.b16 %v7647, %v7641
        %v8596 = vpack.c.b16 %v7648, %v7642
        %v8597 = vpack.c.b16 %v7649, %v7643
        %v8598 = vpack.c.b16 %v7650, %v7644
        %v8599 = vpack.c.b16 %v7657, %v7651
        %v8600 = vpack.c.b16 %v7658, %v7652
        %v8601 = vpack.c.b16 %v7659, %v7653
        %v8602 = vpack.c.b16 %v7660, %v7654
        %v8603 = vpack.c.b16 %v7661, %v7655
        %v8604 = vpack.c.b16 %v7662, %v7656
        %v8605 = vpack.c.b16 %v7669, %v7663
        %v8606 = vpack.c.b16 %v7670, %v7664
        %v8607 = vpack.c.b16 %v7671, %v7665
        %v8608 = vpack.c.b16 %v7672, %v7666
        %v8609 = vpack.c.b16 %v7673, %v7667
        %v8610 = vpack.c.b16 %v7674, %v7668
        %v8611 = vpack.c.b16 %v7681, %v7675
        %v8612 = vpack.c.b16 %v7682, %v7676
        %v8613 = vpack.c.b16 %v7683, %v7677
        %v8614 = vpack.c.b16 %v7684, %v7678
        %v8615 = vpack.c.b16 %v7685, %v7679
        %v8616 = vpack.c.b16 %v7686, %v7680
        %v8617 = vpack.c.b16 %v7693, %v7687
        %v8618 = vpack.c.b16 %v7694, %v7688
        %v8619 = vpack.c.b16 %v7695, %v7689
        %v8620 = vpack.c.b16 %v7696, %v7690
        %v8621 = vpack.c.b16 %v7697, %v7691
        %v8622 = vpack.c.b16 %v7698, %v7692
        %v8623 = vpack.c.b16 %v7705, %v7699
        %v8624 = vpack.c.b16 %v7706, %v7700
        %v8625 = vpack.c.b16 %v7707, %v7701
        %v8626 = vpack.c.b16 %v7708, %v7702
        %v8627 = vpack.c.b16 %v7709, %v7703
        %v8628 = vpack.c.b16 %v7710, %v7704
        %v8629 = vpack.c.b16 %v7717, %v7711
        %v8630 = vpack.c.b16 %v7718, %v7712
        %v8631 = vpack.c.b16 %v7719, %v7713
        %v8632 = vpack.c.b16 %v7720, %v7714
        %v8633 = vpack.c.b16 %v7721, %v7715
        %v8634 = vpack.c.b16 %v7722, %v7716
        %v8635 = vpack.c.b16 %v7729, %v7723
        %v8636 = vpack.c.b16 %v7730, %v7724
        %v8637 = vpack.c.b16 %v7731, %v7725
        %v8638 = vpack.c.b16 %v7732, %v7726
        %v8639 = vpack.c.b16 %v7733, %v7727
        %v8640 = vpack.c.b16 %v7734, %v7728
        %v8641 = vpack.c.b16 %v7741, %v7735
        %v8642 = vpack.c.b16 %v7742, %v7736
        %v8643 = vpack.c.b16 %v7743, %v7737
        %v8644 = vpack.c.b16 %v7744, %v7738
        %v8645 = vpack.c.b16 %v7745, %v7739
        %v8646 = vpack.c.b16 %v7746, %v7740
        %v8647 = vpack.c.b16 %v7753, %v7747
        %v8648 = vpack.c.b16 %v7754, %v7748
        %v8649 = vpack.c.b16 %v7755, %v7749
        %v8650 = vpack.c.b16 %v7756, %v7750
        %v8651 = vpack.c.b16 %v7757, %v7751
        %v8652 = vpack.c.b16 %v7758, %v7752
        %v8653 = vpack.c.b16 %v7765, %v7759
        %v8654 = vpack.c.b16 %v7766, %v7760
        %v8655 = vpack.c.b16 %v7767, %v7761
        %v8656 = vpack.c.b16 %v7768, %v7762
        %v8657 = vpack.c.b16 %v7769, %v7763
        %v8658 = vpack.c.b16 %v7770, %v7764
        %v8659 = vpack.c.b16 %v7777, %v7771
        %v8660 = vpack.c.b16 %v7778, %v7772
        %v8661 = vpack.c.b16 %v7779, %v7773
        %v8662 = vpack.c.b16 %v7780, %v7774
        %v8663 = vpack.c.b16 %v7781, %v7775
        %v8664 = vpack.c.b16 %v7782, %v7776
        %v8665 = vpack.c.b16 %v7789, %v7783
        %v8666 = vpack.c.b16 %v7790, %v7784
        %v8667 = vpack.c.b16 %v7791, %v7785
        %v8668 = vpack.c.b16 %v7792, %v7786
        %v8669 = vpack.c.b16 %v7793, %v7787
        %v8670 = vpack.c.b16 %v7794, %v7788
        %v8671 = vpack.c.b16 %v7801, %v7795
        %v8672 = vpack.c.b16 %v7802, %v7796
        %v8673 = vpack.c.b16 %v7803, %v7797
        %v8674 = vpack.c.b16 %v7804, %v7798
        %v8675 = vpack.c.b16 %v7805, %v7799
        %v8676 = vpack.c.b16 %v7806, %v7800
        %v8677 = vpack.c.b16 %v7813, %v7807
        %v8678 = vpack.c.b16 %v7814, %v7808
        %v8679 = vpack.c.b16 %v7815, %v7809
        %v8680 = vpack.c.b16 %v7816, %v7810
        %v8681 = vpack.c.b16 %v7817, %v7811
        %v8682 = vpack.c.b16 %v7818, %v7812
        %v8683 = vpack.c.b16 %v7825, %v7819
        %v8684 = vpack.c.b16 %v7826, %v7820
        %v8685 = vpack.c.b16 %v7827, %v7821
        %v8686 = vpack.c.b16 %v7828, %v7822
        %v8687 = vpack.c.b16 %v7829, %v7823
        %v8688 = vpack.c.b16 %v7830, %v7824
        %v8689 = vpack.c.b16 %v7837, %v7831
        %v8690 = vpack.c.b16 %v7838, %v7832
        %v8691 = vpack.c.b16 %v7839, %v7833
        %v8692 = vpack.c.b16 %v7840, %v7834
        %v8693 = vpack.c.b16 %v7841, %v7835
        %v8694 = vpack.c.b16 %v7842, %v7836
        %v8695 = vpack.c.b16 %v7849, %v7843
        %v8696 = vpack.c.b16 %v7850, %v7844
        %v8697 = vpack.c.b16 %v7851, %v7845
        %v8698 = vpack.c.b16 %v7852, %v7846
        %v8699 = vpack.c.b16 %v7853, %v7847
        %v8700 = vpack.c.b16 %v7854, %v7848
        %v8701 = vpack.c.b16 %v7861, %v7855
        %v8702 = vpack.c.b16 %v7862, %v7856
        %v8703 = vpack.c.b16 %v7863, %v7857
        %v8704 = vpack.c.b16 %v7864, %v7858
        %v8705 = vpack.c.b16 %v7865, %v7859
        %v8706 = vpack.c.b16 %v7866, %v7860
        %v8707 = vpack.c.b16 %v7873, %v7867
        %v8708 = vpack.c.b16 %v7874, %v7868
        %v8709 = vpack.c.b16 %v7875, %v7869
        %v8710 = vpack.c.b16 %v7876, %v7870
        %v8711 = vpack.c.b16 %v7877, %v7871
        %v8712 = vpack.c.b16 %v7878, %v7872
        %v8713 = vpack.c.b16 %v7885, %v7879
        %v8714 = vpack.c.b16 %v7886, %v7880
        %v8715 = vpack.c.b16 %v7887, %v7881
        %v8716 = vpack.c.b16 %v7888, %v7882
        %v8717 = vpack.c.b16 %v7889, %v7883
        %v8718 = vpack.c.b16 %v7890, %v7884
        %v8719 = vpack.c.b16 %v7897, %v7891
        %v8720 = vpack.c.b16 %v7898, %v7892
        %v8721 = vpack.c.b16 %v7899, %v7893
        %v8722 = vpack.c.b16 %v7900, %v7894
        %v8723 = vpack.c.b16 %v7901, %v7895
        %v8724 = vpack.c.b16 %v7902, %v7896
        %v8725 = vpack.c.b16 %v7909, %v7903
        %v8726 = vpack.c.b16 %v7910, %v7904
        %v8727 = vpack.c.b16 %v7911, %v7905
        %v8728 = vpack.c.b16 %v7912, %v7906
        %v8729 = vpack.c.b16 %v7913, %v7907
        %v8730 = vpack.c.b16 %v7914, %v7908
        %v8731 = vpack.c.b16 %v7921, %v7915
        %v8732 = vpack.c.b16 %v7922, %v7916
        %v8733 = vpack.c.b16 %v7923, %v7917
        %v8734 = vpack.c.b16 %v7924, %v7918
        %v8735 = vpack.c.b16 %v7925, %v7919
        %v8736 = vpack.c.b16 %v7926, %v7920
        %v8737 = vpack.c.b16 %v7933, %v7927
        %v8738 = vpack.c.b16 %v7934, %v7928
        %v8739 = vpack.c.b16 %v7935, %v7929
        %v8740 = vpack.c.b16 %v7936, %v7930
        %v8741 = vpack.c.b16 %v7937, %v7931
        %v8742 = vpack.c.b16 %v7938, %v7932
        %v8743 = vpack.c.b16 %v7945, %v7939
        %v8744 = vpack.c.b16 %v7946, %v7940
        %v8745 = vpack.c.b16 %v7947, %v7941
        %v8746 = vpack.c.b16 %v7948, %v7942
        %v8747 = vpack.c.b16 %v7949, %v7943
        %v8748 = vpack.c.b16 %v7950, %v7944
        %v8749 = vpack.c.b16 %v7957, %v7951
        %v8750 = vpack.c.b16 %v7958, %v7952
        %v8751 = vpack.c.b16 %v7959, %v7953
        %v8752 = vpack.c.b16 %v7960, %v7954
        %v8753 = vpack.c.b16 %v7961, %v7955
        %v8754 = vpack.c.b16 %v7962, %v7956
        %v8755 = vpack.c.b16 %v7969, %v7963
        %v8756 = vpack.c.b16 %v7970, %v7964
        %v8757 = vpack.c.b16 %v7971, %v7965
        %v8758 = vpack.c.b16 %v7972, %v7966
        %v8759 = vpack.c.b16 %v7973, %v7967
        %v8760 = vpack.c.b16 %v7974, %v7968
        %v8761 = vpack.c.b16 %v7981, %v7975
        %v8762 = vpack.c.b16 %v7982, %v7976
        %v8763 = vpack.c.b16 %v7983, %v7977
        %v8764 = vpack.c.b16 %v7984, %v7978
        %v8765 = vpack.c.b16 %v7985, %v7979
        %v8766 = vpack.c.b16 %v7986, %v7980
        %v8767 = vpack.c.b16 %v7993, %v7987
        %v8768 = vpack.c.b16 %v7994, %v7988
        %v8769 = vpack.c.b16 %v7995, %v7989
        %v8770 = vpack.c.b16 %v7996, %v7990
        %v8771 = vpack.c.b16 %v7997, %v7991
        %v8772 = vpack.c.b16 %v7998, %v7992
        %v8773 = vpack.c.b16 %v8005, %v7999
        %v8774 = vpack.c.b16 %v8006, %v8000
        %v8775 = vpack.c.b16 %v8007, %v8001
        %v8776 = vpack.c.b16 %v8008, %v8002
        %v8777 = vpack.c.b16 %v8009, %v8003
        %v8778 = vpack.c.b16 %v8010, %v8004
        %v8779 = vpack.c.b16 %v8017, %v8011
        %v8780 = vpack.c.b16 %v8018, %v8012
        %v8781 = vpack.c.b16 %v8019, %v8013
        %v8782 = vpack.c.b16 %v8020, %v8014
        %v8783 = vpack.c.b16 %v8021, %v8015
        %v8784 = vpack.c.b16 %v8022, %v8016
        %v8785 = vpack.c.b16 %v8029, %v8023
        %v8786 = vpack.c.b16 %v8030, %v8024
        %v8787 = vpack.c.b16 %v8031, %v8025
        %v8788 = vpack.c.b16 %v8032, %v8026
        %v8789 = vpack.c.b16 %v8033, %v8027
        %v8790 = vpack.c.b16 %v8034, %v8028
        %v8791 = vpack.c.b16 %v8041, %v8035
        %v8792 = vpack.c.b16 %v8042, %v8036
        %v8793 = vpack.c.b16 %v8043, %v8037
        %v8794 = vpack.c.b16 %v8044, %v8038
        %v8795 = vpack.c.b16 %v8045, %v8039
        %v8796 = vpack.c.b16 %v8046, %v8040
        %v8797 = vpack.c.b16 %v8053, %v8047
        %v8798 = vpack.c.b16 %v8054, %v8048
        %v8799 = vpack.c.b16 %v8055, %v8049
        %v8800 = vpack.c.b16 %v8056, %v8050
        %v8801 = vpack.c.b16 %v8057, %v8051
        %v8802 = vpack.c.b16 %v8058, %v8052
        %v8803 = vpack.c.b16 %v8065, %v8059
        %v8804 = vpack.c.b16 %v8066, %v8060
        %v8805 = vpack.c.b16 %v8067, %v8061
        %v8806 = vpack.c.b16 %v8068, %v8062
        %v8807 = vpack.c.b16 %v8069, %v8063
        %v8808 = vpack.c.b16 %v8070, %v8064
        %v8809 = vpack.c.b16 %v8077, %v8071
        %v8810 = vpack.c.b16 %v8078, %v8072
        %v8811 = vpack.c.b16 %v8079, %v8073
        %v8812 = vpack.c.b16 %v8080, %v8074
        %v8813 = vpack.c.b16 %v8081, %v8075
        %v8814 = vpack.c.b16 %v8082, %v8076
        %v8815 = vpack.c.b16 %v8089, %v8083
        %v8816 = vpack.c.b16 %v8090, %v8084
        %v8817 = vpack.c.b16 %v8091, %v8085
        %v8818 = vpack.c.b16 %v8092, %v8086
        %v8819 = vpack.c.b16 %v8093, %v8087
        %v8820 = vpack.c.b16 %v8094, %v8088
        %v8821 = vpack.c.b16 %v8101, %v8095
        %v8822 = vpack.c.b16 %v8102, %v8096
        %v8823 = vpack.c.b16 %v8103, %v8097
        %v8824 = vpack.c.b16 %v8104, %v8098
        %v8825 = vpack.c.b16 %v8105, %v8099
        %v8826 = vpack.c.b16 %v8106, %v8100
        %v8827 = vpack.c.b16 %v8113, %v8107
        %v8828 = vpack.c.b16 %v8114, %v8108
        %v8829 = vpack.c.b16 %v8115, %v8109
        %v8830 = vpack.c.b16 %v8116, %v8110
        %v8831 = vpack.c.b16 %v8117, %v8111
        %v8832 = vpack.c.b16 %v8118, %v8112
        %v8833 = vpack.c.b16 %v8125, %v8119
        %v8834 = vpack.c.b16 %v8126, %v8120
        %v8835 = vpack.c.b16 %v8127, %v8121
        %v8836 = vpack.c.b16 %v8128, %v8122
        %v8837 = vpack.c.b16 %v8129, %v8123
        %v8838 = vpack.c.b16 %v8130, %v8124
        %v8839 = vpack.c.b16 %v8137, %v8131
        %v8840 = vpack.c.b16 %v8138, %v8132
        %v8841 = vpack.c.b16 %v8139, %v8133
        %v8842 = vpack.c.b16 %v8140, %v8134
        %v8843 = vpack.c.b16 %v8141, %v8135
        %v8844 = vpack.c.b16 %v8142, %v8136
        %v8845 = vpack.c.b16 %v8149, %v8143
        %v8846 = vpack.c.b16 %v8150, %v8144
        %v8847 = vpack.c.b16 %v8151, %v8145
        %v8848 = vpack.c.b16 %v8152, %v8146
        %v8849 = vpack.c.b16 %v8153, %v8147
        %v8850 = vpack.c.b16 %v8154, %v8148
        %v8851 = vpack.c.b16 %v8161, %v8155
        %v8852 = vpack.c.b16 %v8162, %v8156
        %v8853 = vpack.c.b16 %v8163, %v8157
        %v8854 = vpack.c.b16 %v8164, %v8158
        %v8855 = vpack.c.b16 %v8165, %v8159
        %v8856 = vpack.c.b16 %v8166, %v8160
        %v8857 = vpack.c.b16 %v8173, %v8167
        %v8858 = vpack.c.b16 %v8174, %v8168
        %v8859 = vpack.c.b16 %v8175, %v8169
        %v8860 = vpack.c.b16 %v8176, %v8170
        %v8861 = vpack.c.b16 %v8177, %v8171
        %v8862 = vpack.c.b16 %v8178, %v8172
        %v8863 = vpack.c.b16 %v8185, %v8179
        %v8864 = vpack.c.b16 %v8186, %v8180
        %v8865 = vpack.c.b16 %v8187, %v8181
        %v8866 = vpack.c.b16 %v8188, %v8182
        %v8867 = vpack.c.b16 %v8189, %v8183
        %v8868 = vpack.c.b16 %v8190, %v8184
        %v8869 = vpack.c.b16 %v8197, %v8191
        %v8870 = vpack.c.b16 %v8198, %v8192
        %v8871 = vpack.c.b16 %v8199, %v8193
        %v8872 = vpack.c.b16 %v8200, %v8194
        %v8873 = vpack.c.b16 %v8201, %v8195
        %v8874 = vpack.c.b16 %v8202, %v8196
        %v8875 = vpack.c.b16 %v8209, %v8203
        %v8876 = vpack.c.b16 %v8210, %v8204
        %v8877 = vpack.c.b16 %v8211, %v8205
        %v8878 = vpack.c.b16 %v8212, %v8206
        %v8879 = vpack.c.b16 %v8213, %v8207
        %v8880 = vpack.c.b16 %v8214, %v8208
        %v8881 = vpack.c.b16 %v8221, %v8215
        %v8882 = vpack.c.b16 %v8222, %v8216
        %v8883 = vpack.c.b16 %v8223, %v8217
        %v8884 = vpack.c.b16 %v8224, %v8218
        %v8885 = vpack.c.b16 %v8225, %v8219
        %v8886 = vpack.c.b16 %v8226, %v8220
        %v8887 = vpack.c.b16 %v8233, %v8227
        %v8888 = vpack.c.b16 %v8234, %v8228
        %v8889 = vpack.c.b16 %v8235, %v8229
        %v8890 = vpack.c.b16 %v8236, %v8230
        %v8891 = vpack.c.b16 %v8237, %v8231
        %v8892 = vpack.c.b16 %v8238, %v8232
        %v8893 = vpack.c.b16 %v8245, %v8239
        %v8894 = vpack.c.b16 %v8246, %v8240
        %v8895 = vpack.c.b16 %v8247, %v8241
        %v8896 = vpack.c.b16 %v8248, %v8242
        %v8897 = vpack.c.b16 %v8249, %v8243
        %v8898 = vpack.c.b16 %v8250, %v8244
        %v8899 = vpack.c.b16 %v8257, %v8251
        %v8900 = vpack.c.b16 %v8258, %v8252
        %v8901 = vpack.c.b16 %v8259, %v8253
        %v8902 = vpack.c.b16 %v8260, %v8254
        %v8903 = vpack.c.b16 %v8261, %v8255
        %v8904 = vpack.c.b16 %v8262, %v8256
        %v8905 = vpack.c.b16 %v8269, %v8263
        %v8906 = vpack.c.b16 %v8270, %v8264
        %v8907 = vpack.c.b16 %v8271, %v8265
        %v8908 = vpack.c.b16 %v8272, %v8266
        %v8909 = vpack.c.b16 %v8273, %v8267
        %v8910 = vpack.c.b16 %v8274, %v8268
        %v8911 = vpack.c.b16 %v8281, %v8275
        %v8912 = vpack.c.b16 %v8282, %v8276
        %v8913 = vpack.c.b16 %v8283, %v8277
        %v8914 = vpack.c.b16 %v8284, %v8278
        %v8915 = vpack.c.b16 %v8285, %v8279
        %v8916 = vpack.c.b16 %v8286, %v8280
        %v8917 = vpack.c.b16 %v8293, %v8287
        %v8918 = vpack.c.b16 %v8294, %v8288
        %v8919 = vpack.c.b16 %v8295, %v8289
        %v8920 = vpack.c.b16 %v8296, %v8290
        %v8921 = vpack.c.b16 %v8297, %v8291
        %v8922 = vpack.c.b16 %v8298, %v8292
        %v8923 = vpack.c.b16 %v8305, %v8299
        %v8924 = vpack.c.b16 %v8306, %v8300
        %v8925 = vpack.c.b16 %v8307, %v8301
        %v8926 = vpack.c.b16 %v8308, %v8302
        %v8927 = vpack.c.b16 %v8309, %v8303
        %v8928 = vpack.c.b16 %v8310, %v8304
        %v8929 = vpack.c.b16 %v8317, %v8311
        %v8930 = vpack.c.b16 %v8318, %v8312
        %v8931 = vpack.c.b16 %v8319, %v8313
        %v8932 = vpack.c.b16 %v8320, %v8314
        %v8933 = vpack.c.b16 %v8321, %v8315
        %v8934 = vpack.c.b16 %v8322, %v8316
        %v8935 = vpack.c.b16 %v8329, %v8323
        %v8936 = vpack.c.b16 %v8330, %v8324
        %v8937 = vpack.c.b16 %v8331, %v8325
        %v8938 = vpack.c.b16 %v8332, %v8326
        %v8939 = vpack.c.b16 %v8333, %v8327
        %v8940 = vpack.c.b16 %v8334, %v8328
        %v8941 = vpack.c.b16 %v8341, %v8335
        %v8942 = vpack.c.b16 %v8342, %v8336
        %v8943 = vpack.c.b16 %v8343, %v8337
        %v8944 = vpack.c.b16 %v8344, %v8338
        %v8945 = vpack.c.b16 %v8345, %v8339
        %v8946 = vpack.c.b16 %v8346, %v8340
        %v8947 = vpack.c.b16 %v8353, %v8347
        %v8948 = vpack.c.b16 %v8354, %v8348
        %v8949 = vpack.c.b16 %v8355, %v8349
        %v8950 = vpack.c.b16 %v8356, %v8350
        %v8951 = vpack.c.b16 %v8357, %v8351
        %v8952 = vpack.c.b16 %v8358, %v8352
        %v8953 = vpack.c.b16 %v8365, %v8359
        %v8954 = vpack.c.b16 %v8366, %v8360
        %v8955 = vpack.c.b16 %v8367, %v8361
        %v8956 = vpack.c.b16 %v8368, %v8362
        %v8957 = vpack.c.b16 %v8369, %v8363
        %v8958 = vpack.c.b16 %v8370, %v8364
        %v8959 = vpack.c.b16 %v8377, %v8371
        %v8960 = vpack.c.b16 %v8378, %v8372
        %v8961 = vpack.c.b16 %v8379, %v8373
        %v8962 = vpack.c.b16 %v8380, %v8374
        %v8963 = vpack.c.b16 %v8381, %v8375
        %v8964 = vpack.c.b16 %v8382, %v8376
        %v8965 = vpack.c.b16 %v8389, %v8383
        %v8966 = vpack.c.b16 %v8390, %v8384
        %v8967 = vpack.c.b16 %v8391, %v8385
        %v8968 = vpack.c.b16 %v8392, %v8386
        %v8969 = vpack.c.b16 %v8393, %v8387
        %v8970 = vpack.c.b16 %v8394, %v8388
        %9547 = vmatpush.bf16.msra.mxu0 %v8437
        %9548 = vmatpush.bf16.msra.mxu0 %v8431
        %9549 = vmatpush.bf16.msra.mxu0 %v8425
        %9550 = vmatpush.bf16.msra.mxu0 %v8419
        %9551 = vmatpush.bf16.msra.mxu0 %v8413
        %9552 = vmatpush.bf16.msra.mxu0 %v8407
        %9553 = vmatpush.bf16.msra.mxu0 %v8401
        %9554 = vmatpush.bf16.msra.mxu0 %v8395
        %9555 = vmatmul.bf16.gmra.mxu0 %v6079
        %v9556 = vpop.f32.mrf.mxu0
        %v9557 = vadd.f32 0.0, %v9556
        %v9558 = vpop.f32.mrf.mxu0
        %9559 = vdwg.mxu0
        %9560 = vmatpush.bf16.msra.mxu0 %v8485
        %9561 = vmatpush.bf16.msra.mxu0 %v8479
        %9562 = vmatpush.bf16.msra.mxu0 %v8473
        %9563 = vmatpush.bf16.msra.mxu0 %v8467
        %9564 = vmatpush.bf16.msra.mxu0 %v8461
        %9565 = vmatpush.bf16.msra.mxu0 %v8455
        %9566 = vmatpush.bf16.msra.mxu0 %v8449
        %9567 = vmatpush.bf16.msra.mxu0 %v8443
        %9568 = vmatmul.bf16.gmra.mxu0 %v6080
        %v9569 = vpop.f32.mrf.mxu0
        %v9570 = vadd.f32 %v9557, %v9569
        %v9571 = vpop.f32.mrf.mxu0
        %9572 = vdwg.mxu0
        %9573 = vmatpush.bf16.msra.mxu0 %v8533
        %9574 = vmatpush.bf16.msra.mxu0 %v8527
        %9575 = vmatpush.bf16.msra.mxu0 %v8521
        %9576 = vmatpush.bf16.msra.mxu0 %v8515
        %9577 = vmatpush.bf16.msra.mxu0 %v8509
        %9578 = vmatpush.bf16.msra.mxu0 %v8503
        %9579 = vmatpush.bf16.msra.mxu0 %v8497
        %9580 = vmatpush.bf16.msra.mxu0 %v8491
        %9581 = vmatmul.bf16.gmra.mxu0 %v6081
        %v9582 = vpop.f32.mrf.mxu0
        %v9583 = vadd.f32 %v9570, %v9582
        %v9584 = vpop.f32.mrf.mxu0
        %9585 = vdwg.mxu0
        %9586 = vmatpush.bf16.msra.mxu0 %v8581
        %9587 = vmatpush.bf16.msra.mxu0 %v8575
        %9588 = vmatpush.bf16.msra.mxu0 %v8569
        %9589 = vmatpush.bf16.msra.mxu0 %v8563
        %9590 = vmatpush.bf16.msra.mxu0 %v8557
        %9591 = vmatpush.bf16.msra.mxu0 %v8551
        %9592 = vmatpush.bf16.msra.mxu0 %v8545
        %9593 = vmatpush.bf16.msra.mxu0 %v8539
        %9594 = vmatmul.bf16.gmra.mxu0 %v6082
        %v9595 = vpop.f32.mrf.mxu0
        %v9596 = vadd.f32 %v9583, %v9595
        %v9597 = vpop.f32.mrf.mxu0
        %9598 = vdwg.mxu0
        %9599 = vmatpush.bf16.msra.mxu0 %v8629
        %9600 = vmatpush.bf16.msra.mxu0 %v8623
        %9601 = vmatpush.bf16.msra.mxu0 %v8617
        %9602 = vmatpush.bf16.msra.mxu0 %v8611
        %9603 = vmatpush.bf16.msra.mxu0 %v8605
        %9604 = vmatpush.bf16.msra.mxu0 %v8599
        %9605 = vmatpush.bf16.msra.mxu0 %v8593
        %9606 = vmatpush.bf16.msra.mxu0 %v8587
        %9607 = vmatmul.bf16.gmra.mxu0 %v6083
        %v9608 = vpop.f32.mrf.mxu0
        %v9609 = vadd.f32 %v9596, %v9608
        %v9610 = vpop.f32.mrf.mxu0
        %9611 = vdwg.mxu0
        %9612 = vmatpush.bf16.msra.mxu0 %v8677
        %9613 = vmatpush.bf16.msra.mxu0 %v8671
        %9614 = vmatpush.bf16.msra.mxu0 %v8665
        %9615 = vmatpush.bf16.msra.mxu0 %v8659
        %9616 = vmatpush.bf16.msra.mxu0 %v8653
        %9617 = vmatpush.bf16.msra.mxu0 %v8647
        %9618 = vmatpush.bf16.msra.mxu0 %v8641
        %9619 = vmatpush.bf16.msra.mxu0 %v8635
        %9620 = vmatmul.bf16.gmra.mxu0 %v6084
        %v9621 = vpop.f32.mrf.mxu0
        %v9622 = vadd.f32 %v9609, %v9621
        %v9623 = vpop.f32.mrf.mxu0
        %9624 = vdwg.mxu0
        %9625 = vmatpush.bf16.msra.mxu0 %v8725
        %9626 = vmatpush.bf16.msra.mxu0 %v8719
        %9627 = vmatpush.bf16.msra.mxu0 %v8713
        %9628 = vmatpush.bf16.msra.mxu0 %v8707
        %9629 = vmatpush.bf16.msra.mxu0 %v8701
        %9630 = vmatpush.bf16.msra.mxu0 %v8695
        %9631 = vmatpush.bf16.msra.mxu0 %v8689
        %9632 = vmatpush.bf16.msra.mxu0 %v8683
        %9633 = vmatmul.bf16.gmra.mxu0 %v6085
        %v9634 = vpop.f32.mrf.mxu0
        %v9635 = vadd.f32 %v9622, %v9634
        %v9636 = vpop.f32.mrf.mxu0
        %9637 = vdwg.mxu0
        %9638 = vmatpush.bf16.msra.mxu0 %v8773
        %9639 = vmatpush.bf16.msra.mxu0 %v8767
        %9640 = vmatpush.bf16.msra.mxu0 %v8761
        %9641 = vmatpush.bf16.msra.mxu0 %v8755
        %9642 = vmatpush.bf16.msra.mxu0 %v8749
        %9643 = vmatpush.bf16.msra.mxu0 %v8743
        %9644 = vmatpush.bf16.msra.mxu0 %v8737
        %9645 = vmatpush.bf16.msra.mxu0 %v8731
        %9646 = vmatmul.bf16.gmra.mxu0 %v6086
        %v9647 = vpop.f32.mrf.mxu0
        %v9648 = vadd.f32 %v9635, %v9647
        %v9649 = vpop.f32.mrf.mxu0
        %9650 = vdwg.mxu0
        %9651 = vmatpush.bf16.msra.mxu0 %v8821
        %9652 = vmatpush.bf16.msra.mxu0 %v8815
        %9653 = vmatpush.bf16.msra.mxu0 %v8809
        %9654 = vmatpush.bf16.msra.mxu0 %v8803
        %9655 = vmatpush.bf16.msra.mxu0 %v8797
        %9656 = vmatpush.bf16.msra.mxu0 %v8791
        %9657 = vmatpush.bf16.msra.mxu0 %v8785
        %9658 = vmatpush.bf16.msra.mxu0 %v8779
        %9659 = vmatmul.bf16.gmra.mxu0 %v6087
        %v9660 = vpop.f32.mrf.mxu0
        %v9661 = vadd.f32 %v9648, %v9660
        %v9662 = vpop.f32.mrf.mxu0
        %9663 = vdwg.mxu0
        %9664 = vmatpush.bf16.msra.mxu0 %v8869
        %9665 = vmatpush.bf16.msra.mxu0 %v8863
        %9666 = vmatpush.bf16.msra.mxu0 %v8857
        %9667 = vmatpush.bf16.msra.mxu0 %v8851
        %9668 = vmatpush.bf16.msra.mxu0 %v8845
        %9669 = vmatpush.bf16.msra.mxu0 %v8839
        %9670 = vmatpush.bf16.msra.mxu0 %v8833
        %9671 = vmatpush.bf16.msra.mxu0 %v8827
        %9672 = vmatmul.bf16.gmra.mxu0 %v6088
        %v9673 = vpop.f32.mrf.mxu0
        %v9674 = vadd.f32 %v9661, %v9673
        %v9675 = vpop.f32.mrf.mxu0
        %9676 = vdwg.mxu0
        %9677 = vmatpush.bf16.msra.mxu0 %v8917
        %9678 = vmatpush.bf16.msra.mxu0 %v8911
        %9679 = vmatpush.bf16.msra.mxu0 %v8905
        %9680 = vmatpush.bf16.msra.mxu0 %v8899
        %9681 = vmatpush.bf16.msra.mxu0 %v8893
        %9682 = vmatpush.bf16.msra.mxu0 %v8887
        %9683 = vmatpush.bf16.msra.mxu0 %v8881
        %9684 = vmatpush.bf16.msra.mxu0 %v8875
        %9685 = vmatmul.bf16.gmra.mxu0 %v6089
        %v9686 = vpop.f32.mrf.mxu0
        %v9687 = vadd.f32 %v9674, %v9686
        %v9688 = vpop.f32.mrf.mxu0
        %9689 = vdwg.mxu0
        %9690 = vmatpush.bf16.msra.mxu0 %v8965
        %9691 = vmatpush.bf16.msra.mxu0 %v8959
        %9692 = vmatpush.bf16.msra.mxu0 %v8953
        %9693 = vmatpush.bf16.msra.mxu0 %v8947
        %9694 = vmatpush.bf16.msra.mxu0 %v8941
        %9695 = vmatpush.bf16.msra.mxu0 %v8935
        %9696 = vmatpush.bf16.msra.mxu0 %v8929
        %9697 = vmatpush.bf16.msra.mxu0 %v8923
        %9698 = vmatmul.bf16.gmra.mxu0 %v6090
        %v9699 = vpop.f32.mrf.mxu0
        %v9700 = vadd.f32 %v9687, %v9699
        %v9701 = vpop.f32.mrf.mxu0
        %9702 = vdwg.mxu0
        %9703 = vmatpush.bf16.msra.mxu0 %v8438
        %9704 = vmatpush.bf16.msra.mxu0 %v8432
        %9705 = vmatpush.bf16.msra.mxu0 %v8426
        %9706 = vmatpush.bf16.msra.mxu0 %v8420
        %9707 = vmatpush.bf16.msra.mxu0 %v8414
        %9708 = vmatpush.bf16.msra.mxu0 %v8408
        %9709 = vmatpush.bf16.msra.mxu0 %v8402
        %9710 = vmatpush.bf16.msra.mxu0 %v8396
        %9711 = vmatmul.bf16.gmra.mxu0 %v6079
        %v9712 = vpop.f32.mrf.mxu0
        %v9713 = vadd.f32 0.0, %v9712
        %v9714 = vpop.f32.mrf.mxu0
        %9715 = vdwg.mxu0
        %9716 = vmatpush.bf16.msra.mxu0 %v8486
        %9717 = vmatpush.bf16.msra.mxu0 %v8480
        %9718 = vmatpush.bf16.msra.mxu0 %v8474
        %9719 = vmatpush.bf16.msra.mxu0 %v8468
        %9720 = vmatpush.bf16.msra.mxu0 %v8462
        %9721 = vmatpush.bf16.msra.mxu0 %v8456
        %9722 = vmatpush.bf16.msra.mxu0 %v8450
        %9723 = vmatpush.bf16.msra.mxu0 %v8444
        %9724 = vmatmul.bf16.gmra.mxu0 %v6080
        %v9725 = vpop.f32.mrf.mxu0
        %v9726 = vadd.f32 %v9713, %v9725
        %v9727 = vpop.f32.mrf.mxu0
        %9728 = vdwg.mxu0
        %9729 = vmatpush.bf16.msra.mxu0 %v8534
        %9730 = vmatpush.bf16.msra.mxu0 %v8528
        %9731 = vmatpush.bf16.msra.mxu0 %v8522
        %9732 = vmatpush.bf16.msra.mxu0 %v8516
        %9733 = vmatpush.bf16.msra.mxu0 %v8510
        %9734 = vmatpush.bf16.msra.mxu0 %v8504
        %9735 = vmatpush.bf16.msra.mxu0 %v8498
        %9736 = vmatpush.bf16.msra.mxu0 %v8492
        %9737 = vmatmul.bf16.gmra.mxu0 %v6081
        %v9738 = vpop.f32.mrf.mxu0
        %v9739 = vadd.f32 %v9726, %v9738
        %v9740 = vpop.f32.mrf.mxu0
        %9741 = vdwg.mxu0
        %9742 = vmatpush.bf16.msra.mxu0 %v8582
        %9743 = vmatpush.bf16.msra.mxu0 %v8576
        %9744 = vmatpush.bf16.msra.mxu0 %v8570
        %9745 = vmatpush.bf16.msra.mxu0 %v8564
        %9746 = vmatpush.bf16.msra.mxu0 %v8558
        %9747 = vmatpush.bf16.msra.mxu0 %v8552
        %9748 = vmatpush.bf16.msra.mxu0 %v8546
        %9749 = vmatpush.bf16.msra.mxu0 %v8540
        %9750 = vmatmul.bf16.gmra.mxu0 %v6082
        %v9751 = vpop.f32.mrf.mxu0
        %v9752 = vadd.f32 %v9739, %v9751
        %v9753 = vpop.f32.mrf.mxu0
        %9754 = vdwg.mxu0
        %9755 = vmatpush.bf16.msra.mxu0 %v8630
        %9756 = vmatpush.bf16.msra.mxu0 %v8624
        %9757 = vmatpush.bf16.msra.mxu0 %v8618
        %9758 = vmatpush.bf16.msra.mxu0 %v8612
        %9759 = vmatpush.bf16.msra.mxu0 %v8606
        %9760 = vmatpush.bf16.msra.mxu0 %v8600
        %9761 = vmatpush.bf16.msra.mxu0 %v8594
        %9762 = vmatpush.bf16.msra.mxu0 %v8588
        %9763 = vmatmul.bf16.gmra.mxu0 %v6083
        %v9764 = vpop.f32.mrf.mxu0
        %v9765 = vadd.f32 %v9752, %v9764
        %v9766 = vpop.f32.mrf.mxu0
        %9767 = vdwg.mxu0
        %9768 = vmatpush.bf16.msra.mxu0 %v8678
        %9769 = vmatpush.bf16.msra.mxu0 %v8672
        %9770 = vmatpush.bf16.msra.mxu0 %v8666
        %9771 = vmatpush.bf16.msra.mxu0 %v8660
        %9772 = vmatpush.bf16.msra.mxu0 %v8654
        %9773 = vmatpush.bf16.msra.mxu0 %v8648
        %9774 = vmatpush.bf16.msra.mxu0 %v8642
        %9775 = vmatpush.bf16.msra.mxu0 %v8636
        %9776 = vmatmul.bf16.gmra.mxu0 %v6084
        %v9777 = vpop.f32.mrf.mxu0
        %v9778 = vadd.f32 %v9765, %v9777
        %v9779 = vpop.f32.mrf.mxu0
        %9780 = vdwg.mxu0
        %9781 = vmatpush.bf16.msra.mxu0 %v8726
        %9782 = vmatpush.bf16.msra.mxu0 %v8720
        %9783 = vmatpush.bf16.msra.mxu0 %v8714
        %9784 = vmatpush.bf16.msra.mxu0 %v8708
        %9785 = vmatpush.bf16.msra.mxu0 %v8702
        %9786 = vmatpush.bf16.msra.mxu0 %v8696
        %9787 = vmatpush.bf16.msra.mxu0 %v8690
        %9788 = vmatpush.bf16.msra.mxu0 %v8684
        %9789 = vmatmul.bf16.gmra.mxu0 %v6085
        %v9790 = vpop.f32.mrf.mxu0
        %v9791 = vadd.f32 %v9778, %v9790
        %v9792 = vpop.f32.mrf.mxu0
        %9793 = vdwg.mxu0
        %9794 = vmatpush.bf16.msra.mxu0 %v8774
        %9795 = vmatpush.bf16.msra.mxu0 %v8768
        %9796 = vmatpush.bf16.msra.mxu0 %v8762
        %9797 = vmatpush.bf16.msra.mxu0 %v8756
        %9798 = vmatpush.bf16.msra.mxu0 %v8750
        %9799 = vmatpush.bf16.msra.mxu0 %v8744
        %9800 = vmatpush.bf16.msra.mxu0 %v8738
        %9801 = vmatpush.bf16.msra.mxu0 %v8732
        %9802 = vmatmul.bf16.gmra.mxu0 %v6086
        %v9803 = vpop.f32.mrf.mxu0
        %v9804 = vadd.f32 %v9791, %v9803
        %v9805 = vpop.f32.mrf.mxu0
        %9806 = vdwg.mxu0
        %9807 = vmatpush.bf16.msra.mxu0 %v8822
        %9808 = vmatpush.bf16.msra.mxu0 %v8816
        %9809 = vmatpush.bf16.msra.mxu0 %v8810
        %9810 = vmatpush.bf16.msra.mxu0 %v8804
        %9811 = vmatpush.bf16.msra.mxu0 %v8798
        %9812 = vmatpush.bf16.msra.mxu0 %v8792
        %9813 = vmatpush.bf16.msra.mxu0 %v8786
        %9814 = vmatpush.bf16.msra.mxu0 %v8780
        %9815 = vmatmul.bf16.gmra.mxu0 %v6087
        %v9816 = vpop.f32.mrf.mxu0
        %v9817 = vadd.f32 %v9804, %v9816
        %v9818 = vpop.f32.mrf.mxu0
        %9819 = vdwg.mxu0
        %9820 = vmatpush.bf16.msra.mxu0 %v8870
        %9821 = vmatpush.bf16.msra.mxu0 %v8864
        %9822 = vmatpush.bf16.msra.mxu0 %v8858
        %9823 = vmatpush.bf16.msra.mxu0 %v8852
        %9824 = vmatpush.bf16.msra.mxu0 %v8846
        %9825 = vmatpush.bf16.msra.mxu0 %v8840
        %9826 = vmatpush.bf16.msra.mxu0 %v8834
        %9827 = vmatpush.bf16.msra.mxu0 %v8828
        %9828 = vmatmul.bf16.gmra.mxu0 %v6088
        %v9829 = vpop.f32.mrf.mxu0
        %v9830 = vadd.f32 %v9817, %v9829
        %v9831 = vpop.f32.mrf.mxu0
        %9832 = vdwg.mxu0
        %9833 = vmatpush.bf16.msra.mxu0 %v8918
        %9834 = vmatpush.bf16.msra.mxu0 %v8912
        %9835 = vmatpush.bf16.msra.mxu0 %v8906
        %9836 = vmatpush.bf16.msra.mxu0 %v8900
        %9837 = vmatpush.bf16.msra.mxu0 %v8894
        %9838 = vmatpush.bf16.msra.mxu0 %v8888
        %9839 = vmatpush.bf16.msra.mxu0 %v8882
        %9840 = vmatpush.bf16.msra.mxu0 %v8876
        %9841 = vmatmul.bf16.gmra.mxu0 %v6089
        %v9842 = vpop.f32.mrf.mxu0
        %v9843 = vadd.f32 %v9830, %v9842
        %v9844 = vpop.f32.mrf.mxu0
        %9845 = vdwg.mxu0
        %9846 = vmatpush.bf16.msra.mxu0 %v8966
        %9847 = vmatpush.bf16.msra.mxu0 %v8960
        %9848 = vmatpush.bf16.msra.mxu0 %v8954
        %9849 = vmatpush.bf16.msra.mxu0 %v8948
        %9850 = vmatpush.bf16.msra.mxu0 %v8942
        %9851 = vmatpush.bf16.msra.mxu0 %v8936
        %9852 = vmatpush.bf16.msra.mxu0 %v8930
        %9853 = vmatpush.bf16.msra.mxu0 %v8924
        %9854 = vmatmul.bf16.gmra.mxu0 %v6090
        %v9855 = vpop.f32.mrf.mxu0
        %v9856 = vadd.f32 %v9843, %v9855
        %v9857 = vpop.f32.mrf.mxu0
        %9858 = vdwg.mxu0
        %9859 = vmatpush.bf16.msra.mxu0 %v8439
        %9860 = vmatpush.bf16.msra.mxu0 %v8433
        %9861 = vmatpush.bf16.msra.mxu0 %v8427
        %9862 = vmatpush.bf16.msra.mxu0 %v8421
        %9863 = vmatpush.bf16.msra.mxu0 %v8415
        %9864 = vmatpush.bf16.msra.mxu0 %v8409
        %9865 = vmatpush.bf16.msra.mxu0 %v8403
        %9866 = vmatpush.bf16.msra.mxu0 %v8397
        %9867 = vmatmul.bf16.gmra.mxu0 %v6079
        %v9868 = vpop.f32.mrf.mxu0
        %v9869 = vadd.f32 0.0, %v9868
        %v9870 = vpop.f32.mrf.mxu0
        %9871 = vdwg.mxu0
        %9872 = vmatpush.bf16.msra.mxu0 %v8487
        %9873 = vmatpush.bf16.msra.mxu0 %v8481
        %9874 = vmatpush.bf16.msra.mxu0 %v8475
        %9875 = vmatpush.bf16.msra.mxu0 %v8469
        %9876 = vmatpush.bf16.msra.mxu0 %v8463
        %9877 = vmatpush.bf16.msra.mxu0 %v8457
        %9878 = vmatpush.bf16.msra.mxu0 %v8451
        %9879 = vmatpush.bf16.msra.mxu0 %v8445
        %9880 = vmatmul.bf16.gmra.mxu0 %v6080
        %v9881 = vpop.f32.mrf.mxu0
        %v9882 = vadd.f32 %v9869, %v9881
        %v9883 = vpop.f32.mrf.mxu0
        %9884 = vdwg.mxu0
        %9885 = vmatpush.bf16.msra.mxu0 %v8535
        %9886 = vmatpush.bf16.msra.mxu0 %v8529
        %9887 = vmatpush.bf16.msra.mxu0 %v8523
        %9888 = vmatpush.bf16.msra.mxu0 %v8517
        %9889 = vmatpush.bf16.msra.mxu0 %v8511
        %9890 = vmatpush.bf16.msra.mxu0 %v8505
        %9891 = vmatpush.bf16.msra.mxu0 %v8499
        %9892 = vmatpush.bf16.msra.mxu0 %v8493
        %9893 = vmatmul.bf16.gmra.mxu0 %v6081
        %v9894 = vpop.f32.mrf.mxu0
        %v9895 = vadd.f32 %v9882, %v9894
        %v9896 = vpop.f32.mrf.mxu0
        %9897 = vdwg.mxu0
        %9898 = vmatpush.bf16.msra.mxu0 %v8583
        %9899 = vmatpush.bf16.msra.mxu0 %v8577
        %9900 = vmatpush.bf16.msra.mxu0 %v8571
        %9901 = vmatpush.bf16.msra.mxu0 %v8565
        %9902 = vmatpush.bf16.msra.mxu0 %v8559
        %9903 = vmatpush.bf16.msra.mxu0 %v8553
        %9904 = vmatpush.bf16.msra.mxu0 %v8547
        %9905 = vmatpush.bf16.msra.mxu0 %v8541
        %9906 = vmatmul.bf16.gmra.mxu0 %v6082
        %v9907 = vpop.f32.mrf.mxu0
        %v9908 = vadd.f32 %v9895, %v9907
        %v9909 = vpop.f32.mrf.mxu0
        %9910 = vdwg.mxu0
        %9911 = vmatpush.bf16.msra.mxu0 %v8631
        %9912 = vmatpush.bf16.msra.mxu0 %v8625
        %9913 = vmatpush.bf16.msra.mxu0 %v8619
        %9914 = vmatpush.bf16.msra.mxu0 %v8613
        %9915 = vmatpush.bf16.msra.mxu0 %v8607
        %9916 = vmatpush.bf16.msra.mxu0 %v8601
        %9917 = vmatpush.bf16.msra.mxu0 %v8595
        %9918 = vmatpush.bf16.msra.mxu0 %v8589
        %9919 = vmatmul.bf16.gmra.mxu0 %v6083
        %v9920 = vpop.f32.mrf.mxu0
        %v9921 = vadd.f32 %v9908, %v9920
        %v9922 = vpop.f32.mrf.mxu0
        %9923 = vdwg.mxu0
        %9924 = vmatpush.bf16.msra.mxu0 %v8679
        %9925 = vmatpush.bf16.msra.mxu0 %v8673
        %9926 = vmatpush.bf16.msra.mxu0 %v8667
        %9927 = vmatpush.bf16.msra.mxu0 %v8661
        %9928 = vmatpush.bf16.msra.mxu0 %v8655
        %9929 = vmatpush.bf16.msra.mxu0 %v8649
        %9930 = vmatpush.bf16.msra.mxu0 %v8643
        %9931 = vmatpush.bf16.msra.mxu0 %v8637
        %9932 = vmatmul.bf16.gmra.mxu0 %v6084
        %v9933 = vpop.f32.mrf.mxu0
        %v9934 = vadd.f32 %v9921, %v9933
        %v9935 = vpop.f32.mrf.mxu0
        %9936 = vdwg.mxu0
        %9937 = vmatpush.bf16.msra.mxu0 %v8727
        %9938 = vmatpush.bf16.msra.mxu0 %v8721
        %9939 = vmatpush.bf16.msra.mxu0 %v8715
        %9940 = vmatpush.bf16.msra.mxu0 %v8709
        %9941 = vmatpush.bf16.msra.mxu0 %v8703
        %9942 = vmatpush.bf16.msra.mxu0 %v8697
        %9943 = vmatpush.bf16.msra.mxu0 %v8691
        %9944 = vmatpush.bf16.msra.mxu0 %v8685
        %9945 = vmatmul.bf16.gmra.mxu0 %v6085
        %v9946 = vpop.f32.mrf.mxu0
        %v9947 = vadd.f32 %v9934, %v9946
        %v9948 = vpop.f32.mrf.mxu0
        %9949 = vdwg.mxu0
        %9950 = vmatpush.bf16.msra.mxu0 %v8775
        %9951 = vmatpush.bf16.msra.mxu0 %v8769
        %9952 = vmatpush.bf16.msra.mxu0 %v8763
        %9953 = vmatpush.bf16.msra.mxu0 %v8757
        %9954 = vmatpush.bf16.msra.mxu0 %v8751
        %9955 = vmatpush.bf16.msra.mxu0 %v8745
        %9956 = vmatpush.bf16.msra.mxu0 %v8739
        %9957 = vmatpush.bf16.msra.mxu0 %v8733
        %9958 = vmatmul.bf16.gmra.mxu0 %v6086
        %v9959 = vpop.f32.mrf.mxu0
        %v9960 = vadd.f32 %v9947, %v9959
        %v9961 = vpop.f32.mrf.mxu0
        %9962 = vdwg.mxu0
        %9963 = vmatpush.bf16.msra.mxu0 %v8823
        %9964 = vmatpush.bf16.msra.mxu0 %v8817
        %9965 = vmatpush.bf16.msra.mxu0 %v8811
        %9966 = vmatpush.bf16.msra.mxu0 %v8805
        %9967 = vmatpush.bf16.msra.mxu0 %v8799
        %9968 = vmatpush.bf16.msra.mxu0 %v8793
        %9969 = vmatpush.bf16.msra.mxu0 %v8787
        %9970 = vmatpush.bf16.msra.mxu0 %v8781
        %9971 = vmatmul.bf16.gmra.mxu0 %v6087
        %v9972 = vpop.f32.mrf.mxu0
        %v9973 = vadd.f32 %v9960, %v9972
        %v9974 = vpop.f32.mrf.mxu0
        %9975 = vdwg.mxu0
        %9976 = vmatpush.bf16.msra.mxu0 %v8871
        %9977 = vmatpush.bf16.msra.mxu0 %v8865
        %9978 = vmatpush.bf16.msra.mxu0 %v8859
        %9979 = vmatpush.bf16.msra.mxu0 %v8853
        %9980 = vmatpush.bf16.msra.mxu0 %v8847
        %9981 = vmatpush.bf16.msra.mxu0 %v8841
        %9982 = vmatpush.bf16.msra.mxu0 %v8835
        %9983 = vmatpush.bf16.msra.mxu0 %v8829
        %9984 = vmatmul.bf16.gmra.mxu0 %v6088
        %v9985 = vpop.f32.mrf.mxu0
        %v9986 = vadd.f32 %v9973, %v9985
        %v9987 = vpop.f32.mrf.mxu0
        %9988 = vdwg.mxu0
        %9989 = vmatpush.bf16.msra.mxu0 %v8919
        %9990 = vmatpush.bf16.msra.mxu0 %v8913
        %9991 = vmatpush.bf16.msra.mxu0 %v8907
        %9992 = vmatpush.bf16.msra.mxu0 %v8901
        %9993 = vmatpush.bf16.msra.mxu0 %v8895
        %9994 = vmatpush.bf16.msra.mxu0 %v8889
        %9995 = vmatpush.bf16.msra.mxu0 %v8883
        %9996 = vmatpush.bf16.msra.mxu0 %v8877
        %9997 = vmatmul.bf16.gmra.mxu0 %v6089
        %v9998 = vpop.f32.mrf.mxu0
        %v9999 = vadd.f32 %v9986, %v9998
        %v10000 = vpop.f32.mrf.mxu0
        %10001 = vdwg.mxu0
        %10002 = vmatpush.bf16.msra.mxu0 %v8967
        %10003 = vmatpush.bf16.msra.mxu0 %v8961
        %10004 = vmatpush.bf16.msra.mxu0 %v8955
        %10005 = vmatpush.bf16.msra.mxu0 %v8949
        %10006 = vmatpush.bf16.msra.mxu0 %v8943
        %10007 = vmatpush.bf16.msra.mxu0 %v8937
        %10008 = vmatpush.bf16.msra.mxu0 %v8931
        %10009 = vmatpush.bf16.msra.mxu0 %v8925
        %10010 = vmatmul.bf16.gmra.mxu0 %v6090
        %v10011 = vpop.f32.mrf.mxu0
        %v10012 = vadd.f32 %v9999, %v10011
        %v10013 = vpop.f32.mrf.mxu0
        %10014 = vdwg.mxu0
        %10015 = vmatpush.bf16.msra.mxu0 %v8440
        %10016 = vmatpush.bf16.msra.mxu0 %v8434
        %10017 = vmatpush.bf16.msra.mxu0 %v8428
        %10018 = vmatpush.bf16.msra.mxu0 %v8422
        %10019 = vmatpush.bf16.msra.mxu0 %v8416
        %10020 = vmatpush.bf16.msra.mxu0 %v8410
        %10021 = vmatpush.bf16.msra.mxu0 %v8404
        %10022 = vmatpush.bf16.msra.mxu0 %v8398
        %10023 = vmatmul.bf16.gmra.mxu0 %v6079
        %v10024 = vpop.f32.mrf.mxu0
        %v10025 = vadd.f32 0.0, %v10024
        %v10026 = vpop.f32.mrf.mxu0
        %10027 = vdwg.mxu0
        %10028 = vmatpush.bf16.msra.mxu0 %v8488
        %10029 = vmatpush.bf16.msra.mxu0 %v8482
        %10030 = vmatpush.bf16.msra.mxu0 %v8476
        %10031 = vmatpush.bf16.msra.mxu0 %v8470
        %10032 = vmatpush.bf16.msra.mxu0 %v8464
        %10033 = vmatpush.bf16.msra.mxu0 %v8458
        %10034 = vmatpush.bf16.msra.mxu0 %v8452
        %10035 = vmatpush.bf16.msra.mxu0 %v8446
        %10036 = vmatmul.bf16.gmra.mxu0 %v6080
        %v10037 = vpop.f32.mrf.mxu0
        %v10038 = vadd.f32 %v10025, %v10037
        %v10039 = vpop.f32.mrf.mxu0
        %10040 = vdwg.mxu0
        %10041 = vmatpush.bf16.msra.mxu0 %v8536
        %10042 = vmatpush.bf16.msra.mxu0 %v8530
        %10043 = vmatpush.bf16.msra.mxu0 %v8524
        %10044 = vmatpush.bf16.msra.mxu0 %v8518
        %10045 = vmatpush.bf16.msra.mxu0 %v8512
        %10046 = vmatpush.bf16.msra.mxu0 %v8506
        %10047 = vmatpush.bf16.msra.mxu0 %v8500
        %10048 = vmatpush.bf16.msra.mxu0 %v8494
        %10049 = vmatmul.bf16.gmra.mxu0 %v6081
        %v10050 = vpop.f32.mrf.mxu0
        %v10051 = vadd.f32 %v10038, %v10050
        %v10052 = vpop.f32.mrf.mxu0
        %10053 = vdwg.mxu0
        %10054 = vmatpush.bf16.msra.mxu0 %v8584
        %10055 = vmatpush.bf16.msra.mxu0 %v8578
        %10056 = vmatpush.bf16.msra.mxu0 %v8572
        %10057 = vmatpush.bf16.msra.mxu0 %v8566
        %10058 = vmatpush.bf16.msra.mxu0 %v8560
        %10059 = vmatpush.bf16.msra.mxu0 %v8554
        %10060 = vmatpush.bf16.msra.mxu0 %v8548
        %10061 = vmatpush.bf16.msra.mxu0 %v8542
        %10062 = vmatmul.bf16.gmra.mxu0 %v6082
        %v10063 = vpop.f32.mrf.mxu0
        %v10064 = vadd.f32 %v10051, %v10063
        %v10065 = vpop.f32.mrf.mxu0
        %10066 = vdwg.mxu0
        %10067 = vmatpush.bf16.msra.mxu0 %v8632
        %10068 = vmatpush.bf16.msra.mxu0 %v8626
        %10069 = vmatpush.bf16.msra.mxu0 %v8620
        %10070 = vmatpush.bf16.msra.mxu0 %v8614
        %10071 = vmatpush.bf16.msra.mxu0 %v8608
        %10072 = vmatpush.bf16.msra.mxu0 %v8602
        %10073 = vmatpush.bf16.msra.mxu0 %v8596
        %10074 = vmatpush.bf16.msra.mxu0 %v8590
        %10075 = vmatmul.bf16.gmra.mxu0 %v6083
        %v10076 = vpop.f32.mrf.mxu0
        %v10077 = vadd.f32 %v10064, %v10076
        %v10078 = vpop.f32.mrf.mxu0
        %10079 = vdwg.mxu0
        %10080 = vmatpush.bf16.msra.mxu0 %v8680
        %10081 = vmatpush.bf16.msra.mxu0 %v8674
        %10082 = vmatpush.bf16.msra.mxu0 %v8668
        %10083 = vmatpush.bf16.msra.mxu0 %v8662
        %10084 = vmatpush.bf16.msra.mxu0 %v8656
        %10085 = vmatpush.bf16.msra.mxu0 %v8650
        %10086 = vmatpush.bf16.msra.mxu0 %v8644
        %10087 = vmatpush.bf16.msra.mxu0 %v8638
        %10088 = vmatmul.bf16.gmra.mxu0 %v6084
        %v10089 = vpop.f32.mrf.mxu0
        %v10090 = vadd.f32 %v10077, %v10089
        %v10091 = vpop.f32.mrf.mxu0
        %10092 = vdwg.mxu0
        %10093 = vmatpush.bf16.msra.mxu0 %v8728
        %10094 = vmatpush.bf16.msra.mxu0 %v8722
        %10095 = vmatpush.bf16.msra.mxu0 %v8716
        %10096 = vmatpush.bf16.msra.mxu0 %v8710
        %10097 = vmatpush.bf16.msra.mxu0 %v8704
        %10098 = vmatpush.bf16.msra.mxu0 %v8698
        %10099 = vmatpush.bf16.msra.mxu0 %v8692
        %10100 = vmatpush.bf16.msra.mxu0 %v8686
        %10101 = vmatmul.bf16.gmra.mxu0 %v6085
        %v10102 = vpop.f32.mrf.mxu0
        %v10103 = vadd.f32 %v10090, %v10102
        %v10104 = vpop.f32.mrf.mxu0
        %10105 = vdwg.mxu0
        %10106 = vmatpush.bf16.msra.mxu0 %v8776
        %10107 = vmatpush.bf16.msra.mxu0 %v8770
        %10108 = vmatpush.bf16.msra.mxu0 %v8764
        %10109 = vmatpush.bf16.msra.mxu0 %v8758
        %10110 = vmatpush.bf16.msra.mxu0 %v8752
        %10111 = vmatpush.bf16.msra.mxu0 %v8746
        %10112 = vmatpush.bf16.msra.mxu0 %v8740
        %10113 = vmatpush.bf16.msra.mxu0 %v8734
        %10114 = vmatmul.bf16.gmra.mxu0 %v6086
        %v10115 = vpop.f32.mrf.mxu0
        %v10116 = vadd.f32 %v10103, %v10115
        %v10117 = vpop.f32.mrf.mxu0
        %10118 = vdwg.mxu0
        %10119 = vmatpush.bf16.msra.mxu0 %v8824
        %10120 = vmatpush.bf16.msra.mxu0 %v8818
        %10121 = vmatpush.bf16.msra.mxu0 %v8812
        %10122 = vmatpush.bf16.msra.mxu0 %v8806
        %10123 = vmatpush.bf16.msra.mxu0 %v8800
        %10124 = vmatpush.bf16.msra.mxu0 %v8794
        %10125 = vmatpush.bf16.msra.mxu0 %v8788
        %10126 = vmatpush.bf16.msra.mxu0 %v8782
        %10127 = vmatmul.bf16.gmra.mxu0 %v6087
        %v10128 = vpop.f32.mrf.mxu0
        %v10129 = vadd.f32 %v10116, %v10128
        %v10130 = vpop.f32.mrf.mxu0
        %10131 = vdwg.mxu0
        %10132 = vmatpush.bf16.msra.mxu0 %v8872
        %10133 = vmatpush.bf16.msra.mxu0 %v8866
        %10134 = vmatpush.bf16.msra.mxu0 %v8860
        %10135 = vmatpush.bf16.msra.mxu0 %v8854
        %10136 = vmatpush.bf16.msra.mxu0 %v8848
        %10137 = vmatpush.bf16.msra.mxu0 %v8842
        %10138 = vmatpush.bf16.msra.mxu0 %v8836
        %10139 = vmatpush.bf16.msra.mxu0 %v8830
        %10140 = vmatmul.bf16.gmra.mxu0 %v6088
        %v10141 = vpop.f32.mrf.mxu0
        %v10142 = vadd.f32 %v10129, %v10141
        %v10143 = vpop.f32.mrf.mxu0
        %10144 = vdwg.mxu0
        %10145 = vmatpush.bf16.msra.mxu0 %v8920
        %10146 = vmatpush.bf16.msra.mxu0 %v8914
        %10147 = vmatpush.bf16.msra.mxu0 %v8908
        %10148 = vmatpush.bf16.msra.mxu0 %v8902
        %10149 = vmatpush.bf16.msra.mxu0 %v8896
        %10150 = vmatpush.bf16.msra.mxu0 %v8890
        %10151 = vmatpush.bf16.msra.mxu0 %v8884
        %10152 = vmatpush.bf16.msra.mxu0 %v8878
        %10153 = vmatmul.bf16.gmra.mxu0 %v6089
        %v10154 = vpop.f32.mrf.mxu0
        %v10155 = vadd.f32 %v10142, %v10154
        %v10156 = vpop.f32.mrf.mxu0
        %10157 = vdwg.mxu0
        %10158 = vmatpush.bf16.msra.mxu0 %v8968
        %10159 = vmatpush.bf16.msra.mxu0 %v8962
        %10160 = vmatpush.bf16.msra.mxu0 %v8956
        %10161 = vmatpush.bf16.msra.mxu0 %v8950
        %10162 = vmatpush.bf16.msra.mxu0 %v8944
        %10163 = vmatpush.bf16.msra.mxu0 %v8938
        %10164 = vmatpush.bf16.msra.mxu0 %v8932
        %10165 = vmatpush.bf16.msra.mxu0 %v8926
        %10166 = vmatmul.bf16.gmra.mxu0 %v6090
        %v10167 = vpop.f32.mrf.mxu0
        %v10168 = vadd.f32 %v10155, %v10167
        %v10169 = vpop.f32.mrf.mxu0
        %10170 = vdwg.mxu0
        %10171 = vmatpush.bf16.msra.mxu0 %v8441
        %10172 = vmatpush.bf16.msra.mxu0 %v8435
        %10173 = vmatpush.bf16.msra.mxu0 %v8429
        %10174 = vmatpush.bf16.msra.mxu0 %v8423
        %10175 = vmatpush.bf16.msra.mxu0 %v8417
        %10176 = vmatpush.bf16.msra.mxu0 %v8411
        %10177 = vmatpush.bf16.msra.mxu0 %v8405
        %10178 = vmatpush.bf16.msra.mxu0 %v8399
        %10179 = vmatmul.bf16.gmra.mxu0 %v6079
        %v10180 = vpop.f32.mrf.mxu0
        %v10181 = vadd.f32 0.0, %v10180
        %v10182 = vpop.f32.mrf.mxu0
        %10183 = vdwg.mxu0
        %10184 = vmatpush.bf16.msra.mxu0 %v8489
        %10185 = vmatpush.bf16.msra.mxu0 %v8483
        %10186 = vmatpush.bf16.msra.mxu0 %v8477
        %10187 = vmatpush.bf16.msra.mxu0 %v8471
        %10188 = vmatpush.bf16.msra.mxu0 %v8465
        %10189 = vmatpush.bf16.msra.mxu0 %v8459
        %10190 = vmatpush.bf16.msra.mxu0 %v8453
        %10191 = vmatpush.bf16.msra.mxu0 %v8447
        %10192 = vmatmul.bf16.gmra.mxu0 %v6080
        %v10193 = vpop.f32.mrf.mxu0
        %v10194 = vadd.f32 %v10181, %v10193
        %v10195 = vpop.f32.mrf.mxu0
        %10196 = vdwg.mxu0
        %10197 = vmatpush.bf16.msra.mxu0 %v8537
        %10198 = vmatpush.bf16.msra.mxu0 %v8531
        %10199 = vmatpush.bf16.msra.mxu0 %v8525
        %10200 = vmatpush.bf16.msra.mxu0 %v8519
        %10201 = vmatpush.bf16.msra.mxu0 %v8513
        %10202 = vmatpush.bf16.msra.mxu0 %v8507
        %10203 = vmatpush.bf16.msra.mxu0 %v8501
        %10204 = vmatpush.bf16.msra.mxu0 %v8495
        %10205 = vmatmul.bf16.gmra.mxu0 %v6081
        %v10206 = vpop.f32.mrf.mxu0
        %v10207 = vadd.f32 %v10194, %v10206
        %v10208 = vpop.f32.mrf.mxu0
        %10209 = vdwg.mxu0
        %10210 = vmatpush.bf16.msra.mxu0 %v8585
        %10211 = vmatpush.bf16.msra.mxu0 %v8579
        %10212 = vmatpush.bf16.msra.mxu0 %v8573
        %10213 = vmatpush.bf16.msra.mxu0 %v8567
        %10214 = vmatpush.bf16.msra.mxu0 %v8561
        %10215 = vmatpush.bf16.msra.mxu0 %v8555
        %10216 = vmatpush.bf16.msra.mxu0 %v8549
        %10217 = vmatpush.bf16.msra.mxu0 %v8543
        %10218 = vmatmul.bf16.gmra.mxu0 %v6082
        %v10219 = vpop.f32.mrf.mxu0
        %v10220 = vadd.f32 %v10207, %v10219
        %v10221 = vpop.f32.mrf.mxu0
        %10222 = vdwg.mxu0
        %10223 = vmatpush.bf16.msra.mxu0 %v8633
        %10224 = vmatpush.bf16.msra.mxu0 %v8627
        %10225 = vmatpush.bf16.msra.mxu0 %v8621
        %10226 = vmatpush.bf16.msra.mxu0 %v8615
        %10227 = vmatpush.bf16.msra.mxu0 %v8609
        %10228 = vmatpush.bf16.msra.mxu0 %v8603
        %10229 = vmatpush.bf16.msra.mxu0 %v8597
        %10230 = vmatpush.bf16.msra.mxu0 %v8591
        %10231 = vmatmul.bf16.gmra.mxu0 %v6083
        %v10232 = vpop.f32.mrf.mxu0
        %v10233 = vadd.f32 %v10220, %v10232
        %v10234 = vpop.f32.mrf.mxu0
        %10235 = vdwg.mxu0
        %10236 = vmatpush.bf16.msra.mxu0 %v8681
        %10237 = vmatpush.bf16.msra.mxu0 %v8675
        %10238 = vmatpush.bf16.msra.mxu0 %v8669
        %10239 = vmatpush.bf16.msra.mxu0 %v8663
        %10240 = vmatpush.bf16.msra.mxu0 %v8657
        %10241 = vmatpush.bf16.msra.mxu0 %v8651
        %10242 = vmatpush.bf16.msra.mxu0 %v8645
        %10243 = vmatpush.bf16.msra.mxu0 %v8639
        %10244 = vmatmul.bf16.gmra.mxu0 %v6084
        %v10245 = vpop.f32.mrf.mxu0
        %v10246 = vadd.f32 %v10233, %v10245
        %v10247 = vpop.f32.mrf.mxu0
        %10248 = vdwg.mxu0
        %10249 = vmatpush.bf16.msra.mxu0 %v8729
        %10250 = vmatpush.bf16.msra.mxu0 %v8723
        %10251 = vmatpush.bf16.msra.mxu0 %v8717
        %10252 = vmatpush.bf16.msra.mxu0 %v8711
        %10253 = vmatpush.bf16.msra.mxu0 %v8705
        %10254 = vmatpush.bf16.msra.mxu0 %v8699
        %10255 = vmatpush.bf16.msra.mxu0 %v8693
        %10256 = vmatpush.bf16.msra.mxu0 %v8687
        %10257 = vmatmul.bf16.gmra.mxu0 %v6085
        %v10258 = vpop.f32.mrf.mxu0
        %v10259 = vadd.f32 %v10246, %v10258
        %v10260 = vpop.f32.mrf.mxu0
        %10261 = vdwg.mxu0
        %10262 = vmatpush.bf16.msra.mxu0 %v8777
        %10263 = vmatpush.bf16.msra.mxu0 %v8771
        %10264 = vmatpush.bf16.msra.mxu0 %v8765
        %10265 = vmatpush.bf16.msra.mxu0 %v8759
        %10266 = vmatpush.bf16.msra.mxu0 %v8753
        %10267 = vmatpush.bf16.msra.mxu0 %v8747
        %10268 = vmatpush.bf16.msra.mxu0 %v8741
        %10269 = vmatpush.bf16.msra.mxu0 %v8735
        %10270 = vmatmul.bf16.gmra.mxu0 %v6086
        %v10271 = vpop.f32.mrf.mxu0
        %v10272 = vadd.f32 %v10259, %v10271
        %v10273 = vpop.f32.mrf.mxu0
        %10274 = vdwg.mxu0
        %10275 = vmatpush.bf16.msra.mxu0 %v8825
        %10276 = vmatpush.bf16.msra.mxu0 %v8819
        %10277 = vmatpush.bf16.msra.mxu0 %v8813
        %10278 = vmatpush.bf16.msra.mxu0 %v8807
        %10279 = vmatpush.bf16.msra.mxu0 %v8801
        %10280 = vmatpush.bf16.msra.mxu0 %v8795
        %10281 = vmatpush.bf16.msra.mxu0 %v8789
        %10282 = vmatpush.bf16.msra.mxu0 %v8783
        %10283 = vmatmul.bf16.gmra.mxu0 %v6087
        %v10284 = vpop.f32.mrf.mxu0
        %v10285 = vadd.f32 %v10272, %v10284
        %v10286 = vpop.f32.mrf.mxu0
        %10287 = vdwg.mxu0
        %10288 = vmatpush.bf16.msra.mxu0 %v8873
        %10289 = vmatpush.bf16.msra.mxu0 %v8867
        %10290 = vmatpush.bf16.msra.mxu0 %v8861
        %10291 = vmatpush.bf16.msra.mxu0 %v8855
        %10292 = vmatpush.bf16.msra.mxu0 %v8849
        %10293 = vmatpush.bf16.msra.mxu0 %v8843
        %10294 = vmatpush.bf16.msra.mxu0 %v8837
        %10295 = vmatpush.bf16.msra.mxu0 %v8831
        %10296 = vmatmul.bf16.gmra.mxu0 %v6088
        %v10297 = vpop.f32.mrf.mxu0
        %v10298 = vadd.f32 %v10285, %v10297
        %v10299 = vpop.f32.mrf.mxu0
        %10300 = vdwg.mxu0
        %10301 = vmatpush.bf16.msra.mxu0 %v8921
        %10302 = vmatpush.bf16.msra.mxu0 %v8915
        %10303 = vmatpush.bf16.msra.mxu0 %v8909
        %10304 = vmatpush.bf16.msra.mxu0 %v8903
        %10305 = vmatpush.bf16.msra.mxu0 %v8897
        %10306 = vmatpush.bf16.msra.mxu0 %v8891
        %10307 = vmatpush.bf16.msra.mxu0 %v8885
        %10308 = vmatpush.bf16.msra.mxu0 %v8879
        %10309 = vmatmul.bf16.gmra.mxu0 %v6089
        %v10310 = vpop.f32.mrf.mxu0
        %v10311 = vadd.f32 %v10298, %v10310
        %v10312 = vpop.f32.mrf.mxu0
        %10313 = vdwg.mxu0
        %10314 = vmatpush.bf16.msra.mxu0 %v8969
        %10315 = vmatpush.bf16.msra.mxu0 %v8963
        %10316 = vmatpush.bf16.msra.mxu0 %v8957
        %10317 = vmatpush.bf16.msra.mxu0 %v8951
        %10318 = vmatpush.bf16.msra.mxu0 %v8945
        %10319 = vmatpush.bf16.msra.mxu0 %v8939
        %10320 = vmatpush.bf16.msra.mxu0 %v8933
        %10321 = vmatpush.bf16.msra.mxu0 %v8927
        %10322 = vmatmul.bf16.gmra.mxu0 %v6090
        %v10323 = vpop.f32.mrf.mxu0
        %v10324 = vadd.f32 %v10311, %v10323
        %v10325 = vpop.f32.mrf.mxu0
        %10326 = vdwg.mxu0
        %10327 = vmatpush.bf16.msra.mxu0 %v8442
        %10328 = vmatpush.bf16.msra.mxu0 %v8436
        %10329 = vmatpush.bf16.msra.mxu0 %v8430
        %10330 = vmatpush.bf16.msra.mxu0 %v8424
        %10331 = vmatpush.bf16.msra.mxu0 %v8418
        %10332 = vmatpush.bf16.msra.mxu0 %v8412
        %10333 = vmatpush.bf16.msra.mxu0 %v8406
        %10334 = vmatpush.bf16.msra.mxu0 %v8400
        %10335 = vmatmul.bf16.gmra.mxu0 %v6079
        %v10336 = vpop.f32.mrf.mxu0
        %v10337 = vadd.f32 0.0, %v10336
        %v10338 = vpop.f32.mrf.mxu0
        %10339 = vdwg.mxu0
        %10340 = vmatpush.bf16.msra.mxu0 %v8490
        %10341 = vmatpush.bf16.msra.mxu0 %v8484
        %10342 = vmatpush.bf16.msra.mxu0 %v8478
        %10343 = vmatpush.bf16.msra.mxu0 %v8472
        %10344 = vmatpush.bf16.msra.mxu0 %v8466
        %10345 = vmatpush.bf16.msra.mxu0 %v8460
        %10346 = vmatpush.bf16.msra.mxu0 %v8454
        %10347 = vmatpush.bf16.msra.mxu0 %v8448
        %10348 = vmatmul.bf16.gmra.mxu0 %v6080
        %v10349 = vpop.f32.mrf.mxu0
        %v10350 = vadd.f32 %v10337, %v10349
        %v10351 = vpop.f32.mrf.mxu0
        %10352 = vdwg.mxu0
        %10353 = vmatpush.bf16.msra.mxu0 %v8538
        %10354 = vmatpush.bf16.msra.mxu0 %v8532
        %10355 = vmatpush.bf16.msra.mxu0 %v8526
        %10356 = vmatpush.bf16.msra.mxu0 %v8520
        %10357 = vmatpush.bf16.msra.mxu0 %v8514
        %10358 = vmatpush.bf16.msra.mxu0 %v8508
        %10359 = vmatpush.bf16.msra.mxu0 %v8502
        %10360 = vmatpush.bf16.msra.mxu0 %v8496
        %10361 = vmatmul.bf16.gmra.mxu0 %v6081
        %v10362 = vpop.f32.mrf.mxu0
        %v10363 = vadd.f32 %v10350, %v10362
        %v10364 = vpop.f32.mrf.mxu0
        %10365 = vdwg.mxu0
        %10366 = vmatpush.bf16.msra.mxu0 %v8586
        %10367 = vmatpush.bf16.msra.mxu0 %v8580
        %10368 = vmatpush.bf16.msra.mxu0 %v8574
        %10369 = vmatpush.bf16.msra.mxu0 %v8568
        %10370 = vmatpush.bf16.msra.mxu0 %v8562
        %10371 = vmatpush.bf16.msra.mxu0 %v8556
        %10372 = vmatpush.bf16.msra.mxu0 %v8550
        %10373 = vmatpush.bf16.msra.mxu0 %v8544
        %10374 = vmatmul.bf16.gmra.mxu0 %v6082
        %v10375 = vpop.f32.mrf.mxu0
        %v10376 = vadd.f32 %v10363, %v10375
        %v10377 = vpop.f32.mrf.mxu0
        %10378 = vdwg.mxu0
        %10379 = vmatpush.bf16.msra.mxu0 %v8634
        %10380 = vmatpush.bf16.msra.mxu0 %v8628
        %10381 = vmatpush.bf16.msra.mxu0 %v8622
        %10382 = vmatpush.bf16.msra.mxu0 %v8616
        %10383 = vmatpush.bf16.msra.mxu0 %v8610
        %10384 = vmatpush.bf16.msra.mxu0 %v8604
        %10385 = vmatpush.bf16.msra.mxu0 %v8598
        %10386 = vmatpush.bf16.msra.mxu0 %v8592
        %10387 = vmatmul.bf16.gmra.mxu0 %v6083
        %v10388 = vpop.f32.mrf.mxu0
        %v10389 = vadd.f32 %v10376, %v10388
        %v10390 = vpop.f32.mrf.mxu0
        %10391 = vdwg.mxu0
        %10392 = vmatpush.bf16.msra.mxu0 %v8682
        %10393 = vmatpush.bf16.msra.mxu0 %v8676
        %10394 = vmatpush.bf16.msra.mxu0 %v8670
        %10395 = vmatpush.bf16.msra.mxu0 %v8664
        %10396 = vmatpush.bf16.msra.mxu0 %v8658
        %10397 = vmatpush.bf16.msra.mxu0 %v8652
        %10398 = vmatpush.bf16.msra.mxu0 %v8646
        %10399 = vmatpush.bf16.msra.mxu0 %v8640
        %10400 = vmatmul.bf16.gmra.mxu0 %v6084
        %v10401 = vpop.f32.mrf.mxu0
        %v10402 = vadd.f32 %v10389, %v10401
        %v10403 = vpop.f32.mrf.mxu0
        %10404 = vdwg.mxu0
        %10405 = vmatpush.bf16.msra.mxu0 %v8730
        %10406 = vmatpush.bf16.msra.mxu0 %v8724
        %10407 = vmatpush.bf16.msra.mxu0 %v8718
        %10408 = vmatpush.bf16.msra.mxu0 %v8712
        %10409 = vmatpush.bf16.msra.mxu0 %v8706
        %10410 = vmatpush.bf16.msra.mxu0 %v8700
        %10411 = vmatpush.bf16.msra.mxu0 %v8694
        %10412 = vmatpush.bf16.msra.mxu0 %v8688
        %10413 = vmatmul.bf16.gmra.mxu0 %v6085
        %v10414 = vpop.f32.mrf.mxu0
        %v10415 = vadd.f32 %v10402, %v10414
        %v10416 = vpop.f32.mrf.mxu0
        %10417 = vdwg.mxu0
        %10418 = vmatpush.bf16.msra.mxu0 %v8778
        %10419 = vmatpush.bf16.msra.mxu0 %v8772
        %10420 = vmatpush.bf16.msra.mxu0 %v8766
        %10421 = vmatpush.bf16.msra.mxu0 %v8760
        %10422 = vmatpush.bf16.msra.mxu0 %v8754
        %10423 = vmatpush.bf16.msra.mxu0 %v8748
        %10424 = vmatpush.bf16.msra.mxu0 %v8742
        %10425 = vmatpush.bf16.msra.mxu0 %v8736
        %10426 = vmatmul.bf16.gmra.mxu0 %v6086
        %v10427 = vpop.f32.mrf.mxu0
        %v10428 = vadd.f32 %v10415, %v10427
        %v10429 = vpop.f32.mrf.mxu0
        %10430 = vdwg.mxu0
        %10431 = vmatpush.bf16.msra.mxu0 %v8826
        %10432 = vmatpush.bf16.msra.mxu0 %v8820
        %10433 = vmatpush.bf16.msra.mxu0 %v8814
        %10434 = vmatpush.bf16.msra.mxu0 %v8808
        %10435 = vmatpush.bf16.msra.mxu0 %v8802
        %10436 = vmatpush.bf16.msra.mxu0 %v8796
        %10437 = vmatpush.bf16.msra.mxu0 %v8790
        %10438 = vmatpush.bf16.msra.mxu0 %v8784
        %10439 = vmatmul.bf16.gmra.mxu0 %v6087
        %v10440 = vpop.f32.mrf.mxu0
        %v10441 = vadd.f32 %v10428, %v10440
        %v10442 = vpop.f32.mrf.mxu0
        %10443 = vdwg.mxu0
        %10444 = vmatpush.bf16.msra.mxu0 %v8874
        %10445 = vmatpush.bf16.msra.mxu0 %v8868
        %10446 = vmatpush.bf16.msra.mxu0 %v8862
        %10447 = vmatpush.bf16.msra.mxu0 %v8856
        %10448 = vmatpush.bf16.msra.mxu0 %v8850
        %10449 = vmatpush.bf16.msra.mxu0 %v8844
        %10450 = vmatpush.bf16.msra.mxu0 %v8838
        %10451 = vmatpush.bf16.msra.mxu0 %v8832
        %10452 = vmatmul.bf16.gmra.mxu0 %v6088
        %v10453 = vpop.f32.mrf.mxu0
        %v10454 = vadd.f32 %v10441, %v10453
        %v10455 = vpop.f32.mrf.mxu0
        %10456 = vdwg.mxu0
        %10457 = vmatpush.bf16.msra.mxu0 %v8922
        %10458 = vmatpush.bf16.msra.mxu0 %v8916
        %10459 = vmatpush.bf16.msra.mxu0 %v8910
        %10460 = vmatpush.bf16.msra.mxu0 %v8904
        %10461 = vmatpush.bf16.msra.mxu0 %v8898
        %10462 = vmatpush.bf16.msra.mxu0 %v8892
        %10463 = vmatpush.bf16.msra.mxu0 %v8886
        %10464 = vmatpush.bf16.msra.mxu0 %v8880
        %10465 = vmatmul.bf16.gmra.mxu0 %v6089
        %v10466 = vpop.f32.mrf.mxu0
        %v10467 = vadd.f32 %v10454, %v10466
        %v10468 = vpop.f32.mrf.mxu0
        %10469 = vdwg.mxu0
        %10470 = vmatpush.bf16.msra.mxu0 %v8970
        %10471 = vmatpush.bf16.msra.mxu0 %v8964
        %10472 = vmatpush.bf16.msra.mxu0 %v8958
        %10473 = vmatpush.bf16.msra.mxu0 %v8952
        %10474 = vmatpush.bf16.msra.mxu0 %v8946
        %10475 = vmatpush.bf16.msra.mxu0 %v8940
        %10476 = vmatpush.bf16.msra.mxu0 %v8934
        %10477 = vmatpush.bf16.msra.mxu0 %v8928
        %10478 = vmatmul.bf16.gmra.mxu0 %v6090
        %v10479 = vpop.f32.mrf.mxu0
        %v10480 = vadd.f32 %v10467, %v10479
        %v10481 = vpop.f32.mrf.mxu0
        %10482 = vdwg.mxu0
        %v10489 = vrot.slane %v9856, 6
        %v10490 = vrot.slane %v10012, 4
        %v10491 = vrot.slane %v10168, 2
        %v10492 = vrot.slane %v10480, 6
        %vm10493 = vcmask 1041408
        %v10494 = vsel %vm10493, %v9700, %v10489
        %vm10495 = vcmask 1045508
        %v10496 = vsel %vm10495, %v10490, %v10491
        %vm10497 = vcmask 1043456
        %v10498 = vsel %vm10497, %v10494, %v10496
        %v10499 = vsel %vm10493, %v10324, %v10492
        %v10502 = vadd.f32 %v6065, %v10498
        %v10503 = vadd.f32 %v6066, %v10499
        %10504 = vst [vmem:[#allocation3] sm:$0xff] %v10502
        %10505 = vst [vmem:[#allocation3 + $0x8] sm:$0xf] %v10503
        %p10506 = scmp.eq.s32.totalorder %s39, 1
        // Predicated region
        $region85: #{tpu_custom_call.1} parent=51 // pred_check
          %p10507 = pneg %p10506
        $region86: #{tpu_custom_call.1} parent=51 // pred_check_branch
          %10509 = sbr.rel (%p10507) target = $region88
        $region87: #{tpu_custom_call.1} parent=51 // pred_region
          %v10510 = vld [vmem:[#allocation3] sm:$0xff]
          %v10511 = vld [vmem:[#allocation3 + $0x8] sm:$0xf]
          %v10512 = vmax.f32 %v10510, 0.0
          %v10513 = vmax.f32 %v10511, 0.0
          %v10514 = vadd.f32 %v10512, %v601
          %v10515 = vadd.f32 %v10513, %v602
          %10518 = vst [vmem:[#allocation1] ss:$4 sm:$0xff] %v10514
          %s10519 = scalar_lea.vmem [#allocation1], 32
          %10520 = vst [vmem:[%s10519] ss:$4 sm:$0xff] %v10515
          %v10521 = vld.sshfl [vmem:[#allocation1] sm:$0xff pattern:$0x73625140]
          %v10522 = vld.sshfl [vmem:[#allocation1 + $0x8] sm:$0xff pattern:$0x73625140]
          %v10523 = vld.sshfl [vmem:[#allocation1 + $0x10] sm:$0xff pattern:$0x73625140]
          %v10524 = vld.sshfl [vmem:[#allocation1 + $0x18] sm:$0xff pattern:$0x73625140]
          %v10525 = vld.sshfl [vmem:[#allocation1 + $0x20] sm:$0xff pattern:$0x73625140]
          %v10526 = vld.sshfl [vmem:[#allocation1 + $0x28] sm:$0xff pattern:$0x73625140]
          %v10533 = vpack.c.bf16 %v10521, %v10521
          %v10534 = vpack.c.bf16 %v10522, %v10522
          %v10535 = vpack.c.bf16 %v10523, %v10523
          %v10536 = vpack.c.bf16 %v10524, %v10524
          %v10537 = vpack.c.bf16 %v10525, %v10525
          %v10538 = vpack.c.bf16 %v10526, %v10526
          %v10539 = vld [vmem:[%s519] sm:$0xf]
          %v10540 = vld [vmem:[%s519 + $0x4] sm:$0xf]
          %v10541 = vld [vmem:[%s519 + $0x8] sm:$0xf]
          %v10542 = vld [vmem:[%s519 + $0xc] sm:$0xf]
          %v10543 = vld [vmem:[%s519 + $0x10] sm:$0xf]
          %v10544 = vld [vmem:[%s519 + $0x14] sm:$0xf]
          %v10545 = vld [vmem:[%s519 + $0x18] sm:$0xf]
          %v10546 = vld [vmem:[%s519 + $0x1c] sm:$0xf]
          %v10547 = vld [vmem:[%s519 + $0x20] sm:$0xf]
          %v10548 = vld [vmem:[%s519 + $0x24] sm:$0xf]
          %v10549 = vld [vmem:[%s519 + $0x28] sm:$0xf]
          %v10550 = vld [vmem:[%s519 + $0x2c] sm:$0xf]
          %v10551 = vld [vmem:[%s519 + $0x30] sm:$0xf]
          %v10552 = vld [vmem:[%s519 + $0x34] sm:$0xf]
          %v10553 = vld [vmem:[%s519 + $0x38] sm:$0xf]
          %v10554 = vld [vmem:[%s519 + $0x3c] sm:$0xf]
          %v10555 = vld [vmem:[%s519 + $0x40] sm:$0xf]
          %v10556 = vld [vmem:[%s519 + $0x44] sm:$0xf]
          %v10557 = vld [vmem:[%s519 + $0x48] sm:$0xf]
          %v10558 = vld [vmem:[%s519 + $0x4c] sm:$0xf]
          %v10559 = vld [vmem:[%s519 + $0x50] sm:$0xf]
          %v10560 = vld [vmem:[%s519 + $0x54] sm:$0xf]
          %v10561 = vld [vmem:[%s519 + $0x58] sm:$0xf]
          %v10562 = vld [vmem:[%s519 + $0x5c] sm:$0xf]
          %v10563 = vld [vmem:[%s519 + $0x60] sm:$0xf]
          %v10564 = vld [vmem:[%s519 + $0x64] sm:$0xf]
          %v10565 = vld [vmem:[%s519 + $0x68] sm:$0xf]
          %v10566 = vld [vmem:[%s519 + $0x6c] sm:$0xf]
          %v10567 = vld [vmem:[%s519 + $0x70] sm:$0xf]
          %v10568 = vld [vmem:[%s519 + $0x74] sm:$0xf]
          %v10569 = vld [vmem:[%s519 + $0x78] sm:$0xf]
          %v10570 = vld [vmem:[%s519 + $0x7c] sm:$0xf]
          %v10571 = vld [vmem:[%s519 + $0x80] sm:$0xf]
          %v10572 = vld [vmem:[%s519 + $0x84] sm:$0xf]
          %v10573 = vld [vmem:[%s519 + $0x88] sm:$0xf]
          %v10574 = vld [vmem:[%s519 + $0x8c] sm:$0xf]
          %v10575 = vld [vmem:[%s519 + $0x90] sm:$0xf]
          %v10576 = vld [vmem:[%s519 + $0x94] sm:$0xf]
          %v10577 = vld [vmem:[%s519 + $0x98] sm:$0xf]
          %v10578 = vld [vmem:[%s519 + $0x9c] sm:$0xf]
          %v10579 = vld [vmem:[%s519 + $0xa0] sm:$0xf]
          %v10580 = vld [vmem:[%s519 + $0xa4] sm:$0xf]
          %v10581 = vld [vmem:[%s519 + $0xa8] sm:$0xf]
          %v10582 = vld [vmem:[%s519 + $0xac] sm:$0xf]
          %v10583 = vld [vmem:[%s519 + $0xb0] sm:$0xf]
          %v10584 = vld [vmem:[%s519 + $0xb4] sm:$0xf]
          %v10585 = vld [vmem:[%s519 + $0xb8] sm:$0xf]
          %v10586 = vld [vmem:[%s519 + $0xbc] sm:$0xf]
          %v10587 = vld [vmem:[%s519 + $0xc0] sm:$0xf]
          %v10588 = vld [vmem:[%s519 + $0xc4] sm:$0xf]
          %v10589 = vld [vmem:[%s519 + $0xc8] sm:$0xf]
          %v10590 = vld [vmem:[%s519 + $0xcc] sm:$0xf]
          %v10591 = vld [vmem:[%s519 + $0xd0] sm:$0xf]
          %v10592 = vld [vmem:[%s519 + $0xd4] sm:$0xf]
          %v10593 = vld [vmem:[%s519 + $0xd8] sm:$0xf]
          %v10594 = vld [vmem:[%s519 + $0xdc] sm:$0xf]
          %v10595 = vld [vmem:[%s519 + $0xe0] sm:$0xf]
          %v10596 = vld [vmem:[%s519 + $0xe4] sm:$0xf]
          %v10597 = vld [vmem:[%s519 + $0xe8] sm:$0xf]
          %v10598 = vld [vmem:[%s519 + $0xec] sm:$0xf]
          %v10599 = vld [vmem:[%s519 + $0xf0] sm:$0xf]
          %v10600 = vld [vmem:[%s519 + $0xf4] sm:$0xf]
          %v10601 = vld [vmem:[%s519 + $0xf8] sm:$0xf]
          %v10602 = vld [vmem:[%s519 + $0xfc] sm:$0xf]
          %v10603 = vld [vmem:[%s519 + $0x100] sm:$0xf]
          %v10604 = vld [vmem:[%s519 + $0x104] sm:$0xf]
          %v10605 = vld [vmem:[%s519 + $0x108] sm:$0xf]
          %v10606 = vld [vmem:[%s519 + $0x10c] sm:$0xf]
          %v10607 = vld [vmem:[%s519 + $0x110] sm:$0xf]
          %v10608 = vld [vmem:[%s519 + $0x114] sm:$0xf]
          %v10609 = vld [vmem:[%s519 + $0x118] sm:$0xf]
          %v10610 = vld [vmem:[%s519 + $0x11c] sm:$0xf]
          %v10611 = vld [vmem:[%s519 + $0x120] sm:$0xf]
          %v10612 = vld [vmem:[%s519 + $0x124] sm:$0xf]
          %v10613 = vld [vmem:[%s519 + $0x128] sm:$0xf]
          %v10614 = vld [vmem:[%s519 + $0x12c] sm:$0xf]
          %v10615 = vld [vmem:[%s519 + $0x130] sm:$0xf]
          %v10616 = vld [vmem:[%s519 + $0x134] sm:$0xf]
          %v10617 = vld [vmem:[%s519 + $0x138] sm:$0xf]
          %v10618 = vld [vmem:[%s519 + $0x13c] sm:$0xf]
          %v10619 = vld [vmem:[%s519 + $0x140] sm:$0xf]
          %v10620 = vld [vmem:[%s519 + $0x144] sm:$0xf]
          %v10621 = vld [vmem:[%s519 + $0x148] sm:$0xf]
          %v10622 = vld [vmem:[%s519 + $0x14c] sm:$0xf]
          %v10623 = vld [vmem:[%s519 + $0x150] sm:$0xf]
          %v10624 = vld [vmem:[%s519 + $0x154] sm:$0xf]
          %v10625 = vld [vmem:[%s519 + $0x158] sm:$0xf]
          %v10626 = vld [vmem:[%s519 + $0x15c] sm:$0xf]
          %v10627 = vld [vmem:[%s519 + $0x160] sm:$0xf]
          %v10628 = vld [vmem:[%s519 + $0x164] sm:$0xf]
          %v10629 = vld [vmem:[%s519 + $0x168] sm:$0xf]
          %v10630 = vld [vmem:[%s519 + $0x16c] sm:$0xf]
          %v10631 = vld [vmem:[%s519 + $0x170] sm:$0xf]
          %v10632 = vld [vmem:[%s519 + $0x174] sm:$0xf]
          %v10633 = vld [vmem:[%s519 + $0x178] sm:$0xf]
          %v10634 = vld [vmem:[%s519 + $0x17c] sm:$0xf]
          %v10635 = vld [vmem:[%s528] sm:$0x1]
          %v10637 = vperm.slane %v10635, 0
          %v10735 = vunpack.c.l.b16 %v10539
          %v10736 = vunpack.c.l.b16 %v10540
          %v10737 = vunpack.c.l.b16 %v10541
          %v10738 = vunpack.c.l.b16 %v10542
          %v10739 = vunpack.c.l.b16 %v10543
          %v10740 = vunpack.c.l.b16 %v10544
          %v10741 = vunpack.c.l.b16 %v10545
          %v10742 = vunpack.c.l.b16 %v10546
          %v10743 = vunpack.c.l.b16 %v10547
          %v10744 = vunpack.c.l.b16 %v10548
          %v10745 = vunpack.c.l.b16 %v10549
          %v10746 = vunpack.c.l.b16 %v10550
          %v10747 = vunpack.c.l.b16 %v10551
          %v10748 = vunpack.c.l.b16 %v10552
          %v10749 = vunpack.c.l.b16 %v10553
          %v10750 = vunpack.c.l.b16 %v10554
          %v10751 = vunpack.c.l.b16 %v10555
          %v10752 = vunpack.c.l.b16 %v10556
          %v10753 = vunpack.c.l.b16 %v10557
          %v10754 = vunpack.c.l.b16 %v10558
          %v10755 = vunpack.c.l.b16 %v10559
          %v10756 = vunpack.c.l.b16 %v10560
          %v10757 = vunpack.c.l.b16 %v10561
          %v10758 = vunpack.c.l.b16 %v10562
          %v10759 = vunpack.c.l.b16 %v10563
          %v10760 = vunpack.c.l.b16 %v10564
          %v10761 = vunpack.c.l.b16 %v10565
          %v10762 = vunpack.c.l.b16 %v10566
          %v10763 = vunpack.c.l.b16 %v10567
          %v10764 = vunpack.c.l.b16 %v10568
          %v10765 = vunpack.c.l.b16 %v10569
          %v10766 = vunpack.c.l.b16 %v10570
          %v10767 = vunpack.c.l.b16 %v10571
          %v10768 = vunpack.c.l.b16 %v10572
          %v10769 = vunpack.c.l.b16 %v10573
          %v10770 = vunpack.c.l.b16 %v10574
          %v10771 = vunpack.c.l.b16 %v10575
          %v10772 = vunpack.c.l.b16 %v10576
          %v10773 = vunpack.c.l.b16 %v10577
          %v10774 = vunpack.c.l.b16 %v10578
          %v10775 = vunpack.c.l.b16 %v10579
          %v10776 = vunpack.c.l.b16 %v10580
          %v10777 = vunpack.c.l.b16 %v10581
          %v10778 = vunpack.c.l.b16 %v10582
          %v10779 = vunpack.c.l.b16 %v10583
          %v10780 = vunpack.c.l.b16 %v10584
          %v10781 = vunpack.c.l.b16 %v10585
          %v10782 = vunpack.c.l.b16 %v10586
          %v10783 = vunpack.c.l.b16 %v10587
          %v10784 = vunpack.c.l.b16 %v10588
          %v10785 = vunpack.c.l.b16 %v10589
          %v10786 = vunpack.c.l.b16 %v10590
          %v10787 = vunpack.c.l.b16 %v10591
          %v10788 = vunpack.c.l.b16 %v10592
          %v10789 = vunpack.c.l.b16 %v10593
          %v10790 = vunpack.c.l.b16 %v10594
          %v10791 = vunpack.c.l.b16 %v10595
          %v10792 = vunpack.c.l.b16 %v10596
          %v10793 = vunpack.c.l.b16 %v10597
          %v10794 = vunpack.c.l.b16 %v10598
          %v10795 = vunpack.c.l.b16 %v10599
          %v10796 = vunpack.c.l.b16 %v10600
          %v10797 = vunpack.c.l.b16 %v10601
          %v10798 = vunpack.c.l.b16 %v10602
          %v10799 = vunpack.c.l.b16 %v10603
          %v10800 = vunpack.c.l.b16 %v10604
          %v10801 = vunpack.c.l.b16 %v10605
          %v10802 = vunpack.c.l.b16 %v10606
          %v10803 = vunpack.c.l.b16 %v10607
          %v10804 = vunpack.c.l.b16 %v10608
          %v10805 = vunpack.c.l.b16 %v10609
          %v10806 = vunpack.c.l.b16 %v10610
          %v10807 = vunpack.c.l.b16 %v10611
          %v10808 = vunpack.c.l.b16 %v10612
          %v10809 = vunpack.c.l.b16 %v10613
          %v10810 = vunpack.c.l.b16 %v10614
          %v10811 = vunpack.c.l.b16 %v10615
          %v10812 = vunpack.c.l.b16 %v10616
          %v10813 = vunpack.c.l.b16 %v10617
          %v10814 = vunpack.c.l.b16 %v10618
          %v10815 = vunpack.c.l.b16 %v10619
          %v10816 = vunpack.c.l.b16 %v10620
          %v10817 = vunpack.c.l.b16 %v10621
          %v10818 = vunpack.c.l.b16 %v10622
          %v10819 = vunpack.c.l.b16 %v10623
          %v10820 = vunpack.c.l.b16 %v10624
          %v10821 = vunpack.c.l.b16 %v10625
          %v10822 = vunpack.c.l.b16 %v10626
          %v10823 = vunpack.c.l.b16 %v10627
          %v10824 = vunpack.c.l.b16 %v10628
          %v10825 = vunpack.c.l.b16 %v10629
          %v10826 = vunpack.c.l.b16 %v10630
          %v10827 = vunpack.c.l.b16 %v10631
          %v10828 = vunpack.c.l.b16 %v10632
          %v10829 = vunpack.c.l.b16 %v10633
          %v10830 = vunpack.c.l.b16 %v10634
          %v10831 = vpack.c.b16 %v10736, %v10735
          %v10832 = vpack.c.b16 %v10738, %v10737
          %v10833 = vpack.c.b16 %v10740, %v10739
          %v10834 = vpack.c.b16 %v10742, %v10741
          %v10835 = vpack.c.b16 %v10744, %v10743
          %v10836 = vpack.c.b16 %v10746, %v10745
          %v10837 = vpack.c.b16 %v10748, %v10747
          %v10838 = vpack.c.b16 %v10750, %v10749
          %v10839 = vpack.c.b16 %v10752, %v10751
          %v10840 = vpack.c.b16 %v10754, %v10753
          %v10841 = vpack.c.b16 %v10756, %v10755
          %v10842 = vpack.c.b16 %v10758, %v10757
          %v10843 = vpack.c.b16 %v10760, %v10759
          %v10844 = vpack.c.b16 %v10762, %v10761
          %v10845 = vpack.c.b16 %v10764, %v10763
          %v10846 = vpack.c.b16 %v10766, %v10765
          %v10847 = vpack.c.b16 %v10768, %v10767
          %v10848 = vpack.c.b16 %v10770, %v10769
          %v10849 = vpack.c.b16 %v10772, %v10771
          %v10850 = vpack.c.b16 %v10774, %v10773
          %v10851 = vpack.c.b16 %v10776, %v10775
          %v10852 = vpack.c.b16 %v10778, %v10777
          %v10853 = vpack.c.b16 %v10780, %v10779
          %v10854 = vpack.c.b16 %v10782, %v10781
          %v10855 = vpack.c.b16 %v10784, %v10783
          %v10856 = vpack.c.b16 %v10786, %v10785
          %v10857 = vpack.c.b16 %v10788, %v10787
          %v10858 = vpack.c.b16 %v10790, %v10789
          %v10859 = vpack.c.b16 %v10792, %v10791
          %v10860 = vpack.c.b16 %v10794, %v10793
          %v10861 = vpack.c.b16 %v10796, %v10795
          %v10862 = vpack.c.b16 %v10798, %v10797
          %v10863 = vpack.c.b16 %v10800, %v10799
          %v10864 = vpack.c.b16 %v10802, %v10801
          %v10865 = vpack.c.b16 %v10804, %v10803
          %v10866 = vpack.c.b16 %v10806, %v10805
          %v10867 = vpack.c.b16 %v10808, %v10807
          %v10868 = vpack.c.b16 %v10810, %v10809
          %v10869 = vpack.c.b16 %v10812, %v10811
          %v10870 = vpack.c.b16 %v10814, %v10813
          %v10871 = vpack.c.b16 %v10816, %v10815
          %v10872 = vpack.c.b16 %v10818, %v10817
          %v10873 = vpack.c.b16 %v10820, %v10819
          %v10874 = vpack.c.b16 %v10822, %v10821
          %v10875 = vpack.c.b16 %v10824, %v10823
          %v10876 = vpack.c.b16 %v10826, %v10825
          %v10877 = vpack.c.b16 %v10828, %v10827
          %v10878 = vpack.c.b16 %v10830, %v10829
          %10927 = vmatpush.bf16.msra.mxu0 %v10838
          %10928 = vmatpush.bf16.msra.mxu0 %v10837
          %10929 = vmatpush.bf16.msra.mxu0 %v10836
          %10930 = vmatpush.bf16.msra.mxu0 %v10835
          %10931 = vmatpush.bf16.msra.mxu0 %v10834
          %10932 = vmatpush.bf16.msra.mxu0 %v10833
          %10933 = vmatpush.bf16.msra.mxu0 %v10832
          %10934 = vmatpush.bf16.msra.mxu0 %v10831
          %10935 = vmatmul.bf16.gmra.mxu0 %v10533
          %v10936 = vpop.f32.mrf.mxu0
          %v10937 = vadd.f32 %v10637, %v10936
          %v10938 = vpop.f32.mrf.mxu0
          %10939 = vdwg.mxu0
          %10940 = vmatpush.bf16.msra.mxu0 %v10846
          %10941 = vmatpush.bf16.msra.mxu0 %v10845
          %10942 = vmatpush.bf16.msra.mxu0 %v10844
          %10943 = vmatpush.bf16.msra.mxu0 %v10843
          %10944 = vmatpush.bf16.msra.mxu0 %v10842
          %10945 = vmatpush.bf16.msra.mxu0 %v10841
          %10946 = vmatpush.bf16.msra.mxu0 %v10840
          %10947 = vmatpush.bf16.msra.mxu0 %v10839
          %10948 = vmatmul.bf16.gmra.mxu0 %v10534
          %v10949 = vpop.f32.mrf.mxu0
          %v10950 = vadd.f32 %v10937, %v10949
          %v10951 = vpop.f32.mrf.mxu0
          %10952 = vdwg.mxu0
          %10953 = vmatpush.bf16.msra.mxu0 %v10854
          %10954 = vmatpush.bf16.msra.mxu0 %v10853
          %10955 = vmatpush.bf16.msra.mxu0 %v10852
          %10956 = vmatpush.bf16.msra.mxu0 %v10851
          %10957 = vmatpush.bf16.msra.mxu0 %v10850
          %10958 = vmatpush.bf16.msra.mxu0 %v10849
          %10959 = vmatpush.bf16.msra.mxu0 %v10848
          %10960 = vmatpush.bf16.msra.mxu0 %v10847
          %10961 = vmatmul.bf16.gmra.mxu0 %v10535
          %v10962 = vpop.f32.mrf.mxu0
          %v10963 = vadd.f32 %v10950, %v10962
          %v10964 = vpop.f32.mrf.mxu0
          %10965 = vdwg.mxu0
          %10966 = vmatpush.bf16.msra.mxu0 %v10862
          %10967 = vmatpush.bf16.msra.mxu0 %v10861
          %10968 = vmatpush.bf16.msra.mxu0 %v10860
          %10969 = vmatpush.bf16.msra.mxu0 %v10859
          %10970 = vmatpush.bf16.msra.mxu0 %v10858
          %10971 = vmatpush.bf16.msra.mxu0 %v10857
          %10972 = vmatpush.bf16.msra.mxu0 %v10856
          %10973 = vmatpush.bf16.msra.mxu0 %v10855
          %10974 = vmatmul.bf16.gmra.mxu0 %v10536
          %v10975 = vpop.f32.mrf.mxu0
          %v10976 = vadd.f32 %v10963, %v10975
          %v10977 = vpop.f32.mrf.mxu0
          %10978 = vdwg.mxu0
          %10979 = vmatpush.bf16.msra.mxu0 %v10870
          %10980 = vmatpush.bf16.msra.mxu0 %v10869
          %10981 = vmatpush.bf16.msra.mxu0 %v10868
          %10982 = vmatpush.bf16.msra.mxu0 %v10867
          %10983 = vmatpush.bf16.msra.mxu0 %v10866
          %10984 = vmatpush.bf16.msra.mxu0 %v10865
          %10985 = vmatpush.bf16.msra.mxu0 %v10864
          %10986 = vmatpush.bf16.msra.mxu0 %v10863
          %10987 = vmatmul.bf16.gmra.mxu0 %v10537
          %v10988 = vpop.f32.mrf.mxu0
          %v10989 = vadd.f32 %v10976, %v10988
          %v10990 = vpop.f32.mrf.mxu0
          %10991 = vdwg.mxu0
          %10992 = vmatpush.bf16.msra.mxu0 %v10878
          %10993 = vmatpush.bf16.msra.mxu0 %v10877
          %10994 = vmatpush.bf16.msra.mxu0 %v10876
          %10995 = vmatpush.bf16.msra.mxu0 %v10875
          %10996 = vmatpush.bf16.msra.mxu0 %v10874
          %10997 = vmatpush.bf16.msra.mxu0 %v10873
          %10998 = vmatpush.bf16.msra.mxu0 %v10872
          %10999 = vmatpush.bf16.msra.mxu0 %v10871
          %11000 = vmatmul.bf16.gmra.mxu0 %v10538
          %v11001 = vpop.f32.mrf.mxu0
          %v11002 = vadd.f32 %v10989, %v11001
          %v11003 = vpop.f32.mrf.mxu0
          %11004 = vdwg.mxu0
          %11005 = vst [vmem:[%s595] sm:$0x3] %v11002
        $region88: #{tpu_custom_call.1} parent=51 // pred_fallthru
          _
        %s11006 = sand.u32 %s268, 1
        %s11007 = scalar_lea.sflag [#allocation6], %s11006
        %s11008 = sand.u32 %s268, 1
        %s11009 = smul.addr %s11008, 2
        %s11010 = scalar_lea.vmem [#allocation16], %s11009
        // Predicated region
        $region89: #{tpu_custom_call.1} parent=51 // pred_check
          %p11011 = pneg %p278
        $region90: #{tpu_custom_call.1} parent=51 // pred_check_branch
          %11013 = sbr.rel (%p11011) target = $region92
        $region91: #{tpu_custom_call.1} parent=51 // pred_region
          %11015 = vsyncadd %s11007, 0
          %s11016 = smul.addr %s38, 2
          %s11017 = scalar_lea.hbm %s8, %s11016
          %s11019 = sshll.u32 %s11010, 4
          %s11020 = int_to_ptr.vmem [resolvable:$true] %s11019
          %s11021 = sshll.u32 %s11017, 4
          %s11022 = int_to_ptr.hbm [resolvable:$true] %s11021
          %11024 = dma.vmem_to_hbm [thread:$0]  %s11020, 32, %s11022, %s11007
        $region92: #{tpu_custom_call.1} parent=51 // pred_fallthru
          _
      $region52: #{tpu_custom_call.1} parent=5 // pred_fallthru
        _
      %p11025 = scmp.le.s32.totalorder 2, %s29
      // Predicated region
      $region93: #{tpu_custom_call.1} parent=5 // pred_check
        %p11026 = pneg %p11025
      $region94: #{tpu_custom_call.1} parent=5 // pred_check_branch
        %11028 = sbr.rel (%p11026) target = $region96
      $region95: #{tpu_custom_call.1} parent=5 // pred_region
        %s11029 = ssub.s32 %s29, 2
        // Predicated region
        $region97: #{tpu_custom_call.1} parent=95 // pred_check
          %p11030 = pneg %p284
        $region98: #{tpu_custom_call.1} parent=95 // pred_check_branch
          %11032 = sbr.rel (%p11030) target = $region100
        $region99: #{tpu_custom_call.1} parent=95 // pred_region
          %s11033 = sand.u32 %s269, 1
          %s11034 = scalar_lea.sflag [#allocation6], %s11033
          %s11035 = sand.u32 %s269, 1
          %s11036 = smul.addr %s11035, 2
          %s11037 = scalar_lea.vmem [#allocation16], %s11036
          %11039 = dma.done %s11034, 32
        $region100: #{tpu_custom_call.1} parent=95 // pred_fallthru
          _
      $region96: #{tpu_custom_call.1} parent=5 // pred_fallthru
        _
    $region6: #{tpu_custom_call.1} parent=1 // loop_footer
      %s33 = sadd.s32 1, %s29
    $region7: #{tpu_custom_call.1} parent=1 // loop_footer_branch
      %28 = sbr.rel target = $region3
    $region8: #{tpu_custom_call.1} parent=1 // loop_exit
      _
    %11040 = vsyncpa [#allocation5], 1
    %s11041 = scalar_lea.sflag [#allocation5], 1
    %11042 = vsyncpa %s11041, 1
    %11043 = vsyncpa [#allocation8], 1
    %s11044 = scalar_lea.sflag [#allocation8], 1
    %11045 = vsyncpa %s11044, 1
    %11046 = vsyncpa [#allocation11], 1
    %s11047 = scalar_lea.sflag [#allocation11], 1
    %11048 = vsyncpa %s11047, 1
    %11049 = vsyncpa [#allocation14], 1
    %s11050 = scalar_lea.sflag [#allocation14], 1
    %11051 = vsyncpa %s11050, 1
    %11052 = vsyncpa [#allocation6], 1
    %s11053 = scalar_lea.sflag [#allocation6], 1
    %11054 = vsyncpa %s11053, 1

</llo_original>
